<compile_context>
chip_gen: v6e
topology: v6e:2x2x1
jax: 0.10.0
libtpu: 0.0.40
codegen_flags: <defaults>
</compile_context>

<pallas_src>
import functools

import numpy as np
import jax
import jax.numpy as jnp
from jax import lax
from jax.experimental import pallas as pl
from jax.experimental.pallas import tpu as pltpu

# ---------------- problem configuration (small, deterministic) --------------
B = 2            # batch
H, W = 16, 16    # primal (image) spatial size
HD, WD = 8, 16   # dual (sinogram) spatial size
N_PRIMAL = 2     # primal channels (code slices f[:, 1:2])
N_DUAL = 2       # dual channels   (code slices h_new[:, 0:1])
HID = 32         # hidden channels of the CNN maps
ITERATIONS = 3

MP = H * W       # 256 primal lanes per batch element
MD = HD * WD     # 128 dual lanes per batch element

# 3x3 taps, row-major over (dy, dx) in {-1,0,1}^2 (same order as a Conv2d
# kernel[ky, kx] with dy = ky-1, dx = kx-1).
_TAPS = tuple((dy, dx) for dy in (-1, 0, 1) for dx in (-1, 0, 1))


def _shifts(wc, m):
    # jnp.roll / pltpu.roll semantics: out[p] = x[(p - s) % m]; we want
    # out[p] = x[p + dy*wc + dx], hence s = -(dy*wc + dx) mod m.
    return tuple((-(dy * wc + dx)) % m for dy, dx in _TAPS)


SHIFT_D = _shifts(WD, MD)
SHIFT_P = _shifts(W, MP)


def _border_masks(hc, wc):
    """(9, hc*wc) f32 validity masks, one row per tap (host-precomputed)."""
    pos = np.arange(hc * wc)
    yy, xx = pos // wc, pos % wc
    rows = [(((yy + dy) >= 0) & ((yy + dy) < hc) &
             ((xx + dx) >= 0) & ((xx + dx) < wc)).astype(np.float32)
            for dy, dx in _TAPS]
    return jnp.asarray(np.stack(rows, axis=0))


# ------------------------------ fused kernel --------------------------------
def _fill_taps(slab_ref, row0, x, mask_ref, shifts):
    """Write the 9 rolled + border-masked copies of x (Cin, M) into the im2col
    slab: row (row0 + t*Cin + c) holds tap t of channel c."""
    cin = x.shape[0]
    for t, s in enumerate(shifts):
        if s == 0:                                    # centre tap: all-ones mask
            blk = x
        else:
            blk = mask_ref[t:t + 1, :] * pltpu.roll(x, s, axis=1)
        slab_ref[row0 + t * cin: row0 + (t + 1) * cin, :] = blk


def _lpd_kernel(g_ref, a_ref, at_ref, mask_d_ref, mask_p_ref,
                dw1_ref, db1_ref, dw2_ref, db2_ref,
                pw1_ref, pb1_ref, pw2_ref, pb2_ref,
                out_ref,
                sd1_ref, sd2_ref, sp1_ref, sp2_ref):
    # One grid step == one batch element (batches are independent in LPD).
    g = g_ref[0]                       # (1, MD)   this element's sinogram
    a = a_ref[...]                     # (MP, MD)  forward operator
    at = at_ref[...]                   # (MD, MP)  adjoint operator

    # g's 9 tap rows of the dual-conv1 slab never change -> write them once.
    _fill_taps(sd1_ref, 9 * (N_DUAL + 1), g, mask_d_ref, SHIFT_D)

    f = jnp.zeros((N_PRIMAL, MP), jnp.float32)
    h = jnp.zeros((N_DUAL, MD), jnp.float32)

    for k in range(ITERATIONS):
        # ------------------------------ dual update --------------------------
        af2 = jnp.dot(f[1:2, :], a, preferred_element_type=jnp.float32)   # (1, MD)
        _fill_taps(sd1_ref, 0, h, mask_d_ref, SHIFT_D)                    # rows 0..17
        _fill_taps(sd1_ref, 9 * N_DUAL, af2, mask_d_ref, SHIFT_D)         # rows 18..26
        u = jnp.dot(dw1_ref[k], sd1_ref[...],
                    preferred_element_type=jnp.float32)                   # (HID, MD)
        u = jnp.maximum(u + db1_ref[k], 0.0)
        _fill_taps(sd2_ref, 0, u, mask_d_ref, SHIFT_D)
        h_new = h + jnp.dot(dw2_ref[k], sd2_ref[...],
                            preferred_element_type=jnp.float32) + db2_ref[k]

        # ----------------------------- primal update -------------------------
        ath = jnp.dot(h_new[0:1, :], at,
                      preferred_element_type=jnp.float32)                 # (1, MP)
        _fill_taps(sp1_ref, 0, f, mask_p_ref, SHIFT_P)                    # rows 0..17
        _fill_taps(sp1_ref, 9 * N_PRIMAL, ath, mask_p_ref, SHIFT_P)       # rows 18..26
        v = jnp.dot(pw1_ref[k], sp1_ref[...],
                    preferred_element_type=jnp.float32)                   # (HID, MP)
        v = jnp.maximum(v + pb1_ref[k], 0.0)
        _fill_taps(sp2_ref, 0, v, mask_p_ref, SHIFT_P)
        f = f + jnp.dot(pw2_ref[k], sp2_ref[...],
                        preferred_element_type=jnp.float32) + pb2_ref[k]

        h = h_new

    out_ref[0] = f[0:1, :]                                                # (1, MP)


# ------------------------------ public wrapper -------------------------------
def lpd_forward(g_nchw, params):
    """Mirrors LPD.forward: g is NCHW (B, 1, HD, WD); returns (B, 1, H, W)."""
    assert g_nchw.shape == (B, 1, HD, WD), g_nchw.shape
    g_in = g_nchw.reshape(B, 1, MD).astype(jnp.float32)

    full2 = lambda s: pl.BlockSpec(s, lambda b: (0, 0))        # broadcast 2-D
    full3 = lambda s: pl.BlockSpec(s, lambda b: (0, 0, 0))     # broadcast 3-D

    flops = 2 * B * ITERATIONS * (
        MP * MD                             # A f2
        + HID * 9 * (N_DUAL + 2) * MD       # dual conv1
        + N_DUAL * 9 * HID * MD             # dual conv2
        + MD * MP                           # A^T h
        + HID * 9 * (N_PRIMAL + 1) * MP     # primal conv1
        + N_PRIMAL * 9 * HID * MP)          # primal conv2
    bytes_accessed = 4 * (g_in.size + B * MP
                          + sum(int(v.size) for v in params.values()))

    out_flat = pl.pallas_call(
        _lpd_kernel,
        out_shape=jax.ShapeDtypeStruct((B, 1, MP), jnp.float32),
        grid=(B,),
        in_specs=[
            pl.BlockSpec((1, 1, MD), lambda b: (b, 0, 0)),        # g (per batch)
            full2((MP, MD)),                                      # A
            full2((MD, MP)),                                      # A^T
            full2((9, MD)),                                       # dual border masks
            full2((9, MP)),                                       # primal border masks
            full3((ITERATIONS, HID, 9 * (N_DUAL + 2))),           # dual conv1 W
            full3((ITERATIONS, HID, 1)),                          # dual conv1 b
            full3((ITERATIONS, N_DUAL, 9 * HID)),                 # dual conv2 W
            full3((ITERATIONS, N_DUAL, 1)),                       # dual conv2 b
            full3((ITERATIONS, HID, 9 * (N_PRIMAL + 1))),         # primal conv1 W
            full3((ITERATIONS, HID, 1)),                          # primal conv1 b
            full3((ITERATIONS, N_PRIMAL, 9 * HID)),               # primal conv2 W
            full3((ITERATIONS, N_PRIMAL, 1)),                     # primal conv2 b
        ],
        out_specs=pl.BlockSpec((1, 1, MP), lambda b: (b, 0, 0)),
        scratch_shapes=[
            pltpu.VMEM((9 * (N_DUAL + 2), MD), jnp.float32),      # dual conv1 im2col
            pltpu.VMEM((9 * HID, MD), jnp.float32),               # dual conv2 im2col
            pltpu.VMEM((9 * (N_PRIMAL + 1), MP), jnp.float32),    # primal conv1 im2col
            pltpu.VMEM((9 * HID, MP), jnp.float32),               # primal conv2 im2col
        ],
        compiler_params=pltpu.CompilerParams(
            dimension_semantics=("parallel",)),
        cost_estimate=pl.CostEstimate(
            flops=flops, transcendentals=0, bytes_accessed=bytes_accessed),
    )(g_in, params["A"], params["AT"], params["mask_d"], params["mask_p"],
      params["dw1"], params["db1"], params["dw2"], params["db2"],
      params["pw1"], params["pb1"], params["pw2"], params["pb2"])

    return out_flat.reshape(B, 1, H, W)


# ------------------------------ parameter init --------------------------------
def init_params(key):
    keys = jax.random.split(key, 1 + 4 * ITERATIONS)

    # Dense ray-transform surrogate A : (H*W) -> (HD*WD); adjoint = A^T.
    a = jax.random.normal(keys[0], (MP, MD), jnp.float32) / MP

    def conv_w9(k, cout, cin, scale):
        return scale * jax.random.normal(k, (9, cout, cin), jnp.float32)

    def flatten(w9, groups):
        # Flatten per-tap weights (9, Cout, Cin) to (Cout, 9*Cin), column order
        # matching the im2col slab rows: group-major, then tap-major, then
        # channel-within-group (column = group_offset + t*cg + c).
        cout = w9.shape[1]
        parts, c0 = [], 0
        for cg in groups:
            sub = w9[:, :, c0:c0 + cg]                              # (9, cout, cg)
            parts.append(jnp.transpose(sub, (1, 0, 2)).reshape(cout, 9 * cg))
            c0 += cg
        return jnp.concatenate(parts, axis=1)

    raw = {n: [] for n in ("dw1", "db1", "dw2", "db2", "pw1", "pb1", "pw2", "pb2")}
    idx = 1
    for _ in range(ITERATIONS):
        kd1, kd2, kp1, kp2 = keys[idx:idx + 4]
        idx += 4
        kd1w, kd1b = jax.random.split(kd1)
        kd2w, kd2b = jax.random.split(kd2)
        kp1w, kp1b = jax.random.split(kp1)
        kp2w, kp2b = jax.random.split(kp2)

        raw["dw1"].append(conv_w9(kd1w, HID, N_DUAL + 2, 0.1))
        raw["db1"].append(0.1 * jax.random.normal(kd1b, (HID, 1), jnp.float32))
        raw["dw2"].append(conv_w9(kd2w, N_DUAL, HID, 0.05))
        raw["db2"].append(0.05 * jax.random.normal(kd2b, (N_DUAL, 1), jnp.float32))

        raw["pw1"].append(conv_w9(kp1w, HID, N_PRIMAL + 1, 0.1))
        raw["pb1"].append(0.1 * jax.random.normal(kp1b, (HID, 1), jnp.float32))
        raw["pw2"].append(conv_w9(kp2w, N_PRIMAL, HID, 0.05))
        raw["pb2"].append(0.05 * jax.random.normal(kp2b, (N_PRIMAL, 1), jnp.float32))

    raw = {n: jnp.stack(v, axis=0) for n, v in raw.items()}
    raw["A"], raw["AT"] = a, jnp.transpose(a)

    def flatten_all(w9_stack, groups):
        return jnp.stack([flatten(w9_stack[k], groups) for k in range(ITERATIONS)], 0)

    params = {
        "A": a, "AT": jnp.transpose(a),
        "mask_d": _border_masks(HD, WD), "mask_p": _border_masks(H, W),
        "dw1": flatten_all(raw["dw1"], (N_DUAL, 1, 1)), "db1": raw["db1"],
        "dw2": flatten_all(raw["dw2"], (HID,)),         "db2": raw["db2"],
        "pw1": flatten_all(raw["pw1"], (N_PRIMAL, 1)),  "pb1": raw["pb1"],
        "pw2": flatten_all(raw["pw2"], (HID,)),         "pb2": raw["pb2"],
    }
    return params, raw


# ----------------------- pure-JAX reference (validation) ----------------------
def lpd_reference(g_nchw, raw):
    hi = lax.Precision.HIGHEST

    def conv(x, w9, b):
        cout, cin = w9.shape[1], w9.shape[2]
        w = jnp.transpose(w9.reshape(3, 3, cout, cin), (2, 3, 0, 1))   # OIHW
        y = lax.conv_general_dilated(
            x, w, (1, 1), ((1, 1), (1, 1)),
            dimension_numbers=("NCHW", "OIHW", "NCHW"), precision=hi)
        return y + b.reshape(1, cout, 1, 1)

    a, at = raw["A"], raw["AT"]
    f = jnp.zeros((B, N_PRIMAL, H, W), jnp.float32)
    h = jnp.zeros((B, N_DUAL, HD, WD), jnp.float32)
    for k in range(ITERATIONS):
        f2 = f[:, 1:2].reshape(B, MP)
        af2 = jnp.dot(f2, a, precision=hi).reshape(B, 1, HD, WD)
        xd = jnp.concatenate([h, af2, g_nchw], axis=1)
        u = jax.nn.relu(conv(xd, raw["dw1"][k], raw["db1"][k]))
        h_new = h + conv(u, raw["dw2"][k], raw["db2"][k])

        h1 = h_new[:, 0:1].reshape(B, MD)
        ath = jnp.dot(h1, at, precision=hi).reshape(B, 1, H, W)
        xp = jnp.concatenate([f, ath], axis=1)
        v = jax.nn.relu(conv(xp, raw["pw1"][k], raw["pb1"][k]))
        f = f + conv(v, raw["pw2"][k], raw["pb2"][k])
        h = h_new
    return f[:, 0:1]


# ---------------------------------- main --------------------------------------
if __name__ == "__main__":
    params, raw = init_params(jax.random.PRNGKey(42))
    g = jax.random.normal(jax.random.PRNGKey(0), (B, 1, HD, WD), jnp.float32)

    run = jax.jit(functools.partial(lpd_forward, params=params))
    out = jax.block_until_ready(run(g))

    assert out.shape == (B, 1, H, W), out.shape
    assert out.dtype == jnp.float32
    assert bool(jnp.all(jnp.isfinite(out)))

    # Lock in tap ordering / roll sign / weight flattening against pure JAX.
    ref = lpd_reference(g, raw)
    err = float(jnp.max(jnp.abs(out - ref)))
    tol = 2e-2 * float(jnp.max(jnp.abs(ref))) + 1e-5
    assert err <= tol, (err, tol)

    print("KERNEL_OK")
</pallas_src>

<mosaic_0001>
module attributes {stable_mosaic.version = 11 : i64} {
  func.func @_lpd_kernel(%arg0: i32, %arg1: memref<1x1x128xf32, #tpu.memory_space<vmem>>, %arg2: memref<256x128xf32, #tpu.memory_space<vmem>>, %arg3: memref<128x256xf32, #tpu.memory_space<vmem>>, %arg4: memref<9x128xf32, #tpu.memory_space<vmem>>, %arg5: memref<9x256xf32, #tpu.memory_space<vmem>>, %arg6: memref<3x32x36xf32, #tpu.memory_space<vmem>>, %arg7: memref<3x32x1xf32, #tpu.memory_space<vmem>>, %arg8: memref<3x2x288xf32, #tpu.memory_space<vmem>>, %arg9: memref<3x2x1xf32, #tpu.memory_space<vmem>>, %arg10: memref<3x32x27xf32, #tpu.memory_space<vmem>>, %arg11: memref<3x32x1xf32, #tpu.memory_space<vmem>>, %arg12: memref<3x2x288xf32, #tpu.memory_space<vmem>>, %arg13: memref<3x2x1xf32, #tpu.memory_space<vmem>>, %arg14: memref<1x1x256xf32, #tpu.memory_space<vmem>>, %arg15: memref<36x128xf32, #tpu.memory_space<vmem>>, %arg16: memref<288x128xf32, #tpu.memory_space<vmem>>, %arg17: memref<27x256xf32, #tpu.memory_space<vmem>>, %arg18: memref<288x256xf32, #tpu.memory_space<vmem>>) attributes {dimension_semantics = [#tpu.dimension_semantics<parallel>], iteration_bounds = array<i64: 2>, scalar_prefetch = 0 : i64, scratch_operands = 4 : i64, tpu.core_type = #tpu.core_type<tc>, window_params = [{transform_indices = @transform_0, window_bounds = array<i64: 1, 1, 128>}, {pipeline_mode = #tpu.pipeline_mode<synchronous>, transform_indices = @transform_1, window_bounds = array<i64: 256, 128>}, {pipeline_mode = #tpu.pipeline_mode<synchronous>, transform_indices = @transform_2, window_bounds = array<i64: 128, 256>}, {pipeline_mode = #tpu.pipeline_mode<synchronous>, transform_indices = @transform_3, window_bounds = array<i64: 9, 128>}, {pipeline_mode = #tpu.pipeline_mode<synchronous>, transform_indices = @transform_4, window_bounds = array<i64: 9, 256>}, {pipeline_mode = #tpu.pipeline_mode<synchronous>, transform_indices = @transform_5, window_bounds = array<i64: 3, 32, 36>}, {pipeline_mode = #tpu.pipeline_mode<synchronous>, transform_indices = @transform_6, window_bounds = array<i64: 3, 32, 1>}, {pipeline_mode = #tpu.pipeline_mode<synchronous>, transform_indices = @transform_7, window_bounds = array<i64: 3, 2, 288>}, {pipeline_mode = #tpu.pipeline_mode<synchronous>, transform_indices = @transform_8, window_bounds = array<i64: 3, 2, 1>}, {pipeline_mode = #tpu.pipeline_mode<synchronous>, transform_indices = @transform_9, window_bounds = array<i64: 3, 32, 27>}, {pipeline_mode = #tpu.pipeline_mode<synchronous>, transform_indices = @transform_10, window_bounds = array<i64: 3, 32, 1>}, {pipeline_mode = #tpu.pipeline_mode<synchronous>, transform_indices = @transform_11, window_bounds = array<i64: 3, 2, 288>}, {pipeline_mode = #tpu.pipeline_mode<synchronous>, transform_indices = @transform_12, window_bounds = array<i64: 3, 2, 1>}, {transform_indices = @transform_13, window_bounds = array<i64: 1, 1, 256>}]} {
    %c0 = arith.constant 0 : index
    %c0_0 = arith.constant 0 : index
    %c0_1 = arith.constant 0 : index
    %0 = vector.load %arg1[%c0, %c0_0, %c0_1] : memref<1x1x128xf32, #tpu.memory_space<vmem>>, vector<1x1x128xf32>
    %1 = vector.shape_cast %0 : vector<1x1x128xf32> to vector<1x128xf32>
    %c0_2 = arith.constant 0 : index
    %c0_3 = arith.constant 0 : index
    %2 = vector.load %arg2[%c0_2, %c0_3] : memref<256x128xf32, #tpu.memory_space<vmem>>, vector<256x128xf32>
    %c0_4 = arith.constant 0 : index
    %c0_5 = arith.constant 0 : index
    %3 = vector.load %arg3[%c0_4, %c0_5] : memref<128x256xf32, #tpu.memory_space<vmem>>, vector<128x256xf32>
    %c0_6 = arith.constant 0 : index
    %c0_7 = arith.constant 0 : index
    %4 = vector.load %arg4[%c0_6, %c0_7] : memref<9x128xf32, #tpu.memory_space<vmem>>, vector<1x128xf32>
    %c17_i32 = arith.constant 17 : i32
    %5 = tpu.dynamic_rotate %1 by %c17_i32 dim 1 : vector<1x128xf32>, i32 -> vector<1x128xf32>
    %6 = arith.mulf %4, %5 : vector<1x128xf32>
    %c27 = arith.constant 27 : index
    %c0_8 = arith.constant 0 : index
    %7 = vector.load %arg15[%c27, %c0_8] : memref<36x128xf32, #tpu.memory_space<vmem>>, vector<1x128xf32>
    tpu.vector_store %arg15[%c27, %c0_8], %6 {strides = array<i32>} : memref<36x128xf32, #tpu.memory_space<vmem>>, vector<1x128xf32>,
    %c1 = arith.constant 1 : index
    %c0_9 = arith.constant 0 : index
    %8 = vector.load %arg4[%c1, %c0_9] : memref<9x128xf32, #tpu.memory_space<vmem>>, vector<1x128xf32>
    %c16_i32 = arith.constant 16 : i32
    %9 = tpu.dynamic_rotate %1 by %c16_i32 dim 1 : vector<1x128xf32>, i32 -> vector<1x128xf32>
    %10 = arith.mulf %8, %9 : vector<1x128xf32>
    %c28 = arith.constant 28 : index
    %c0_10 = arith.constant 0 : index
    %11 = vector.load %arg15[%c28, %c0_10] : memref<36x128xf32, #tpu.memory_space<vmem>>, vector<1x128xf32>
    tpu.vector_store %arg15[%c28, %c0_10], %10 {strides = array<i32>} : memref<36x128xf32, #tpu.memory_space<vmem>>, vector<1x128xf32>,
    %c2 = arith.constant 2 : index
    %c0_11 = arith.constant 0 : index
    %12 = vector.load %arg4[%c2, %c0_11] : memref<9x128xf32, #tpu.memory_space<vmem>>, vector<1x128xf32>
    %c15_i32 = arith.constant 15 : i32
    %13 = tpu.dynamic_rotate %1 by %c15_i32 dim 1 : vector<1x128xf32>, i32 -> vector<1x128xf32>
    %14 = arith.mulf %12, %13 : vector<1x128xf32>
    %c29 = arith.constant 29 : index
    %c0_12 = arith.constant 0 : index
    %15 = vector.load %arg15[%c29, %c0_12] : memref<36x128xf32, #tpu.memory_space<vmem>>, vector<1x128xf32>
    tpu.vector_store %arg15[%c29, %c0_12], %14 {strides = array<i32>} : memref<36x128xf32, #tpu.memory_space<vmem>>, vector<1x128xf32>,
    %c3 = arith.constant 3 : index
    %c0_13 = arith.constant 0 : index
    %16 = vector.load %arg4[%c3, %c0_13] : memref<9x128xf32, #tpu.memory_space<vmem>>, vector<1x128xf32>
    %c1_i32 = arith.constant 1 : i32
    %17 = tpu.dynamic_rotate %1 by %c1_i32 dim 1 : vector<1x128xf32>, i32 -> vector<1x128xf32>
    %18 = arith.mulf %16, %17 : vector<1x128xf32>
    %c30 = arith.constant 30 : index
    %c0_14 = arith.constant 0 : index
    %19 = vector.load %arg15[%c30, %c0_14] : memref<36x128xf32, #tpu.memory_space<vmem>>, vector<1x128xf32>
    tpu.vector_store %arg15[%c30, %c0_14], %18 {strides = array<i32>} : memref<36x128xf32, #tpu.memory_space<vmem>>, vector<1x128xf32>,
    %c31 = arith.constant 31 : index
    %c0_15 = arith.constant 0 : index
    %20 = vector.load %arg15[%c31, %c0_15] : memref<36x128xf32, #tpu.memory_space<vmem>>, vector<1x128xf32>
    tpu.vector_store %arg15[%c31, %c0_15], %1 {strides = array<i32>} : memref<36x128xf32, #tpu.memory_space<vmem>>, vector<1x128xf32>,
    %c5 = arith.constant 5 : index
    %c0_16 = arith.constant 0 : index
    %21 = vector.load %arg4[%c5, %c0_16] : memref<9x128xf32, #tpu.memory_space<vmem>>, vector<1x128xf32>
    %c127_i32 = arith.constant 127 : i32
    %22 = tpu.dynamic_rotate %1 by %c127_i32 dim 1 : vector<1x128xf32>, i32 -> vector<1x128xf32>
    %23 = arith.mulf %21, %22 : vector<1x128xf32>
    %c32 = arith.constant 32 : index
    %c0_17 = arith.constant 0 : index
    %24 = vector.load %arg15[%c32, %c0_17] : memref<36x128xf32, #tpu.memory_space<vmem>>, vector<1x128xf32>
    tpu.vector_store %arg15[%c32, %c0_17], %23 {strides = array<i32>} : memref<36x128xf32, #tpu.memory_space<vmem>>, vector<1x128xf32>,
    %c6 = arith.constant 6 : index
    %c0_18 = arith.constant 0 : index
    %25 = vector.load %arg4[%c6, %c0_18] : memref<9x128xf32, #tpu.memory_space<vmem>>, vector<1x128xf32>
    %c113_i32 = arith.constant 113 : i32
    %26 = tpu.dynamic_rotate %1 by %c113_i32 dim 1 : vector<1x128xf32>, i32 -> vector<1x128xf32>
    %27 = arith.mulf %25, %26 : vector<1x128xf32>
    %c33 = arith.constant 33 : index
    %c0_19 = arith.constant 0 : index
    %28 = vector.load %arg15[%c33, %c0_19] : memref<36x128xf32, #tpu.memory_space<vmem>>, vector<1x128xf32>
    tpu.vector_store %arg15[%c33, %c0_19], %27 {strides = array<i32>} : memref<36x128xf32, #tpu.memory_space<vmem>>, vector<1x128xf32>,
    %c7 = arith.constant 7 : index
    %c0_20 = arith.constant 0 : index
    %29 = vector.load %arg4[%c7, %c0_20] : memref<9x128xf32, #tpu.memory_space<vmem>>, vector<1x128xf32>
    %c112_i32 = arith.constant 112 : i32
    %30 = tpu.dynamic_rotate %1 by %c112_i32 dim 1 : vector<1x128xf32>, i32 -> vector<1x128xf32>
    %31 = arith.mulf %29, %30 : vector<1x128xf32>
    %c34 = arith.constant 34 : index
    %c0_21 = arith.constant 0 : index
    %32 = vector.load %arg15[%c34, %c0_21] : memref<36x128xf32, #tpu.memory_space<vmem>>, vector<1x128xf32>
    tpu.vector_store %arg15[%c34, %c0_21], %31 {strides = array<i32>} : memref<36x128xf32, #tpu.memory_space<vmem>>, vector<1x128xf32>,
    %c8 = arith.constant 8 : index
    %c0_22 = arith.constant 0 : index
    %33 = vector.load %arg4[%c8, %c0_22] : memref<9x128xf32, #tpu.memory_space<vmem>>, vector<1x128xf32>
    %c111_i32 = arith.constant 111 : i32
    %34 = tpu.dynamic_rotate %1 by %c111_i32 dim 1 : vector<1x128xf32>, i32 -> vector<1x128xf32>
    %35 = arith.mulf %33, %34 : vector<1x128xf32>
    %c35 = arith.constant 35 : index
    %c0_23 = arith.constant 0 : index
    %36 = vector.load %arg15[%c35, %c0_23] : memref<36x128xf32, #tpu.memory_space<vmem>>, vector<1x128xf32>
    tpu.vector_store %arg15[%c35, %c0_23], %35 {strides = array<i32>} : memref<36x128xf32, #tpu.memory_space<vmem>>, vector<1x128xf32>,
    %cst = arith.constant 0.000000e+00 : f32
    %37 = vector.broadcast %cst : f32 to vector<2x256xf32>
    %cst_24 = arith.constant 0.000000e+00 : f32
    %38 = vector.broadcast %cst_24 : f32 to vector<2x128xf32>
    %39 = vector.extract_strided_slice %37 {offsets = [1, 0], sizes = [1, 256], strides = [1, 1]} : vector<2x256xf32> to vector<1x256xf32>
    %cst_25 = arith.constant dense<0.000000e+00> : vector<1x128xf32>
    %40 = tpu.matmul %39, %2, %cst_25 {dimension_numbers = #tpu.dot_dimension_numbers<[1], [0], [0], [1], [0, 0, 1, 1], [], []>} : vector<1x256xf32>, vector<256x128xf32>, vector<1x128xf32> -> vector<1x128xf32>
    %c0_26 = arith.constant 0 : index
    %c0_27 = arith.constant 0 : index
    %41 = vector.load %arg4[%c0_26, %c0_27] : memref<9x128xf32, #tpu.memory_space<vmem>>, vector<1x128xf32>
    %c17_i32_28 = arith.constant 17 : i32
    %42 = tpu.dynamic_rotate %38 by %c17_i32_28 dim 1 : vector<2x128xf32>, i32 -> vector<2x128xf32>
    %43 = vector.broadcast %41 : vector<1x128xf32> to vector<2x128xf32>
    %44 = arith.mulf %43, %42 : vector<2x128xf32>
    %c0_29 = arith.constant 0 : index
    %c0_30 = arith.constant 0 : index
    %45 = vector.load %arg15[%c0_29, %c0_30] : memref<36x128xf32, #tpu.memory_space<vmem>>, vector<2x128xf32>
    tpu.vector_store %arg15[%c0_29, %c0_30], %44 {strides = array<i32>} : memref<36x128xf32, #tpu.memory_space<vmem>>, vector<2x128xf32>,
    %c1_31 = arith.constant 1 : index
    %c0_32 = arith.constant 0 : index
    %46 = vector.load %arg4[%c1_31, %c0_32] : memref<9x128xf32, #tpu.memory_space<vmem>>, vector<1x128xf32>
    %c16_i32_33 = arith.constant 16 : i32
    %47 = tpu.dynamic_rotate %38 by %c16_i32_33 dim 1 : vector<2x128xf32>, i32 -> vector<2x128xf32>
    %48 = vector.broadcast %46 : vector<1x128xf32> to vector<2x128xf32>
    %49 = arith.mulf %48, %47 : vector<2x128xf32>
    %c2_34 = arith.constant 2 : index
    %c0_35 = arith.constant 0 : index
    %50 = vector.load %arg15[%c2_34, %c0_35] : memref<36x128xf32, #tpu.memory_space<vmem>>, vector<2x128xf32>
    tpu.vector_store %arg15[%c2_34, %c0_35], %49 {strides = array<i32>} : memref<36x128xf32, #tpu.memory_space<vmem>>, vector<2x128xf32>,
    %c2_36 = arith.constant 2 : index
    %c0_37 = arith.constant 0 : index
    %51 = vector.load %arg4[%c2_36, %c0_37] : memref<9x128xf32, #tpu.memory_space<vmem>>, vector<1x128xf32>
    %c15_i32_38 = arith.constant 15 : i32
    %52 = tpu.dynamic_rotate %38 by %c15_i32_38 dim 1 : vector<2x128xf32>, i32 -> vector<2x128xf32>
    %53 = vector.broadcast %51 : vector<1x128xf32> to vector<2x128xf32>
    %54 = arith.mulf %53, %52 : vector<2x128xf32>
    %c4 = arith.constant 4 : index
    %c0_39 = arith.constant 0 : index
    %55 = vector.load %arg15[%c4, %c0_39] : memref<36x128xf32, #tpu.memory_space<vmem>>, vector<2x128xf32>
    tpu.vector_store %arg15[%c4, %c0_39], %54 {strides = array<i32>} : memref<36x128xf32, #tpu.memory_space<vmem>>, vector<2x128xf32>,
    %c3_40 = arith.constant 3 : index
    %c0_41 = arith.constant 0 : index
    %56 = vector.load %arg4[%c3_40, %c0_41] : memref<9x128xf32, #tpu.memory_space<vmem>>, vector<1x128xf32>
    %c1_i32_42 = arith.constant 1 : i32
    %57 = tpu.dynamic_rotate %38 by %c1_i32_42 dim 1 : vector<2x128xf32>, i32 -> vector<2x128xf32>
    %58 = vector.broadcast %56 : vector<1x128xf32> to vector<2x128xf32>
    %59 = arith.mulf %58, %57 : vector<2x128xf32>
    %c6_43 = arith.constant 6 : index
    %c0_44 = arith.constant 0 : index
    %60 = vector.load %arg15[%c6_43, %c0_44] : memref<36x128xf32, #tpu.memory_space<vmem>>, vector<2x128xf32>
    tpu.vector_store %arg15[%c6_43, %c0_44], %59 {strides = array<i32>} : memref<36x128xf32, #tpu.memory_space<vmem>>, vector<2x128xf32>,
    %c8_45 = arith.constant 8 : index
    %c0_46 = arith.constant 0 : index
    %61 = vector.load %arg15[%c8_45, %c0_46] : memref<36x128xf32, #tpu.memory_space<vmem>>, vector<2x128xf32>
    tpu.vector_store %arg15[%c8_45, %c0_46], %38 {strides = array<i32>} : memref<36x128xf32, #tpu.memory_space<vmem>>, vector<2x128xf32>,
    %c5_47 = arith.constant 5 : index
    %c0_48 = arith.constant 0 : index
    %62 = vector.load %arg4[%c5_47, %c0_48] : memref<9x128xf32, #tpu.memory_space<vmem>>, vector<1x128xf32>
    %c127_i32_49 = arith.constant 127 : i32
    %63 = tpu.dynamic_rotate %38 by %c127_i32_49 dim 1 : vector<2x128xf32>, i32 -> vector<2x128xf32>
    %64 = vector.broadcast %62 : vector<1x128xf32> to vector<2x128xf32>
    %65 = arith.mulf %64, %63 : vector<2x128xf32>
    %c10 = arith.constant 10 : index
    %c0_50 = arith.constant 0 : index
    %66 = vector.load %arg15[%c10, %c0_50] : memref<36x128xf32, #tpu.memory_space<vmem>>, vector<2x128xf32>
    tpu.vector_store %arg15[%c10, %c0_50], %65 {strides = array<i32>} : memref<36x128xf32, #tpu.memory_space<vmem>>, vector<2x128xf32>,
    %c6_51 = arith.constant 6 : index
    %c0_52 = arith.constant 0 : index
    %67 = vector.load %arg4[%c6_51, %c0_52] : memref<9x128xf32, #tpu.memory_space<vmem>>, vector<1x128xf32>
    %c113_i32_53 = arith.constant 113 : i32
    %68 = tpu.dynamic_rotate %38 by %c113_i32_53 dim 1 : vector<2x128xf32>, i32 -> vector<2x128xf32>
    %69 = vector.broadcast %67 : vector<1x128xf32> to vector<2x128xf32>
    %70 = arith.mulf %69, %68 : vector<2x128xf32>
    %c12 = arith.constant 12 : index
    %c0_54 = arith.constant 0 : index
    %71 = vector.load %arg15[%c12, %c0_54] : memref<36x128xf32, #tpu.memory_space<vmem>>, vector<2x128xf32>
    tpu.vector_store %arg15[%c12, %c0_54], %70 {strides = array<i32>} : memref<36x128xf32, #tpu.memory_space<vmem>>, vector<2x128xf32>,
    %c7_55 = arith.constant 7 : index
    %c0_56 = arith.constant 0 : index
    %72 = vector.load %arg4[%c7_55, %c0_56] : memref<9x128xf32, #tpu.memory_space<vmem>>, vector<1x128xf32>
    %c112_i32_57 = arith.constant 112 : i32
    %73 = tpu.dynamic_rotate %38 by %c112_i32_57 dim 1 : vector<2x128xf32>, i32 -> vector<2x128xf32>
    %74 = vector.broadcast %72 : vector<1x128xf32> to vector<2x128xf32>
    %75 = arith.mulf %74, %73 : vector<2x128xf32>
    %c14 = arith.constant 14 : index
    %c0_58 = arith.constant 0 : index
    %76 = vector.load %arg15[%c14, %c0_58] : memref<36x128xf32, #tpu.memory_space<vmem>>, vector<2x128xf32>
    tpu.vector_store %arg15[%c14, %c0_58], %75 {strides = array<i32>} : memref<36x128xf32, #tpu.memory_space<vmem>>, vector<2x128xf32>,
    %c8_59 = arith.constant 8 : index
    %c0_60 = arith.constant 0 : index
    %77 = vector.load %arg4[%c8_59, %c0_60] : memref<9x128xf32, #tpu.memory_space<vmem>>, vector<1x128xf32>
    %c111_i32_61 = arith.constant 111 : i32
    %78 = tpu.dynamic_rotate %38 by %c111_i32_61 dim 1 : vector<2x128xf32>, i32 -> vector<2x128xf32>
    %79 = vector.broadcast %77 : vector<1x128xf32> to vector<2x128xf32>
    %80 = arith.mulf %79, %78 : vector<2x128xf32>
    %c16 = arith.constant 16 : index
    %c0_62 = arith.constant 0 : index
    %81 = vector.load %arg15[%c16, %c0_62] : memref<36x128xf32, #tpu.memory_space<vmem>>, vector<2x128xf32>
    tpu.vector_store %arg15[%c16, %c0_62], %80 {strides = array<i32>} : memref<36x128xf32, #tpu.memory_space<vmem>>, vector<2x128xf32>,
    %c0_63 = arith.constant 0 : index
    %c0_64 = arith.constant 0 : index
    %82 = vector.load %arg4[%c0_63, %c0_64] : memref<9x128xf32, #tpu.memory_space<vmem>>, vector<1x128xf32>
    %c17_i32_65 = arith.constant 17 : i32
    %83 = tpu.dynamic_rotate %40 by %c17_i32_65 dim 1 : vector<1x128xf32>, i32 -> vector<1x128xf32>
    %84 = arith.mulf %82, %83 : vector<1x128xf32>
    %c18 = arith.constant 18 : index
    %c0_66 = arith.constant 0 : index
    %85 = vector.load %arg15[%c18, %c0_66] : memref<36x128xf32, #tpu.memory_space<vmem>>, vector<1x128xf32>
    tpu.vector_store %arg15[%c18, %c0_66], %84 {strides = array<i32>} : memref<36x128xf32, #tpu.memory_space<vmem>>, vector<1x128xf32>,
    %c1_67 = arith.constant 1 : index
    %c0_68 = arith.constant 0 : index
    %86 = vector.load %arg4[%c1_67, %c0_68] : memref<9x128xf32, #tpu.memory_space<vmem>>, vector<1x128xf32>
    %c16_i32_69 = arith.constant 16 : i32
    %87 = tpu.dynamic_rotate %40 by %c16_i32_69 dim 1 : vector<1x128xf32>, i32 -> vector<1x128xf32>
    %88 = arith.mulf %86, %87 : vector<1x128xf32>
    %c19 = arith.constant 19 : index
    %c0_70 = arith.constant 0 : index
    %89 = vector.load %arg15[%c19, %c0_70] : memref<36x128xf32, #tpu.memory_space<vmem>>, vector<1x128xf32>
    tpu.vector_store %arg15[%c19, %c0_70], %88 {strides = array<i32>} : memref<36x128xf32, #tpu.memory_space<vmem>>, vector<1x128xf32>,
    %c2_71 = arith.constant 2 : index
    %c0_72 = arith.constant 0 : index
    %90 = vector.load %arg4[%c2_71, %c0_72] : memref<9x128xf32, #tpu.memory_space<vmem>>, vector<1x128xf32>
    %c15_i32_73 = arith.constant 15 : i32
    %91 = tpu.dynamic_rotate %40 by %c15_i32_73 dim 1 : vector<1x128xf32>, i32 -> vector<1x128xf32>
    %92 = arith.mulf %90, %91 : vector<1x128xf32>
    %c20 = arith.constant 20 : index
    %c0_74 = arith.constant 0 : index
    %93 = vector.load %arg15[%c20, %c0_74] : memref<36x128xf32, #tpu.memory_space<vmem>>, vector<1x128xf32>
    tpu.vector_store %arg15[%c20, %c0_74], %92 {strides = array<i32>} : memref<36x128xf32, #tpu.memory_space<vmem>>, vector<1x128xf32>,
    %c3_75 = arith.constant 3 : index
    %c0_76 = arith.constant 0 : index
    %94 = vector.load %arg4[%c3_75, %c0_76] : memref<9x128xf32, #tpu.memory_space<vmem>>, vector<1x128xf32>
    %c1_i32_77 = arith.constant 1 : i32
    %95 = tpu.dynamic_rotate %40 by %c1_i32_77 dim 1 : vector<1x128xf32>, i32 -> vector<1x128xf32>
    %96 = arith.mulf %94, %95 : vector<1x128xf32>
    %c21 = arith.constant 21 : index
    %c0_78 = arith.constant 0 : index
    %97 = vector.load %arg15[%c21, %c0_78] : memref<36x128xf32, #tpu.memory_space<vmem>>, vector<1x128xf32>
    tpu.vector_store %arg15[%c21, %c0_78], %96 {strides = array<i32>} : memref<36x128xf32, #tpu.memory_space<vmem>>, vector<1x128xf32>,
    %c22 = arith.constant 22 : index
    %c0_79 = arith.constant 0 : index
    %98 = vector.load %arg15[%c22, %c0_79] : memref<36x128xf32, #tpu.memory_space<vmem>>, vector<1x128xf32>
    tpu.vector_store %arg15[%c22, %c0_79], %40 {strides = array<i32>} : memref<36x128xf32, #tpu.memory_space<vmem>>, vector<1x128xf32>,
    %c5_80 = arith.constant 5 : index
    %c0_81 = arith.constant 0 : index
    %99 = vector.load %arg4[%c5_80, %c0_81] : memref<9x128xf32, #tpu.memory_space<vmem>>, vector<1x128xf32>
    %c127_i32_82 = arith.constant 127 : i32
    %100 = tpu.dynamic_rotate %40 by %c127_i32_82 dim 1 : vector<1x128xf32>, i32 -> vector<1x128xf32>
    %101 = arith.mulf %99, %100 : vector<1x128xf32>
    %c23 = arith.constant 23 : index
    %c0_83 = arith.constant 0 : index
    %102 = vector.load %arg15[%c23, %c0_83] : memref<36x128xf32, #tpu.memory_space<vmem>>, vector<1x128xf32>
    tpu.vector_store %arg15[%c23, %c0_83], %101 {strides = array<i32>} : memref<36x128xf32, #tpu.memory_space<vmem>>, vector<1x128xf32>,
    %c6_84 = arith.constant 6 : index
    %c0_85 = arith.constant 0 : index
    %103 = vector.load %arg4[%c6_84, %c0_85] : memref<9x128xf32, #tpu.memory_space<vmem>>, vector<1x128xf32>
    %c113_i32_86 = arith.constant 113 : i32
    %104 = tpu.dynamic_rotate %40 by %c113_i32_86 dim 1 : vector<1x128xf32>, i32 -> vector<1x128xf32>
    %105 = arith.mulf %103, %104 : vector<1x128xf32>
    %c24 = arith.constant 24 : index
    %c0_87 = arith.constant 0 : index
    %106 = vector.load %arg15[%c24, %c0_87] : memref<36x128xf32, #tpu.memory_space<vmem>>, vector<1x128xf32>
    tpu.vector_store %arg15[%c24, %c0_87], %105 {strides = array<i32>} : memref<36x128xf32, #tpu.memory_space<vmem>>, vector<1x128xf32>,
    %c7_88 = arith.constant 7 : index
    %c0_89 = arith.constant 0 : index
    %107 = vector.load %arg4[%c7_88, %c0_89] : memref<9x128xf32, #tpu.memory_space<vmem>>, vector<1x128xf32>
    %c112_i32_90 = arith.constant 112 : i32
    %108 = tpu.dynamic_rotate %40 by %c112_i32_90 dim 1 : vector<1x128xf32>, i32 -> vector<1x128xf32>
    %109 = arith.mulf %107, %108 : vector<1x128xf32>
    %c25 = arith.constant 25 : index
    %c0_91 = arith.constant 0 : index
    %110 = vector.load %arg15[%c25, %c0_91] : memref<36x128xf32, #tpu.memory_space<vmem>>, vector<1x128xf32>
    tpu.vector_store %arg15[%c25, %c0_91], %109 {strides = array<i32>} : memref<36x128xf32, #tpu.memory_space<vmem>>, vector<1x128xf32>,
    %c8_92 = arith.constant 8 : index
    %c0_93 = arith.constant 0 : index
    %111 = vector.load %arg4[%c8_92, %c0_93] : memref<9x128xf32, #tpu.memory_space<vmem>>, vector<1x128xf32>
    %c111_i32_94 = arith.constant 111 : i32
    %112 = tpu.dynamic_rotate %40 by %c111_i32_94 dim 1 : vector<1x128xf32>, i32 -> vector<1x128xf32>
    %113 = arith.mulf %111, %112 : vector<1x128xf32>
    %c26 = arith.constant 26 : index
    %c0_95 = arith.constant 0 : index
    %114 = vector.load %arg15[%c26, %c0_95] : memref<36x128xf32, #tpu.memory_space<vmem>>, vector<1x128xf32>
    tpu.vector_store %arg15[%c26, %c0_95], %113 {strides = array<i32>} : memref<36x128xf32, #tpu.memory_space<vmem>>, vector<1x128xf32>,
    %c0_96 = arith.constant 0 : index
    %c0_97 = arith.constant 0 : index
    %c0_98 = arith.constant 0 : index
    %115 = vector.load %arg6[%c0_96, %c0_97, %c0_98] : memref<3x32x36xf32, #tpu.memory_space<vmem>>, vector<1x32x36xf32>
    %116 = vector.shape_cast %115 : vector<1x32x36xf32> to vector<32x36xf32>
    %c0_99 = arith.constant 0 : index
    %c0_100 = arith.constant 0 : index
    %117 = vector.load %arg15[%c0_99, %c0_100] : memref<36x128xf32, #tpu.memory_space<vmem>>, vector<36x128xf32>
    %cst_101 = arith.constant dense<0.000000e+00> : vector<32x128xf32>
    %118 = tpu.matmul %116, %117, %cst_101 {dimension_numbers = #tpu.dot_dimension_numbers<[1], [0], [0], [1], [0, 0, 1, 1], [], []>} : vector<32x36xf32>, vector<36x128xf32>, vector<32x128xf32> -> vector<32x128xf32>
    %c0_102 = arith.constant 0 : index
    %c0_103 = arith.constant 0 : index
    %c0_104 = arith.constant 0 : index
    %119 = vector.load %arg7[%c0_102, %c0_103, %c0_104] : memref<3x32x1xf32, #tpu.memory_space<vmem>>, vector<1x32x1xf32>
    %120 = vector.shape_cast %119 : vector<1x32x1xf32> to vector<32x1xf32>
    %121 = vector.broadcast %120 : vector<32x1xf32> to vector<32x128xf32>
    %122 = arith.addf %118, %121 : vector<32x128xf32>
    %cst_105 = arith.constant 0.000000e+00 : f32
    %123 = vector.broadcast %cst_105 : f32 to vector<32x128xf32>
    %124 = arith.maximumf %122, %123 : vector<32x128xf32>
    %c0_106 = arith.constant 0 : index
    %c0_107 = arith.constant 0 : index
    %125 = vector.load %arg4[%c0_106, %c0_107] : memref<9x128xf32, #tpu.memory_space<vmem>>, vector<1x128xf32>
    %c17_i32_108 = arith.constant 17 : i32
    %126 = tpu.dynamic_rotate %124 by %c17_i32_108 dim 1 : vector<32x128xf32>, i32 -> vector<32x128xf32>
    %127 = vector.broadcast %125 : vector<1x128xf32> to vector<32x128xf32>
    %128 = arith.mulf %127, %126 : vector<32x128xf32>
    %c0_109 = arith.constant 0 : index
    %c0_110 = arith.constant 0 : index
    %129 = vector.load %arg16[%c0_109, %c0_110] : memref<288x128xf32, #tpu.memory_space<vmem>>, vector<32x128xf32>
    tpu.vector_store %arg16[%c0_109, %c0_110], %128 {strides = array<i32>} : memref<288x128xf32, #tpu.memory_space<vmem>>, vector<32x128xf32>,
    %c1_111 = arith.constant 1 : index
    %c0_112 = arith.constant 0 : index
    %130 = vector.load %arg4[%c1_111, %c0_112] : memref<9x128xf32, #tpu.memory_space<vmem>>, vector<1x128xf32>
    %c16_i32_113 = arith.constant 16 : i32
    %131 = tpu.dynamic_rotate %124 by %c16_i32_113 dim 1 : vector<32x128xf32>, i32 -> vector<32x128xf32>
    %132 = vector.broadcast %130 : vector<1x128xf32> to vector<32x128xf32>
    %133 = arith.mulf %132, %131 : vector<32x128xf32>
    %c32_114 = arith.constant 32 : index
    %c0_115 = arith.constant 0 : index
    %134 = vector.load %arg16[%c32_114, %c0_115] : memref<288x128xf32, #tpu.memory_space<vmem>>, vector<32x128xf32>
    tpu.vector_store %arg16[%c32_114, %c0_115], %133 {strides = array<i32>} : memref<288x128xf32, #tpu.memory_space<vmem>>, vector<32x128xf32>,
    %c2_116 = arith.constant 2 : index
    %c0_117 = arith.constant 0 : index
    %135 = vector.load %arg4[%c2_116, %c0_117] : memref<9x128xf32, #tpu.memory_space<vmem>>, vector<1x128xf32>
    %c15_i32_118 = arith.constant 15 : i32
    %136 = tpu.dynamic_rotate %124 by %c15_i32_118 dim 1 : vector<32x128xf32>, i32 -> vector<32x128xf32>
    %137 = vector.broadcast %135 : vector<1x128xf32> to vector<32x128xf32>
    %138 = arith.mulf %137, %136 : vector<32x128xf32>
    %c64 = arith.constant 64 : index
    %c0_119 = arith.constant 0 : index
    %139 = vector.load %arg16[%c64, %c0_119] : memref<288x128xf32, #tpu.memory_space<vmem>>, vector<32x128xf32>
    tpu.vector_store %arg16[%c64, %c0_119], %138 {strides = array<i32>} : memref<288x128xf32, #tpu.memory_space<vmem>>, vector<32x128xf32>,
    %c3_120 = arith.constant 3 : index
    %c0_121 = arith.constant 0 : index
    %140 = vector.load %arg4[%c3_120, %c0_121] : memref<9x128xf32, #tpu.memory_space<vmem>>, vector<1x128xf32>
    %c1_i32_122 = arith.constant 1 : i32
    %141 = tpu.dynamic_rotate %124 by %c1_i32_122 dim 1 : vector<32x128xf32>, i32 -> vector<32x128xf32>
    %142 = vector.broadcast %140 : vector<1x128xf32> to vector<32x128xf32>
    %143 = arith.mulf %142, %141 : vector<32x128xf32>
    %c96 = arith.constant 96 : index
    %c0_123 = arith.constant 0 : index
    %144 = vector.load %arg16[%c96, %c0_123] : memref<288x128xf32, #tpu.memory_space<vmem>>, vector<32x128xf32>
    tpu.vector_store %arg16[%c96, %c0_123], %143 {strides = array<i32>} : memref<288x128xf32, #tpu.memory_space<vmem>>, vector<32x128xf32>,
    %c128 = arith.constant 128 : index
    %c0_124 = arith.constant 0 : index
    %145 = vector.load %arg16[%c128, %c0_124] : memref<288x128xf32, #tpu.memory_space<vmem>>, vector<32x128xf32>
    tpu.vector_store %arg16[%c128, %c0_124], %124 {strides = array<i32>} : memref<288x128xf32, #tpu.memory_space<vmem>>, vector<32x128xf32>,
    %c5_125 = arith.constant 5 : index
    %c0_126 = arith.constant 0 : index
    %146 = vector.load %arg4[%c5_125, %c0_126] : memref<9x128xf32, #tpu.memory_space<vmem>>, vector<1x128xf32>
    %c127_i32_127 = arith.constant 127 : i32
    %147 = tpu.dynamic_rotate %124 by %c127_i32_127 dim 1 : vector<32x128xf32>, i32 -> vector<32x128xf32>
    %148 = vector.broadcast %146 : vector<1x128xf32> to vector<32x128xf32>
    %149 = arith.mulf %148, %147 : vector<32x128xf32>
    %c160 = arith.constant 160 : index
    %c0_128 = arith.constant 0 : index
    %150 = vector.load %arg16[%c160, %c0_128] : memref<288x128xf32, #tpu.memory_space<vmem>>, vector<32x128xf32>
    tpu.vector_store %arg16[%c160, %c0_128], %149 {strides = array<i32>} : memref<288x128xf32, #tpu.memory_space<vmem>>, vector<32x128xf32>,
    %c6_129 = arith.constant 6 : index
    %c0_130 = arith.constant 0 : index
    %151 = vector.load %arg4[%c6_129, %c0_130] : memref<9x128xf32, #tpu.memory_space<vmem>>, vector<1x128xf32>
    %c113_i32_131 = arith.constant 113 : i32
    %152 = tpu.dynamic_rotate %124 by %c113_i32_131 dim 1 : vector<32x128xf32>, i32 -> vector<32x128xf32>
    %153 = vector.broadcast %151 : vector<1x128xf32> to vector<32x128xf32>
    %154 = arith.mulf %153, %152 : vector<32x128xf32>
    %c192 = arith.constant 192 : index
    %c0_132 = arith.constant 0 : index
    %155 = vector.load %arg16[%c192, %c0_132] : memref<288x128xf32, #tpu.memory_space<vmem>>, vector<32x128xf32>
    tpu.vector_store %arg16[%c192, %c0_132], %154 {strides = array<i32>} : memref<288x128xf32, #tpu.memory_space<vmem>>, vector<32x128xf32>,
    %c7_133 = arith.constant 7 : index
    %c0_134 = arith.constant 0 : index
    %156 = vector.load %arg4[%c7_133, %c0_134] : memref<9x128xf32, #tpu.memory_space<vmem>>, vector<1x128xf32>
    %c112_i32_135 = arith.constant 112 : i32
    %157 = tpu.dynamic_rotate %124 by %c112_i32_135 dim 1 : vector<32x128xf32>, i32 -> vector<32x128xf32>
    %158 = vector.broadcast %156 : vector<1x128xf32> to vector<32x128xf32>
    %159 = arith.mulf %158, %157 : vector<32x128xf32>
    %c224 = arith.constant 224 : index
    %c0_136 = arith.constant 0 : index
    %160 = vector.load %arg16[%c224, %c0_136] : memref<288x128xf32, #tpu.memory_space<vmem>>, vector<32x128xf32>
    tpu.vector_store %arg16[%c224, %c0_136], %159 {strides = array<i32>} : memref<288x128xf32, #tpu.memory_space<vmem>>, vector<32x128xf32>,
    %c8_137 = arith.constant 8 : index
    %c0_138 = arith.constant 0 : index
    %161 = vector.load %arg4[%c8_137, %c0_138] : memref<9x128xf32, #tpu.memory_space<vmem>>, vector<1x128xf32>
    %c111_i32_139 = arith.constant 111 : i32
    %162 = tpu.dynamic_rotate %124 by %c111_i32_139 dim 1 : vector<32x128xf32>, i32 -> vector<32x128xf32>
    %163 = vector.broadcast %161 : vector<1x128xf32> to vector<32x128xf32>
    %164 = arith.mulf %163, %162 : vector<32x128xf32>
    %c256 = arith.constant 256 : index
    %c0_140 = arith.constant 0 : index
    %165 = vector.load %arg16[%c256, %c0_140] : memref<288x128xf32, #tpu.memory_space<vmem>>, vector<32x128xf32>
    tpu.vector_store %arg16[%c256, %c0_140], %164 {strides = array<i32>} : memref<288x128xf32, #tpu.memory_space<vmem>>, vector<32x128xf32>,
    %c0_141 = arith.constant 0 : index
    %c0_142 = arith.constant 0 : index
    %c0_143 = arith.constant 0 : index
    %166 = vector.load %arg8[%c0_141, %c0_142, %c0_143] : memref<3x2x288xf32, #tpu.memory_space<vmem>>, vector<1x2x288xf32>
    %167 = vector.shape_cast %166 : vector<1x2x288xf32> to vector<2x288xf32>
    %c0_144 = arith.constant 0 : index
    %c0_145 = arith.constant 0 : index
    %168 = vector.load %arg16[%c0_144, %c0_145] : memref<288x128xf32, #tpu.memory_space<vmem>>, vector<288x128xf32>
    %cst_146 = arith.constant dense<0.000000e+00> : vector<2x128xf32>
    %169 = tpu.matmul %167, %168, %cst_146 {dimension_numbers = #tpu.dot_dimension_numbers<[1], [0], [0], [1], [0, 0, 1, 1], [], []>} : vector<2x288xf32>, vector<288x128xf32>, vector<2x128xf32> -> vector<2x128xf32>
    %170 = arith.addf %38, %169 : vector<2x128xf32>
    %c0_147 = arith.constant 0 : index
    %c0_148 = arith.constant 0 : index
    %c0_149 = arith.constant 0 : index
    %171 = vector.load %arg9[%c0_147, %c0_148, %c0_149] : memref<3x2x1xf32, #tpu.memory_space<vmem>>, vector<1x2x1xf32>
    %172 = vector.shape_cast %171 : vector<1x2x1xf32> to vector<2x1xf32>
    %173 = vector.broadcast %172 : vector<2x1xf32> to vector<2x128xf32>
    %174 = arith.addf %170, %173 : vector<2x128xf32>
    %175 = vector.extract_strided_slice %174 {offsets = [0, 0], sizes = [1, 128], strides = [1, 1]} : vector<2x128xf32> to vector<1x128xf32>
    %cst_150 = arith.constant dense<0.000000e+00> : vector<1x256xf32>
    %176 = tpu.matmul %175, %3, %cst_150 {dimension_numbers = #tpu.dot_dimension_numbers<[1], [0], [0], [1], [0, 0, 1, 1], [], []>} : vector<1x128xf32>, vector<128x256xf32>, vector<1x256xf32> -> vector<1x256xf32>
    %c0_151 = arith.constant 0 : index
    %c0_152 = arith.constant 0 : index
    %177 = vector.load %arg5[%c0_151, %c0_152] : memref<9x256xf32, #tpu.memory_space<vmem>>, vector<1x256xf32>
    %c17_i32_153 = arith.constant 17 : i32
    %178 = tpu.dynamic_rotate %37 by %c17_i32_153 dim 1 : vector<2x256xf32>, i32 -> vector<2x256xf32>
    %179 = vector.broadcast %177 : vector<1x256xf32> to vector<2x256xf32>
    %180 = arith.mulf %179, %178 : vector<2x256xf32>
    %c0_154 = arith.constant 0 : index
    %c0_155 = arith.constant 0 : index
    %181 = vector.load %arg17[%c0_154, %c0_155] : memref<27x256xf32, #tpu.memory_space<vmem>>, vector<2x256xf32>
    tpu.vector_store %arg17[%c0_154, %c0_155], %180 {strides = array<i32>} : memref<27x256xf32, #tpu.memory_space<vmem>>, vector<2x256xf32>,
    %c1_156 = arith.constant 1 : index
    %c0_157 = arith.constant 0 : index
    %182 = vector.load %arg5[%c1_156, %c0_157] : memref<9x256xf32, #tpu.memory_space<vmem>>, vector<1x256xf32>
    %c16_i32_158 = arith.constant 16 : i32
    %183 = tpu.dynamic_rotate %37 by %c16_i32_158 dim 1 : vector<2x256xf32>, i32 -> vector<2x256xf32>
    %184 = vector.broadcast %182 : vector<1x256xf32> to vector<2x256xf32>
    %185 = arith.mulf %184, %183 : vector<2x256xf32>
    %c2_159 = arith.constant 2 : index
    %c0_160 = arith.constant 0 : index
    %186 = vector.load %arg17[%c2_159, %c0_160] : memref<27x256xf32, #tpu.memory_space<vmem>>, vector<2x256xf32>
    tpu.vector_store %arg17[%c2_159, %c0_160], %185 {strides = array<i32>} : memref<27x256xf32, #tpu.memory_space<vmem>>, vector<2x256xf32>,
    %c2_161 = arith.constant 2 : index
    %c0_162 = arith.constant 0 : index
    %187 = vector.load %arg5[%c2_161, %c0_162] : memref<9x256xf32, #tpu.memory_space<vmem>>, vector<1x256xf32>
    %c15_i32_163 = arith.constant 15 : i32
    %188 = tpu.dynamic_rotate %37 by %c15_i32_163 dim 1 : vector<2x256xf32>, i32 -> vector<2x256xf32>
    %189 = vector.broadcast %187 : vector<1x256xf32> to vector<2x256xf32>
    %190 = arith.mulf %189, %188 : vector<2x256xf32>
    %c4_164 = arith.constant 4 : index
    %c0_165 = arith.constant 0 : index
    %191 = vector.load %arg17[%c4_164, %c0_165] : memref<27x256xf32, #tpu.memory_space<vmem>>, vector<2x256xf32>
    tpu.vector_store %arg17[%c4_164, %c0_165], %190 {strides = array<i32>} : memref<27x256xf32, #tpu.memory_space<vmem>>, vector<2x256xf32>,
    %c3_166 = arith.constant 3 : index
    %c0_167 = arith.constant 0 : index
    %192 = vector.load %arg5[%c3_166, %c0_167] : memref<9x256xf32, #tpu.memory_space<vmem>>, vector<1x256xf32>
    %c1_i32_168 = arith.constant 1 : i32
    %193 = tpu.dynamic_rotate %37 by %c1_i32_168 dim 1 : vector<2x256xf32>, i32 -> vector<2x256xf32>
    %194 = vector.broadcast %192 : vector<1x256xf32> to vector<2x256xf32>
    %195 = arith.mulf %194, %193 : vector<2x256xf32>
    %c6_169 = arith.constant 6 : index
    %c0_170 = arith.constant 0 : index
    %196 = vector.load %arg17[%c6_169, %c0_170] : memref<27x256xf32, #tpu.memory_space<vmem>>, vector<2x256xf32>
    tpu.vector_store %arg17[%c6_169, %c0_170], %195 {strides = array<i32>} : memref<27x256xf32, #tpu.memory_space<vmem>>, vector<2x256xf32>,
    %c8_171 = arith.constant 8 : index
    %c0_172 = arith.constant 0 : index
    %197 = vector.load %arg17[%c8_171, %c0_172] : memref<27x256xf32, #tpu.memory_space<vmem>>, vector<2x256xf32>
    tpu.vector_store %arg17[%c8_171, %c0_172], %37 {strides = array<i32>} : memref<27x256xf32, #tpu.memory_space<vmem>>, vector<2x256xf32>,
    %c5_173 = arith.constant 5 : index
    %c0_174 = arith.constant 0 : index
    %198 = vector.load %arg5[%c5_173, %c0_174] : memref<9x256xf32, #tpu.memory_space<vmem>>, vector<1x256xf32>
    %c255_i32 = arith.constant 255 : i32
    %199 = tpu.dynamic_rotate %37 by %c255_i32 dim 1 : vector<2x256xf32>, i32 -> vector<2x256xf32>
    %200 = vector.broadcast %198 : vector<1x256xf32> to vector<2x256xf32>
    %201 = arith.mulf %200, %199 : vector<2x256xf32>
    %c10_175 = arith.constant 10 : index
    %c0_176 = arith.constant 0 : index
    %202 = vector.load %arg17[%c10_175, %c0_176] : memref<27x256xf32, #tpu.memory_space<vmem>>, vector<2x256xf32>
    tpu.vector_store %arg17[%c10_175, %c0_176], %201 {strides = array<i32>} : memref<27x256xf32, #tpu.memory_space<vmem>>, vector<2x256xf32>,
    %c6_177 = arith.constant 6 : index
    %c0_178 = arith.constant 0 : index
    %203 = vector.load %arg5[%c6_177, %c0_178] : memref<9x256xf32, #tpu.memory_space<vmem>>, vector<1x256xf32>
    %c241_i32 = arith.constant 241 : i32
    %204 = tpu.dynamic_rotate %37 by %c241_i32 dim 1 : vector<2x256xf32>, i32 -> vector<2x256xf32>
    %205 = vector.broadcast %203 : vector<1x256xf32> to vector<2x256xf32>
    %206 = arith.mulf %205, %204 : vector<2x256xf32>
    %c12_179 = arith.constant 12 : index
    %c0_180 = arith.constant 0 : index
    %207 = vector.load %arg17[%c12_179, %c0_180] : memref<27x256xf32, #tpu.memory_space<vmem>>, vector<2x256xf32>
    tpu.vector_store %arg17[%c12_179, %c0_180], %206 {strides = array<i32>} : memref<27x256xf32, #tpu.memory_space<vmem>>, vector<2x256xf32>,
    %c7_181 = arith.constant 7 : index
    %c0_182 = arith.constant 0 : index
    %208 = vector.load %arg5[%c7_181, %c0_182] : memref<9x256xf32, #tpu.memory_space<vmem>>, vector<1x256xf32>
    %c240_i32 = arith.constant 240 : i32
    %209 = tpu.dynamic_rotate %37 by %c240_i32 dim 1 : vector<2x256xf32>, i32 -> vector<2x256xf32>
    %210 = vector.broadcast %208 : vector<1x256xf32> to vector<2x256xf32>
    %211 = arith.mulf %210, %209 : vector<2x256xf32>
    %c14_183 = arith.constant 14 : index
    %c0_184 = arith.constant 0 : index
    %212 = vector.load %arg17[%c14_183, %c0_184] : memref<27x256xf32, #tpu.memory_space<vmem>>, vector<2x256xf32>
    tpu.vector_store %arg17[%c14_183, %c0_184], %211 {strides = array<i32>} : memref<27x256xf32, #tpu.memory_space<vmem>>, vector<2x256xf32>,
    %c8_185 = arith.constant 8 : index
    %c0_186 = arith.constant 0 : index
    %213 = vector.load %arg5[%c8_185, %c0_186] : memref<9x256xf32, #tpu.memory_space<vmem>>, vector<1x256xf32>
    %c239_i32 = arith.constant 239 : i32
    %214 = tpu.dynamic_rotate %37 by %c239_i32 dim 1 : vector<2x256xf32>, i32 -> vector<2x256xf32>
    %215 = vector.broadcast %213 : vector<1x256xf32> to vector<2x256xf32>
    %216 = arith.mulf %215, %214 : vector<2x256xf32>
    %c16_187 = arith.constant 16 : index
    %c0_188 = arith.constant 0 : index
    %217 = vector.load %arg17[%c16_187, %c0_188] : memref<27x256xf32, #tpu.memory_space<vmem>>, vector<2x256xf32>
    tpu.vector_store %arg17[%c16_187, %c0_188], %216 {strides = array<i32>} : memref<27x256xf32, #tpu.memory_space<vmem>>, vector<2x256xf32>,
    %c0_189 = arith.constant 0 : index
    %c0_190 = arith.constant 0 : index
    %218 = vector.load %arg5[%c0_189, %c0_190] : memref<9x256xf32, #tpu.memory_space<vmem>>, vector<1x256xf32>
    %c17_i32_191 = arith.constant 17 : i32
    %219 = tpu.dynamic_rotate %176 by %c17_i32_191 dim 1 : vector<1x256xf32>, i32 -> vector<1x256xf32>
    %220 = arith.mulf %218, %219 : vector<1x256xf32>
    %c18_192 = arith.constant 18 : index
    %c0_193 = arith.constant 0 : index
    %221 = vector.load %arg17[%c18_192, %c0_193] : memref<27x256xf32, #tpu.memory_space<vmem>>, vector<1x256xf32>
    tpu.vector_store %arg17[%c18_192, %c0_193], %220 {strides = array<i32>} : memref<27x256xf32, #tpu.memory_space<vmem>>, vector<1x256xf32>,
    %c1_194 = arith.constant 1 : index
    %c0_195 = arith.constant 0 : index
    %222 = vector.load %arg5[%c1_194, %c0_195] : memref<9x256xf32, #tpu.memory_space<vmem>>, vector<1x256xf32>
    %c16_i32_196 = arith.constant 16 : i32
    %223 = tpu.dynamic_rotate %176 by %c16_i32_196 dim 1 : vector<1x256xf32>, i32 -> vector<1x256xf32>
    %224 = arith.mulf %222, %223 : vector<1x256xf32>
    %c19_197 = arith.constant 19 : index
    %c0_198 = arith.constant 0 : index
    %225 = vector.load %arg17[%c19_197, %c0_198] : memref<27x256xf32, #tpu.memory_space<vmem>>, vector<1x256xf32>
    tpu.vector_store %arg17[%c19_197, %c0_198], %224 {strides = array<i32>} : memref<27x256xf32, #tpu.memory_space<vmem>>, vector<1x256xf32>,
    %c2_199 = arith.constant 2 : index
    %c0_200 = arith.constant 0 : index
    %226 = vector.load %arg5[%c2_199, %c0_200] : memref<9x256xf32, #tpu.memory_space<vmem>>, vector<1x256xf32>
    %c15_i32_201 = arith.constant 15 : i32
    %227 = tpu.dynamic_rotate %176 by %c15_i32_201 dim 1 : vector<1x256xf32>, i32 -> vector<1x256xf32>
    %228 = arith.mulf %226, %227 : vector<1x256xf32>
    %c20_202 = arith.constant 20 : index
    %c0_203 = arith.constant 0 : index
    %229 = vector.load %arg17[%c20_202, %c0_203] : memref<27x256xf32, #tpu.memory_space<vmem>>, vector<1x256xf32>
    tpu.vector_store %arg17[%c20_202, %c0_203], %228 {strides = array<i32>} : memref<27x256xf32, #tpu.memory_space<vmem>>, vector<1x256xf32>,
    %c3_204 = arith.constant 3 : index
    %c0_205 = arith.constant 0 : index
    %230 = vector.load %arg5[%c3_204, %c0_205] : memref<9x256xf32, #tpu.memory_space<vmem>>, vector<1x256xf32>
    %c1_i32_206 = arith.constant 1 : i32
    %231 = tpu.dynamic_rotate %176 by %c1_i32_206 dim 1 : vector<1x256xf32>, i32 -> vector<1x256xf32>
    %232 = arith.mulf %230, %231 : vector<1x256xf32>
    %c21_207 = arith.constant 21 : index
    %c0_208 = arith.constant 0 : index
    %233 = vector.load %arg17[%c21_207, %c0_208] : memref<27x256xf32, #tpu.memory_space<vmem>>, vector<1x256xf32>
    tpu.vector_store %arg17[%c21_207, %c0_208], %232 {strides = array<i32>} : memref<27x256xf32, #tpu.memory_space<vmem>>, vector<1x256xf32>,
    %c22_209 = arith.constant 22 : index
    %c0_210 = arith.constant 0 : index
    %234 = vector.load %arg17[%c22_209, %c0_210] : memref<27x256xf32, #tpu.memory_space<vmem>>, vector<1x256xf32>
    tpu.vector_store %arg17[%c22_209, %c0_210], %176 {strides = array<i32>} : memref<27x256xf32, #tpu.memory_space<vmem>>, vector<1x256xf32>,
    %c5_211 = arith.constant 5 : index
    %c0_212 = arith.constant 0 : index
    %235 = vector.load %arg5[%c5_211, %c0_212] : memref<9x256xf32, #tpu.memory_space<vmem>>, vector<1x256xf32>
    %c255_i32_213 = arith.constant 255 : i32
    %236 = tpu.dynamic_rotate %176 by %c255_i32_213 dim 1 : vector<1x256xf32>, i32 -> vector<1x256xf32>
    %237 = arith.mulf %235, %236 : vector<1x256xf32>
    %c23_214 = arith.constant 23 : index
    %c0_215 = arith.constant 0 : index
    %238 = vector.load %arg17[%c23_214, %c0_215] : memref<27x256xf32, #tpu.memory_space<vmem>>, vector<1x256xf32>
    tpu.vector_store %arg17[%c23_214, %c0_215], %237 {strides = array<i32>} : memref<27x256xf32, #tpu.memory_space<vmem>>, vector<1x256xf32>,
    %c6_216 = arith.constant 6 : index
    %c0_217 = arith.constant 0 : index
    %239 = vector.load %arg5[%c6_216, %c0_217] : memref<9x256xf32, #tpu.memory_space<vmem>>, vector<1x256xf32>
    %c241_i32_218 = arith.constant 241 : i32
    %240 = tpu.dynamic_rotate %176 by %c241_i32_218 dim 1 : vector<1x256xf32>, i32 -> vector<1x256xf32>
    %241 = arith.mulf %239, %240 : vector<1x256xf32>
    %c24_219 = arith.constant 24 : index
    %c0_220 = arith.constant 0 : index
    %242 = vector.load %arg17[%c24_219, %c0_220] : memref<27x256xf32, #tpu.memory_space<vmem>>, vector<1x256xf32>
    tpu.vector_store %arg17[%c24_219, %c0_220], %241 {strides = array<i32>} : memref<27x256xf32, #tpu.memory_space<vmem>>, vector<1x256xf32>,
    %c7_221 = arith.constant 7 : index
    %c0_222 = arith.constant 0 : index
    %243 = vector.load %arg5[%c7_221, %c0_222] : memref<9x256xf32, #tpu.memory_space<vmem>>, vector<1x256xf32>
    %c240_i32_223 = arith.constant 240 : i32
    %244 = tpu.dynamic_rotate %176 by %c240_i32_223 dim 1 : vector<1x256xf32>, i32 -> vector<1x256xf32>
    %245 = arith.mulf %243, %244 : vector<1x256xf32>
    %c25_224 = arith.constant 25 : index
    %c0_225 = arith.constant 0 : index
    %246 = vector.load %arg17[%c25_224, %c0_225] : memref<27x256xf32, #tpu.memory_space<vmem>>, vector<1x256xf32>
    tpu.vector_store %arg17[%c25_224, %c0_225], %245 {strides = array<i32>} : memref<27x256xf32, #tpu.memory_space<vmem>>, vector<1x256xf32>,
    %c8_226 = arith.constant 8 : index
    %c0_227 = arith.constant 0 : index
    %247 = vector.load %arg5[%c8_226, %c0_227] : memref<9x256xf32, #tpu.memory_space<vmem>>, vector<1x256xf32>
    %c239_i32_228 = arith.constant 239 : i32
    %248 = tpu.dynamic_rotate %176 by %c239_i32_228 dim 1 : vector<1x256xf32>, i32 -> vector<1x256xf32>
    %249 = arith.mulf %247, %248 : vector<1x256xf32>
    %c26_229 = arith.constant 26 : index
    %c0_230 = arith.constant 0 : index
    %250 = vector.load %arg17[%c26_229, %c0_230] : memref<27x256xf32, #tpu.memory_space<vmem>>, vector<1x256xf32>
    tpu.vector_store %arg17[%c26_229, %c0_230], %249 {strides = array<i32>} : memref<27x256xf32, #tpu.memory_space<vmem>>, vector<1x256xf32>,
    %c0_231 = arith.constant 0 : index
    %c0_232 = arith.constant 0 : index
    %c0_233 = arith.constant 0 : index
    %251 = vector.load %arg10[%c0_231, %c0_232, %c0_233] : memref<3x32x27xf32, #tpu.memory_space<vmem>>, vector<1x32x27xf32>
    %252 = vector.shape_cast %251 : vector<1x32x27xf32> to vector<32x27xf32>
    %c0_234 = arith.constant 0 : index
    %c0_235 = arith.constant 0 : index
    %253 = vector.load %arg17[%c0_234, %c0_235] : memref<27x256xf32, #tpu.memory_space<vmem>>, vector<27x256xf32>
    %cst_236 = arith.constant dense<0.000000e+00> : vector<32x256xf32>
    %254 = tpu.matmul %252, %253, %cst_236 {dimension_numbers = #tpu.dot_dimension_numbers<[1], [0], [0], [1], [0, 0, 1, 1], [], []>} : vector<32x27xf32>, vector<27x256xf32>, vector<32x256xf32> -> vector<32x256xf32>
    %c0_237 = arith.constant 0 : index
    %c0_238 = arith.constant 0 : index
    %c0_239 = arith.constant 0 : index
    %255 = vector.load %arg11[%c0_237, %c0_238, %c0_239] : memref<3x32x1xf32, #tpu.memory_space<vmem>>, vector<1x32x1xf32>
    %256 = vector.shape_cast %255 : vector<1x32x1xf32> to vector<32x1xf32>
    %257 = vector.broadcast %256 : vector<32x1xf32> to vector<32x256xf32>
    %258 = arith.addf %254, %257 : vector<32x256xf32>
    %cst_240 = arith.constant 0.000000e+00 : f32
    %259 = vector.broadcast %cst_240 : f32 to vector<32x256xf32>
    %260 = arith.maximumf %258, %259 : vector<32x256xf32>
    %c0_241 = arith.constant 0 : index
    %c0_242 = arith.constant 0 : index
    %261 = vector.load %arg5[%c0_241, %c0_242] : memref<9x256xf32, #tpu.memory_space<vmem>>, vector<1x256xf32>
    %c17_i32_243 = arith.constant 17 : i32
    %262 = tpu.dynamic_rotate %260 by %c17_i32_243 dim 1 : vector<32x256xf32>, i32 -> vector<32x256xf32>
    %263 = vector.broadcast %261 : vector<1x256xf32> to vector<32x256xf32>
    %264 = arith.mulf %263, %262 : vector<32x256xf32>
    %c0_244 = arith.constant 0 : index
    %c0_245 = arith.constant 0 : index
    %265 = vector.load %arg18[%c0_244, %c0_245] : memref<288x256xf32, #tpu.memory_space<vmem>>, vector<32x256xf32>
    tpu.vector_store %arg18[%c0_244, %c0_245], %264 {strides = array<i32>} : memref<288x256xf32, #tpu.memory_space<vmem>>, vector<32x256xf32>,
    %c1_246 = arith.constant 1 : index
    %c0_247 = arith.constant 0 : index
    %266 = vector.load %arg5[%c1_246, %c0_247] : memref<9x256xf32, #tpu.memory_space<vmem>>, vector<1x256xf32>
    %c16_i32_248 = arith.constant 16 : i32
    %267 = tpu.dynamic_rotate %260 by %c16_i32_248 dim 1 : vector<32x256xf32>, i32 -> vector<32x256xf32>
    %268 = vector.broadcast %266 : vector<1x256xf32> to vector<32x256xf32>
    %269 = arith.mulf %268, %267 : vector<32x256xf32>
    %c32_249 = arith.constant 32 : index
    %c0_250 = arith.constant 0 : index
    %270 = vector.load %arg18[%c32_249, %c0_250] : memref<288x256xf32, #tpu.memory_space<vmem>>, vector<32x256xf32>
    tpu.vector_store %arg18[%c32_249, %c0_250], %269 {strides = array<i32>} : memref<288x256xf32, #tpu.memory_space<vmem>>, vector<32x256xf32>,
    %c2_251 = arith.constant 2 : index
    %c0_252 = arith.constant 0 : index
    %271 = vector.load %arg5[%c2_251, %c0_252] : memref<9x256xf32, #tpu.memory_space<vmem>>, vector<1x256xf32>
    %c15_i32_253 = arith.constant 15 : i32
    %272 = tpu.dynamic_rotate %260 by %c15_i32_253 dim 1 : vector<32x256xf32>, i32 -> vector<32x256xf32>
    %273 = vector.broadcast %271 : vector<1x256xf32> to vector<32x256xf32>
    %274 = arith.mulf %273, %272 : vector<32x256xf32>
    %c64_254 = arith.constant 64 : index
    %c0_255 = arith.constant 0 : index
    %275 = vector.load %arg18[%c64_254, %c0_255] : memref<288x256xf32, #tpu.memory_space<vmem>>, vector<32x256xf32>
    tpu.vector_store %arg18[%c64_254, %c0_255], %274 {strides = array<i32>} : memref<288x256xf32, #tpu.memory_space<vmem>>, vector<32x256xf32>,
    %c3_256 = arith.constant 3 : index
    %c0_257 = arith.constant 0 : index
    %276 = vector.load %arg5[%c3_256, %c0_257] : memref<9x256xf32, #tpu.memory_space<vmem>>, vector<1x256xf32>
    %c1_i32_258 = arith.constant 1 : i32
    %277 = tpu.dynamic_rotate %260 by %c1_i32_258 dim 1 : vector<32x256xf32>, i32 -> vector<32x256xf32>
    %278 = vector.broadcast %276 : vector<1x256xf32> to vector<32x256xf32>
    %279 = arith.mulf %278, %277 : vector<32x256xf32>
    %c96_259 = arith.constant 96 : index
    %c0_260 = arith.constant 0 : index
    %280 = vector.load %arg18[%c96_259, %c0_260] : memref<288x256xf32, #tpu.memory_space<vmem>>, vector<32x256xf32>
    tpu.vector_store %arg18[%c96_259, %c0_260], %279 {strides = array<i32>} : memref<288x256xf32, #tpu.memory_space<vmem>>, vector<32x256xf32>,
    %c128_261 = arith.constant 128 : index
    %c0_262 = arith.constant 0 : index
    %281 = vector.load %arg18[%c128_261, %c0_262] : memref<288x256xf32, #tpu.memory_space<vmem>>, vector<32x256xf32>
    tpu.vector_store %arg18[%c128_261, %c0_262], %260 {strides = array<i32>} : memref<288x256xf32, #tpu.memory_space<vmem>>, vector<32x256xf32>,
    %c5_263 = arith.constant 5 : index
    %c0_264 = arith.constant 0 : index
    %282 = vector.load %arg5[%c5_263, %c0_264] : memref<9x256xf32, #tpu.memory_space<vmem>>, vector<1x256xf32>
    %c255_i32_265 = arith.constant 255 : i32
    %283 = tpu.dynamic_rotate %260 by %c255_i32_265 dim 1 : vector<32x256xf32>, i32 -> vector<32x256xf32>
    %284 = vector.broadcast %282 : vector<1x256xf32> to vector<32x256xf32>
    %285 = arith.mulf %284, %283 : vector<32x256xf32>
    %c160_266 = arith.constant 160 : index
    %c0_267 = arith.constant 0 : index
    %286 = vector.load %arg18[%c160_266, %c0_267] : memref<288x256xf32, #tpu.memory_space<vmem>>, vector<32x256xf32>
    tpu.vector_store %arg18[%c160_266, %c0_267], %285 {strides = array<i32>} : memref<288x256xf32, #tpu.memory_space<vmem>>, vector<32x256xf32>,
    %c6_268 = arith.constant 6 : index
    %c0_269 = arith.constant 0 : index
    %287 = vector.load %arg5[%c6_268, %c0_269] : memref<9x256xf32, #tpu.memory_space<vmem>>, vector<1x256xf32>
    %c241_i32_270 = arith.constant 241 : i32
    %288 = tpu.dynamic_rotate %260 by %c241_i32_270 dim 1 : vector<32x256xf32>, i32 -> vector<32x256xf32>
    %289 = vector.broadcast %287 : vector<1x256xf32> to vector<32x256xf32>
    %290 = arith.mulf %289, %288 : vector<32x256xf32>
    %c192_271 = arith.constant 192 : index
    %c0_272 = arith.constant 0 : index
    %291 = vector.load %arg18[%c192_271, %c0_272] : memref<288x256xf32, #tpu.memory_space<vmem>>, vector<32x256xf32>
    tpu.vector_store %arg18[%c192_271, %c0_272], %290 {strides = array<i32>} : memref<288x256xf32, #tpu.memory_space<vmem>>, vector<32x256xf32>,
    %c7_273 = arith.constant 7 : index
    %c0_274 = arith.constant 0 : index
    %292 = vector.load %arg5[%c7_273, %c0_274] : memref<9x256xf32, #tpu.memory_space<vmem>>, vector<1x256xf32>
    %c240_i32_275 = arith.constant 240 : i32
    %293 = tpu.dynamic_rotate %260 by %c240_i32_275 dim 1 : vector<32x256xf32>, i32 -> vector<32x256xf32>
    %294 = vector.broadcast %292 : vector<1x256xf32> to vector<32x256xf32>
    %295 = arith.mulf %294, %293 : vector<32x256xf32>
    %c224_276 = arith.constant 224 : index
    %c0_277 = arith.constant 0 : index
    %296 = vector.load %arg18[%c224_276, %c0_277] : memref<288x256xf32, #tpu.memory_space<vmem>>, vector<32x256xf32>
    tpu.vector_store %arg18[%c224_276, %c0_277], %295 {strides = array<i32>} : memref<288x256xf32, #tpu.memory_space<vmem>>, vector<32x256xf32>,
    %c8_278 = arith.constant 8 : index
    %c0_279 = arith.constant 0 : index
    %297 = vector.load %arg5[%c8_278, %c0_279] : memref<9x256xf32, #tpu.memory_space<vmem>>, vector<1x256xf32>
    %c239_i32_280 = arith.constant 239 : i32
    %298 = tpu.dynamic_rotate %260 by %c239_i32_280 dim 1 : vector<32x256xf32>, i32 -> vector<32x256xf32>
    %299 = vector.broadcast %297 : vector<1x256xf32> to vector<32x256xf32>
    %300 = arith.mulf %299, %298 : vector<32x256xf32>
    %c256_281 = arith.constant 256 : index
    %c0_282 = arith.constant 0 : index
    %301 = vector.load %arg18[%c256_281, %c0_282] : memref<288x256xf32, #tpu.memory_space<vmem>>, vector<32x256xf32>
    tpu.vector_store %arg18[%c256_281, %c0_282], %300 {strides = array<i32>} : memref<288x256xf32, #tpu.memory_space<vmem>>, vector<32x256xf32>,
    %c0_283 = arith.constant 0 : index
    %c0_284 = arith.constant 0 : index
    %c0_285 = arith.constant 0 : index
    %302 = vector.load %arg12[%c0_283, %c0_284, %c0_285] : memref<3x2x288xf32, #tpu.memory_space<vmem>>, vector<1x2x288xf32>
    %303 = vector.shape_cast %302 : vector<1x2x288xf32> to vector<2x288xf32>
    %c0_286 = arith.constant 0 : index
    %c0_287 = arith.constant 0 : index
    %304 = vector.load %arg18[%c0_286, %c0_287] : memref<288x256xf32, #tpu.memory_space<vmem>>, vector<288x256xf32>
    %cst_288 = arith.constant dense<0.000000e+00> : vector<2x256xf32>
    %305 = tpu.matmul %303, %304, %cst_288 {dimension_numbers = #tpu.dot_dimension_numbers<[1], [0], [0], [1], [0, 0, 1, 1], [], []>} : vector<2x288xf32>, vector<288x256xf32>, vector<2x256xf32> -> vector<2x256xf32>
    %306 = arith.addf %37, %305 : vector<2x256xf32>
    %c0_289 = arith.constant 0 : index
    %c0_290 = arith.constant 0 : index
    %c0_291 = arith.constant 0 : index
    %307 = vector.load %arg13[%c0_289, %c0_290, %c0_291] : memref<3x2x1xf32, #tpu.memory_space<vmem>>, vector<1x2x1xf32>
    %308 = vector.shape_cast %307 : vector<1x2x1xf32> to vector<2x1xf32>
    %309 = vector.broadcast %308 : vector<2x1xf32> to vector<2x256xf32>
    %310 = arith.addf %306, %309 : vector<2x256xf32>
    %311 = vector.extract_strided_slice %310 {offsets = [1, 0], sizes = [1, 256], strides = [1, 1]} : vector<2x256xf32> to vector<1x256xf32>
    %cst_292 = arith.constant dense<0.000000e+00> : vector<1x128xf32>
    %312 = tpu.matmul %311, %2, %cst_292 {dimension_numbers = #tpu.dot_dimension_numbers<[1], [0], [0], [1], [0, 0, 1, 1], [], []>} : vector<1x256xf32>, vector<256x128xf32>, vector<1x128xf32> -> vector<1x128xf32>
    %c0_293 = arith.constant 0 : index
    %c0_294 = arith.constant 0 : index
    %313 = vector.load %arg4[%c0_293, %c0_294] : memref<9x128xf32, #tpu.memory_space<vmem>>, vector<1x128xf32>
    %c17_i32_295 = arith.constant 17 : i32
    %314 = tpu.dynamic_rotate %174 by %c17_i32_295 dim 1 : vector<2x128xf32>, i32 -> vector<2x128xf32>
    %315 = vector.broadcast %313 : vector<1x128xf32> to vector<2x128xf32>
    %316 = arith.mulf %315, %314 : vector<2x128xf32>
    %c0_296 = arith.constant 0 : index
    %c0_297 = arith.constant 0 : index
    %317 = vector.load %arg15[%c0_296, %c0_297] : memref<36x128xf32, #tpu.memory_space<vmem>>, vector<2x128xf32>
    tpu.vector_store %arg15[%c0_296, %c0_297], %316 {strides = array<i32>} : memref<36x128xf32, #tpu.memory_space<vmem>>, vector<2x128xf32>,
    %c1_298 = arith.constant 1 : index
    %c0_299 = arith.constant 0 : index
    %318 = vector.load %arg4[%c1_298, %c0_299] : memref<9x128xf32, #tpu.memory_space<vmem>>, vector<1x128xf32>
    %c16_i32_300 = arith.constant 16 : i32
    %319 = tpu.dynamic_rotate %174 by %c16_i32_300 dim 1 : vector<2x128xf32>, i32 -> vector<2x128xf32>
    %320 = vector.broadcast %318 : vector<1x128xf32> to vector<2x128xf32>
    %321 = arith.mulf %320, %319 : vector<2x128xf32>
    %c2_301 = arith.constant 2 : index
    %c0_302 = arith.constant 0 : index
    %322 = vector.load %arg15[%c2_301, %c0_302] : memref<36x128xf32, #tpu.memory_space<vmem>>, vector<2x128xf32>
    tpu.vector_store %arg15[%c2_301, %c0_302], %321 {strides = array<i32>} : memref<36x128xf32, #tpu.memory_space<vmem>>, vector<2x128xf32>,
    %c2_303 = arith.constant 2 : index
    %c0_304 = arith.constant 0 : index
    %323 = vector.load %arg4[%c2_303, %c0_304] : memref<9x128xf32, #tpu.memory_space<vmem>>, vector<1x128xf32>
    %c15_i32_305 = arith.constant 15 : i32
    %324 = tpu.dynamic_rotate %174 by %c15_i32_305 dim 1 : vector<2x128xf32>, i32 -> vector<2x128xf32>
    %325 = vector.broadcast %323 : vector<1x128xf32> to vector<2x128xf32>
    %326 = arith.mulf %325, %324 : vector<2x128xf32>
    %c4_306 = arith.constant 4 : index
    %c0_307 = arith.constant 0 : index
    %327 = vector.load %arg15[%c4_306, %c0_307] : memref<36x128xf32, #tpu.memory_space<vmem>>, vector<2x128xf32>
    tpu.vector_store %arg15[%c4_306, %c0_307], %326 {strides = array<i32>} : memref<36x128xf32, #tpu.memory_space<vmem>>, vector<2x128xf32>,
    %c3_308 = arith.constant 3 : index
    %c0_309 = arith.constant 0 : index
    %328 = vector.load %arg4[%c3_308, %c0_309] : memref<9x128xf32, #tpu.memory_space<vmem>>, vector<1x128xf32>
    %c1_i32_310 = arith.constant 1 : i32
    %329 = tpu.dynamic_rotate %174 by %c1_i32_310 dim 1 : vector<2x128xf32>, i32 -> vector<2x128xf32>
    %330 = vector.broadcast %328 : vector<1x128xf32> to vector<2x128xf32>
    %331 = arith.mulf %330, %329 : vector<2x128xf32>
    %c6_311 = arith.constant 6 : index
    %c0_312 = arith.constant 0 : index
    %332 = vector.load %arg15[%c6_311, %c0_312] : memref<36x128xf32, #tpu.memory_space<vmem>>, vector<2x128xf32>
    tpu.vector_store %arg15[%c6_311, %c0_312], %331 {strides = array<i32>} : memref<36x128xf32, #tpu.memory_space<vmem>>, vector<2x128xf32>,
    %c8_313 = arith.constant 8 : index
    %c0_314 = arith.constant 0 : index
    %333 = vector.load %arg15[%c8_313, %c0_314] : memref<36x128xf32, #tpu.memory_space<vmem>>, vector<2x128xf32>
    tpu.vector_store %arg15[%c8_313, %c0_314], %174 {strides = array<i32>} : memref<36x128xf32, #tpu.memory_space<vmem>>, vector<2x128xf32>,
    %c5_315 = arith.constant 5 : index
    %c0_316 = arith.constant 0 : index
    %334 = vector.load %arg4[%c5_315, %c0_316] : memref<9x128xf32, #tpu.memory_space<vmem>>, vector<1x128xf32>
    %c127_i32_317 = arith.constant 127 : i32
    %335 = tpu.dynamic_rotate %174 by %c127_i32_317 dim 1 : vector<2x128xf32>, i32 -> vector<2x128xf32>
    %336 = vector.broadcast %334 : vector<1x128xf32> to vector<2x128xf32>
    %337 = arith.mulf %336, %335 : vector<2x128xf32>
    %c10_318 = arith.constant 10 : index
    %c0_319 = arith.constant 0 : index
    %338 = vector.load %arg15[%c10_318, %c0_319] : memref<36x128xf32, #tpu.memory_space<vmem>>, vector<2x128xf32>
    tpu.vector_store %arg15[%c10_318, %c0_319], %337 {strides = array<i32>} : memref<36x128xf32, #tpu.memory_space<vmem>>, vector<2x128xf32>,
    %c6_320 = arith.constant 6 : index
    %c0_321 = arith.constant 0 : index
    %339 = vector.load %arg4[%c6_320, %c0_321] : memref<9x128xf32, #tpu.memory_space<vmem>>, vector<1x128xf32>
    %c113_i32_322 = arith.constant 113 : i32
    %340 = tpu.dynamic_rotate %174 by %c113_i32_322 dim 1 : vector<2x128xf32>, i32 -> vector<2x128xf32>
    %341 = vector.broadcast %339 : vector<1x128xf32> to vector<2x128xf32>
    %342 = arith.mulf %341, %340 : vector<2x128xf32>
    %c12_323 = arith.constant 12 : index
    %c0_324 = arith.constant 0 : index
    %343 = vector.load %arg15[%c12_323, %c0_324] : memref<36x128xf32, #tpu.memory_space<vmem>>, vector<2x128xf32>
    tpu.vector_store %arg15[%c12_323, %c0_324], %342 {strides = array<i32>} : memref<36x128xf32, #tpu.memory_space<vmem>>, vector<2x128xf32>,
    %c7_325 = arith.constant 7 : index
    %c0_326 = arith.constant 0 : index
    %344 = vector.load %arg4[%c7_325, %c0_326] : memref<9x128xf32, #tpu.memory_space<vmem>>, vector<1x128xf32>
    %c112_i32_327 = arith.constant 112 : i32
    %345 = tpu.dynamic_rotate %174 by %c112_i32_327 dim 1 : vector<2x128xf32>, i32 -> vector<2x128xf32>
    %346 = vector.broadcast %344 : vector<1x128xf32> to vector<2x128xf32>
    %347 = arith.mulf %346, %345 : vector<2x128xf32>
    %c14_328 = arith.constant 14 : index
    %c0_329 = arith.constant 0 : index
    %348 = vector.load %arg15[%c14_328, %c0_329] : memref<36x128xf32, #tpu.memory_space<vmem>>, vector<2x128xf32>
    tpu.vector_store %arg15[%c14_328, %c0_329], %347 {strides = array<i32>} : memref<36x128xf32, #tpu.memory_space<vmem>>, vector<2x128xf32>,
    %c8_330 = arith.constant 8 : index
    %c0_331 = arith.constant 0 : index
    %349 = vector.load %arg4[%c8_330, %c0_331] : memref<9x128xf32, #tpu.memory_space<vmem>>, vector<1x128xf32>
    %c111_i32_332 = arith.constant 111 : i32
    %350 = tpu.dynamic_rotate %174 by %c111_i32_332 dim 1 : vector<2x128xf32>, i32 -> vector<2x128xf32>
    %351 = vector.broadcast %349 : vector<1x128xf32> to vector<2x128xf32>
    %352 = arith.mulf %351, %350 : vector<2x128xf32>
    %c16_333 = arith.constant 16 : index
    %c0_334 = arith.constant 0 : index
    %353 = vector.load %arg15[%c16_333, %c0_334] : memref<36x128xf32, #tpu.memory_space<vmem>>, vector<2x128xf32>
    tpu.vector_store %arg15[%c16_333, %c0_334], %352 {strides = array<i32>} : memref<36x128xf32, #tpu.memory_space<vmem>>, vector<2x128xf32>,
    %c0_335 = arith.constant 0 : index
    %c0_336 = arith.constant 0 : index
    %354 = vector.load %arg4[%c0_335, %c0_336] : memref<9x128xf32, #tpu.memory_space<vmem>>, vector<1x128xf32>
    %c17_i32_337 = arith.constant 17 : i32
    %355 = tpu.dynamic_rotate %312 by %c17_i32_337 dim 1 : vector<1x128xf32>, i32 -> vector<1x128xf32>
    %356 = arith.mulf %354, %355 : vector<1x128xf32>
    %c18_338 = arith.constant 18 : index
    %c0_339 = arith.constant 0 : index
    %357 = vector.load %arg15[%c18_338, %c0_339] : memref<36x128xf32, #tpu.memory_space<vmem>>, vector<1x128xf32>
    tpu.vector_store %arg15[%c18_338, %c0_339], %356 {strides = array<i32>} : memref<36x128xf32, #tpu.memory_space<vmem>>, vector<1x128xf32>,
    %c1_340 = arith.constant 1 : index
    %c0_341 = arith.constant 0 : index
    %358 = vector.load %arg4[%c1_340, %c0_341] : memref<9x128xf32, #tpu.memory_space<vmem>>, vector<1x128xf32>
    %c16_i32_342 = arith.constant 16 : i32
    %359 = tpu.dynamic_rotate %312 by %c16_i32_342 dim 1 : vector<1x128xf32>, i32 -> vector<1x128xf32>
    %360 = arith.mulf %358, %359 : vector<1x128xf32>
    %c19_343 = arith.constant 19 : index
    %c0_344 = arith.constant 0 : index
    %361 = vector.load %arg15[%c19_343, %c0_344] : memref<36x128xf32, #tpu.memory_space<vmem>>, vector<1x128xf32>
    tpu.vector_store %arg15[%c19_343, %c0_344], %360 {strides = array<i32>} : memref<36x128xf32, #tpu.memory_space<vmem>>, vector<1x128xf32>,
    %c2_345 = arith.constant 2 : index
    %c0_346 = arith.constant 0 : index
    %362 = vector.load %arg4[%c2_345, %c0_346] : memref<9x128xf32, #tpu.memory_space<vmem>>, vector<1x128xf32>
    %c15_i32_347 = arith.constant 15 : i32
    %363 = tpu.dynamic_rotate %312 by %c15_i32_347 dim 1 : vector<1x128xf32>, i32 -> vector<1x128xf32>
    %364 = arith.mulf %362, %363 : vector<1x128xf32>
    %c20_348 = arith.constant 20 : index
    %c0_349 = arith.constant 0 : index
    %365 = vector.load %arg15[%c20_348, %c0_349] : memref<36x128xf32, #tpu.memory_space<vmem>>, vector<1x128xf32>
    tpu.vector_store %arg15[%c20_348, %c0_349], %364 {strides = array<i32>} : memref<36x128xf32, #tpu.memory_space<vmem>>, vector<1x128xf32>,
    %c3_350 = arith.constant 3 : index
    %c0_351 = arith.constant 0 : index
    %366 = vector.load %arg4[%c3_350, %c0_351] : memref<9x128xf32, #tpu.memory_space<vmem>>, vector<1x128xf32>
    %c1_i32_352 = arith.constant 1 : i32
    %367 = tpu.dynamic_rotate %312 by %c1_i32_352 dim 1 : vector<1x128xf32>, i32 -> vector<1x128xf32>
    %368 = arith.mulf %366, %367 : vector<1x128xf32>
    %c21_353 = arith.constant 21 : index
    %c0_354 = arith.constant 0 : index
    %369 = vector.load %arg15[%c21_353, %c0_354] : memref<36x128xf32, #tpu.memory_space<vmem>>, vector<1x128xf32>
    tpu.vector_store %arg15[%c21_353, %c0_354], %368 {strides = array<i32>} : memref<36x128xf32, #tpu.memory_space<vmem>>, vector<1x128xf32>,
    %c22_355 = arith.constant 22 : index
    %c0_356 = arith.constant 0 : index
    %370 = vector.load %arg15[%c22_355, %c0_356] : memref<36x128xf32, #tpu.memory_space<vmem>>, vector<1x128xf32>
    tpu.vector_store %arg15[%c22_355, %c0_356], %312 {strides = array<i32>} : memref<36x128xf32, #tpu.memory_space<vmem>>, vector<1x128xf32>,
    %c5_357 = arith.constant 5 : index
    %c0_358 = arith.constant 0 : index
    %371 = vector.load %arg4[%c5_357, %c0_358] : memref<9x128xf32, #tpu.memory_space<vmem>>, vector<1x128xf32>
    %c127_i32_359 = arith.constant 127 : i32
    %372 = tpu.dynamic_rotate %312 by %c127_i32_359 dim 1 : vector<1x128xf32>, i32 -> vector<1x128xf32>
    %373 = arith.mulf %371, %372 : vector<1x128xf32>
    %c23_360 = arith.constant 23 : index
    %c0_361 = arith.constant 0 : index
    %374 = vector.load %arg15[%c23_360, %c0_361] : memref<36x128xf32, #tpu.memory_space<vmem>>, vector<1x128xf32>
    tpu.vector_store %arg15[%c23_360, %c0_361], %373 {strides = array<i32>} : memref<36x128xf32, #tpu.memory_space<vmem>>, vector<1x128xf32>,
    %c6_362 = arith.constant 6 : index
    %c0_363 = arith.constant 0 : index
    %375 = vector.load %arg4[%c6_362, %c0_363] : memref<9x128xf32, #tpu.memory_space<vmem>>, vector<1x128xf32>
    %c113_i32_364 = arith.constant 113 : i32
    %376 = tpu.dynamic_rotate %312 by %c113_i32_364 dim 1 : vector<1x128xf32>, i32 -> vector<1x128xf32>
    %377 = arith.mulf %375, %376 : vector<1x128xf32>
    %c24_365 = arith.constant 24 : index
    %c0_366 = arith.constant 0 : index
    %378 = vector.load %arg15[%c24_365, %c0_366] : memref<36x128xf32, #tpu.memory_space<vmem>>, vector<1x128xf32>
    tpu.vector_store %arg15[%c24_365, %c0_366], %377 {strides = array<i32>} : memref<36x128xf32, #tpu.memory_space<vmem>>, vector<1x128xf32>,
    %c7_367 = arith.constant 7 : index
    %c0_368 = arith.constant 0 : index
    %379 = vector.load %arg4[%c7_367, %c0_368] : memref<9x128xf32, #tpu.memory_space<vmem>>, vector<1x128xf32>
    %c112_i32_369 = arith.constant 112 : i32
    %380 = tpu.dynamic_rotate %312 by %c112_i32_369 dim 1 : vector<1x128xf32>, i32 -> vector<1x128xf32>
    %381 = arith.mulf %379, %380 : vector<1x128xf32>
    %c25_370 = arith.constant 25 : index
    %c0_371 = arith.constant 0 : index
    %382 = vector.load %arg15[%c25_370, %c0_371] : memref<36x128xf32, #tpu.memory_space<vmem>>, vector<1x128xf32>
    tpu.vector_store %arg15[%c25_370, %c0_371], %381 {strides = array<i32>} : memref<36x128xf32, #tpu.memory_space<vmem>>, vector<1x128xf32>,
    %c8_372 = arith.constant 8 : index
    %c0_373 = arith.constant 0 : index
    %383 = vector.load %arg4[%c8_372, %c0_373] : memref<9x128xf32, #tpu.memory_space<vmem>>, vector<1x128xf32>
    %c111_i32_374 = arith.constant 111 : i32
    %384 = tpu.dynamic_rotate %312 by %c111_i32_374 dim 1 : vector<1x128xf32>, i32 -> vector<1x128xf32>
    %385 = arith.mulf %383, %384 : vector<1x128xf32>
    %c26_375 = arith.constant 26 : index
    %c0_376 = arith.constant 0 : index
    %386 = vector.load %arg15[%c26_375, %c0_376] : memref<36x128xf32, #tpu.memory_space<vmem>>, vector<1x128xf32>
    tpu.vector_store %arg15[%c26_375, %c0_376], %385 {strides = array<i32>} : memref<36x128xf32, #tpu.memory_space<vmem>>, vector<1x128xf32>,
    %c1_377 = arith.constant 1 : index
    %c0_378 = arith.constant 0 : index
    %c0_379 = arith.constant 0 : index
    %387 = vector.load %arg6[%c1_377, %c0_378, %c0_379] : memref<3x32x36xf32, #tpu.memory_space<vmem>>, vector<1x32x36xf32>
    %388 = vector.shape_cast %387 : vector<1x32x36xf32> to vector<32x36xf32>
    %c0_380 = arith.constant 0 : index
    %c0_381 = arith.constant 0 : index
    %389 = vector.load %arg15[%c0_380, %c0_381] : memref<36x128xf32, #tpu.memory_space<vmem>>, vector<36x128xf32>
    %cst_382 = arith.constant dense<0.000000e+00> : vector<32x128xf32>
    %390 = tpu.matmul %388, %389, %cst_382 {dimension_numbers = #tpu.dot_dimension_numbers<[1], [0], [0], [1], [0, 0, 1, 1], [], []>} : vector<32x36xf32>, vector<36x128xf32>, vector<32x128xf32> -> vector<32x128xf32>
    %c1_383 = arith.constant 1 : index
    %c0_384 = arith.constant 0 : index
    %c0_385 = arith.constant 0 : index
    %391 = vector.load %arg7[%c1_383, %c0_384, %c0_385] : memref<3x32x1xf32, #tpu.memory_space<vmem>>, vector<1x32x1xf32>
    %392 = vector.shape_cast %391 : vector<1x32x1xf32> to vector<32x1xf32>
    %393 = vector.broadcast %392 : vector<32x1xf32> to vector<32x128xf32>
    %394 = arith.addf %390, %393 : vector<32x128xf32>
    %cst_386 = arith.constant 0.000000e+00 : f32
    %395 = vector.broadcast %cst_386 : f32 to vector<32x128xf32>
    %396 = arith.maximumf %394, %395 : vector<32x128xf32>
    %c0_387 = arith.constant 0 : index
    %c0_388 = arith.constant 0 : index
    %397 = vector.load %arg4[%c0_387, %c0_388] : memref<9x128xf32, #tpu.memory_space<vmem>>, vector<1x128xf32>
    %c17_i32_389 = arith.constant 17 : i32
    %398 = tpu.dynamic_rotate %396 by %c17_i32_389 dim 1 : vector<32x128xf32>, i32 -> vector<32x128xf32>
    %399 = vector.broadcast %397 : vector<1x128xf32> to vector<32x128xf32>
    %400 = arith.mulf %399, %398 : vector<32x128xf32>
    %c0_390 = arith.constant 0 : index
    %c0_391 = arith.constant 0 : index
    %401 = vector.load %arg16[%c0_390, %c0_391] : memref<288x128xf32, #tpu.memory_space<vmem>>, vector<32x128xf32>
    tpu.vector_store %arg16[%c0_390, %c0_391], %400 {strides = array<i32>} : memref<288x128xf32, #tpu.memory_space<vmem>>, vector<32x128xf32>,
    %c1_392 = arith.constant 1 : index
    %c0_393 = arith.constant 0 : index
    %402 = vector.load %arg4[%c1_392, %c0_393] : memref<9x128xf32, #tpu.memory_space<vmem>>, vector<1x128xf32>
    %c16_i32_394 = arith.constant 16 : i32
    %403 = tpu.dynamic_rotate %396 by %c16_i32_394 dim 1 : vector<32x128xf32>, i32 -> vector<32x128xf32>
    %404 = vector.broadcast %402 : vector<1x128xf32> to vector<32x128xf32>
    %405 = arith.mulf %404, %403 : vector<32x128xf32>
    %c32_395 = arith.constant 32 : index
    %c0_396 = arith.constant 0 : index
    %406 = vector.load %arg16[%c32_395, %c0_396] : memref<288x128xf32, #tpu.memory_space<vmem>>, vector<32x128xf32>
    tpu.vector_store %arg16[%c32_395, %c0_396], %405 {strides = array<i32>} : memref<288x128xf32, #tpu.memory_space<vmem>>, vector<32x128xf32>,
    %c2_397 = arith.constant 2 : index
    %c0_398 = arith.constant 0 : index
    %407 = vector.load %arg4[%c2_397, %c0_398] : memref<9x128xf32, #tpu.memory_space<vmem>>, vector<1x128xf32>
    %c15_i32_399 = arith.constant 15 : i32
    %408 = tpu.dynamic_rotate %396 by %c15_i32_399 dim 1 : vector<32x128xf32>, i32 -> vector<32x128xf32>
    %409 = vector.broadcast %407 : vector<1x128xf32> to vector<32x128xf32>
    %410 = arith.mulf %409, %408 : vector<32x128xf32>
    %c64_400 = arith.constant 64 : index
    %c0_401 = arith.constant 0 : index
    %411 = vector.load %arg16[%c64_400, %c0_401] : memref<288x128xf32, #tpu.memory_space<vmem>>, vector<32x128xf32>
    tpu.vector_store %arg16[%c64_400, %c0_401], %410 {strides = array<i32>} : memref<288x128xf32, #tpu.memory_space<vmem>>, vector<32x128xf32>,
    %c3_402 = arith.constant 3 : index
    %c0_403 = arith.constant 0 : index
    %412 = vector.load %arg4[%c3_402, %c0_403] : memref<9x128xf32, #tpu.memory_space<vmem>>, vector<1x128xf32>
    %c1_i32_404 = arith.constant 1 : i32
    %413 = tpu.dynamic_rotate %396 by %c1_i32_404 dim 1 : vector<32x128xf32>, i32 -> vector<32x128xf32>
    %414 = vector.broadcast %412 : vector<1x128xf32> to vector<32x128xf32>
    %415 = arith.mulf %414, %413 : vector<32x128xf32>
    %c96_405 = arith.constant 96 : index
    %c0_406 = arith.constant 0 : index
    %416 = vector.load %arg16[%c96_405, %c0_406] : memref<288x128xf32, #tpu.memory_space<vmem>>, vector<32x128xf32>
    tpu.vector_store %arg16[%c96_405, %c0_406], %415 {strides = array<i32>} : memref<288x128xf32, #tpu.memory_space<vmem>>, vector<32x128xf32>,
    %c128_407 = arith.constant 128 : index
    %c0_408 = arith.constant 0 : index
    %417 = vector.load %arg16[%c128_407, %c0_408] : memref<288x128xf32, #tpu.memory_space<vmem>>, vector<32x128xf32>
    tpu.vector_store %arg16[%c128_407, %c0_408], %396 {strides = array<i32>} : memref<288x128xf32, #tpu.memory_space<vmem>>, vector<32x128xf32>,
    %c5_409 = arith.constant 5 : index
    %c0_410 = arith.constant 0 : index
    %418 = vector.load %arg4[%c5_409, %c0_410] : memref<9x128xf32, #tpu.memory_space<vmem>>, vector<1x128xf32>
    %c127_i32_411 = arith.constant 127 : i32
    %419 = tpu.dynamic_rotate %396 by %c127_i32_411 dim 1 : vector<32x128xf32>, i32 -> vector<32x128xf32>
    %420 = vector.broadcast %418 : vector<1x128xf32> to vector<32x128xf32>
    %421 = arith.mulf %420, %419 : vector<32x128xf32>
    %c160_412 = arith.constant 160 : index
    %c0_413 = arith.constant 0 : index
    %422 = vector.load %arg16[%c160_412, %c0_413] : memref<288x128xf32, #tpu.memory_space<vmem>>, vector<32x128xf32>
    tpu.vector_store %arg16[%c160_412, %c0_413], %421 {strides = array<i32>} : memref<288x128xf32, #tpu.memory_space<vmem>>, vector<32x128xf32>,
    %c6_414 = arith.constant 6 : index
    %c0_415 = arith.constant 0 : index
    %423 = vector.load %arg4[%c6_414, %c0_415] : memref<9x128xf32, #tpu.memory_space<vmem>>, vector<1x128xf32>
    %c113_i32_416 = arith.constant 113 : i32
    %424 = tpu.dynamic_rotate %396 by %c113_i32_416 dim 1 : vector<32x128xf32>, i32 -> vector<32x128xf32>
    %425 = vector.broadcast %423 : vector<1x128xf32> to vector<32x128xf32>
    %426 = arith.mulf %425, %424 : vector<32x128xf32>
    %c192_417 = arith.constant 192 : index
    %c0_418 = arith.constant 0 : index
    %427 = vector.load %arg16[%c192_417, %c0_418] : memref<288x128xf32, #tpu.memory_space<vmem>>, vector<32x128xf32>
    tpu.vector_store %arg16[%c192_417, %c0_418], %426 {strides = array<i32>} : memref<288x128xf32, #tpu.memory_space<vmem>>, vector<32x128xf32>,
    %c7_419 = arith.constant 7 : index
    %c0_420 = arith.constant 0 : index
    %428 = vector.load %arg4[%c7_419, %c0_420] : memref<9x128xf32, #tpu.memory_space<vmem>>, vector<1x128xf32>
    %c112_i32_421 = arith.constant 112 : i32
    %429 = tpu.dynamic_rotate %396 by %c112_i32_421 dim 1 : vector<32x128xf32>, i32 -> vector<32x128xf32>
    %430 = vector.broadcast %428 : vector<1x128xf32> to vector<32x128xf32>
    %431 = arith.mulf %430, %429 : vector<32x128xf32>
    %c224_422 = arith.constant 224 : index
    %c0_423 = arith.constant 0 : index
    %432 = vector.load %arg16[%c224_422, %c0_423] : memref<288x128xf32, #tpu.memory_space<vmem>>, vector<32x128xf32>
    tpu.vector_store %arg16[%c224_422, %c0_423], %431 {strides = array<i32>} : memref<288x128xf32, #tpu.memory_space<vmem>>, vector<32x128xf32>,
    %c8_424 = arith.constant 8 : index
    %c0_425 = arith.constant 0 : index
    %433 = vector.load %arg4[%c8_424, %c0_425] : memref<9x128xf32, #tpu.memory_space<vmem>>, vector<1x128xf32>
    %c111_i32_426 = arith.constant 111 : i32
    %434 = tpu.dynamic_rotate %396 by %c111_i32_426 dim 1 : vector<32x128xf32>, i32 -> vector<32x128xf32>
    %435 = vector.broadcast %433 : vector<1x128xf32> to vector<32x128xf32>
    %436 = arith.mulf %435, %434 : vector<32x128xf32>
    %c256_427 = arith.constant 256 : index
    %c0_428 = arith.constant 0 : index
    %437 = vector.load %arg16[%c256_427, %c0_428] : memref<288x128xf32, #tpu.memory_space<vmem>>, vector<32x128xf32>
    tpu.vector_store %arg16[%c256_427, %c0_428], %436 {strides = array<i32>} : memref<288x128xf32, #tpu.memory_space<vmem>>, vector<32x128xf32>,
    %c1_429 = arith.constant 1 : index
    %c0_430 = arith.constant 0 : index
    %c0_431 = arith.constant 0 : index
    %438 = vector.load %arg8[%c1_429, %c0_430, %c0_431] : memref<3x2x288xf32, #tpu.memory_space<vmem>>, vector<1x2x288xf32>
    %439 = vector.shape_cast %438 : vector<1x2x288xf32> to vector<2x288xf32>
    %c0_432 = arith.constant 0 : index
    %c0_433 = arith.constant 0 : index
    %440 = vector.load %arg16[%c0_432, %c0_433] : memref<288x128xf32, #tpu.memory_space<vmem>>, vector<288x128xf32>
    %cst_434 = arith.constant dense<0.000000e+00> : vector<2x128xf32>
    %441 = tpu.matmul %439, %440, %cst_434 {dimension_numbers = #tpu.dot_dimension_numbers<[1], [0], [0], [1], [0, 0, 1, 1], [], []>} : vector<2x288xf32>, vector<288x128xf32>, vector<2x128xf32> -> vector<2x128xf32>
    %442 = arith.addf %174, %441 : vector<2x128xf32>
    %c1_435 = arith.constant 1 : index
    %c0_436 = arith.constant 0 : index
    %c0_437 = arith.constant 0 : index
    %443 = vector.load %arg9[%c1_435, %c0_436, %c0_437] : memref<3x2x1xf32, #tpu.memory_space<vmem>>, vector<1x2x1xf32>
    %444 = vector.shape_cast %443 : vector<1x2x1xf32> to vector<2x1xf32>
    %445 = vector.broadcast %444 : vector<2x1xf32> to vector<2x128xf32>
    %446 = arith.addf %442, %445 : vector<2x128xf32>
    %447 = vector.extract_strided_slice %446 {offsets = [0, 0], sizes = [1, 128], strides = [1, 1]} : vector<2x128xf32> to vector<1x128xf32>
    %cst_438 = arith.constant dense<0.000000e+00> : vector<1x256xf32>
    %448 = tpu.matmul %447, %3, %cst_438 {dimension_numbers = #tpu.dot_dimension_numbers<[1], [0], [0], [1], [0, 0, 1, 1], [], []>} : vector<1x128xf32>, vector<128x256xf32>, vector<1x256xf32> -> vector<1x256xf32>
    %c0_439 = arith.constant 0 : index
    %c0_440 = arith.constant 0 : index
    %449 = vector.load %arg5[%c0_439, %c0_440] : memref<9x256xf32, #tpu.memory_space<vmem>>, vector<1x256xf32>
    %c17_i32_441 = arith.constant 17 : i32
    %450 = tpu.dynamic_rotate %310 by %c17_i32_441 dim 1 : vector<2x256xf32>, i32 -> vector<2x256xf32>
    %451 = vector.broadcast %449 : vector<1x256xf32> to vector<2x256xf32>
    %452 = arith.mulf %451, %450 : vector<2x256xf32>
    %c0_442 = arith.constant 0 : index
    %c0_443 = arith.constant 0 : index
    %453 = vector.load %arg17[%c0_442, %c0_443] : memref<27x256xf32, #tpu.memory_space<vmem>>, vector<2x256xf32>
    tpu.vector_store %arg17[%c0_442, %c0_443], %452 {strides = array<i32>} : memref<27x256xf32, #tpu.memory_space<vmem>>, vector<2x256xf32>,
    %c1_444 = arith.constant 1 : index
    %c0_445 = arith.constant 0 : index
    %454 = vector.load %arg5[%c1_444, %c0_445] : memref<9x256xf32, #tpu.memory_space<vmem>>, vector<1x256xf32>
    %c16_i32_446 = arith.constant 16 : i32
    %455 = tpu.dynamic_rotate %310 by %c16_i32_446 dim 1 : vector<2x256xf32>, i32 -> vector<2x256xf32>
    %456 = vector.broadcast %454 : vector<1x256xf32> to vector<2x256xf32>
    %457 = arith.mulf %456, %455 : vector<2x256xf32>
    %c2_447 = arith.constant 2 : index
    %c0_448 = arith.constant 0 : index
    %458 = vector.load %arg17[%c2_447, %c0_448] : memref<27x256xf32, #tpu.memory_space<vmem>>, vector<2x256xf32>
    tpu.vector_store %arg17[%c2_447, %c0_448], %457 {strides = array<i32>} : memref<27x256xf32, #tpu.memory_space<vmem>>, vector<2x256xf32>,
    %c2_449 = arith.constant 2 : index
    %c0_450 = arith.constant 0 : index
    %459 = vector.load %arg5[%c2_449, %c0_450] : memref<9x256xf32, #tpu.memory_space<vmem>>, vector<1x256xf32>
    %c15_i32_451 = arith.constant 15 : i32
    %460 = tpu.dynamic_rotate %310 by %c15_i32_451 dim 1 : vector<2x256xf32>, i32 -> vector<2x256xf32>
    %461 = vector.broadcast %459 : vector<1x256xf32> to vector<2x256xf32>
    %462 = arith.mulf %461, %460 : vector<2x256xf32>
    %c4_452 = arith.constant 4 : index
    %c0_453 = arith.constant 0 : index
    %463 = vector.load %arg17[%c4_452, %c0_453] : memref<27x256xf32, #tpu.memory_space<vmem>>, vector<2x256xf32>
    tpu.vector_store %arg17[%c4_452, %c0_453], %462 {strides = array<i32>} : memref<27x256xf32, #tpu.memory_space<vmem>>, vector<2x256xf32>,
    %c3_454 = arith.constant 3 : index
    %c0_455 = arith.constant 0 : index
    %464 = vector.load %arg5[%c3_454, %c0_455] : memref<9x256xf32, #tpu.memory_space<vmem>>, vector<1x256xf32>
    %c1_i32_456 = arith.constant 1 : i32
    %465 = tpu.dynamic_rotate %310 by %c1_i32_456 dim 1 : vector<2x256xf32>, i32 -> vector<2x256xf32>
    %466 = vector.broadcast %464 : vector<1x256xf32> to vector<2x256xf32>
    %467 = arith.mulf %466, %465 : vector<2x256xf32>
    %c6_457 = arith.constant 6 : index
    %c0_458 = arith.constant 0 : index
    %468 = vector.load %arg17[%c6_457, %c0_458] : memref<27x256xf32, #tpu.memory_space<vmem>>, vector<2x256xf32>
    tpu.vector_store %arg17[%c6_457, %c0_458], %467 {strides = array<i32>} : memref<27x256xf32, #tpu.memory_space<vmem>>, vector<2x256xf32>,
    %c8_459 = arith.constant 8 : index
    %c0_460 = arith.constant 0 : index
    %469 = vector.load %arg17[%c8_459, %c0_460] : memref<27x256xf32, #tpu.memory_space<vmem>>, vector<2x256xf32>
    tpu.vector_store %arg17[%c8_459, %c0_460], %310 {strides = array<i32>} : memref<27x256xf32, #tpu.memory_space<vmem>>, vector<2x256xf32>,
    %c5_461 = arith.constant 5 : index
    %c0_462 = arith.constant 0 : index
    %470 = vector.load %arg5[%c5_461, %c0_462] : memref<9x256xf32, #tpu.memory_space<vmem>>, vector<1x256xf32>
    %c255_i32_463 = arith.constant 255 : i32
    %471 = tpu.dynamic_rotate %310 by %c255_i32_463 dim 1 : vector<2x256xf32>, i32 -> vector<2x256xf32>
    %472 = vector.broadcast %470 : vector<1x256xf32> to vector<2x256xf32>
    %473 = arith.mulf %472, %471 : vector<2x256xf32>
    %c10_464 = arith.constant 10 : index
    %c0_465 = arith.constant 0 : index
    %474 = vector.load %arg17[%c10_464, %c0_465] : memref<27x256xf32, #tpu.memory_space<vmem>>, vector<2x256xf32>
    tpu.vector_store %arg17[%c10_464, %c0_465], %473 {strides = array<i32>} : memref<27x256xf32, #tpu.memory_space<vmem>>, vector<2x256xf32>,
    %c6_466 = arith.constant 6 : index
    %c0_467 = arith.constant 0 : index
    %475 = vector.load %arg5[%c6_466, %c0_467] : memref<9x256xf32, #tpu.memory_space<vmem>>, vector<1x256xf32>
    %c241_i32_468 = arith.constant 241 : i32
    %476 = tpu.dynamic_rotate %310 by %c241_i32_468 dim 1 : vector<2x256xf32>, i32 -> vector<2x256xf32>
    %477 = vector.broadcast %475 : vector<1x256xf32> to vector<2x256xf32>
    %478 = arith.mulf %477, %476 : vector<2x256xf32>
    %c12_469 = arith.constant 12 : index
    %c0_470 = arith.constant 0 : index
    %479 = vector.load %arg17[%c12_469, %c0_470] : memref<27x256xf32, #tpu.memory_space<vmem>>, vector<2x256xf32>
    tpu.vector_store %arg17[%c12_469, %c0_470], %478 {strides = array<i32>} : memref<27x256xf32, #tpu.memory_space<vmem>>, vector<2x256xf32>,
    %c7_471 = arith.constant 7 : index
    %c0_472 = arith.constant 0 : index
    %480 = vector.load %arg5[%c7_471, %c0_472] : memref<9x256xf32, #tpu.memory_space<vmem>>, vector<1x256xf32>
    %c240_i32_473 = arith.constant 240 : i32
    %481 = tpu.dynamic_rotate %310 by %c240_i32_473 dim 1 : vector<2x256xf32>, i32 -> vector<2x256xf32>
    %482 = vector.broadcast %480 : vector<1x256xf32> to vector<2x256xf32>
    %483 = arith.mulf %482, %481 : vector<2x256xf32>
    %c14_474 = arith.constant 14 : index
    %c0_475 = arith.constant 0 : index
    %484 = vector.load %arg17[%c14_474, %c0_475] : memref<27x256xf32, #tpu.memory_space<vmem>>, vector<2x256xf32>
    tpu.vector_store %arg17[%c14_474, %c0_475], %483 {strides = array<i32>} : memref<27x256xf32, #tpu.memory_space<vmem>>, vector<2x256xf32>,
    %c8_476 = arith.constant 8 : index
    %c0_477 = arith.constant 0 : index
    %485 = vector.load %arg5[%c8_476, %c0_477] : memref<9x256xf32, #tpu.memory_space<vmem>>, vector<1x256xf32>
    %c239_i32_478 = arith.constant 239 : i32
    %486 = tpu.dynamic_rotate %310 by %c239_i32_478 dim 1 : vector<2x256xf32>, i32 -> vector<2x256xf32>
    %487 = vector.broadcast %485 : vector<1x256xf32> to vector<2x256xf32>
    %488 = arith.mulf %487, %486 : vector<2x256xf32>
    %c16_479 = arith.constant 16 : index
    %c0_480 = arith.constant 0 : index
    %489 = vector.load %arg17[%c16_479, %c0_480] : memref<27x256xf32, #tpu.memory_space<vmem>>, vector<2x256xf32>
    tpu.vector_store %arg17[%c16_479, %c0_480], %488 {strides = array<i32>} : memref<27x256xf32, #tpu.memory_space<vmem>>, vector<2x256xf32>,
    %c0_481 = arith.constant 0 : index
    %c0_482 = arith.constant 0 : index
    %490 = vector.load %arg5[%c0_481, %c0_482] : memref<9x256xf32, #tpu.memory_space<vmem>>, vector<1x256xf32>
    %c17_i32_483 = arith.constant 17 : i32
    %491 = tpu.dynamic_rotate %448 by %c17_i32_483 dim 1 : vector<1x256xf32>, i32 -> vector<1x256xf32>
    %492 = arith.mulf %490, %491 : vector<1x256xf32>
    %c18_484 = arith.constant 18 : index
    %c0_485 = arith.constant 0 : index
    %493 = vector.load %arg17[%c18_484, %c0_485] : memref<27x256xf32, #tpu.memory_space<vmem>>, vector<1x256xf32>
    tpu.vector_store %arg17[%c18_484, %c0_485], %492 {strides = array<i32>} : memref<27x256xf32, #tpu.memory_space<vmem>>, vector<1x256xf32>,
    %c1_486 = arith.constant 1 : index
    %c0_487 = arith.constant 0 : index
    %494 = vector.load %arg5[%c1_486, %c0_487] : memref<9x256xf32, #tpu.memory_space<vmem>>, vector<1x256xf32>
    %c16_i32_488 = arith.constant 16 : i32
    %495 = tpu.dynamic_rotate %448 by %c16_i32_488 dim 1 : vector<1x256xf32>, i32 -> vector<1x256xf32>
    %496 = arith.mulf %494, %495 : vector<1x256xf32>
    %c19_489 = arith.constant 19 : index
    %c0_490 = arith.constant 0 : index
    %497 = vector.load %arg17[%c19_489, %c0_490] : memref<27x256xf32, #tpu.memory_space<vmem>>, vector<1x256xf32>
    tpu.vector_store %arg17[%c19_489, %c0_490], %496 {strides = array<i32>} : memref<27x256xf32, #tpu.memory_space<vmem>>, vector<1x256xf32>,
    %c2_491 = arith.constant 2 : index
    %c0_492 = arith.constant 0 : index
    %498 = vector.load %arg5[%c2_491, %c0_492] : memref<9x256xf32, #tpu.memory_space<vmem>>, vector<1x256xf32>
    %c15_i32_493 = arith.constant 15 : i32
    %499 = tpu.dynamic_rotate %448 by %c15_i32_493 dim 1 : vector<1x256xf32>, i32 -> vector<1x256xf32>
    %500 = arith.mulf %498, %499 : vector<1x256xf32>
    %c20_494 = arith.constant 20 : index
    %c0_495 = arith.constant 0 : index
    %501 = vector.load %arg17[%c20_494, %c0_495] : memref<27x256xf32, #tpu.memory_space<vmem>>, vector<1x256xf32>
    tpu.vector_store %arg17[%c20_494, %c0_495], %500 {strides = array<i32>} : memref<27x256xf32, #tpu.memory_space<vmem>>, vector<1x256xf32>,
    %c3_496 = arith.constant 3 : index
    %c0_497 = arith.constant 0 : index
    %502 = vector.load %arg5[%c3_496, %c0_497] : memref<9x256xf32, #tpu.memory_space<vmem>>, vector<1x256xf32>
    %c1_i32_498 = arith.constant 1 : i32
    %503 = tpu.dynamic_rotate %448 by %c1_i32_498 dim 1 : vector<1x256xf32>, i32 -> vector<1x256xf32>
    %504 = arith.mulf %502, %503 : vector<1x256xf32>
    %c21_499 = arith.constant 21 : index
    %c0_500 = arith.constant 0 : index
    %505 = vector.load %arg17[%c21_499, %c0_500] : memref<27x256xf32, #tpu.memory_space<vmem>>, vector<1x256xf32>
    tpu.vector_store %arg17[%c21_499, %c0_500], %504 {strides = array<i32>} : memref<27x256xf32, #tpu.memory_space<vmem>>, vector<1x256xf32>,
    %c22_501 = arith.constant 22 : index
    %c0_502 = arith.constant 0 : index
    %506 = vector.load %arg17[%c22_501, %c0_502] : memref<27x256xf32, #tpu.memory_space<vmem>>, vector<1x256xf32>
    tpu.vector_store %arg17[%c22_501, %c0_502], %448 {strides = array<i32>} : memref<27x256xf32, #tpu.memory_space<vmem>>, vector<1x256xf32>,
    %c5_503 = arith.constant 5 : index
    %c0_504 = arith.constant 0 : index
    %507 = vector.load %arg5[%c5_503, %c0_504] : memref<9x256xf32, #tpu.memory_space<vmem>>, vector<1x256xf32>
    %c255_i32_505 = arith.constant 255 : i32
    %508 = tpu.dynamic_rotate %448 by %c255_i32_505 dim 1 : vector<1x256xf32>, i32 -> vector<1x256xf32>
    %509 = arith.mulf %507, %508 : vector<1x256xf32>
    %c23_506 = arith.constant 23 : index
    %c0_507 = arith.constant 0 : index
    %510 = vector.load %arg17[%c23_506, %c0_507] : memref<27x256xf32, #tpu.memory_space<vmem>>, vector<1x256xf32>
    tpu.vector_store %arg17[%c23_506, %c0_507], %509 {strides = array<i32>} : memref<27x256xf32, #tpu.memory_space<vmem>>, vector<1x256xf32>,
    %c6_508 = arith.constant 6 : index
    %c0_509 = arith.constant 0 : index
    %511 = vector.load %arg5[%c6_508, %c0_509] : memref<9x256xf32, #tpu.memory_space<vmem>>, vector<1x256xf32>
    %c241_i32_510 = arith.constant 241 : i32
    %512 = tpu.dynamic_rotate %448 by %c241_i32_510 dim 1 : vector<1x256xf32>, i32 -> vector<1x256xf32>
    %513 = arith.mulf %511, %512 : vector<1x256xf32>
    %c24_511 = arith.constant 24 : index
    %c0_512 = arith.constant 0 : index
    %514 = vector.load %arg17[%c24_511, %c0_512] : memref<27x256xf32, #tpu.memory_space<vmem>>, vector<1x256xf32>
    tpu.vector_store %arg17[%c24_511, %c0_512], %513 {strides = array<i32>} : memref<27x256xf32, #tpu.memory_space<vmem>>, vector<1x256xf32>,
    %c7_513 = arith.constant 7 : index
    %c0_514 = arith.constant 0 : index
    %515 = vector.load %arg5[%c7_513, %c0_514] : memref<9x256xf32, #tpu.memory_space<vmem>>, vector<1x256xf32>
    %c240_i32_515 = arith.constant 240 : i32
    %516 = tpu.dynamic_rotate %448 by %c240_i32_515 dim 1 : vector<1x256xf32>, i32 -> vector<1x256xf32>
    %517 = arith.mulf %515, %516 : vector<1x256xf32>
    %c25_516 = arith.constant 25 : index
    %c0_517 = arith.constant 0 : index
    %518 = vector.load %arg17[%c25_516, %c0_517] : memref<27x256xf32, #tpu.memory_space<vmem>>, vector<1x256xf32>
    tpu.vector_store %arg17[%c25_516, %c0_517], %517 {strides = array<i32>} : memref<27x256xf32, #tpu.memory_space<vmem>>, vector<1x256xf32>,
    %c8_518 = arith.constant 8 : index
    %c0_519 = arith.constant 0 : index
    %519 = vector.load %arg5[%c8_518, %c0_519] : memref<9x256xf32, #tpu.memory_space<vmem>>, vector<1x256xf32>
    %c239_i32_520 = arith.constant 239 : i32
    %520 = tpu.dynamic_rotate %448 by %c239_i32_520 dim 1 : vector<1x256xf32>, i32 -> vector<1x256xf32>
    %521 = arith.mulf %519, %520 : vector<1x256xf32>
    %c26_521 = arith.constant 26 : index
    %c0_522 = arith.constant 0 : index
    %522 = vector.load %arg17[%c26_521, %c0_522] : memref<27x256xf32, #tpu.memory_space<vmem>>, vector<1x256xf32>
    tpu.vector_store %arg17[%c26_521, %c0_522], %521 {strides = array<i32>} : memref<27x256xf32, #tpu.memory_space<vmem>>, vector<1x256xf32>,
    %c1_523 = arith.constant 1 : index
    %c0_524 = arith.constant 0 : index
    %c0_525 = arith.constant 0 : index
    %523 = vector.load %arg10[%c1_523, %c0_524, %c0_525] : memref<3x32x27xf32, #tpu.memory_space<vmem>>, vector<1x32x27xf32>
    %524 = vector.shape_cast %523 : vector<1x32x27xf32> to vector<32x27xf32>
    %c0_526 = arith.constant 0 : index
    %c0_527 = arith.constant 0 : index
    %525 = vector.load %arg17[%c0_526, %c0_527] : memref<27x256xf32, #tpu.memory_space<vmem>>, vector<27x256xf32>
    %cst_528 = arith.constant dense<0.000000e+00> : vector<32x256xf32>
    %526 = tpu.matmul %524, %525, %cst_528 {dimension_numbers = #tpu.dot_dimension_numbers<[1], [0], [0], [1], [0, 0, 1, 1], [], []>} : vector<32x27xf32>, vector<27x256xf32>, vector<32x256xf32> -> vector<32x256xf32>
    %c1_529 = arith.constant 1 : index
    %c0_530 = arith.constant 0 : index
    %c0_531 = arith.constant 0 : index
    %527 = vector.load %arg11[%c1_529, %c0_530, %c0_531] : memref<3x32x1xf32, #tpu.memory_space<vmem>>, vector<1x32x1xf32>
    %528 = vector.shape_cast %527 : vector<1x32x1xf32> to vector<32x1xf32>
    %529 = vector.broadcast %528 : vector<32x1xf32> to vector<32x256xf32>
    %530 = arith.addf %526, %529 : vector<32x256xf32>
    %cst_532 = arith.constant 0.000000e+00 : f32
    %531 = vector.broadcast %cst_532 : f32 to vector<32x256xf32>
    %532 = arith.maximumf %530, %531 : vector<32x256xf32>
    %c0_533 = arith.constant 0 : index
    %c0_534 = arith.constant 0 : index
    %533 = vector.load %arg5[%c0_533, %c0_534] : memref<9x256xf32, #tpu.memory_space<vmem>>, vector<1x256xf32>
    %c17_i32_535 = arith.constant 17 : i32
    %534 = tpu.dynamic_rotate %532 by %c17_i32_535 dim 1 : vector<32x256xf32>, i32 -> vector<32x256xf32>
    %535 = vector.broadcast %533 : vector<1x256xf32> to vector<32x256xf32>
    %536 = arith.mulf %535, %534 : vector<32x256xf32>
    %c0_536 = arith.constant 0 : index
    %c0_537 = arith.constant 0 : index
    %537 = vector.load %arg18[%c0_536, %c0_537] : memref<288x256xf32, #tpu.memory_space<vmem>>, vector<32x256xf32>
    tpu.vector_store %arg18[%c0_536, %c0_537], %536 {strides = array<i32>} : memref<288x256xf32, #tpu.memory_space<vmem>>, vector<32x256xf32>,
    %c1_538 = arith.constant 1 : index
    %c0_539 = arith.constant 0 : index
    %538 = vector.load %arg5[%c1_538, %c0_539] : memref<9x256xf32, #tpu.memory_space<vmem>>, vector<1x256xf32>
    %c16_i32_540 = arith.constant 16 : i32
    %539 = tpu.dynamic_rotate %532 by %c16_i32_540 dim 1 : vector<32x256xf32>, i32 -> vector<32x256xf32>
    %540 = vector.broadcast %538 : vector<1x256xf32> to vector<32x256xf32>
    %541 = arith.mulf %540, %539 : vector<32x256xf32>
    %c32_541 = arith.constant 32 : index
    %c0_542 = arith.constant 0 : index
    %542 = vector.load %arg18[%c32_541, %c0_542] : memref<288x256xf32, #tpu.memory_space<vmem>>, vector<32x256xf32>
    tpu.vector_store %arg18[%c32_541, %c0_542], %541 {strides = array<i32>} : memref<288x256xf32, #tpu.memory_space<vmem>>, vector<32x256xf32>,
    %c2_543 = arith.constant 2 : index
    %c0_544 = arith.constant 0 : index
    %543 = vector.load %arg5[%c2_543, %c0_544] : memref<9x256xf32, #tpu.memory_space<vmem>>, vector<1x256xf32>
    %c15_i32_545 = arith.constant 15 : i32
    %544 = tpu.dynamic_rotate %532 by %c15_i32_545 dim 1 : vector<32x256xf32>, i32 -> vector<32x256xf32>
    %545 = vector.broadcast %543 : vector<1x256xf32> to vector<32x256xf32>
    %546 = arith.mulf %545, %544 : vector<32x256xf32>
    %c64_546 = arith.constant 64 : index
    %c0_547 = arith.constant 0 : index
    %547 = vector.load %arg18[%c64_546, %c0_547] : memref<288x256xf32, #tpu.memory_space<vmem>>, vector<32x256xf32>
    tpu.vector_store %arg18[%c64_546, %c0_547], %546 {strides = array<i32>} : memref<288x256xf32, #tpu.memory_space<vmem>>, vector<32x256xf32>,
    %c3_548 = arith.constant 3 : index
    %c0_549 = arith.constant 0 : index
    %548 = vector.load %arg5[%c3_548, %c0_549] : memref<9x256xf32, #tpu.memory_space<vmem>>, vector<1x256xf32>
    %c1_i32_550 = arith.constant 1 : i32
    %549 = tpu.dynamic_rotate %532 by %c1_i32_550 dim 1 : vector<32x256xf32>, i32 -> vector<32x256xf32>
    %550 = vector.broadcast %548 : vector<1x256xf32> to vector<32x256xf32>
    %551 = arith.mulf %550, %549 : vector<32x256xf32>
    %c96_551 = arith.constant 96 : index
    %c0_552 = arith.constant 0 : index
    %552 = vector.load %arg18[%c96_551, %c0_552] : memref<288x256xf32, #tpu.memory_space<vmem>>, vector<32x256xf32>
    tpu.vector_store %arg18[%c96_551, %c0_552], %551 {strides = array<i32>} : memref<288x256xf32, #tpu.memory_space<vmem>>, vector<32x256xf32>,
    %c128_553 = arith.constant 128 : index
    %c0_554 = arith.constant 0 : index
    %553 = vector.load %arg18[%c128_553, %c0_554] : memref<288x256xf32, #tpu.memory_space<vmem>>, vector<32x256xf32>
    tpu.vector_store %arg18[%c128_553, %c0_554], %532 {strides = array<i32>} : memref<288x256xf32, #tpu.memory_space<vmem>>, vector<32x256xf32>,
    %c5_555 = arith.constant 5 : index
    %c0_556 = arith.constant 0 : index
    %554 = vector.load %arg5[%c5_555, %c0_556] : memref<9x256xf32, #tpu.memory_space<vmem>>, vector<1x256xf32>
    %c255_i32_557 = arith.constant 255 : i32
    %555 = tpu.dynamic_rotate %532 by %c255_i32_557 dim 1 : vector<32x256xf32>, i32 -> vector<32x256xf32>
    %556 = vector.broadcast %554 : vector<1x256xf32> to vector<32x256xf32>
    %557 = arith.mulf %556, %555 : vector<32x256xf32>
    %c160_558 = arith.constant 160 : index
    %c0_559 = arith.constant 0 : index
    %558 = vector.load %arg18[%c160_558, %c0_559] : memref<288x256xf32, #tpu.memory_space<vmem>>, vector<32x256xf32>
    tpu.vector_store %arg18[%c160_558, %c0_559], %557 {strides = array<i32>} : memref<288x256xf32, #tpu.memory_space<vmem>>, vector<32x256xf32>,
    %c6_560 = arith.constant 6 : index
    %c0_561 = arith.constant 0 : index
    %559 = vector.load %arg5[%c6_560, %c0_561] : memref<9x256xf32, #tpu.memory_space<vmem>>, vector<1x256xf32>
    %c241_i32_562 = arith.constant 241 : i32
    %560 = tpu.dynamic_rotate %532 by %c241_i32_562 dim 1 : vector<32x256xf32>, i32 -> vector<32x256xf32>
    %561 = vector.broadcast %559 : vector<1x256xf32> to vector<32x256xf32>
    %562 = arith.mulf %561, %560 : vector<32x256xf32>
    %c192_563 = arith.constant 192 : index
    %c0_564 = arith.constant 0 : index
    %563 = vector.load %arg18[%c192_563, %c0_564] : memref<288x256xf32, #tpu.memory_space<vmem>>, vector<32x256xf32>
    tpu.vector_store %arg18[%c192_563, %c0_564], %562 {strides = array<i32>} : memref<288x256xf32, #tpu.memory_space<vmem>>, vector<32x256xf32>,
    %c7_565 = arith.constant 7 : index
    %c0_566 = arith.constant 0 : index
    %564 = vector.load %arg5[%c7_565, %c0_566] : memref<9x256xf32, #tpu.memory_space<vmem>>, vector<1x256xf32>
    %c240_i32_567 = arith.constant 240 : i32
    %565 = tpu.dynamic_rotate %532 by %c240_i32_567 dim 1 : vector<32x256xf32>, i32 -> vector<32x256xf32>
    %566 = vector.broadcast %564 : vector<1x256xf32> to vector<32x256xf32>
    %567 = arith.mulf %566, %565 : vector<32x256xf32>
    %c224_568 = arith.constant 224 : index
    %c0_569 = arith.constant 0 : index
    %568 = vector.load %arg18[%c224_568, %c0_569] : memref<288x256xf32, #tpu.memory_space<vmem>>, vector<32x256xf32>
    tpu.vector_store %arg18[%c224_568, %c0_569], %567 {strides = array<i32>} : memref<288x256xf32, #tpu.memory_space<vmem>>, vector<32x256xf32>,
    %c8_570 = arith.constant 8 : index
    %c0_571 = arith.constant 0 : index
    %569 = vector.load %arg5[%c8_570, %c0_571] : memref<9x256xf32, #tpu.memory_space<vmem>>, vector<1x256xf32>
    %c239_i32_572 = arith.constant 239 : i32
    %570 = tpu.dynamic_rotate %532 by %c239_i32_572 dim 1 : vector<32x256xf32>, i32 -> vector<32x256xf32>
    %571 = vector.broadcast %569 : vector<1x256xf32> to vector<32x256xf32>
    %572 = arith.mulf %571, %570 : vector<32x256xf32>
    %c256_573 = arith.constant 256 : index
    %c0_574 = arith.constant 0 : index
    %573 = vector.load %arg18[%c256_573, %c0_574] : memref<288x256xf32, #tpu.memory_space<vmem>>, vector<32x256xf32>
    tpu.vector_store %arg18[%c256_573, %c0_574], %572 {strides = array<i32>} : memref<288x256xf32, #tpu.memory_space<vmem>>, vector<32x256xf32>,
    %c1_575 = arith.constant 1 : index
    %c0_576 = arith.constant 0 : index
    %c0_577 = arith.constant 0 : index
    %574 = vector.load %arg12[%c1_575, %c0_576, %c0_577] : memref<3x2x288xf32, #tpu.memory_space<vmem>>, vector<1x2x288xf32>
    %575 = vector.shape_cast %574 : vector<1x2x288xf32> to vector<2x288xf32>
    %c0_578 = arith.constant 0 : index
    %c0_579 = arith.constant 0 : index
    %576 = vector.load %arg18[%c0_578, %c0_579] : memref<288x256xf32, #tpu.memory_space<vmem>>, vector<288x256xf32>
    %cst_580 = arith.constant dense<0.000000e+00> : vector<2x256xf32>
    %577 = tpu.matmul %575, %576, %cst_580 {dimension_numbers = #tpu.dot_dimension_numbers<[1], [0], [0], [1], [0, 0, 1, 1], [], []>} : vector<2x288xf32>, vector<288x256xf32>, vector<2x256xf32> -> vector<2x256xf32>
    %578 = arith.addf %310, %577 : vector<2x256xf32>
    %c1_581 = arith.constant 1 : index
    %c0_582 = arith.constant 0 : index
    %c0_583 = arith.constant 0 : index
    %579 = vector.load %arg13[%c1_581, %c0_582, %c0_583] : memref<3x2x1xf32, #tpu.memory_space<vmem>>, vector<1x2x1xf32>
    %580 = vector.shape_cast %579 : vector<1x2x1xf32> to vector<2x1xf32>
    %581 = vector.broadcast %580 : vector<2x1xf32> to vector<2x256xf32>
    %582 = arith.addf %578, %581 : vector<2x256xf32>
    %583 = vector.extract_strided_slice %582 {offsets = [1, 0], sizes = [1, 256], strides = [1, 1]} : vector<2x256xf32> to vector<1x256xf32>
    %cst_584 = arith.constant dense<0.000000e+00> : vector<1x128xf32>
    %584 = tpu.matmul %583, %2, %cst_584 {dimension_numbers = #tpu.dot_dimension_numbers<[1], [0], [0], [1], [0, 0, 1, 1], [], []>} : vector<1x256xf32>, vector<256x128xf32>, vector<1x128xf32> -> vector<1x128xf32>
    %c0_585 = arith.constant 0 : index
    %c0_586 = arith.constant 0 : index
    %585 = vector.load %arg4[%c0_585, %c0_586] : memref<9x128xf32, #tpu.memory_space<vmem>>, vector<1x128xf32>
    %c17_i32_587 = arith.constant 17 : i32
    %586 = tpu.dynamic_rotate %446 by %c17_i32_587 dim 1 : vector<2x128xf32>, i32 -> vector<2x128xf32>
    %587 = vector.broadcast %585 : vector<1x128xf32> to vector<2x128xf32>
    %588 = arith.mulf %587, %586 : vector<2x128xf32>
    %c0_588 = arith.constant 0 : index
    %c0_589 = arith.constant 0 : index
    %589 = vector.load %arg15[%c0_588, %c0_589] : memref<36x128xf32, #tpu.memory_space<vmem>>, vector<2x128xf32>
    tpu.vector_store %arg15[%c0_588, %c0_589], %588 {strides = array<i32>} : memref<36x128xf32, #tpu.memory_space<vmem>>, vector<2x128xf32>,
    %c1_590 = arith.constant 1 : index
    %c0_591 = arith.constant 0 : index
    %590 = vector.load %arg4[%c1_590, %c0_591] : memref<9x128xf32, #tpu.memory_space<vmem>>, vector<1x128xf32>
    %c16_i32_592 = arith.constant 16 : i32
    %591 = tpu.dynamic_rotate %446 by %c16_i32_592 dim 1 : vector<2x128xf32>, i32 -> vector<2x128xf32>
    %592 = vector.broadcast %590 : vector<1x128xf32> to vector<2x128xf32>
    %593 = arith.mulf %592, %591 : vector<2x128xf32>
    %c2_593 = arith.constant 2 : index
    %c0_594 = arith.constant 0 : index
    %594 = vector.load %arg15[%c2_593, %c0_594] : memref<36x128xf32, #tpu.memory_space<vmem>>, vector<2x128xf32>
    tpu.vector_store %arg15[%c2_593, %c0_594], %593 {strides = array<i32>} : memref<36x128xf32, #tpu.memory_space<vmem>>, vector<2x128xf32>,
    %c2_595 = arith.constant 2 : index
    %c0_596 = arith.constant 0 : index
    %595 = vector.load %arg4[%c2_595, %c0_596] : memref<9x128xf32, #tpu.memory_space<vmem>>, vector<1x128xf32>
    %c15_i32_597 = arith.constant 15 : i32
    %596 = tpu.dynamic_rotate %446 by %c15_i32_597 dim 1 : vector<2x128xf32>, i32 -> vector<2x128xf32>
    %597 = vector.broadcast %595 : vector<1x128xf32> to vector<2x128xf32>
    %598 = arith.mulf %597, %596 : vector<2x128xf32>
    %c4_598 = arith.constant 4 : index
    %c0_599 = arith.constant 0 : index
    %599 = vector.load %arg15[%c4_598, %c0_599] : memref<36x128xf32, #tpu.memory_space<vmem>>, vector<2x128xf32>
    tpu.vector_store %arg15[%c4_598, %c0_599], %598 {strides = array<i32>} : memref<36x128xf32, #tpu.memory_space<vmem>>, vector<2x128xf32>,
    %c3_600 = arith.constant 3 : index
    %c0_601 = arith.constant 0 : index
    %600 = vector.load %arg4[%c3_600, %c0_601] : memref<9x128xf32, #tpu.memory_space<vmem>>, vector<1x128xf32>
    %c1_i32_602 = arith.constant 1 : i32
    %601 = tpu.dynamic_rotate %446 by %c1_i32_602 dim 1 : vector<2x128xf32>, i32 -> vector<2x128xf32>
    %602 = vector.broadcast %600 : vector<1x128xf32> to vector<2x128xf32>
    %603 = arith.mulf %602, %601 : vector<2x128xf32>
    %c6_603 = arith.constant 6 : index
    %c0_604 = arith.constant 0 : index
    %604 = vector.load %arg15[%c6_603, %c0_604] : memref<36x128xf32, #tpu.memory_space<vmem>>, vector<2x128xf32>
    tpu.vector_store %arg15[%c6_603, %c0_604], %603 {strides = array<i32>} : memref<36x128xf32, #tpu.memory_space<vmem>>, vector<2x128xf32>,
    %c8_605 = arith.constant 8 : index
    %c0_606 = arith.constant 0 : index
    %605 = vector.load %arg15[%c8_605, %c0_606] : memref<36x128xf32, #tpu.memory_space<vmem>>, vector<2x128xf32>
    tpu.vector_store %arg15[%c8_605, %c0_606], %446 {strides = array<i32>} : memref<36x128xf32, #tpu.memory_space<vmem>>, vector<2x128xf32>,
    %c5_607 = arith.constant 5 : index
    %c0_608 = arith.constant 0 : index
    %606 = vector.load %arg4[%c5_607, %c0_608] : memref<9x128xf32, #tpu.memory_space<vmem>>, vector<1x128xf32>
    %c127_i32_609 = arith.constant 127 : i32
    %607 = tpu.dynamic_rotate %446 by %c127_i32_609 dim 1 : vector<2x128xf32>, i32 -> vector<2x128xf32>
    %608 = vector.broadcast %606 : vector<1x128xf32> to vector<2x128xf32>
    %609 = arith.mulf %608, %607 : vector<2x128xf32>
    %c10_610 = arith.constant 10 : index
    %c0_611 = arith.constant 0 : index
    %610 = vector.load %arg15[%c10_610, %c0_611] : memref<36x128xf32, #tpu.memory_space<vmem>>, vector<2x128xf32>
    tpu.vector_store %arg15[%c10_610, %c0_611], %609 {strides = array<i32>} : memref<36x128xf32, #tpu.memory_space<vmem>>, vector<2x128xf32>,
    %c6_612 = arith.constant 6 : index
    %c0_613 = arith.constant 0 : index
    %611 = vector.load %arg4[%c6_612, %c0_613] : memref<9x128xf32, #tpu.memory_space<vmem>>, vector<1x128xf32>
    %c113_i32_614 = arith.constant 113 : i32
    %612 = tpu.dynamic_rotate %446 by %c113_i32_614 dim 1 : vector<2x128xf32>, i32 -> vector<2x128xf32>
    %613 = vector.broadcast %611 : vector<1x128xf32> to vector<2x128xf32>
    %614 = arith.mulf %613, %612 : vector<2x128xf32>
    %c12_615 = arith.constant 12 : index
    %c0_616 = arith.constant 0 : index
    %615 = vector.load %arg15[%c12_615, %c0_616] : memref<36x128xf32, #tpu.memory_space<vmem>>, vector<2x128xf32>
    tpu.vector_store %arg15[%c12_615, %c0_616], %614 {strides = array<i32>} : memref<36x128xf32, #tpu.memory_space<vmem>>, vector<2x128xf32>,
    %c7_617 = arith.constant 7 : index
    %c0_618 = arith.constant 0 : index
    %616 = vector.load %arg4[%c7_617, %c0_618] : memref<9x128xf32, #tpu.memory_space<vmem>>, vector<1x128xf32>
    %c112_i32_619 = arith.constant 112 : i32
    %617 = tpu.dynamic_rotate %446 by %c112_i32_619 dim 1 : vector<2x128xf32>, i32 -> vector<2x128xf32>
    %618 = vector.broadcast %616 : vector<1x128xf32> to vector<2x128xf32>
    %619 = arith.mulf %618, %617 : vector<2x128xf32>
    %c14_620 = arith.constant 14 : index
    %c0_621 = arith.constant 0 : index
    %620 = vector.load %arg15[%c14_620, %c0_621] : memref<36x128xf32, #tpu.memory_space<vmem>>, vector<2x128xf32>
    tpu.vector_store %arg15[%c14_620, %c0_621], %619 {strides = array<i32>} : memref<36x128xf32, #tpu.memory_space<vmem>>, vector<2x128xf32>,
    %c8_622 = arith.constant 8 : index
    %c0_623 = arith.constant 0 : index
    %621 = vector.load %arg4[%c8_622, %c0_623] : memref<9x128xf32, #tpu.memory_space<vmem>>, vector<1x128xf32>
    %c111_i32_624 = arith.constant 111 : i32
    %622 = tpu.dynamic_rotate %446 by %c111_i32_624 dim 1 : vector<2x128xf32>, i32 -> vector<2x128xf32>
    %623 = vector.broadcast %621 : vector<1x128xf32> to vector<2x128xf32>
    %624 = arith.mulf %623, %622 : vector<2x128xf32>
    %c16_625 = arith.constant 16 : index
    %c0_626 = arith.constant 0 : index
    %625 = vector.load %arg15[%c16_625, %c0_626] : memref<36x128xf32, #tpu.memory_space<vmem>>, vector<2x128xf32>
    tpu.vector_store %arg15[%c16_625, %c0_626], %624 {strides = array<i32>} : memref<36x128xf32, #tpu.memory_space<vmem>>, vector<2x128xf32>,
    %c0_627 = arith.constant 0 : index
    %c0_628 = arith.constant 0 : index
    %626 = vector.load %arg4[%c0_627, %c0_628] : memref<9x128xf32, #tpu.memory_space<vmem>>, vector<1x128xf32>
    %c17_i32_629 = arith.constant 17 : i32
    %627 = tpu.dynamic_rotate %584 by %c17_i32_629 dim 1 : vector<1x128xf32>, i32 -> vector<1x128xf32>
    %628 = arith.mulf %626, %627 : vector<1x128xf32>
    %c18_630 = arith.constant 18 : index
    %c0_631 = arith.constant 0 : index
    %629 = vector.load %arg15[%c18_630, %c0_631] : memref<36x128xf32, #tpu.memory_space<vmem>>, vector<1x128xf32>
    tpu.vector_store %arg15[%c18_630, %c0_631], %628 {strides = array<i32>} : memref<36x128xf32, #tpu.memory_space<vmem>>, vector<1x128xf32>,
    %c1_632 = arith.constant 1 : index
    %c0_633 = arith.constant 0 : index
    %630 = vector.load %arg4[%c1_632, %c0_633] : memref<9x128xf32, #tpu.memory_space<vmem>>, vector<1x128xf32>
    %c16_i32_634 = arith.constant 16 : i32
    %631 = tpu.dynamic_rotate %584 by %c16_i32_634 dim 1 : vector<1x128xf32>, i32 -> vector<1x128xf32>
    %632 = arith.mulf %630, %631 : vector<1x128xf32>
    %c19_635 = arith.constant 19 : index
    %c0_636 = arith.constant 0 : index
    %633 = vector.load %arg15[%c19_635, %c0_636] : memref<36x128xf32, #tpu.memory_space<vmem>>, vector<1x128xf32>
    tpu.vector_store %arg15[%c19_635, %c0_636], %632 {strides = array<i32>} : memref<36x128xf32, #tpu.memory_space<vmem>>, vector<1x128xf32>,
    %c2_637 = arith.constant 2 : index
    %c0_638 = arith.constant 0 : index
    %634 = vector.load %arg4[%c2_637, %c0_638] : memref<9x128xf32, #tpu.memory_space<vmem>>, vector<1x128xf32>
    %c15_i32_639 = arith.constant 15 : i32
    %635 = tpu.dynamic_rotate %584 by %c15_i32_639 dim 1 : vector<1x128xf32>, i32 -> vector<1x128xf32>
    %636 = arith.mulf %634, %635 : vector<1x128xf32>
    %c20_640 = arith.constant 20 : index
    %c0_641 = arith.constant 0 : index
    %637 = vector.load %arg15[%c20_640, %c0_641] : memref<36x128xf32, #tpu.memory_space<vmem>>, vector<1x128xf32>
    tpu.vector_store %arg15[%c20_640, %c0_641], %636 {strides = array<i32>} : memref<36x128xf32, #tpu.memory_space<vmem>>, vector<1x128xf32>,
    %c3_642 = arith.constant 3 : index
    %c0_643 = arith.constant 0 : index
    %638 = vector.load %arg4[%c3_642, %c0_643] : memref<9x128xf32, #tpu.memory_space<vmem>>, vector<1x128xf32>
    %c1_i32_644 = arith.constant 1 : i32
    %639 = tpu.dynamic_rotate %584 by %c1_i32_644 dim 1 : vector<1x128xf32>, i32 -> vector<1x128xf32>
    %640 = arith.mulf %638, %639 : vector<1x128xf32>
    %c21_645 = arith.constant 21 : index
    %c0_646 = arith.constant 0 : index
    %641 = vector.load %arg15[%c21_645, %c0_646] : memref<36x128xf32, #tpu.memory_space<vmem>>, vector<1x128xf32>
    tpu.vector_store %arg15[%c21_645, %c0_646], %640 {strides = array<i32>} : memref<36x128xf32, #tpu.memory_space<vmem>>, vector<1x128xf32>,
    %c22_647 = arith.constant 22 : index
    %c0_648 = arith.constant 0 : index
    %642 = vector.load %arg15[%c22_647, %c0_648] : memref<36x128xf32, #tpu.memory_space<vmem>>, vector<1x128xf32>
    tpu.vector_store %arg15[%c22_647, %c0_648], %584 {strides = array<i32>} : memref<36x128xf32, #tpu.memory_space<vmem>>, vector<1x128xf32>,
    %c5_649 = arith.constant 5 : index
    %c0_650 = arith.constant 0 : index
    %643 = vector.load %arg4[%c5_649, %c0_650] : memref<9x128xf32, #tpu.memory_space<vmem>>, vector<1x128xf32>
    %c127_i32_651 = arith.constant 127 : i32
    %644 = tpu.dynamic_rotate %584 by %c127_i32_651 dim 1 : vector<1x128xf32>, i32 -> vector<1x128xf32>
    %645 = arith.mulf %643, %644 : vector<1x128xf32>
    %c23_652 = arith.constant 23 : index
    %c0_653 = arith.constant 0 : index
    %646 = vector.load %arg15[%c23_652, %c0_653] : memref<36x128xf32, #tpu.memory_space<vmem>>, vector<1x128xf32>
    tpu.vector_store %arg15[%c23_652, %c0_653], %645 {strides = array<i32>} : memref<36x128xf32, #tpu.memory_space<vmem>>, vector<1x128xf32>,
    %c6_654 = arith.constant 6 : index
    %c0_655 = arith.constant 0 : index
    %647 = vector.load %arg4[%c6_654, %c0_655] : memref<9x128xf32, #tpu.memory_space<vmem>>, vector<1x128xf32>
    %c113_i32_656 = arith.constant 113 : i32
    %648 = tpu.dynamic_rotate %584 by %c113_i32_656 dim 1 : vector<1x128xf32>, i32 -> vector<1x128xf32>
    %649 = arith.mulf %647, %648 : vector<1x128xf32>
    %c24_657 = arith.constant 24 : index
    %c0_658 = arith.constant 0 : index
    %650 = vector.load %arg15[%c24_657, %c0_658] : memref<36x128xf32, #tpu.memory_space<vmem>>, vector<1x128xf32>
    tpu.vector_store %arg15[%c24_657, %c0_658], %649 {strides = array<i32>} : memref<36x128xf32, #tpu.memory_space<vmem>>, vector<1x128xf32>,
    %c7_659 = arith.constant 7 : index
    %c0_660 = arith.constant 0 : index
    %651 = vector.load %arg4[%c7_659, %c0_660] : memref<9x128xf32, #tpu.memory_space<vmem>>, vector<1x128xf32>
    %c112_i32_661 = arith.constant 112 : i32
    %652 = tpu.dynamic_rotate %584 by %c112_i32_661 dim 1 : vector<1x128xf32>, i32 -> vector<1x128xf32>
    %653 = arith.mulf %651, %652 : vector<1x128xf32>
    %c25_662 = arith.constant 25 : index
    %c0_663 = arith.constant 0 : index
    %654 = vector.load %arg15[%c25_662, %c0_663] : memref<36x128xf32, #tpu.memory_space<vmem>>, vector<1x128xf32>
    tpu.vector_store %arg15[%c25_662, %c0_663], %653 {strides = array<i32>} : memref<36x128xf32, #tpu.memory_space<vmem>>, vector<1x128xf32>,
    %c8_664 = arith.constant 8 : index
    %c0_665 = arith.constant 0 : index
    %655 = vector.load %arg4[%c8_664, %c0_665] : memref<9x128xf32, #tpu.memory_space<vmem>>, vector<1x128xf32>
    %c111_i32_666 = arith.constant 111 : i32
    %656 = tpu.dynamic_rotate %584 by %c111_i32_666 dim 1 : vector<1x128xf32>, i32 -> vector<1x128xf32>
    %657 = arith.mulf %655, %656 : vector<1x128xf32>
    %c26_667 = arith.constant 26 : index
    %c0_668 = arith.constant 0 : index
    %658 = vector.load %arg15[%c26_667, %c0_668] : memref<36x128xf32, #tpu.memory_space<vmem>>, vector<1x128xf32>
    tpu.vector_store %arg15[%c26_667, %c0_668], %657 {strides = array<i32>} : memref<36x128xf32, #tpu.memory_space<vmem>>, vector<1x128xf32>,
    %c2_669 = arith.constant 2 : index
    %c0_670 = arith.constant 0 : index
    %c0_671 = arith.constant 0 : index
    %659 = vector.load %arg6[%c2_669, %c0_670, %c0_671] : memref<3x32x36xf32, #tpu.memory_space<vmem>>, vector<1x32x36xf32>
    %660 = vector.shape_cast %659 : vector<1x32x36xf32> to vector<32x36xf32>
    %c0_672 = arith.constant 0 : index
    %c0_673 = arith.constant 0 : index
    %661 = vector.load %arg15[%c0_672, %c0_673] : memref<36x128xf32, #tpu.memory_space<vmem>>, vector<36x128xf32>
    %cst_674 = arith.constant dense<0.000000e+00> : vector<32x128xf32>
    %662 = tpu.matmul %660, %661, %cst_674 {dimension_numbers = #tpu.dot_dimension_numbers<[1], [0], [0], [1], [0, 0, 1, 1], [], []>} : vector<32x36xf32>, vector<36x128xf32>, vector<32x128xf32> -> vector<32x128xf32>
    %c2_675 = arith.constant 2 : index
    %c0_676 = arith.constant 0 : index
    %c0_677 = arith.constant 0 : index
    %663 = vector.load %arg7[%c2_675, %c0_676, %c0_677] : memref<3x32x1xf32, #tpu.memory_space<vmem>>, vector<1x32x1xf32>
    %664 = vector.shape_cast %663 : vector<1x32x1xf32> to vector<32x1xf32>
    %665 = vector.broadcast %664 : vector<32x1xf32> to vector<32x128xf32>
    %666 = arith.addf %662, %665 : vector<32x128xf32>
    %cst_678 = arith.constant 0.000000e+00 : f32
    %667 = vector.broadcast %cst_678 : f32 to vector<32x128xf32>
    %668 = arith.maximumf %666, %667 : vector<32x128xf32>
    %c0_679 = arith.constant 0 : index
    %c0_680 = arith.constant 0 : index
    %669 = vector.load %arg4[%c0_679, %c0_680] : memref<9x128xf32, #tpu.memory_space<vmem>>, vector<1x128xf32>
    %c17_i32_681 = arith.constant 17 : i32
    %670 = tpu.dynamic_rotate %668 by %c17_i32_681 dim 1 : vector<32x128xf32>, i32 -> vector<32x128xf32>
    %671 = vector.broadcast %669 : vector<1x128xf32> to vector<32x128xf32>
    %672 = arith.mulf %671, %670 : vector<32x128xf32>
    %c0_682 = arith.constant 0 : index
    %c0_683 = arith.constant 0 : index
    %673 = vector.load %arg16[%c0_682, %c0_683] : memref<288x128xf32, #tpu.memory_space<vmem>>, vector<32x128xf32>
    tpu.vector_store %arg16[%c0_682, %c0_683], %672 {strides = array<i32>} : memref<288x128xf32, #tpu.memory_space<vmem>>, vector<32x128xf32>,
    %c1_684 = arith.constant 1 : index
    %c0_685 = arith.constant 0 : index
    %674 = vector.load %arg4[%c1_684, %c0_685] : memref<9x128xf32, #tpu.memory_space<vmem>>, vector<1x128xf32>
    %c16_i32_686 = arith.constant 16 : i32
    %675 = tpu.dynamic_rotate %668 by %c16_i32_686 dim 1 : vector<32x128xf32>, i32 -> vector<32x128xf32>
    %676 = vector.broadcast %674 : vector<1x128xf32> to vector<32x128xf32>
    %677 = arith.mulf %676, %675 : vector<32x128xf32>
    %c32_687 = arith.constant 32 : index
    %c0_688 = arith.constant 0 : index
    %678 = vector.load %arg16[%c32_687, %c0_688] : memref<288x128xf32, #tpu.memory_space<vmem>>, vector<32x128xf32>
    tpu.vector_store %arg16[%c32_687, %c0_688], %677 {strides = array<i32>} : memref<288x128xf32, #tpu.memory_space<vmem>>, vector<32x128xf32>,
    %c2_689 = arith.constant 2 : index
    %c0_690 = arith.constant 0 : index
    %679 = vector.load %arg4[%c2_689, %c0_690] : memref<9x128xf32, #tpu.memory_space<vmem>>, vector<1x128xf32>
    %c15_i32_691 = arith.constant 15 : i32
    %680 = tpu.dynamic_rotate %668 by %c15_i32_691 dim 1 : vector<32x128xf32>, i32 -> vector<32x128xf32>
    %681 = vector.broadcast %679 : vector<1x128xf32> to vector<32x128xf32>
    %682 = arith.mulf %681, %680 : vector<32x128xf32>
    %c64_692 = arith.constant 64 : index
    %c0_693 = arith.constant 0 : index
    %683 = vector.load %arg16[%c64_692, %c0_693] : memref<288x128xf32, #tpu.memory_space<vmem>>, vector<32x128xf32>
    tpu.vector_store %arg16[%c64_692, %c0_693], %682 {strides = array<i32>} : memref<288x128xf32, #tpu.memory_space<vmem>>, vector<32x128xf32>,
    %c3_694 = arith.constant 3 : index
    %c0_695 = arith.constant 0 : index
    %684 = vector.load %arg4[%c3_694, %c0_695] : memref<9x128xf32, #tpu.memory_space<vmem>>, vector<1x128xf32>
    %c1_i32_696 = arith.constant 1 : i32
    %685 = tpu.dynamic_rotate %668 by %c1_i32_696 dim 1 : vector<32x128xf32>, i32 -> vector<32x128xf32>
    %686 = vector.broadcast %684 : vector<1x128xf32> to vector<32x128xf32>
    %687 = arith.mulf %686, %685 : vector<32x128xf32>
    %c96_697 = arith.constant 96 : index
    %c0_698 = arith.constant 0 : index
    %688 = vector.load %arg16[%c96_697, %c0_698] : memref<288x128xf32, #tpu.memory_space<vmem>>, vector<32x128xf32>
    tpu.vector_store %arg16[%c96_697, %c0_698], %687 {strides = array<i32>} : memref<288x128xf32, #tpu.memory_space<vmem>>, vector<32x128xf32>,
    %c128_699 = arith.constant 128 : index
    %c0_700 = arith.constant 0 : index
    %689 = vector.load %arg16[%c128_699, %c0_700] : memref<288x128xf32, #tpu.memory_space<vmem>>, vector<32x128xf32>
    tpu.vector_store %arg16[%c128_699, %c0_700], %668 {strides = array<i32>} : memref<288x128xf32, #tpu.memory_space<vmem>>, vector<32x128xf32>,
    %c5_701 = arith.constant 5 : index
    %c0_702 = arith.constant 0 : index
    %690 = vector.load %arg4[%c5_701, %c0_702] : memref<9x128xf32, #tpu.memory_space<vmem>>, vector<1x128xf32>
    %c127_i32_703 = arith.constant 127 : i32
    %691 = tpu.dynamic_rotate %668 by %c127_i32_703 dim 1 : vector<32x128xf32>, i32 -> vector<32x128xf32>
    %692 = vector.broadcast %690 : vector<1x128xf32> to vector<32x128xf32>
    %693 = arith.mulf %692, %691 : vector<32x128xf32>
    %c160_704 = arith.constant 160 : index
    %c0_705 = arith.constant 0 : index
    %694 = vector.load %arg16[%c160_704, %c0_705] : memref<288x128xf32, #tpu.memory_space<vmem>>, vector<32x128xf32>
    tpu.vector_store %arg16[%c160_704, %c0_705], %693 {strides = array<i32>} : memref<288x128xf32, #tpu.memory_space<vmem>>, vector<32x128xf32>,
    %c6_706 = arith.constant 6 : index
    %c0_707 = arith.constant 0 : index
    %695 = vector.load %arg4[%c6_706, %c0_707] : memref<9x128xf32, #tpu.memory_space<vmem>>, vector<1x128xf32>
    %c113_i32_708 = arith.constant 113 : i32
    %696 = tpu.dynamic_rotate %668 by %c113_i32_708 dim 1 : vector<32x128xf32>, i32 -> vector<32x128xf32>
    %697 = vector.broadcast %695 : vector<1x128xf32> to vector<32x128xf32>
    %698 = arith.mulf %697, %696 : vector<32x128xf32>
    %c192_709 = arith.constant 192 : index
    %c0_710 = arith.constant 0 : index
    %699 = vector.load %arg16[%c192_709, %c0_710] : memref<288x128xf32, #tpu.memory_space<vmem>>, vector<32x128xf32>
    tpu.vector_store %arg16[%c192_709, %c0_710], %698 {strides = array<i32>} : memref<288x128xf32, #tpu.memory_space<vmem>>, vector<32x128xf32>,
    %c7_711 = arith.constant 7 : index
    %c0_712 = arith.constant 0 : index
    %700 = vector.load %arg4[%c7_711, %c0_712] : memref<9x128xf32, #tpu.memory_space<vmem>>, vector<1x128xf32>
    %c112_i32_713 = arith.constant 112 : i32
    %701 = tpu.dynamic_rotate %668 by %c112_i32_713 dim 1 : vector<32x128xf32>, i32 -> vector<32x128xf32>
    %702 = vector.broadcast %700 : vector<1x128xf32> to vector<32x128xf32>
    %703 = arith.mulf %702, %701 : vector<32x128xf32>
    %c224_714 = arith.constant 224 : index
    %c0_715 = arith.constant 0 : index
    %704 = vector.load %arg16[%c224_714, %c0_715] : memref<288x128xf32, #tpu.memory_space<vmem>>, vector<32x128xf32>
    tpu.vector_store %arg16[%c224_714, %c0_715], %703 {strides = array<i32>} : memref<288x128xf32, #tpu.memory_space<vmem>>, vector<32x128xf32>,
    %c8_716 = arith.constant 8 : index
    %c0_717 = arith.constant 0 : index
    %705 = vector.load %arg4[%c8_716, %c0_717] : memref<9x128xf32, #tpu.memory_space<vmem>>, vector<1x128xf32>
    %c111_i32_718 = arith.constant 111 : i32
    %706 = tpu.dynamic_rotate %668 by %c111_i32_718 dim 1 : vector<32x128xf32>, i32 -> vector<32x128xf32>
    %707 = vector.broadcast %705 : vector<1x128xf32> to vector<32x128xf32>
    %708 = arith.mulf %707, %706 : vector<32x128xf32>
    %c256_719 = arith.constant 256 : index
    %c0_720 = arith.constant 0 : index
    %709 = vector.load %arg16[%c256_719, %c0_720] : memref<288x128xf32, #tpu.memory_space<vmem>>, vector<32x128xf32>
    tpu.vector_store %arg16[%c256_719, %c0_720], %708 {strides = array<i32>} : memref<288x128xf32, #tpu.memory_space<vmem>>, vector<32x128xf32>,
    %c2_721 = arith.constant 2 : index
    %c0_722 = arith.constant 0 : index
    %c0_723 = arith.constant 0 : index
    %710 = vector.load %arg8[%c2_721, %c0_722, %c0_723] : memref<3x2x288xf32, #tpu.memory_space<vmem>>, vector<1x2x288xf32>
    %711 = vector.shape_cast %710 : vector<1x2x288xf32> to vector<2x288xf32>
    %c0_724 = arith.constant 0 : index
    %c0_725 = arith.constant 0 : index
    %712 = vector.load %arg16[%c0_724, %c0_725] : memref<288x128xf32, #tpu.memory_space<vmem>>, vector<288x128xf32>
    %cst_726 = arith.constant dense<0.000000e+00> : vector<2x128xf32>
    %713 = tpu.matmul %711, %712, %cst_726 {dimension_numbers = #tpu.dot_dimension_numbers<[1], [0], [0], [1], [0, 0, 1, 1], [], []>} : vector<2x288xf32>, vector<288x128xf32>, vector<2x128xf32> -> vector<2x128xf32>
    %714 = arith.addf %446, %713 : vector<2x128xf32>
    %c2_727 = arith.constant 2 : index
    %c0_728 = arith.constant 0 : index
    %c0_729 = arith.constant 0 : index
    %715 = vector.load %arg9[%c2_727, %c0_728, %c0_729] : memref<3x2x1xf32, #tpu.memory_space<vmem>>, vector<1x2x1xf32>
    %716 = vector.shape_cast %715 : vector<1x2x1xf32> to vector<2x1xf32>
    %717 = vector.broadcast %716 : vector<2x1xf32> to vector<2x128xf32>
    %718 = arith.addf %714, %717 : vector<2x128xf32>
    %719 = vector.extract_strided_slice %718 {offsets = [0, 0], sizes = [1, 128], strides = [1, 1]} : vector<2x128xf32> to vector<1x128xf32>
    %cst_730 = arith.constant dense<0.000000e+00> : vector<1x256xf32>
    %720 = tpu.matmul %719, %3, %cst_730 {dimension_numbers = #tpu.dot_dimension_numbers<[1], [0], [0], [1], [0, 0, 1, 1], [], []>} : vector<1x128xf32>, vector<128x256xf32>, vector<1x256xf32> -> vector<1x256xf32>
    %c0_731 = arith.constant 0 : index
    %c0_732 = arith.constant 0 : index
    %721 = vector.load %arg5[%c0_731, %c0_732] : memref<9x256xf32, #tpu.memory_space<vmem>>, vector<1x256xf32>
    %c17_i32_733 = arith.constant 17 : i32
    %722 = tpu.dynamic_rotate %582 by %c17_i32_733 dim 1 : vector<2x256xf32>, i32 -> vector<2x256xf32>
    %723 = vector.broadcast %721 : vector<1x256xf32> to vector<2x256xf32>
    %724 = arith.mulf %723, %722 : vector<2x256xf32>
    %c0_734 = arith.constant 0 : index
    %c0_735 = arith.constant 0 : index
    %725 = vector.load %arg17[%c0_734, %c0_735] : memref<27x256xf32, #tpu.memory_space<vmem>>, vector<2x256xf32>
    tpu.vector_store %arg17[%c0_734, %c0_735], %724 {strides = array<i32>} : memref<27x256xf32, #tpu.memory_space<vmem>>, vector<2x256xf32>,
    %c1_736 = arith.constant 1 : index
    %c0_737 = arith.constant 0 : index
    %726 = vector.load %arg5[%c1_736, %c0_737] : memref<9x256xf32, #tpu.memory_space<vmem>>, vector<1x256xf32>
    %c16_i32_738 = arith.constant 16 : i32
    %727 = tpu.dynamic_rotate %582 by %c16_i32_738 dim 1 : vector<2x256xf32>, i32 -> vector<2x256xf32>
    %728 = vector.broadcast %726 : vector<1x256xf32> to vector<2x256xf32>
    %729 = arith.mulf %728, %727 : vector<2x256xf32>
    %c2_739 = arith.constant 2 : index
    %c0_740 = arith.constant 0 : index
    %730 = vector.load %arg17[%c2_739, %c0_740] : memref<27x256xf32, #tpu.memory_space<vmem>>, vector<2x256xf32>
    tpu.vector_store %arg17[%c2_739, %c0_740], %729 {strides = array<i32>} : memref<27x256xf32, #tpu.memory_space<vmem>>, vector<2x256xf32>,
    %c2_741 = arith.constant 2 : index
    %c0_742 = arith.constant 0 : index
    %731 = vector.load %arg5[%c2_741, %c0_742] : memref<9x256xf32, #tpu.memory_space<vmem>>, vector<1x256xf32>
    %c15_i32_743 = arith.constant 15 : i32
    %732 = tpu.dynamic_rotate %582 by %c15_i32_743 dim 1 : vector<2x256xf32>, i32 -> vector<2x256xf32>
    %733 = vector.broadcast %731 : vector<1x256xf32> to vector<2x256xf32>
    %734 = arith.mulf %733, %732 : vector<2x256xf32>
    %c4_744 = arith.constant 4 : index
    %c0_745 = arith.constant 0 : index
    %735 = vector.load %arg17[%c4_744, %c0_745] : memref<27x256xf32, #tpu.memory_space<vmem>>, vector<2x256xf32>
    tpu.vector_store %arg17[%c4_744, %c0_745], %734 {strides = array<i32>} : memref<27x256xf32, #tpu.memory_space<vmem>>, vector<2x256xf32>,
    %c3_746 = arith.constant 3 : index
    %c0_747 = arith.constant 0 : index
    %736 = vector.load %arg5[%c3_746, %c0_747] : memref<9x256xf32, #tpu.memory_space<vmem>>, vector<1x256xf32>
    %c1_i32_748 = arith.constant 1 : i32
    %737 = tpu.dynamic_rotate %582 by %c1_i32_748 dim 1 : vector<2x256xf32>, i32 -> vector<2x256xf32>
    %738 = vector.broadcast %736 : vector<1x256xf32> to vector<2x256xf32>
    %739 = arith.mulf %738, %737 : vector<2x256xf32>
    %c6_749 = arith.constant 6 : index
    %c0_750 = arith.constant 0 : index
    %740 = vector.load %arg17[%c6_749, %c0_750] : memref<27x256xf32, #tpu.memory_space<vmem>>, vector<2x256xf32>
    tpu.vector_store %arg17[%c6_749, %c0_750], %739 {strides = array<i32>} : memref<27x256xf32, #tpu.memory_space<vmem>>, vector<2x256xf32>,
    %c8_751 = arith.constant 8 : index
    %c0_752 = arith.constant 0 : index
    %741 = vector.load %arg17[%c8_751, %c0_752] : memref<27x256xf32, #tpu.memory_space<vmem>>, vector<2x256xf32>
    tpu.vector_store %arg17[%c8_751, %c0_752], %582 {strides = array<i32>} : memref<27x256xf32, #tpu.memory_space<vmem>>, vector<2x256xf32>,
    %c5_753 = arith.constant 5 : index
    %c0_754 = arith.constant 0 : index
    %742 = vector.load %arg5[%c5_753, %c0_754] : memref<9x256xf32, #tpu.memory_space<vmem>>, vector<1x256xf32>
    %c255_i32_755 = arith.constant 255 : i32
    %743 = tpu.dynamic_rotate %582 by %c255_i32_755 dim 1 : vector<2x256xf32>, i32 -> vector<2x256xf32>
    %744 = vector.broadcast %742 : vector<1x256xf32> to vector<2x256xf32>
    %745 = arith.mulf %744, %743 : vector<2x256xf32>
    %c10_756 = arith.constant 10 : index
    %c0_757 = arith.constant 0 : index
    %746 = vector.load %arg17[%c10_756, %c0_757] : memref<27x256xf32, #tpu.memory_space<vmem>>, vector<2x256xf32>
    tpu.vector_store %arg17[%c10_756, %c0_757], %745 {strides = array<i32>} : memref<27x256xf32, #tpu.memory_space<vmem>>, vector<2x256xf32>,
    %c6_758 = arith.constant 6 : index
    %c0_759 = arith.constant 0 : index
    %747 = vector.load %arg5[%c6_758, %c0_759] : memref<9x256xf32, #tpu.memory_space<vmem>>, vector<1x256xf32>
    %c241_i32_760 = arith.constant 241 : i32
    %748 = tpu.dynamic_rotate %582 by %c241_i32_760 dim 1 : vector<2x256xf32>, i32 -> vector<2x256xf32>
    %749 = vector.broadcast %747 : vector<1x256xf32> to vector<2x256xf32>
    %750 = arith.mulf %749, %748 : vector<2x256xf32>
    %c12_761 = arith.constant 12 : index
    %c0_762 = arith.constant 0 : index
    %751 = vector.load %arg17[%c12_761, %c0_762] : memref<27x256xf32, #tpu.memory_space<vmem>>, vector<2x256xf32>
    tpu.vector_store %arg17[%c12_761, %c0_762], %750 {strides = array<i32>} : memref<27x256xf32, #tpu.memory_space<vmem>>, vector<2x256xf32>,
    %c7_763 = arith.constant 7 : index
    %c0_764 = arith.constant 0 : index
    %752 = vector.load %arg5[%c7_763, %c0_764] : memref<9x256xf32, #tpu.memory_space<vmem>>, vector<1x256xf32>
    %c240_i32_765 = arith.constant 240 : i32
    %753 = tpu.dynamic_rotate %582 by %c240_i32_765 dim 1 : vector<2x256xf32>, i32 -> vector<2x256xf32>
    %754 = vector.broadcast %752 : vector<1x256xf32> to vector<2x256xf32>
    %755 = arith.mulf %754, %753 : vector<2x256xf32>
    %c14_766 = arith.constant 14 : index
    %c0_767 = arith.constant 0 : index
    %756 = vector.load %arg17[%c14_766, %c0_767] : memref<27x256xf32, #tpu.memory_space<vmem>>, vector<2x256xf32>
    tpu.vector_store %arg17[%c14_766, %c0_767], %755 {strides = array<i32>} : memref<27x256xf32, #tpu.memory_space<vmem>>, vector<2x256xf32>,
    %c8_768 = arith.constant 8 : index
    %c0_769 = arith.constant 0 : index
    %757 = vector.load %arg5[%c8_768, %c0_769] : memref<9x256xf32, #tpu.memory_space<vmem>>, vector<1x256xf32>
    %c239_i32_770 = arith.constant 239 : i32
    %758 = tpu.dynamic_rotate %582 by %c239_i32_770 dim 1 : vector<2x256xf32>, i32 -> vector<2x256xf32>
    %759 = vector.broadcast %757 : vector<1x256xf32> to vector<2x256xf32>
    %760 = arith.mulf %759, %758 : vector<2x256xf32>
    %c16_771 = arith.constant 16 : index
    %c0_772 = arith.constant 0 : index
    %761 = vector.load %arg17[%c16_771, %c0_772] : memref<27x256xf32, #tpu.memory_space<vmem>>, vector<2x256xf32>
    tpu.vector_store %arg17[%c16_771, %c0_772], %760 {strides = array<i32>} : memref<27x256xf32, #tpu.memory_space<vmem>>, vector<2x256xf32>,
    %c0_773 = arith.constant 0 : index
    %c0_774 = arith.constant 0 : index
    %762 = vector.load %arg5[%c0_773, %c0_774] : memref<9x256xf32, #tpu.memory_space<vmem>>, vector<1x256xf32>
    %c17_i32_775 = arith.constant 17 : i32
    %763 = tpu.dynamic_rotate %720 by %c17_i32_775 dim 1 : vector<1x256xf32>, i32 -> vector<1x256xf32>
    %764 = arith.mulf %762, %763 : vector<1x256xf32>
    %c18_776 = arith.constant 18 : index
    %c0_777 = arith.constant 0 : index
    %765 = vector.load %arg17[%c18_776, %c0_777] : memref<27x256xf32, #tpu.memory_space<vmem>>, vector<1x256xf32>
    tpu.vector_store %arg17[%c18_776, %c0_777], %764 {strides = array<i32>} : memref<27x256xf32, #tpu.memory_space<vmem>>, vector<1x256xf32>,
    %c1_778 = arith.constant 1 : index
    %c0_779 = arith.constant 0 : index
    %766 = vector.load %arg5[%c1_778, %c0_779] : memref<9x256xf32, #tpu.memory_space<vmem>>, vector<1x256xf32>
    %c16_i32_780 = arith.constant 16 : i32
    %767 = tpu.dynamic_rotate %720 by %c16_i32_780 dim 1 : vector<1x256xf32>, i32 -> vector<1x256xf32>
    %768 = arith.mulf %766, %767 : vector<1x256xf32>
    %c19_781 = arith.constant 19 : index
    %c0_782 = arith.constant 0 : index
    %769 = vector.load %arg17[%c19_781, %c0_782] : memref<27x256xf32, #tpu.memory_space<vmem>>, vector<1x256xf32>
    tpu.vector_store %arg17[%c19_781, %c0_782], %768 {strides = array<i32>} : memref<27x256xf32, #tpu.memory_space<vmem>>, vector<1x256xf32>,
    %c2_783 = arith.constant 2 : index
    %c0_784 = arith.constant 0 : index
    %770 = vector.load %arg5[%c2_783, %c0_784] : memref<9x256xf32, #tpu.memory_space<vmem>>, vector<1x256xf32>
    %c15_i32_785 = arith.constant 15 : i32
    %771 = tpu.dynamic_rotate %720 by %c15_i32_785 dim 1 : vector<1x256xf32>, i32 -> vector<1x256xf32>
    %772 = arith.mulf %770, %771 : vector<1x256xf32>
    %c20_786 = arith.constant 20 : index
    %c0_787 = arith.constant 0 : index
    %773 = vector.load %arg17[%c20_786, %c0_787] : memref<27x256xf32, #tpu.memory_space<vmem>>, vector<1x256xf32>
    tpu.vector_store %arg17[%c20_786, %c0_787], %772 {strides = array<i32>} : memref<27x256xf32, #tpu.memory_space<vmem>>, vector<1x256xf32>,
    %c3_788 = arith.constant 3 : index
    %c0_789 = arith.constant 0 : index
    %774 = vector.load %arg5[%c3_788, %c0_789] : memref<9x256xf32, #tpu.memory_space<vmem>>, vector<1x256xf32>
    %c1_i32_790 = arith.constant 1 : i32
    %775 = tpu.dynamic_rotate %720 by %c1_i32_790 dim 1 : vector<1x256xf32>, i32 -> vector<1x256xf32>
    %776 = arith.mulf %774, %775 : vector<1x256xf32>
    %c21_791 = arith.constant 21 : index
    %c0_792 = arith.constant 0 : index
    %777 = vector.load %arg17[%c21_791, %c0_792] : memref<27x256xf32, #tpu.memory_space<vmem>>, vector<1x256xf32>
    tpu.vector_store %arg17[%c21_791, %c0_792], %776 {strides = array<i32>} : memref<27x256xf32, #tpu.memory_space<vmem>>, vector<1x256xf32>,
    %c22_793 = arith.constant 22 : index
    %c0_794 = arith.constant 0 : index
    %778 = vector.load %arg17[%c22_793, %c0_794] : memref<27x256xf32, #tpu.memory_space<vmem>>, vector<1x256xf32>
    tpu.vector_store %arg17[%c22_793, %c0_794], %720 {strides = array<i32>} : memref<27x256xf32, #tpu.memory_space<vmem>>, vector<1x256xf32>,
    %c5_795 = arith.constant 5 : index
    %c0_796 = arith.constant 0 : index
    %779 = vector.load %arg5[%c5_795, %c0_796] : memref<9x256xf32, #tpu.memory_space<vmem>>, vector<1x256xf32>
    %c255_i32_797 = arith.constant 255 : i32
    %780 = tpu.dynamic_rotate %720 by %c255_i32_797 dim 1 : vector<1x256xf32>, i32 -> vector<1x256xf32>
    %781 = arith.mulf %779, %780 : vector<1x256xf32>
    %c23_798 = arith.constant 23 : index
    %c0_799 = arith.constant 0 : index
    %782 = vector.load %arg17[%c23_798, %c0_799] : memref<27x256xf32, #tpu.memory_space<vmem>>, vector<1x256xf32>
    tpu.vector_store %arg17[%c23_798, %c0_799], %781 {strides = array<i32>} : memref<27x256xf32, #tpu.memory_space<vmem>>, vector<1x256xf32>,
    %c6_800 = arith.constant 6 : index
    %c0_801 = arith.constant 0 : index
    %783 = vector.load %arg5[%c6_800, %c0_801] : memref<9x256xf32, #tpu.memory_space<vmem>>, vector<1x256xf32>
    %c241_i32_802 = arith.constant 241 : i32
    %784 = tpu.dynamic_rotate %720 by %c241_i32_802 dim 1 : vector<1x256xf32>, i32 -> vector<1x256xf32>
    %785 = arith.mulf %783, %784 : vector<1x256xf32>
    %c24_803 = arith.constant 24 : index
    %c0_804 = arith.constant 0 : index
    %786 = vector.load %arg17[%c24_803, %c0_804] : memref<27x256xf32, #tpu.memory_space<vmem>>, vector<1x256xf32>
    tpu.vector_store %arg17[%c24_803, %c0_804], %785 {strides = array<i32>} : memref<27x256xf32, #tpu.memory_space<vmem>>, vector<1x256xf32>,
    %c7_805 = arith.constant 7 : index
    %c0_806 = arith.constant 0 : index
    %787 = vector.load %arg5[%c7_805, %c0_806] : memref<9x256xf32, #tpu.memory_space<vmem>>, vector<1x256xf32>
    %c240_i32_807 = arith.constant 240 : i32
    %788 = tpu.dynamic_rotate %720 by %c240_i32_807 dim 1 : vector<1x256xf32>, i32 -> vector<1x256xf32>
    %789 = arith.mulf %787, %788 : vector<1x256xf32>
    %c25_808 = arith.constant 25 : index
    %c0_809 = arith.constant 0 : index
    %790 = vector.load %arg17[%c25_808, %c0_809] : memref<27x256xf32, #tpu.memory_space<vmem>>, vector<1x256xf32>
    tpu.vector_store %arg17[%c25_808, %c0_809], %789 {strides = array<i32>} : memref<27x256xf32, #tpu.memory_space<vmem>>, vector<1x256xf32>,
    %c8_810 = arith.constant 8 : index
    %c0_811 = arith.constant 0 : index
    %791 = vector.load %arg5[%c8_810, %c0_811] : memref<9x256xf32, #tpu.memory_space<vmem>>, vector<1x256xf32>
    %c239_i32_812 = arith.constant 239 : i32
    %792 = tpu.dynamic_rotate %720 by %c239_i32_812 dim 1 : vector<1x256xf32>, i32 -> vector<1x256xf32>
    %793 = arith.mulf %791, %792 : vector<1x256xf32>
    %c26_813 = arith.constant 26 : index
    %c0_814 = arith.constant 0 : index
    %794 = vector.load %arg17[%c26_813, %c0_814] : memref<27x256xf32, #tpu.memory_space<vmem>>, vector<1x256xf32>
    tpu.vector_store %arg17[%c26_813, %c0_814], %793 {strides = array<i32>} : memref<27x256xf32, #tpu.memory_space<vmem>>, vector<1x256xf32>,
    %c2_815 = arith.constant 2 : index
    %c0_816 = arith.constant 0 : index
    %c0_817 = arith.constant 0 : index
    %795 = vector.load %arg10[%c2_815, %c0_816, %c0_817] : memref<3x32x27xf32, #tpu.memory_space<vmem>>, vector<1x32x27xf32>
    %796 = vector.shape_cast %795 : vector<1x32x27xf32> to vector<32x27xf32>
    %c0_818 = arith.constant 0 : index
    %c0_819 = arith.constant 0 : index
    %797 = vector.load %arg17[%c0_818, %c0_819] : memref<27x256xf32, #tpu.memory_space<vmem>>, vector<27x256xf32>
    %cst_820 = arith.constant dense<0.000000e+00> : vector<32x256xf32>
    %798 = tpu.matmul %796, %797, %cst_820 {dimension_numbers = #tpu.dot_dimension_numbers<[1], [0], [0], [1], [0, 0, 1, 1], [], []>} : vector<32x27xf32>, vector<27x256xf32>, vector<32x256xf32> -> vector<32x256xf32>
    %c2_821 = arith.constant 2 : index
    %c0_822 = arith.constant 0 : index
    %c0_823 = arith.constant 0 : index
    %799 = vector.load %arg11[%c2_821, %c0_822, %c0_823] : memref<3x32x1xf32, #tpu.memory_space<vmem>>, vector<1x32x1xf32>
    %800 = vector.shape_cast %799 : vector<1x32x1xf32> to vector<32x1xf32>
    %801 = vector.broadcast %800 : vector<32x1xf32> to vector<32x256xf32>
    %802 = arith.addf %798, %801 : vector<32x256xf32>
    %cst_824 = arith.constant 0.000000e+00 : f32
    %803 = vector.broadcast %cst_824 : f32 to vector<32x256xf32>
    %804 = arith.maximumf %802, %803 : vector<32x256xf32>
    %c0_825 = arith.constant 0 : index
    %c0_826 = arith.constant 0 : index
    %805 = vector.load %arg5[%c0_825, %c0_826] : memref<9x256xf32, #tpu.memory_space<vmem>>, vector<1x256xf32>
    %c17_i32_827 = arith.constant 17 : i32
    %806 = tpu.dynamic_rotate %804 by %c17_i32_827 dim 1 : vector<32x256xf32>, i32 -> vector<32x256xf32>
    %807 = vector.broadcast %805 : vector<1x256xf32> to vector<32x256xf32>
    %808 = arith.mulf %807, %806 : vector<32x256xf32>
    %c0_828 = arith.constant 0 : index
    %c0_829 = arith.constant 0 : index
    %809 = vector.load %arg18[%c0_828, %c0_829] : memref<288x256xf32, #tpu.memory_space<vmem>>, vector<32x256xf32>
    tpu.vector_store %arg18[%c0_828, %c0_829], %808 {strides = array<i32>} : memref<288x256xf32, #tpu.memory_space<vmem>>, vector<32x256xf32>,
    %c1_830 = arith.constant 1 : index
    %c0_831 = arith.constant 0 : index
    %810 = vector.load %arg5[%c1_830, %c0_831] : memref<9x256xf32, #tpu.memory_space<vmem>>, vector<1x256xf32>
    %c16_i32_832 = arith.constant 16 : i32
    %811 = tpu.dynamic_rotate %804 by %c16_i32_832 dim 1 : vector<32x256xf32>, i32 -> vector<32x256xf32>
    %812 = vector.broadcast %810 : vector<1x256xf32> to vector<32x256xf32>
    %813 = arith.mulf %812, %811 : vector<32x256xf32>
    %c32_833 = arith.constant 32 : index
    %c0_834 = arith.constant 0 : index
    %814 = vector.load %arg18[%c32_833, %c0_834] : memref<288x256xf32, #tpu.memory_space<vmem>>, vector<32x256xf32>
    tpu.vector_store %arg18[%c32_833, %c0_834], %813 {strides = array<i32>} : memref<288x256xf32, #tpu.memory_space<vmem>>, vector<32x256xf32>,
    %c2_835 = arith.constant 2 : index
    %c0_836 = arith.constant 0 : index
    %815 = vector.load %arg5[%c2_835, %c0_836] : memref<9x256xf32, #tpu.memory_space<vmem>>, vector<1x256xf32>
    %c15_i32_837 = arith.constant 15 : i32
    %816 = tpu.dynamic_rotate %804 by %c15_i32_837 dim 1 : vector<32x256xf32>, i32 -> vector<32x256xf32>
    %817 = vector.broadcast %815 : vector<1x256xf32> to vector<32x256xf32>
    %818 = arith.mulf %817, %816 : vector<32x256xf32>
    %c64_838 = arith.constant 64 : index
    %c0_839 = arith.constant 0 : index
    %819 = vector.load %arg18[%c64_838, %c0_839] : memref<288x256xf32, #tpu.memory_space<vmem>>, vector<32x256xf32>
    tpu.vector_store %arg18[%c64_838, %c0_839], %818 {strides = array<i32>} : memref<288x256xf32, #tpu.memory_space<vmem>>, vector<32x256xf32>,
    %c3_840 = arith.constant 3 : index
    %c0_841 = arith.constant 0 : index
    %820 = vector.load %arg5[%c3_840, %c0_841] : memref<9x256xf32, #tpu.memory_space<vmem>>, vector<1x256xf32>
    %c1_i32_842 = arith.constant 1 : i32
    %821 = tpu.dynamic_rotate %804 by %c1_i32_842 dim 1 : vector<32x256xf32>, i32 -> vector<32x256xf32>
    %822 = vector.broadcast %820 : vector<1x256xf32> to vector<32x256xf32>
    %823 = arith.mulf %822, %821 : vector<32x256xf32>
    %c96_843 = arith.constant 96 : index
    %c0_844 = arith.constant 0 : index
    %824 = vector.load %arg18[%c96_843, %c0_844] : memref<288x256xf32, #tpu.memory_space<vmem>>, vector<32x256xf32>
    tpu.vector_store %arg18[%c96_843, %c0_844], %823 {strides = array<i32>} : memref<288x256xf32, #tpu.memory_space<vmem>>, vector<32x256xf32>,
    %c128_845 = arith.constant 128 : index
    %c0_846 = arith.constant 0 : index
    %825 = vector.load %arg18[%c128_845, %c0_846] : memref<288x256xf32, #tpu.memory_space<vmem>>, vector<32x256xf32>
    tpu.vector_store %arg18[%c128_845, %c0_846], %804 {strides = array<i32>} : memref<288x256xf32, #tpu.memory_space<vmem>>, vector<32x256xf32>,
    %c5_847 = arith.constant 5 : index
    %c0_848 = arith.constant 0 : index
    %826 = vector.load %arg5[%c5_847, %c0_848] : memref<9x256xf32, #tpu.memory_space<vmem>>, vector<1x256xf32>
    %c255_i32_849 = arith.constant 255 : i32
    %827 = tpu.dynamic_rotate %804 by %c255_i32_849 dim 1 : vector<32x256xf32>, i32 -> vector<32x256xf32>
    %828 = vector.broadcast %826 : vector<1x256xf32> to vector<32x256xf32>
    %829 = arith.mulf %828, %827 : vector<32x256xf32>
    %c160_850 = arith.constant 160 : index
    %c0_851 = arith.constant 0 : index
    %830 = vector.load %arg18[%c160_850, %c0_851] : memref<288x256xf32, #tpu.memory_space<vmem>>, vector<32x256xf32>
    tpu.vector_store %arg18[%c160_850, %c0_851], %829 {strides = array<i32>} : memref<288x256xf32, #tpu.memory_space<vmem>>, vector<32x256xf32>,
    %c6_852 = arith.constant 6 : index
    %c0_853 = arith.constant 0 : index
    %831 = vector.load %arg5[%c6_852, %c0_853] : memref<9x256xf32, #tpu.memory_space<vmem>>, vector<1x256xf32>
    %c241_i32_854 = arith.constant 241 : i32
    %832 = tpu.dynamic_rotate %804 by %c241_i32_854 dim 1 : vector<32x256xf32>, i32 -> vector<32x256xf32>
    %833 = vector.broadcast %831 : vector<1x256xf32> to vector<32x256xf32>
    %834 = arith.mulf %833, %832 : vector<32x256xf32>
    %c192_855 = arith.constant 192 : index
    %c0_856 = arith.constant 0 : index
    %835 = vector.load %arg18[%c192_855, %c0_856] : memref<288x256xf32, #tpu.memory_space<vmem>>, vector<32x256xf32>
    tpu.vector_store %arg18[%c192_855, %c0_856], %834 {strides = array<i32>} : memref<288x256xf32, #tpu.memory_space<vmem>>, vector<32x256xf32>,
    %c7_857 = arith.constant 7 : index
    %c0_858 = arith.constant 0 : index
    %836 = vector.load %arg5[%c7_857, %c0_858] : memref<9x256xf32, #tpu.memory_space<vmem>>, vector<1x256xf32>
    %c240_i32_859 = arith.constant 240 : i32
    %837 = tpu.dynamic_rotate %804 by %c240_i32_859 dim 1 : vector<32x256xf32>, i32 -> vector<32x256xf32>
    %838 = vector.broadcast %836 : vector<1x256xf32> to vector<32x256xf32>
    %839 = arith.mulf %838, %837 : vector<32x256xf32>
    %c224_860 = arith.constant 224 : index
    %c0_861 = arith.constant 0 : index
    %840 = vector.load %arg18[%c224_860, %c0_861] : memref<288x256xf32, #tpu.memory_space<vmem>>, vector<32x256xf32>
    tpu.vector_store %arg18[%c224_860, %c0_861], %839 {strides = array<i32>} : memref<288x256xf32, #tpu.memory_space<vmem>>, vector<32x256xf32>,
    %c8_862 = arith.constant 8 : index
    %c0_863 = arith.constant 0 : index
    %841 = vector.load %arg5[%c8_862, %c0_863] : memref<9x256xf32, #tpu.memory_space<vmem>>, vector<1x256xf32>
    %c239_i32_864 = arith.constant 239 : i32
    %842 = tpu.dynamic_rotate %804 by %c239_i32_864 dim 1 : vector<32x256xf32>, i32 -> vector<32x256xf32>
    %843 = vector.broadcast %841 : vector<1x256xf32> to vector<32x256xf32>
    %844 = arith.mulf %843, %842 : vector<32x256xf32>
    %c256_865 = arith.constant 256 : index
    %c0_866 = arith.constant 0 : index
    %845 = vector.load %arg18[%c256_865, %c0_866] : memref<288x256xf32, #tpu.memory_space<vmem>>, vector<32x256xf32>
    tpu.vector_store %arg18[%c256_865, %c0_866], %844 {strides = array<i32>} : memref<288x256xf32, #tpu.memory_space<vmem>>, vector<32x256xf32>,
    %c2_867 = arith.constant 2 : index
    %c0_868 = arith.constant 0 : index
    %c0_869 = arith.constant 0 : index
    %846 = vector.load %arg12[%c2_867, %c0_868, %c0_869] : memref<3x2x288xf32, #tpu.memory_space<vmem>>, vector<1x2x288xf32>
    %847 = vector.shape_cast %846 : vector<1x2x288xf32> to vector<2x288xf32>
    %c0_870 = arith.constant 0 : index
    %c0_871 = arith.constant 0 : index
    %848 = vector.load %arg18[%c0_870, %c0_871] : memref<288x256xf32, #tpu.memory_space<vmem>>, vector<288x256xf32>
    %cst_872 = arith.constant dense<0.000000e+00> : vector<2x256xf32>
    %849 = tpu.matmul %847, %848, %cst_872 {dimension_numbers = #tpu.dot_dimension_numbers<[1], [0], [0], [1], [0, 0, 1, 1], [], []>} : vector<2x288xf32>, vector<288x256xf32>, vector<2x256xf32> -> vector<2x256xf32>
    %850 = arith.addf %582, %849 : vector<2x256xf32>
    %c2_873 = arith.constant 2 : index
    %c0_874 = arith.constant 0 : index
    %c0_875 = arith.constant 0 : index
    %851 = vector.load %arg13[%c2_873, %c0_874, %c0_875] : memref<3x2x1xf32, #tpu.memory_space<vmem>>, vector<1x2x1xf32>
    %852 = vector.shape_cast %851 : vector<1x2x1xf32> to vector<2x1xf32>
    %853 = vector.broadcast %852 : vector<2x1xf32> to vector<2x256xf32>
    %854 = arith.addf %850, %853 : vector<2x256xf32>
    %855 = vector.extract_strided_slice %854 {offsets = [0, 0], sizes = [1, 256], strides = [1, 1]} : vector<2x256xf32> to vector<1x256xf32>
    %c0_876 = arith.constant 0 : index
    %c0_877 = arith.constant 0 : index
    %c0_878 = arith.constant 0 : index
    %856 = vector.load %arg14[%c0_876, %c0_877, %c0_878] : memref<1x1x256xf32, #tpu.memory_space<vmem>>, vector<1x1x256xf32>
    %857 = vector.shape_cast %856 : vector<1x1x256xf32> to vector<1x256xf32>
    %858 = vector.shape_cast %855 : vector<1x256xf32> to vector<1x1x256xf32>
    tpu.vector_store %arg14[%c0_876, %c0_877, %c0_878], %858 {strides = array<i32>} : memref<1x1x256xf32, #tpu.memory_space<vmem>>, vector<1x1x256xf32>,
    return
  }
  func.func @transform_0(%arg0: i32) -> (i32, i32, i32) {
    %c0_i32 = arith.constant 0 : i32
    %c0_i32_0 = arith.constant 0 : i32
    %c0_i32_1 = arith.constant 0 : i32
    return %arg0, %c0_i32, %c0_i32_0 : i32, i32, i32
  }
  func.func @transform_1(%arg0: i32) -> (i32, i32) {
    %c0_i32 = arith.constant 0 : i32
    %c0_i32_0 = arith.constant 0 : i32
    %c0_i32_1 = arith.constant 0 : i32
    return %c0_i32, %c0_i32_0 : i32, i32
  }
  func.func @transform_2(%arg0: i32) -> (i32, i32) {
    %c0_i32 = arith.constant 0 : i32
    %c0_i32_0 = arith.constant 0 : i32
    %c0_i32_1 = arith.constant 0 : i32
    return %c0_i32, %c0_i32_0 : i32, i32
  }
  func.func @transform_3(%arg0: i32) -> (i32, i32) {
    %c0_i32 = arith.constant 0 : i32
    %c0_i32_0 = arith.constant 0 : i32
    %c0_i32_1 = arith.constant 0 : i32
    return %c0_i32, %c0_i32_0 : i32, i32
  }
  func.func @transform_4(%arg0: i32) -> (i32, i32) {
    %c0_i32 = arith.constant 0 : i32
    %c0_i32_0 = arith.constant 0 : i32
    %c0_i32_1 = arith.constant 0 : i32
    return %c0_i32, %c0_i32_0 : i32, i32
  }
  func.func @transform_5(%arg0: i32) -> (i32, i32, i32) {
    %c0_i32 = arith.constant 0 : i32
    %c0_i32_0 = arith.constant 0 : i32
    %c0_i32_1 = arith.constant 0 : i32
    %c0_i32_2 = arith.constant 0 : i32
    return %c0_i32, %c0_i32_0, %c0_i32_1 : i32, i32, i32
  }
  func.func @transform_6(%arg0: i32) -> (i32, i32, i32) {
    %c0_i32 = arith.constant 0 : i32
    %c0_i32_0 = arith.constant 0 : i32
    %c0_i32_1 = arith.constant 0 : i32
    %c0_i32_2 = arith.constant 0 : i32
    return %c0_i32, %c0_i32_0, %c0_i32_1 : i32, i32, i32
  }
  func.func @transform_7(%arg0: i32) -> (i32, i32, i32) {
    %c0_i32 = arith.constant 0 : i32
    %c0_i32_0 = arith.constant 0 : i32
    %c0_i32_1 = arith.constant 0 : i32
    %c0_i32_2 = arith.constant 0 : i32
    return %c0_i32, %c0_i32_0, %c0_i32_1 : i32, i32, i32
  }
  func.func @transform_8(%arg0: i32) -> (i32, i32, i32) {
    %c0_i32 = arith.constant 0 : i32
    %c0_i32_0 = arith.constant 0 : i32
    %c0_i32_1 = arith.constant 0 : i32
    %c0_i32_2 = arith.constant 0 : i32
    return %c0_i32, %c0_i32_0, %c0_i32_1 : i32, i32, i32
  }
  func.func @transform_9(%arg0: i32) -> (i32, i32, i32) {
    %c0_i32 = arith.constant 0 : i32
    %c0_i32_0 = arith.constant 0 : i32
    %c0_i32_1 = arith.constant 0 : i32
    %c0_i32_2 = arith.constant 0 : i32
    return %c0_i32, %c0_i32_0, %c0_i32_1 : i32, i32, i32
  }
  func.func @transform_10(%arg0: i32) -> (i32, i32, i32) {
    %c0_i32 = arith.constant 0 : i32
    %c0_i32_0 = arith.constant 0 : i32
    %c0_i32_1 = arith.constant 0 : i32
    %c0_i32_2 = arith.constant 0 : i32
    return %c0_i32, %c0_i32_0, %c0_i32_1 : i32, i32, i32
  }
  func.func @transform_11(%arg0: i32) -> (i32, i32, i32) {
    %c0_i32 = arith.constant 0 : i32
    %c0_i32_0 = arith.constant 0 : i32
    %c0_i32_1 = arith.constant 0 : i32
    %c0_i32_2 = arith.constant 0 : i32
    return %c0_i32, %c0_i32_0, %c0_i32_1 : i32, i32, i32
  }
  func.func @transform_12(%arg0: i32) -> (i32, i32, i32) {
    %c0_i32 = arith.constant 0 : i32
    %c0_i32_0 = arith.constant 0 : i32
    %c0_i32_1 = arith.constant 0 : i32
    %c0_i32_2 = arith.constant 0 : i32
    return %c0_i32, %c0_i32_0, %c0_i32_1 : i32, i32, i32
  }
  func.func @transform_13(%arg0: i32) -> (i32, i32, i32) {
    %c0_i32 = arith.constant 0 : i32
    %c0_i32_0 = arith.constant 0 : i32
    %c0_i32_1 = arith.constant 0 : i32
    return %arg0, %c0_i32, %c0_i32_0 : i32, i32, i32
  }
}

</mosaic_0001>

<llo_original>
// kernel: lpd_forward.1
$region0: #{lpd_forward.1}
  #allocation0 [shape = 'u32[]', space=smem, size = 0x4, offset = 0x4, fixed_abs, tag = 'smem constant byte address 0x4 - core index']
  #allocation1 [shape = 'u32[144,128]{1,0:T(1,128)}', space=vmem, size = 0x12000, scoped, tag = 'internal scratch']
  #allocation2 [shape = 'f32[36,128]{1,0:T(8,128)}', space=vmem, size = 0x5000, scoped, tag = 'scratch operand']
  #allocation3 [shape = 'f32[288,128]{1,0:T(8,128)}', space=vmem, size = 0x24000, scoped, tag = 'scratch operand']
  #allocation4 [shape = 'f32[27,256]{1,0:T(8,128)}', space=vmem, size = 0x8000, scoped, tag = 'scratch operand']
  #allocation5 [shape = 'f32[288,256]{1,0:T(8,128)}', space=vmem, size = 0x48000, scoped, tag = 'scratch operand']
  %s0 = inlined_call_operand.vmem [shape: f32[2,1,128], index: 0, kind: input, shape index: {}]
  %s1 = inlined_call_operand.hbm [shape: f32[256,128], index: 1, kind: input, shape index: {}]
  %s2 = inlined_call_operand.hbm [shape: f32[128,256], index: 2, kind: input, shape index: {}]
  %s3 = inlined_call_operand.hbm [shape: f32[9,128], index: 3, kind: input, shape index: {}]
  %s4 = inlined_call_operand.hbm [shape: f32[9,256], index: 4, kind: input, shape index: {}]
  %s5 = inlined_call_operand.hbm [shape: f32[3,32,36], index: 5, kind: input, shape index: {}]
  %s6 = inlined_call_operand.hbm [shape: f32[3,32,1], index: 6, kind: input, shape index: {}]
  %s7 = inlined_call_operand.vmem [shape: f32[3,2,288], index: 7, kind: input, shape index: {}]
  %s8 = inlined_call_operand.hbm [shape: f32[3,2,1], index: 8, kind: input, shape index: {}]
  %s9 = inlined_call_operand.hbm [shape: f32[3,32,27], index: 9, kind: input, shape index: {}]
  %s10 = inlined_call_operand.hbm [shape: f32[3,32,1], index: 10, kind: input, shape index: {}]
  %s11 = inlined_call_operand.vmem [shape: f32[3,2,288], index: 11, kind: input, shape index: {}]
  %s12 = inlined_call_operand.hbm [shape: f32[3,2,1], index: 12, kind: input, shape index: {}]
  %s13 = inlined_call_operand.vmem [shape: f32[2,1,256], index: 13, kind: output, shape index: {}]
  %s14 = sld [smem:[#allocation0]]
  $region125: #{lpd_forward.1} parent=0
    _
  %s16 = ssub.s32 1, %s14
  %s17 = scalar_select 0, %s16, %s14
  $region1: #{lpd_forward.1} parent=0
    #allocation6 [shape = 'u8[131072]{0}', space=vmem, size = 0x20000, scoped, tag = 'input window, operand 1, single buffered']
    #allocation7 [shape = 's32[2]{0}', space=sflag, size = 0x8, scoped, tag = 'scoped memory for lpd_forward.1']
    #allocation8 [shape = 'u8[131072]{0}', space=vmem, size = 0x20000, scoped, tag = 'input window, operand 2, single buffered']
    #allocation9 [shape = 's32[1]{0}', space=sflag, size = 0x4, scoped, tag = 'scoped memory for lpd_forward.1']
    #allocation10 [shape = 'u8[8192]{0}', space=vmem, size = 0x2000, scoped, tag = 'input window, operand 3, single buffered']
    #allocation11 [shape = 'u8[16384]{0}', space=vmem, size = 0x4000, scoped, tag = 'input window, operand 4, single buffered']
    #allocation12 [shape = 's32[1]{0}', space=sflag, size = 0x4, scoped, tag = 'scoped memory for lpd_forward.1']
    #allocation13 [shape = 'u8[49152]{0}', space=vmem, size = 0xc000, scoped, tag = 'input window, operand 5, single buffered']
    #allocation14 [shape = 'u8[49152]{0}', space=vmem, size = 0xc000, scoped, tag = 'input window, operand 6, single buffered']
    #allocation15 [shape = 's32[1]{0}', space=sflag, size = 0x4, scoped, tag = 'scoped memory for lpd_forward.1']
    #allocation16 [shape = 'u8[3072]{0}', space=vmem, size = 0xc00, scoped, tag = 'input window, operand 8, single buffered']
    #allocation17 [shape = 'u8[49152]{0}', space=vmem, size = 0xc000, scoped, tag = 'input window, operand 9, single buffered']
    #allocation18 [shape = 's32[1]{0}', space=sflag, size = 0x4, scoped, tag = 'scoped memory for lpd_forward.1']
    #allocation19 [shape = 'u8[49152]{0}', space=vmem, size = 0xc000, scoped, tag = 'input window, operand 10, single buffered']
    #allocation20 [shape = 'u8[3072]{0}', space=vmem, size = 0xc00, scoped, tag = 'input window, operand 12, single buffered']
    #allocation21 [shape = 's32[1]{0}', space=sflag, size = 0x4, scoped, tag = 'scoped memory for lpd_forward.1']
    %18 = vsyncpa [#allocation7], 0
    %19 = vsyncpa [#allocation9], 0
    %20 = vsyncpa [#allocation12], 0
    %21 = vsyncpa [#allocation15], 0
    %22 = vsyncpa [#allocation18], 0
    %23 = vsyncpa [#allocation21], 0
    loop: start=0, step=1, limit=4
    $region2: #{lpd_forward.1} parent=1 // loop_pre_header
      _
    $region3: #{lpd_forward.1} parent=1 // loop_header
      %s25 = sphi 0, %s29
      %p26 = scmp.ge.s32.totalorder %s25, 4
      %s35 = sphi 0, %s37
      %s38 = sphi 0, %s35
      %s39 = sphi 0, %s38
      %s55 = sphi 0, %s39
      %s59 = sphi 0, %s59
      %s61 = sphi 0, %s59
      %s62 = sphi 0, %s61
      %s76 = sphi 0, %s62
      %s80 = sphi 0, %s80
      %s82 = sphi 0, %s80
      %s83 = sphi 0, %s82
      %s97 = sphi 0, %s83
      %s101 = sphi 0, %s101
      %s103 = sphi 0, %s101
      %s104 = sphi 0, %s103
      %s118 = sphi 0, %s104
      %s122 = sphi 0, %s122
      %s124 = sphi 0, %s122
      %s125 = sphi 0, %s124
      %s139 = sphi 0, %s125
      %s143 = sphi 0, %s143
      %s145 = sphi 0, %s143
      %s146 = sphi 0, %s145
      %s160 = sphi 0, %s146
      %s164 = sphi 0, %s164
      %s166 = sphi 0, %s164
      %s167 = sphi 0, %s166
      %s181 = sphi 0, %s167
      %s185 = sphi 0, %s185
      %s187 = sphi 0, %s185
      %s188 = sphi 0, %s187
      %s202 = sphi 0, %s188
      %s206 = sphi 0, %s206
      %s208 = sphi 0, %s206
      %s209 = sphi 0, %s208
      %s223 = sphi 0, %s209
      %s227 = sphi 0, %s227
      %s229 = sphi 0, %s227
      %s230 = sphi 0, %s229
      %s244 = sphi 0, %s230
      %s248 = sphi 0, %s248
      %s250 = sphi 0, %s248
      %s251 = sphi 0, %s250
      %s265 = sphi 0, %s251
      %s269 = sphi 0, %s269
      %s271 = sphi 0, %s269
      %s272 = sphi 0, %s271
      %s286 = sphi 0, %s272
      %s290 = sphi 0, %s290
      %s292 = sphi 0, %s290
      %s293 = sphi 0, %s292
      %s307 = sphi 0, %s293
      %s313 = sphi 0, %s315
      %s316 = sphi 0, %s313
      %s317 = sphi 0, %s316
      %s333 = sphi 0, %s317
    $region4: #{lpd_forward.1} parent=1 // loop_header_branch
      %28 = sbr.rel (%p26) target = $region8
    $region5: #{lpd_forward.1} parent=1 // loop_body
      %s30 = ssub.s32 %s25, 1
      %s31 = ssub.s32 %s25, 2
      %s32 = sadd.s32 %s25, 1
      %s33 = ssub.s32 %s25, %s32
      %p34 = scmp.eq.s32.totalorder %s33, 0
      %s36 = sadd.s32 %s35, 1
      %s37 = scalar_select %p34, %s35, %s36
      %p40 = pneg %p34
      %p41 = scmp.eq.s32.totalorder %s25, 1
      %p42 = por %p40, %p41
      %p43 = scmp.ne.s32.totalorder %s35, %s38
      %p44 = scmp.eq.s32.totalorder %s25, 0
      %p45 = por %p43, %p44
      %p46 = scmp.ne.s32.totalorder %s35, %s38
      %p47 = scmp.eq.s32.totalorder %s30, 1
      %p48 = por %p46, %p47
      %p49 = scmp.ne.s32.totalorder %s38, %s39
      %p50 = scmp.eq.s32.totalorder %s30, 0
      %p51 = por %p49, %p50
      %p52 = scmp.ne.s32.totalorder %s38, %s39
      %p53 = scmp.eq.s32.totalorder %s31, 1
      %p54 = por %p52, %p53
      %p56 = scmp.ne.s32.totalorder %s39, %s55
      %p57 = scmp.eq.s32.totalorder %s31, 0
      %p58 = por %p56, %p57
      %s60 = sadd.s32 %s59, 1
      %p63 = scmp.eq.s32.totalorder %s25, 1
      %p64 = scmp.ne.s32.totalorder %s59, %s61
      %p65 = scmp.eq.s32.totalorder %s25, 0
      %p66 = por %p64, %p65
      %p67 = scmp.ne.s32.totalorder %s59, %s61
      %p68 = scmp.eq.s32.totalorder %s30, 1
      %p69 = por %p67, %p68
      %p70 = scmp.ne.s32.totalorder %s61, %s62
      %p71 = scmp.eq.s32.totalorder %s30, 0
      %p72 = por %p70, %p71
      %p73 = scmp.ne.s32.totalorder %s61, %s62
      %p74 = scmp.eq.s32.totalorder %s31, 1
      %p75 = por %p73, %p74
      %p77 = scmp.ne.s32.totalorder %s62, %s76
      %p78 = scmp.eq.s32.totalorder %s31, 0
      %p79 = por %p77, %p78
      %s81 = sadd.s32 %s80, 1
      %p84 = scmp.eq.s32.totalorder %s25, 1
      %p85 = scmp.ne.s32.totalorder %s80, %s82
      %p86 = scmp.eq.s32.totalorder %s25, 0
      %p87 = por %p85, %p86
      %p88 = scmp.ne.s32.totalorder %s80, %s82
      %p89 = scmp.eq.s32.totalorder %s30, 1
      %p90 = por %p88, %p89
      %p91 = scmp.ne.s32.totalorder %s82, %s83
      %p92 = scmp.eq.s32.totalorder %s30, 0
      %p93 = por %p91, %p92
      %p94 = scmp.ne.s32.totalorder %s82, %s83
      %p95 = scmp.eq.s32.totalorder %s31, 1
      %p96 = por %p94, %p95
      %p98 = scmp.ne.s32.totalorder %s83, %s97
      %p99 = scmp.eq.s32.totalorder %s31, 0
      %p100 = por %p98, %p99
      %s102 = sadd.s32 %s101, 1
      %p105 = scmp.eq.s32.totalorder %s25, 1
      %p106 = scmp.ne.s32.totalorder %s101, %s103
      %p107 = scmp.eq.s32.totalorder %s25, 0
      %p108 = por %p106, %p107
      %p109 = scmp.ne.s32.totalorder %s101, %s103
      %p110 = scmp.eq.s32.totalorder %s30, 1
      %p111 = por %p109, %p110
      %p112 = scmp.ne.s32.totalorder %s103, %s104
      %p113 = scmp.eq.s32.totalorder %s30, 0
      %p114 = por %p112, %p113
      %p115 = scmp.ne.s32.totalorder %s103, %s104
      %p116 = scmp.eq.s32.totalorder %s31, 1
      %p117 = por %p115, %p116
      %p119 = scmp.ne.s32.totalorder %s104, %s118
      %p120 = scmp.eq.s32.totalorder %s31, 0
      %p121 = por %p119, %p120
      %s123 = sadd.s32 %s122, 1
      %p126 = scmp.eq.s32.totalorder %s25, 1
      %p127 = scmp.ne.s32.totalorder %s122, %s124
      %p128 = scmp.eq.s32.totalorder %s25, 0
      %p129 = por %p127, %p128
      %p130 = scmp.ne.s32.totalorder %s122, %s124
      %p131 = scmp.eq.s32.totalorder %s30, 1
      %p132 = por %p130, %p131
      %p133 = scmp.ne.s32.totalorder %s124, %s125
      %p134 = scmp.eq.s32.totalorder %s30, 0
      %p135 = por %p133, %p134
      %p136 = scmp.ne.s32.totalorder %s124, %s125
      %p137 = scmp.eq.s32.totalorder %s31, 1
      %p138 = por %p136, %p137
      %p140 = scmp.ne.s32.totalorder %s125, %s139
      %p141 = scmp.eq.s32.totalorder %s31, 0
      %p142 = por %p140, %p141
      %s144 = sadd.s32 %s143, 1
      %p147 = scmp.eq.s32.totalorder %s25, 1
      %p148 = scmp.ne.s32.totalorder %s143, %s145
      %p149 = scmp.eq.s32.totalorder %s25, 0
      %p150 = por %p148, %p149
      %p151 = scmp.ne.s32.totalorder %s143, %s145
      %p152 = scmp.eq.s32.totalorder %s30, 1
      %p153 = por %p151, %p152
      %p154 = scmp.ne.s32.totalorder %s145, %s146
      %p155 = scmp.eq.s32.totalorder %s30, 0
      %p156 = por %p154, %p155
      %p157 = scmp.ne.s32.totalorder %s145, %s146
      %p158 = scmp.eq.s32.totalorder %s31, 1
      %p159 = por %p157, %p158
      %p161 = scmp.ne.s32.totalorder %s146, %s160
      %p162 = scmp.eq.s32.totalorder %s31, 0
      %p163 = por %p161, %p162
      %s165 = sadd.s32 %s164, 1
      %p168 = scmp.eq.s32.totalorder %s25, 1
      %p169 = scmp.ne.s32.totalorder %s164, %s166
      %p170 = scmp.eq.s32.totalorder %s25, 0
      %p171 = por %p169, %p170
      %p172 = scmp.ne.s32.totalorder %s164, %s166
      %p173 = scmp.eq.s32.totalorder %s30, 1
      %p174 = por %p172, %p173
      %p175 = scmp.ne.s32.totalorder %s166, %s167
      %p176 = scmp.eq.s32.totalorder %s30, 0
      %p177 = por %p175, %p176
      %p178 = scmp.ne.s32.totalorder %s166, %s167
      %p179 = scmp.eq.s32.totalorder %s31, 1
      %p180 = por %p178, %p179
      %p182 = scmp.ne.s32.totalorder %s167, %s181
      %p183 = scmp.eq.s32.totalorder %s31, 0
      %p184 = por %p182, %p183
      %s186 = sadd.s32 %s185, 1
      %p189 = scmp.eq.s32.totalorder %s25, 1
      %p190 = scmp.ne.s32.totalorder %s185, %s187
      %p191 = scmp.eq.s32.totalorder %s25, 0
      %p192 = por %p190, %p191
      %p193 = scmp.ne.s32.totalorder %s185, %s187
      %p194 = scmp.eq.s32.totalorder %s30, 1
      %p195 = por %p193, %p194
      %p196 = scmp.ne.s32.totalorder %s187, %s188
      %p197 = scmp.eq.s32.totalorder %s30, 0
      %p198 = por %p196, %p197
      %p199 = scmp.ne.s32.totalorder %s187, %s188
      %p200 = scmp.eq.s32.totalorder %s31, 1
      %p201 = por %p199, %p200
      %p203 = scmp.ne.s32.totalorder %s188, %s202
      %p204 = scmp.eq.s32.totalorder %s31, 0
      %p205 = por %p203, %p204
      %s207 = sadd.s32 %s206, 1
      %p210 = scmp.eq.s32.totalorder %s25, 1
      %p211 = scmp.ne.s32.totalorder %s206, %s208
      %p212 = scmp.eq.s32.totalorder %s25, 0
      %p213 = por %p211, %p212
      %p214 = scmp.ne.s32.totalorder %s206, %s208
      %p215 = scmp.eq.s32.totalorder %s30, 1
      %p216 = por %p214, %p215
      %p217 = scmp.ne.s32.totalorder %s208, %s209
      %p218 = scmp.eq.s32.totalorder %s30, 0
      %p219 = por %p217, %p218
      %p220 = scmp.ne.s32.totalorder %s208, %s209
      %p221 = scmp.eq.s32.totalorder %s31, 1
      %p222 = por %p220, %p221
      %p224 = scmp.ne.s32.totalorder %s209, %s223
      %p225 = scmp.eq.s32.totalorder %s31, 0
      %p226 = por %p224, %p225
      %s228 = sadd.s32 %s227, 1
      %p231 = scmp.eq.s32.totalorder %s25, 1
      %p232 = scmp.ne.s32.totalorder %s227, %s229
      %p233 = scmp.eq.s32.totalorder %s25, 0
      %p234 = por %p232, %p233
      %p235 = scmp.ne.s32.totalorder %s227, %s229
      %p236 = scmp.eq.s32.totalorder %s30, 1
      %p237 = por %p235, %p236
      %p238 = scmp.ne.s32.totalorder %s229, %s230
      %p239 = scmp.eq.s32.totalorder %s30, 0
      %p240 = por %p238, %p239
      %p241 = scmp.ne.s32.totalorder %s229, %s230
      %p242 = scmp.eq.s32.totalorder %s31, 1
      %p243 = por %p241, %p242
      %p245 = scmp.ne.s32.totalorder %s230, %s244
      %p246 = scmp.eq.s32.totalorder %s31, 0
      %p247 = por %p245, %p246
      %s249 = sadd.s32 %s248, 1
      %p252 = scmp.eq.s32.totalorder %s25, 1
      %p253 = scmp.ne.s32.totalorder %s248, %s250
      %p254 = scmp.eq.s32.totalorder %s25, 0
      %p255 = por %p253, %p254
      %p256 = scmp.ne.s32.totalorder %s248, %s250
      %p257 = scmp.eq.s32.totalorder %s30, 1
      %p258 = por %p256, %p257
      %p259 = scmp.ne.s32.totalorder %s250, %s251
      %p260 = scmp.eq.s32.totalorder %s30, 0
      %p261 = por %p259, %p260
      %p262 = scmp.ne.s32.totalorder %s250, %s251
      %p263 = scmp.eq.s32.totalorder %s31, 1
      %p264 = por %p262, %p263
      %p266 = scmp.ne.s32.totalorder %s251, %s265
      %p267 = scmp.eq.s32.totalorder %s31, 0
      %p268 = por %p266, %p267
      %s270 = sadd.s32 %s269, 1
      %p273 = scmp.eq.s32.totalorder %s25, 1
      %p274 = scmp.ne.s32.totalorder %s269, %s271
      %p275 = scmp.eq.s32.totalorder %s25, 0
      %p276 = por %p274, %p275
      %p277 = scmp.ne.s32.totalorder %s269, %s271
      %p278 = scmp.eq.s32.totalorder %s30, 1
      %p279 = por %p277, %p278
      %p280 = scmp.ne.s32.totalorder %s271, %s272
      %p281 = scmp.eq.s32.totalorder %s30, 0
      %p282 = por %p280, %p281
      %p283 = scmp.ne.s32.totalorder %s271, %s272
      %p284 = scmp.eq.s32.totalorder %s31, 1
      %p285 = por %p283, %p284
      %p287 = scmp.ne.s32.totalorder %s272, %s286
      %p288 = scmp.eq.s32.totalorder %s31, 0
      %p289 = por %p287, %p288
      %s291 = sadd.s32 %s290, 1
      %p294 = scmp.eq.s32.totalorder %s25, 1
      %p295 = scmp.ne.s32.totalorder %s290, %s292
      %p296 = scmp.eq.s32.totalorder %s25, 0
      %p297 = por %p295, %p296
      %p298 = scmp.ne.s32.totalorder %s290, %s292
      %p299 = scmp.eq.s32.totalorder %s30, 1
      %p300 = por %p298, %p299
      %p301 = scmp.ne.s32.totalorder %s292, %s293
      %p302 = scmp.eq.s32.totalorder %s30, 0
      %p303 = por %p301, %p302
      %p304 = scmp.ne.s32.totalorder %s292, %s293
      %p305 = scmp.eq.s32.totalorder %s31, 1
      %p306 = por %p304, %p305
      %p308 = scmp.ne.s32.totalorder %s293, %s307
      %p309 = scmp.eq.s32.totalorder %s31, 0
      %p310 = por %p308, %p309
      %s311 = ssub.s32 %s25, %s32
      %p312 = scmp.eq.s32.totalorder %s311, 0
      %s314 = sadd.s32 %s313, 1
      %s315 = scalar_select %p312, %s313, %s314
      %p318 = pneg %p312
      %p319 = scmp.eq.s32.totalorder %s25, 1
      %p320 = por %p318, %p319
      %p321 = scmp.ne.s32.totalorder %s313, %s316
      %p322 = scmp.eq.s32.totalorder %s25, 0
      %p323 = por %p321, %p322
      %p324 = scmp.ne.s32.totalorder %s313, %s316
      %p325 = scmp.eq.s32.totalorder %s30, 1
      %p326 = por %p324, %p325
      %p327 = scmp.ne.s32.totalorder %s316, %s317
      %p328 = scmp.eq.s32.totalorder %s30, 0
      %p329 = por %p327, %p328
      %p330 = scmp.ne.s32.totalorder %s316, %s317
      %p331 = scmp.eq.s32.totalorder %s31, 1
      %p332 = por %p330, %p331
      %p334 = scmp.ne.s32.totalorder %s317, %s333
      %p335 = scmp.eq.s32.totalorder %s31, 0
      %p336 = por %p334, %p335
      %p337 = scmp.le.s32.totalorder 1, %s25
      %p338 = scmp.lt.s32.totalorder %s25, 3
      %p339 = pnand %p337, %p338
      %p340 = pneg %p339
      // Predicated region
      $region9: #{lpd_forward.1} parent=5 // pred_check
        _
      $region10: #{lpd_forward.1} parent=5 // pred_check_branch
        %342 = sbr.rel (%p339) target = $region12
      $region11: #{lpd_forward.1} parent=5 // pred_region
        %s343 = ssub.s32 %s25, 1
        // Predicated region
        $region13: #{lpd_forward.1} parent=11 // pred_check
          %p344 = pneg %p72
        $region14: #{lpd_forward.1} parent=11 // pred_check_branch
          %346 = sbr.rel (%p344) target = $region16
        $region15: #{lpd_forward.1} parent=11 // pred_region
          %s348 = ssub.s32 4096, 4096
          %349 = vsyncadd [#allocation7], %s348
          %s350 = sshll.u32 [#allocation6], 4
          %s351 = int_to_ptr.vmem [resolvable:$true] %s350
          %356 = dma.hbm_to_vmem [thread:$0]  %s1, 4096, %s351, [#allocation7], 128, 128, 8
        $region16: #{lpd_forward.1} parent=11 // pred_fallthru
          _
        // Predicated region
        $region17: #{lpd_forward.1} parent=11 // pred_check
          %p357 = pneg %p93
        $region18: #{lpd_forward.1} parent=11 // pred_check_branch
          %359 = sbr.rel (%p357) target = $region20
        $region19: #{lpd_forward.1} parent=11 // pred_region
          %s361 = ssub.s32 4096, 4096
          %362 = vsyncadd [#allocation9], %s361
          %s363 = sshll.u32 [#allocation8], 4
          %s364 = int_to_ptr.vmem [resolvable:$true] %s363
          %369 = dma.hbm_to_vmem [thread:$0]  %s2, 4096, %s364, [#allocation9], 256, 256, 16
        $region20: #{lpd_forward.1} parent=11 // pred_fallthru
          _
        // Predicated region
        $region21: #{lpd_forward.1} parent=11 // pred_check
          %p370 = pneg %p114
        $region22: #{lpd_forward.1} parent=11 // pred_check_branch
          %372 = sbr.rel (%p370) target = $region24
        $region23: #{lpd_forward.1} parent=11 // pred_region
          %s374 = ssub.s32 256, 256
          %375 = vsyncadd [#allocation9], %s374
          %s376 = sshll.u32 [#allocation10], 4
          %s377 = int_to_ptr.vmem [resolvable:$true] %s376
          %382 = dma.hbm_to_vmem [thread:$0]  %s3, 256, %s377, [#allocation9], 128, 128, 8
        $region24: #{lpd_forward.1} parent=11 // pred_fallthru
          _
        // Predicated region
        $region25: #{lpd_forward.1} parent=11 // pred_check
          %p383 = pneg %p135
        $region26: #{lpd_forward.1} parent=11 // pred_check_branch
          %385 = sbr.rel (%p383) target = $region28
        $region27: #{lpd_forward.1} parent=11 // pred_region
          %s387 = ssub.s32 512, 512
          %388 = vsyncadd [#allocation12], %s387
          %s389 = sshll.u32 [#allocation11], 4
          %s390 = int_to_ptr.vmem [resolvable:$true] %s389
          %395 = dma.hbm_to_vmem [thread:$0]  %s4, 512, %s390, [#allocation12], 256, 256, 16
        $region28: #{lpd_forward.1} parent=11 // pred_fallthru
          _
        // Predicated region
        $region29: #{lpd_forward.1} parent=11 // pred_check
          %p396 = pneg %p156
        $region30: #{lpd_forward.1} parent=11 // pred_check_branch
          %398 = sbr.rel (%p396) target = $region32
        $region31: #{lpd_forward.1} parent=11 // pred_region
          %s400 = ssub.s32 1536, 1536
          %401 = vsyncadd [#allocation12], %s400
          %s402 = sshll.u32 [#allocation13], 4
          %s403 = int_to_ptr.vmem [resolvable:$true] %s402
          %408 = dma.hbm_to_vmem [thread:$0]  %s5, 1536, %s403, [#allocation12], 128, 128, 8
        $region32: #{lpd_forward.1} parent=11 // pred_fallthru
          _
        // Predicated region
        $region33: #{lpd_forward.1} parent=11 // pred_check
          %p409 = pneg %p177
        $region34: #{lpd_forward.1} parent=11 // pred_check_branch
          %411 = sbr.rel (%p409) target = $region36
        $region35: #{lpd_forward.1} parent=11 // pred_region
          %s413 = ssub.s32 1536, 1536
          %414 = vsyncadd [#allocation15], %s413
          %s415 = sshll.u32 [#allocation14], 4
          %s416 = int_to_ptr.vmem [resolvable:$true] %s415
          %421 = dma.hbm_to_vmem [thread:$0]  %s6, 1536, %s416, [#allocation15], 128, 128, 8
        $region36: #{lpd_forward.1} parent=11 // pred_fallthru
          _
        // Predicated region
        $region37: #{lpd_forward.1} parent=11 // pred_check
          %p422 = pneg %p198
        $region38: #{lpd_forward.1} parent=11 // pred_check_branch
          %424 = sbr.rel (%p422) target = $region40
        $region39: #{lpd_forward.1} parent=11 // pred_region
          _
        $region40: #{lpd_forward.1} parent=11 // pred_fallthru
          _
        // Predicated region
        $region41: #{lpd_forward.1} parent=11 // pred_check
          %p425 = pneg %p219
        $region42: #{lpd_forward.1} parent=11 // pred_check_branch
          %427 = sbr.rel (%p425) target = $region44
        $region43: #{lpd_forward.1} parent=11 // pred_region
          %s429 = ssub.s32 96, 96
          %430 = vsyncadd [#allocation15], %s429
          %s431 = sshll.u32 [#allocation16], 4
          %s432 = int_to_ptr.vmem [resolvable:$true] %s431
          %437 = dma.hbm_to_vmem [thread:$0]  %s8, 96, %s432, [#allocation15], 32, 32, 2
        $region44: #{lpd_forward.1} parent=11 // pred_fallthru
          _
        // Predicated region
        $region45: #{lpd_forward.1} parent=11 // pred_check
          %p438 = pneg %p240
        $region46: #{lpd_forward.1} parent=11 // pred_check_branch
          %440 = sbr.rel (%p438) target = $region48
        $region47: #{lpd_forward.1} parent=11 // pred_region
          %s442 = ssub.s32 1536, 1536
          %443 = vsyncadd [#allocation18], %s442
          %s444 = sshll.u32 [#allocation17], 4
          %s445 = int_to_ptr.vmem [resolvable:$true] %s444
          %450 = dma.hbm_to_vmem [thread:$0]  %s9, 1536, %s445, [#allocation18], 128, 128, 8
        $region48: #{lpd_forward.1} parent=11 // pred_fallthru
          _
        // Predicated region
        $region49: #{lpd_forward.1} parent=11 // pred_check
          %p451 = pneg %p261
        $region50: #{lpd_forward.1} parent=11 // pred_check_branch
          %453 = sbr.rel (%p451) target = $region52
        $region51: #{lpd_forward.1} parent=11 // pred_region
          %s455 = ssub.s32 1536, 1536
          %456 = vsyncadd [#allocation18], %s455
          %s457 = sshll.u32 [#allocation19], 4
          %s458 = int_to_ptr.vmem [resolvable:$true] %s457
          %463 = dma.hbm_to_vmem [thread:$0]  %s10, 1536, %s458, [#allocation18], 128, 128, 8
        $region52: #{lpd_forward.1} parent=11 // pred_fallthru
          _
        // Predicated region
        $region53: #{lpd_forward.1} parent=11 // pred_check
          %p464 = pneg %p282
        $region54: #{lpd_forward.1} parent=11 // pred_check_branch
          %466 = sbr.rel (%p464) target = $region56
        $region55: #{lpd_forward.1} parent=11 // pred_region
          _
        $region56: #{lpd_forward.1} parent=11 // pred_fallthru
          _
        // Predicated region
        $region57: #{lpd_forward.1} parent=11 // pred_check
          %p467 = pneg %p303
        $region58: #{lpd_forward.1} parent=11 // pred_check_branch
          %469 = sbr.rel (%p467) target = $region60
        $region59: #{lpd_forward.1} parent=11 // pred_region
          %s471 = ssub.s32 96, 96
          %472 = vsyncadd [#allocation21], %s471
          %s473 = sshll.u32 [#allocation20], 4
          %s474 = int_to_ptr.vmem [resolvable:$true] %s473
          %479 = dma.hbm_to_vmem [thread:$0]  %s12, 96, %s474, [#allocation21], 32, 32, 2
        $region60: #{lpd_forward.1} parent=11 // pred_fallthru
          _
      $region12: #{lpd_forward.1} parent=5 // pred_fallthru
        _
      %p480 = scmp.lt.s32.totalorder %s25, 2
      // Predicated region
      $region61: #{lpd_forward.1} parent=5 // pred_check
        %p481 = pneg %p480
      $region62: #{lpd_forward.1} parent=5 // pred_check_branch
        %483 = sbr.rel (%p481) target = $region64
      $region63: #{lpd_forward.1} parent=5 // pred_region
        // Predicated region
        $region65: #{lpd_forward.1} parent=63 // pred_check
          %p484 = pneg %p45
        $region66: #{lpd_forward.1} parent=63 // pred_check_branch
          %486 = sbr.rel (%p484) target = $region68
        $region67: #{lpd_forward.1} parent=63 // pred_region
          %p487 = scmp.lt.s32.totalorder %s25, 1
          %s488 = scalar_select %p487, %s25, 1
          %s489 = scalar_lea.vmem %s0, %s488
        $region68: #{lpd_forward.1} parent=63 // pred_fallthru
          _
      $region64: #{lpd_forward.1} parent=5 // pred_fallthru
        _
      %p490 = scmp.le.s32.totalorder 1, %s25
      %p491 = scmp.lt.s32.totalorder %s25, 3
      %p492 = pnand %p490, %p491
      %p493 = pneg %p492
      // Predicated region
      $region69: #{lpd_forward.1} parent=5 // pred_check
        _
      $region70: #{lpd_forward.1} parent=5 // pred_check_branch
        %495 = sbr.rel (%p492) target = $region72
      $region71: #{lpd_forward.1} parent=5 // pred_region
        %s496 = ssub.s32 %s25, 1
        // Predicated region
        $region73: #{lpd_forward.1} parent=71 // pred_check
          %p497 = pneg %p72
        $region74: #{lpd_forward.1} parent=71 // pred_check_branch
          %499 = sbr.rel (%p497) target = $region76
        $region75: #{lpd_forward.1} parent=71 // pred_region
          %500 = dma.done [#allocation7], 4096
        $region76: #{lpd_forward.1} parent=71 // pred_fallthru
          _
        // Predicated region
        $region77: #{lpd_forward.1} parent=71 // pred_check
          %p501 = pneg %p93
        $region78: #{lpd_forward.1} parent=71 // pred_check_branch
          %503 = sbr.rel (%p501) target = $region80
        $region79: #{lpd_forward.1} parent=71 // pred_region
          %504 = dma.done [#allocation9], 4096
        $region80: #{lpd_forward.1} parent=71 // pred_fallthru
          _
        // Predicated region
        $region81: #{lpd_forward.1} parent=71 // pred_check
          %p505 = pneg %p114
        $region82: #{lpd_forward.1} parent=71 // pred_check_branch
          %507 = sbr.rel (%p505) target = $region84
        $region83: #{lpd_forward.1} parent=71 // pred_region
          %508 = dma.done [#allocation9], 256
        $region84: #{lpd_forward.1} parent=71 // pred_fallthru
          _
        // Predicated region
        $region85: #{lpd_forward.1} parent=71 // pred_check
          %p509 = pneg %p135
        $region86: #{lpd_forward.1} parent=71 // pred_check_branch
          %511 = sbr.rel (%p509) target = $region88
        $region87: #{lpd_forward.1} parent=71 // pred_region
          %512 = dma.done [#allocation12], 512
        $region88: #{lpd_forward.1} parent=71 // pred_fallthru
          _
        // Predicated region
        $region89: #{lpd_forward.1} parent=71 // pred_check
          %p513 = pneg %p156
        $region90: #{lpd_forward.1} parent=71 // pred_check_branch
          %515 = sbr.rel (%p513) target = $region92
        $region91: #{lpd_forward.1} parent=71 // pred_region
          %516 = dma.done [#allocation12], 1536
        $region92: #{lpd_forward.1} parent=71 // pred_fallthru
          _
        // Predicated region
        $region93: #{lpd_forward.1} parent=71 // pred_check
          %p517 = pneg %p177
        $region94: #{lpd_forward.1} parent=71 // pred_check_branch
          %519 = sbr.rel (%p517) target = $region96
        $region95: #{lpd_forward.1} parent=71 // pred_region
          %520 = dma.done [#allocation15], 1536
        $region96: #{lpd_forward.1} parent=71 // pred_fallthru
          _
        // Predicated region
        $region97: #{lpd_forward.1} parent=71 // pred_check
          %p521 = pneg %p219
        $region98: #{lpd_forward.1} parent=71 // pred_check_branch
          %523 = sbr.rel (%p521) target = $region100
        $region99: #{lpd_forward.1} parent=71 // pred_region
          %524 = dma.done [#allocation15], 96
        $region100: #{lpd_forward.1} parent=71 // pred_fallthru
          _
        // Predicated region
        $region101: #{lpd_forward.1} parent=71 // pred_check
          %p525 = pneg %p240
        $region102: #{lpd_forward.1} parent=71 // pred_check_branch
          %527 = sbr.rel (%p525) target = $region104
        $region103: #{lpd_forward.1} parent=71 // pred_region
          %528 = dma.done [#allocation18], 1536
        $region104: #{lpd_forward.1} parent=71 // pred_fallthru
          _
        // Predicated region
        $region105: #{lpd_forward.1} parent=71 // pred_check
          %p529 = pneg %p261
        $region106: #{lpd_forward.1} parent=71 // pred_check_branch
          %531 = sbr.rel (%p529) target = $region108
        $region107: #{lpd_forward.1} parent=71 // pred_region
          %532 = dma.done [#allocation18], 1536
        $region108: #{lpd_forward.1} parent=71 // pred_fallthru
          _
        // Predicated region
        $region109: #{lpd_forward.1} parent=71 // pred_check
          %p533 = pneg %p303
        $region110: #{lpd_forward.1} parent=71 // pred_check_branch
          %535 = sbr.rel (%p533) target = $region112
        $region111: #{lpd_forward.1} parent=71 // pred_region
          %536 = dma.done [#allocation21], 96
        $region112: #{lpd_forward.1} parent=71 // pred_fallthru
          _
        %p537 = scmp.lt.s32.totalorder %s30, 1
        %s538 = scalar_select %p537, %s30, 1
        %s539 = scalar_lea.vmem %s0, %s538
        %p540 = pneg %p51
        %p541 = pneg %p48
        %p542 = pneg %p72
        %p543 = pneg %p69
        %p544 = pneg %p93
        %p545 = pneg %p90
        %p546 = pneg %p114
        %p547 = pneg %p111
        %p548 = pneg %p135
        %p549 = pneg %p132
        %p550 = pneg %p156
        %p551 = pneg %p153
        %p552 = pneg %p177
        %p553 = pneg %p174
        %p554 = pneg %p198
        %p555 = pneg %p195
        %p556 = pneg %p219
        %p557 = pneg %p216
        %p558 = pneg %p240
        %p559 = pneg %p237
        %p560 = pneg %p261
        %p561 = pneg %p258
        %p562 = pneg %p282
        %p563 = pneg %p279
        %p564 = pneg %p303
        %p565 = pneg %p300
        %p566 = pneg %p329
        %p567 = pneg %p326
        %p568 = scmp.lt.s32.totalorder %s30, 1
        %s569 = scalar_select %p568, %s30, 1
        %s570 = smul.addr %s569, 2
        %s571 = scalar_lea.vmem %s13, %s570
        %p572 = scmp.lt.s32.totalorder %s30, 1
        %s573 = scalar_select %p572, %s30, 1
        %s574 = scalar_lea.vmem %s0, %s573
        %p575 = scmp.lt.s32.totalorder %s30, 1
        %s576 = scalar_select %p575, %s30, 1
        %s577 = smul.addr %s576, 2
        %s578 = scalar_lea.vmem %s13, %s577
        %v579 = vld [vmem:[%s574] sm:$0x1]
        %v580 = vld [vmem:[#allocation6] sm:$0xff]
        %v581 = vld [vmem:[#allocation6 + $0x8] sm:$0xff]
        %v582 = vld [vmem:[#allocation6 + $0x10] sm:$0xff]
        %v583 = vld [vmem:[#allocation6 + $0x18] sm:$0xff]
        %v584 = vld [vmem:[#allocation6 + $0x20] sm:$0xff]
        %v585 = vld [vmem:[#allocation6 + $0x28] sm:$0xff]
        %v586 = vld [vmem:[#allocation6 + $0x30] sm:$0xff]
        %v587 = vld [vmem:[#allocation6 + $0x38] sm:$0xff]
        %v588 = vld [vmem:[#allocation6 + $0x40] sm:$0xff]
        %v589 = vld [vmem:[#allocation6 + $0x48] sm:$0xff]
        %v590 = vld [vmem:[#allocation6 + $0x50] sm:$0xff]
        %v591 = vld [vmem:[#allocation6 + $0x58] sm:$0xff]
        %v592 = vld [vmem:[#allocation6 + $0x60] sm:$0xff]
        %v593 = vld [vmem:[#allocation6 + $0x68] sm:$0xff]
        %v594 = vld [vmem:[#allocation6 + $0x70] sm:$0xff]
        %v595 = vld [vmem:[#allocation6 + $0x78] sm:$0xff]
        %v596 = vld [vmem:[#allocation6 + $0x80] sm:$0xff]
        %v597 = vld [vmem:[#allocation6 + $0x88] sm:$0xff]
        %v598 = vld [vmem:[#allocation6 + $0x90] sm:$0xff]
        %v599 = vld [vmem:[#allocation6 + $0x98] sm:$0xff]
        %v600 = vld [vmem:[#allocation6 + $0xa0] sm:$0xff]
        %v601 = vld [vmem:[#allocation6 + $0xa8] sm:$0xff]
        %v602 = vld [vmem:[#allocation6 + $0xb0] sm:$0xff]
        %v603 = vld [vmem:[#allocation6 + $0xb8] sm:$0xff]
        %v604 = vld [vmem:[#allocation6 + $0xc0] sm:$0xff]
        %v605 = vld [vmem:[#allocation6 + $0xc8] sm:$0xff]
        %v606 = vld [vmem:[#allocation6 + $0xd0] sm:$0xff]
        %v607 = vld [vmem:[#allocation6 + $0xd8] sm:$0xff]
        %v608 = vld [vmem:[#allocation6 + $0xe0] sm:$0xff]
        %v609 = vld [vmem:[#allocation6 + $0xe8] sm:$0xff]
        %v610 = vld [vmem:[#allocation6 + $0xf0] sm:$0xff]
        %v611 = vld [vmem:[#allocation6 + $0xf8] sm:$0xff]
        %v612 = vld [vmem:[#allocation8] sm:$0xff]
        %v613 = vld [vmem:[#allocation8 + $0x8] sm:$0xff]
        %v614 = vld [vmem:[#allocation8 + $0x10] sm:$0xff]
        %v615 = vld [vmem:[#allocation8 + $0x18] sm:$0xff]
        %v616 = vld [vmem:[#allocation8 + $0x20] sm:$0xff]
        %v617 = vld [vmem:[#allocation8 + $0x28] sm:$0xff]
        %v618 = vld [vmem:[#allocation8 + $0x30] sm:$0xff]
        %v619 = vld [vmem:[#allocation8 + $0x38] sm:$0xff]
        %v620 = vld [vmem:[#allocation8 + $0x40] sm:$0xff]
        %v621 = vld [vmem:[#allocation8 + $0x48] sm:$0xff]
        %v622 = vld [vmem:[#allocation8 + $0x50] sm:$0xff]
        %v623 = vld [vmem:[#allocation8 + $0x58] sm:$0xff]
        %v624 = vld [vmem:[#allocation8 + $0x60] sm:$0xff]
        %v625 = vld [vmem:[#allocation8 + $0x68] sm:$0xff]
        %v626 = vld [vmem:[#allocation8 + $0x70] sm:$0xff]
        %v627 = vld [vmem:[#allocation8 + $0x78] sm:$0xff]
        %v628 = vld [vmem:[#allocation8 + $0x80] sm:$0xff]
        %v629 = vld [vmem:[#allocation8 + $0x88] sm:$0xff]
        %v630 = vld [vmem:[#allocation8 + $0x90] sm:$0xff]
        %v631 = vld [vmem:[#allocation8 + $0x98] sm:$0xff]
        %v632 = vld [vmem:[#allocation8 + $0xa0] sm:$0xff]
        %v633 = vld [vmem:[#allocation8 + $0xa8] sm:$0xff]
        %v634 = vld [vmem:[#allocation8 + $0xb0] sm:$0xff]
        %v635 = vld [vmem:[#allocation8 + $0xb8] sm:$0xff]
        %v636 = vld [vmem:[#allocation8 + $0xc0] sm:$0xff]
        %v637 = vld [vmem:[#allocation8 + $0xc8] sm:$0xff]
        %v638 = vld [vmem:[#allocation8 + $0xd0] sm:$0xff]
        %v639 = vld [vmem:[#allocation8 + $0xd8] sm:$0xff]
        %v640 = vld [vmem:[#allocation8 + $0xe0] sm:$0xff]
        %v641 = vld [vmem:[#allocation8 + $0xe8] sm:$0xff]
        %v642 = vld [vmem:[#allocation8 + $0xf0] sm:$0xff]
        %v643 = vld [vmem:[#allocation8 + $0xf8] sm:$0xff]
        %v644 = vld [vmem:[#allocation10] sm:$0x1]
        %645 = vrot.lane.b32.xlu0 %v579, 17
        %v646 = vpop.permute.xlu0 %645
        %v647 = vmul.f32 %v644, %v646
        %648 = vst [vmem:[#allocation2 + $0x1b] sm:$0x1] %v647
        %v649 = vld [vmem:[#allocation10 + $0x1] sm:$0x1]
        %650 = vrot.lane.b32.xlu0 %v579, 16
        %v651 = vpop.permute.xlu0 %650
        %v652 = vmul.f32 %v649, %v651
        %653 = vst [vmem:[#allocation2 + $0x1c] sm:$0x1] %v652
        %v654 = vld [vmem:[#allocation10 + $0x2] sm:$0x1]
        %655 = vrot.lane.b32.xlu0 %v579, 15
        %v656 = vpop.permute.xlu0 %655
        %v657 = vmul.f32 %v654, %v656
        %658 = vst [vmem:[#allocation2 + $0x1d] sm:$0x1] %v657
        %v659 = vld [vmem:[#allocation10 + $0x3] sm:$0x1]
        %660 = vrot.lane.b32.xlu0 %v579, 1
        %v661 = vpop.permute.xlu0 %660
        %v662 = vmul.f32 %v659, %v661
        %663 = vst [vmem:[#allocation2 + $0x1e] sm:$0x1] %v662
        %664 = vst [vmem:[#allocation2 + $0x1f] sm:$0x1] %v579
        %v665 = vld [vmem:[#allocation10 + $0x5] sm:$0x1]
        %666 = vrot.lane.b32.xlu0 %v579, 127
        %v667 = vpop.permute.xlu0 %666
        %v668 = vmul.f32 %v665, %v667
        %669 = vst [vmem:[#allocation2 + $0x20] sm:$0x1] %v668
        %v670 = vld [vmem:[#allocation10 + $0x6] sm:$0x1]
        %671 = vrot.lane.b32.xlu0 %v579, 113
        %v672 = vpop.permute.xlu0 %671
        %v673 = vmul.f32 %v670, %v672
        %674 = vst [vmem:[#allocation2 + $0x21] sm:$0x1] %v673
        %v675 = vld [vmem:[#allocation10 + $0x7] sm:$0x1]
        %676 = vrot.lane.b32.xlu0 %v579, 112
        %v677 = vpop.permute.xlu0 %676
        %v678 = vmul.f32 %v675, %v677
        %679 = vst [vmem:[#allocation2 + $0x22] sm:$0x1] %v678
        %v680 = vld [vmem:[#allocation10 + $0x8] sm:$0x1]
        %681 = vrot.lane.b32.xlu0 %v579, 111
        %v682 = vpop.permute.xlu0 %681
        %v683 = vmul.f32 %v680, %v682
        %684 = vst [vmem:[#allocation2 + $0x23] sm:$0x1] %v683
        %685 = vmatprep.subr.mxu0 0.0
        %686 = vmatpush1.msra.mxu0 %v595
        %687 = vmatprep.subr.mxu0 0.0
        %688 = vmatpush1.msra.mxu0 %v594
        %689 = vmatprep.subr.mxu0 0.0
        %690 = vmatpush1.msra.mxu0 %v593
        %691 = vmatprep.subr.mxu0 0.0
        %692 = vmatpush1.msra.mxu0 %v592
        %693 = vmatprep.subr.mxu0 0.0
        %694 = vmatpush1.msra.mxu0 %v591
        %695 = vmatprep.subr.mxu0 0.0
        %696 = vmatpush1.msra.mxu0 %v590
        %697 = vmatprep.subr.mxu0 0.0
        %698 = vmatpush1.msra.mxu0 %v589
        %699 = vmatprep.subr.mxu0 0.0
        %700 = vmatpush1.msra.mxu0 %v588
        %701 = vmatprep.subr.mxu0 0.0
        %702 = vmatpush1.msra.mxu0 %v587
        %703 = vmatprep.subr.mxu0 0.0
        %704 = vmatpush1.msra.mxu0 %v586
        %705 = vmatprep.subr.mxu0 0.0
        %706 = vmatpush1.msra.mxu0 %v585
        %707 = vmatprep.subr.mxu0 0.0
        %708 = vmatpush1.msra.mxu0 %v584
        %709 = vmatprep.subr.mxu0 0.0
        %710 = vmatpush1.msra.mxu0 %v583
        %711 = vmatprep.subr.mxu0 0.0
        %712 = vmatpush1.msra.mxu0 %v582
        %713 = vmatprep.subr.mxu0 0.0
        %714 = vmatpush1.msra.mxu0 %v581
        %715 = vmatprep.subr.mxu0 0.0
        %716 = vmatpush1.msra.mxu0 %v580
        %717 = vmatprep.subr.mxu0 0.0
        %718 = vmatpush2.msra.mxu0 %v611
        %719 = vmatprep.subr.mxu0 0.0
        %720 = vmatpush2.msra.mxu0 %v610
        %721 = vmatprep.subr.mxu0 0.0
        %722 = vmatpush2.msra.mxu0 %v609
        %723 = vmatprep.subr.mxu0 0.0
        %724 = vmatpush2.msra.mxu0 %v608
        %725 = vmatprep.subr.mxu0 0.0
        %726 = vmatpush2.msra.mxu0 %v607
        %727 = vmatprep.subr.mxu0 0.0
        %728 = vmatpush2.msra.mxu0 %v606
        %729 = vmatprep.subr.mxu0 0.0
        %730 = vmatpush2.msra.mxu0 %v605
        %731 = vmatprep.subr.mxu0 0.0
        %732 = vmatpush2.msra.mxu0 %v604
        %733 = vmatprep.subr.mxu0 0.0
        %734 = vmatpush2.msra.mxu0 %v603
        %735 = vmatprep.subr.mxu0 0.0
        %736 = vmatpush2.msra.mxu0 %v602
        %737 = vmatprep.subr.mxu0 0.0
        %738 = vmatpush2.msra.mxu0 %v601
        %739 = vmatprep.subr.mxu0 0.0
        %740 = vmatpush2.msra.mxu0 %v600
        %741 = vmatprep.subr.mxu0 0.0
        %742 = vmatpush2.msra.mxu0 %v599
        %743 = vmatprep.subr.mxu0 0.0
        %744 = vmatpush2.msra.mxu0 %v598
        %745 = vmatprep.subr.mxu0 0.0
        %746 = vmatpush2.msra.mxu0 %v597
        %747 = vmatprep.subr.mxu0 0.0
        %748 = vmatpush2.msra.mxu0 %v596
        %749 = vmatprep.mubr.f32.mxu0 0.0
        %750 = vmatmul.mubr.f32.gmra.mxu0 0.0
        %v751 = vpop.f32.mrf.mxu0
        %v752 = vadd.f32 0.0, %v751
        %v753 = vpop.f32.mrf.mxu0
        %754 = vdwg.mxu0
        %v755 = vld [vmem:[#allocation10] sm:$0x1]
        %756 = vrot.lane.b32.xlu0 0.0, 17
        %v757 = vpop.permute.xlu0 %756
        %v758 = vlaneseq
        %v759 = vshrl.u32 %v758, 7
        %v760 = vsub.s32 0, %v759
        %v761 = vrot.slane %v755, %v760
        %v762 = vmul.f32 %v761, %v757
        %763 = vst [vmem:[#allocation2] sm:$0x3] %v762
        %v764 = vld [vmem:[#allocation10 + $0x1] sm:$0x1]
        %765 = vrot.lane.b32.xlu0 0.0, 16
        %v766 = vpop.permute.xlu0 %765
        %v767 = vlaneseq
        %v768 = vshrl.u32 %v767, 7
        %v769 = vsub.s32 0, %v768
        %v770 = vrot.slane %v764, %v769
        %v771 = vmul.f32 %v770, %v766
        %772 = vst [vmem:[#allocation2 + $0x2] sm:$0x3] %v771
        %v773 = vld [vmem:[#allocation10 + $0x2] sm:$0x1]
        %774 = vrot.lane.b32.xlu0 0.0, 15
        %v775 = vpop.permute.xlu0 %774
        %v776 = vlaneseq
        %v777 = vshrl.u32 %v776, 7
        %v778 = vsub.s32 0, %v777
        %v779 = vrot.slane %v773, %v778
        %v780 = vmul.f32 %v779, %v775
        %781 = vst [vmem:[#allocation2 + $0x4] sm:$0x3] %v780
        %v782 = vld [vmem:[#allocation10 + $0x3] sm:$0x1]
        %783 = vrot.lane.b32.xlu0 0.0, 1
        %v784 = vpop.permute.xlu0 %783
        %v785 = vlaneseq
        %v786 = vshrl.u32 %v785, 7
        %v787 = vsub.s32 0, %v786
        %v788 = vrot.slane %v782, %v787
        %v789 = vmul.f32 %v788, %v784
        %790 = vst [vmem:[#allocation2 + $0x6] sm:$0x3] %v789
        %791 = vst [vmem:[#allocation2 + $0x8] sm:$0x3] 0.0
        %v792 = vld [vmem:[#allocation10 + $0x5] sm:$0x1]
        %793 = vrot.lane.b32.xlu0 0.0, 127
        %v794 = vpop.permute.xlu0 %793
        %v795 = vlaneseq
        %v796 = vshrl.u32 %v795, 7
        %v797 = vsub.s32 0, %v796
        %v798 = vrot.slane %v792, %v797
        %v799 = vmul.f32 %v798, %v794
        %800 = vst [vmem:[#allocation2 + $0xa] sm:$0x3] %v799
        %v801 = vld [vmem:[#allocation10 + $0x6] sm:$0x1]
        %802 = vrot.lane.b32.xlu0 0.0, 113
        %v803 = vpop.permute.xlu0 %802
        %v804 = vlaneseq
        %v805 = vshrl.u32 %v804, 7
        %v806 = vsub.s32 0, %v805
        %v807 = vrot.slane %v801, %v806
        %v808 = vmul.f32 %v807, %v803
        %809 = vst [vmem:[#allocation2 + $0xc] sm:$0x3] %v808
        %v810 = vld [vmem:[#allocation10 + $0x7] sm:$0x1]
        %811 = vrot.lane.b32.xlu0 0.0, 112
        %v812 = vpop.permute.xlu0 %811
        %v813 = vlaneseq
        %v814 = vshrl.u32 %v813, 7
        %v815 = vsub.s32 0, %v814
        %v816 = vrot.slane %v810, %v815
        %v817 = vmul.f32 %v816, %v812
        %818 = vst [vmem:[#allocation2 + $0xe] sm:$0x3] %v817
        %v819 = vld [vmem:[#allocation10 + $0x8] sm:$0x1]
        %820 = vrot.lane.b32.xlu0 0.0, 111
        %v821 = vpop.permute.xlu0 %820
        %v822 = vlaneseq
        %v823 = vshrl.u32 %v822, 7
        %v824 = vsub.s32 0, %v823
        %v825 = vrot.slane %v819, %v824
        %v826 = vmul.f32 %v825, %v821
        %827 = vst [vmem:[#allocation2 + $0x10] sm:$0x3] %v826
        %v828 = vld [vmem:[#allocation10] sm:$0x1]
        %829 = vrot.lane.b32.xlu0 %v752, 17
        %v830 = vpop.permute.xlu0 %829
        %v831 = vmul.f32 %v828, %v830
        %832 = vst [vmem:[#allocation2 + $0x12] sm:$0x1] %v831
        %v833 = vld [vmem:[#allocation10 + $0x1] sm:$0x1]
        %834 = vrot.lane.b32.xlu0 %v752, 16
        %v835 = vpop.permute.xlu0 %834
        %v836 = vmul.f32 %v833, %v835
        %837 = vst [vmem:[#allocation2 + $0x13] sm:$0x1] %v836
        %v838 = vld [vmem:[#allocation10 + $0x2] sm:$0x1]
        %839 = vrot.lane.b32.xlu0 %v752, 15
        %v840 = vpop.permute.xlu0 %839
        %v841 = vmul.f32 %v838, %v840
        %842 = vst [vmem:[#allocation2 + $0x14] sm:$0x1] %v841
        %v843 = vld [vmem:[#allocation10 + $0x3] sm:$0x1]
        %844 = vrot.lane.b32.xlu0 %v752, 1
        %v845 = vpop.permute.xlu0 %844
        %v846 = vmul.f32 %v843, %v845
        %847 = vst [vmem:[#allocation2 + $0x15] sm:$0x1] %v846
        %848 = vst [vmem:[#allocation2 + $0x16] sm:$0x1] %v752
        %v849 = vld [vmem:[#allocation10 + $0x5] sm:$0x1]
        %850 = vrot.lane.b32.xlu0 %v752, 127
        %v851 = vpop.permute.xlu0 %850
        %v852 = vmul.f32 %v849, %v851
        %853 = vst [vmem:[#allocation2 + $0x17] sm:$0x1] %v852
        %v854 = vld [vmem:[#allocation10 + $0x6] sm:$0x1]
        %855 = vrot.lane.b32.xlu0 %v752, 113
        %v856 = vpop.permute.xlu0 %855
        %v857 = vmul.f32 %v854, %v856
        %858 = vst [vmem:[#allocation2 + $0x18] sm:$0x1] %v857
        %v859 = vld [vmem:[#allocation10 + $0x7] sm:$0x1]
        %860 = vrot.lane.b32.xlu0 %v752, 112
        %v861 = vpop.permute.xlu0 %860
        %v862 = vmul.f32 %v859, %v861
        %863 = vst [vmem:[#allocation2 + $0x19] sm:$0x1] %v862
        %v864 = vld [vmem:[#allocation10 + $0x8] sm:$0x1]
        %865 = vrot.lane.b32.xlu0 %v752, 111
        %v866 = vpop.permute.xlu0 %865
        %v867 = vmul.f32 %v864, %v866
        %868 = vst [vmem:[#allocation2 + $0x1a] sm:$0x1] %v867
        %v869 = vld [vmem:[#allocation13] sm:$0xff]
        %v870 = vld [vmem:[#allocation13 + $0x8] sm:$0xff]
        %v871 = vld [vmem:[#allocation13 + $0x10] sm:$0xff]
        %v872 = vld [vmem:[#allocation13 + $0x18] sm:$0xff]
        %v873 = vld [vmem:[#allocation2] sm:$0xff]
        %v874 = vld [vmem:[#allocation2 + $0x8] sm:$0xff]
        %v875 = vld [vmem:[#allocation2 + $0x10] sm:$0xff]
        %v876 = vld [vmem:[#allocation2 + $0x18] sm:$0xff]
        %v877 = vld [vmem:[#allocation2 + $0x20] sm:$0xf]
        %v878 = vld [vmem:[#allocation14] sm:$0xff]
        %v879 = vld [vmem:[#allocation14 + $0x8] sm:$0xff]
        %v880 = vld [vmem:[#allocation14 + $0x10] sm:$0xff]
        %v881 = vld [vmem:[#allocation14 + $0x18] sm:$0xff]
        %883 = vset.pattern.permute.xlu0 0
        %884 = vperm.xlu0 %883, %v878
        %v885 = vpop.permute.xlu0 %884
        %888 = vset.pattern.permute.xlu0 0
        %889 = vperm.xlu0 %888, %v879
        %v890 = vpop.permute.xlu0 %889
        %893 = vset.pattern.permute.xlu0 0
        %894 = vperm.xlu0 %893, %v880
        %v895 = vpop.permute.xlu0 %894
        %898 = vset.pattern.permute.xlu0 0
        %899 = vperm.xlu0 %898, %v881
        %v900 = vpop.permute.xlu0 %899
        %vm902 = vcmask 293888
        %v904 = vsel %vm902, %v869, 0
        %v907 = vsel %vm902, %v870, 0
        %v910 = vsel %vm902, %v871, 0
        %v913 = vsel %vm902, %v872, 0
        %vm915 = vcmask 1043456
        %v917 = vsel %vm915, %v877, 0
        %919 = vmatprep.subr.mxu0 0.0
        %920 = vmatpush1.msra.mxu0 0.0
        %921 = vmatprep.subr.mxu0 0.0
        %922 = vmatpush1.msra.mxu0 0.0
        %923 = vmatprep.subr.mxu0 0.0
        %924 = vmatpush1.msra.mxu0 0.0
        %925 = vmatprep.subr.mxu0 0.0
        %926 = vmatpush1.msra.mxu0 0.0
        %927 = vmatprep.subr.mxu0 0.0
        %928 = vmatpush1.msra.mxu0 0.0
        %929 = vmatprep.subr.mxu0 0.0
        %930 = vmatpush1.msra.mxu0 0.0
        %931 = vmatprep.subr.mxu0 0.0
        %932 = vmatpush1.msra.mxu0 0.0
        %933 = vmatprep.subr.mxu0 0.0
        %934 = vmatpush1.msra.mxu0 0.0
        %935 = vmatprep.subr.mxu0 0.0
        %936 = vmatpush1.msra.mxu0 0.0
        %937 = vmatprep.subr.mxu0 0.0
        %938 = vmatpush1.msra.mxu0 0.0
        %939 = vmatprep.subr.mxu0 0.0
        %940 = vmatpush1.msra.mxu0 0.0
        %941 = vmatprep.subr.mxu0 0.0
        %942 = vmatpush1.msra.mxu0 %v917
        %943 = vmatprep.subr.mxu0 0.0
        %944 = vmatpush1.msra.mxu0 %v876
        %945 = vmatprep.subr.mxu0 0.0
        %946 = vmatpush1.msra.mxu0 %v875
        %947 = vmatprep.subr.mxu0 0.0
        %948 = vmatpush1.msra.mxu0 %v874
        %949 = vmatprep.subr.mxu0 0.0
        %950 = vmatpush1.msra.mxu0 %v873
        %951 = vmatprep.subr.mxu0 0.0
        %952 = vmatpush2.msra.mxu0 0.0
        %953 = vmatprep.subr.mxu0 0.0
        %954 = vmatpush2.msra.mxu0 0.0
        %955 = vmatprep.subr.mxu0 0.0
        %956 = vmatpush2.msra.mxu0 0.0
        %957 = vmatprep.subr.mxu0 0.0
        %958 = vmatpush2.msra.mxu0 0.0
        %959 = vmatprep.subr.mxu0 0.0
        %960 = vmatpush2.msra.mxu0 0.0
        %961 = vmatprep.subr.mxu0 0.0
        %962 = vmatpush2.msra.mxu0 0.0
        %963 = vmatprep.subr.mxu0 0.0
        %964 = vmatpush2.msra.mxu0 0.0
        %965 = vmatprep.subr.mxu0 0.0
        %966 = vmatpush2.msra.mxu0 0.0
        %967 = vmatprep.subr.mxu0 0.0
        %968 = vmatpush2.msra.mxu0 0.0
        %969 = vmatprep.subr.mxu0 0.0
        %970 = vmatpush2.msra.mxu0 0.0
        %971 = vmatprep.subr.mxu0 0.0
        %972 = vmatpush2.msra.mxu0 0.0
        %973 = vmatprep.subr.mxu0 0.0
        %974 = vmatpush2.msra.mxu0 0.0
        %975 = vmatprep.subr.mxu0 0.0
        %976 = vmatpush2.msra.mxu0 0.0
        %977 = vmatprep.subr.mxu0 0.0
        %978 = vmatpush2.msra.mxu0 0.0
        %979 = vmatprep.subr.mxu0 0.0
        %980 = vmatpush2.msra.mxu0 0.0
        %981 = vmatprep.subr.mxu0 0.0
        %982 = vmatpush2.msra.mxu0 0.0
        %983 = vmatprep.mubr.f32.mxu0 0.0
        %984 = vmatmul.mubr.f32.gmra.mxu0 %v904
        %v985 = vpop.f32.mrf.mxu0
        %v986 = vadd.f32 %v885, %v985
        %v987 = vpop.f32.mrf.mxu0
        %988 = vmatprep.mubr.f32.mxu0 0.0
        %989 = vmatmul.mubr.f32.gmra.mxu0 %v907
        %v990 = vpop.f32.mrf.mxu0
        %v991 = vadd.f32 %v890, %v990
        %v992 = vpop.f32.mrf.mxu0
        %993 = vmatprep.mubr.f32.mxu0 0.0
        %994 = vmatmul.mubr.f32.gmra.mxu0 %v910
        %v995 = vpop.f32.mrf.mxu0
        %v996 = vadd.f32 %v895, %v995
        %v997 = vpop.f32.mrf.mxu0
        %998 = vmatprep.mubr.f32.mxu0 0.0
        %999 = vmatmul.mubr.f32.gmra.mxu0 %v913
        %v1000 = vpop.f32.mrf.mxu0
        %v1001 = vadd.f32 %v900, %v1000
        %v1002 = vpop.f32.mrf.mxu0
        %1003 = vdwg.mxu0
        %v1004 = vmax.f32 %v986, 0.0
        %v1005 = vmax.f32 %v991, 0.0
        %v1006 = vmax.f32 %v996, 0.0
        %v1007 = vmax.f32 %v1001, 0.0
        %v1008 = vld [vmem:[#allocation10] sm:$0x1]
        %1009 = vrot.lane.b32.xlu0 %v1004, 17
        %v1010 = vpop.permute.xlu0 %1009
        %1011 = vrot.lane.b32.xlu0 %v1005, 17
        %v1012 = vpop.permute.xlu0 %1011
        %1013 = vrot.lane.b32.xlu0 %v1006, 17
        %v1014 = vpop.permute.xlu0 %1013
        %1015 = vrot.lane.b32.xlu0 %v1007, 17
        %v1016 = vpop.permute.xlu0 %1015
        %v1017 = vlaneseq
        %v1018 = vshrl.u32 %v1017, 7
        %v1019 = vsub.s32 0, %v1018
        %v1020 = vrot.slane %v1008, %v1019
        %v1021 = vmul.f32 %v1020, %v1010
        %v1022 = vmul.f32 %v1020, %v1012
        %v1023 = vmul.f32 %v1020, %v1014
        %v1024 = vmul.f32 %v1020, %v1016
        %1025 = vst [vmem:[#allocation3] sm:$0xff] %v1021
        %1026 = vst [vmem:[#allocation3 + $0x8] sm:$0xff] %v1022
        %1027 = vst [vmem:[#allocation3 + $0x10] sm:$0xff] %v1023
        %1028 = vst [vmem:[#allocation3 + $0x18] sm:$0xff] %v1024
        %v1029 = vld [vmem:[#allocation10 + $0x1] sm:$0x1]
        %1030 = vrot.lane.b32.xlu0 %v1004, 16
        %v1031 = vpop.permute.xlu0 %1030
        %1032 = vrot.lane.b32.xlu0 %v1005, 16
        %v1033 = vpop.permute.xlu0 %1032
        %1034 = vrot.lane.b32.xlu0 %v1006, 16
        %v1035 = vpop.permute.xlu0 %1034
        %1036 = vrot.lane.b32.xlu0 %v1007, 16
        %v1037 = vpop.permute.xlu0 %1036
        %v1038 = vlaneseq
        %v1039 = vshrl.u32 %v1038, 7
        %v1040 = vsub.s32 0, %v1039
        %v1041 = vrot.slane %v1029, %v1040
        %v1042 = vmul.f32 %v1041, %v1031
        %v1043 = vmul.f32 %v1041, %v1033
        %v1044 = vmul.f32 %v1041, %v1035
        %v1045 = vmul.f32 %v1041, %v1037
        %1046 = vst [vmem:[#allocation3 + $0x20] sm:$0xff] %v1042
        %1047 = vst [vmem:[#allocation3 + $0x28] sm:$0xff] %v1043
        %1048 = vst [vmem:[#allocation3 + $0x30] sm:$0xff] %v1044
        %1049 = vst [vmem:[#allocation3 + $0x38] sm:$0xff] %v1045
        %v1050 = vld [vmem:[#allocation10 + $0x2] sm:$0x1]
        %1051 = vrot.lane.b32.xlu0 %v1004, 15
        %v1052 = vpop.permute.xlu0 %1051
        %1053 = vrot.lane.b32.xlu0 %v1005, 15
        %v1054 = vpop.permute.xlu0 %1053
        %1055 = vrot.lane.b32.xlu0 %v1006, 15
        %v1056 = vpop.permute.xlu0 %1055
        %1057 = vrot.lane.b32.xlu0 %v1007, 15
        %v1058 = vpop.permute.xlu0 %1057
        %v1059 = vlaneseq
        %v1060 = vshrl.u32 %v1059, 7
        %v1061 = vsub.s32 0, %v1060
        %v1062 = vrot.slane %v1050, %v1061
        %v1063 = vmul.f32 %v1062, %v1052
        %v1064 = vmul.f32 %v1062, %v1054
        %v1065 = vmul.f32 %v1062, %v1056
        %v1066 = vmul.f32 %v1062, %v1058
        %1067 = vst [vmem:[#allocation3 + $0x40] sm:$0xff] %v1063
        %1068 = vst [vmem:[#allocation3 + $0x48] sm:$0xff] %v1064
        %1069 = vst [vmem:[#allocation3 + $0x50] sm:$0xff] %v1065
        %1070 = vst [vmem:[#allocation3 + $0x58] sm:$0xff] %v1066
        %v1071 = vld [vmem:[#allocation10 + $0x3] sm:$0x1]
        %1072 = vrot.lane.b32.xlu0 %v1004, 1
        %v1073 = vpop.permute.xlu0 %1072
        %1074 = vrot.lane.b32.xlu0 %v1005, 1
        %v1075 = vpop.permute.xlu0 %1074
        %1076 = vrot.lane.b32.xlu0 %v1006, 1
        %v1077 = vpop.permute.xlu0 %1076
        %1078 = vrot.lane.b32.xlu0 %v1007, 1
        %v1079 = vpop.permute.xlu0 %1078
        %v1080 = vlaneseq
        %v1081 = vshrl.u32 %v1080, 7
        %v1082 = vsub.s32 0, %v1081
        %v1083 = vrot.slane %v1071, %v1082
        %v1084 = vmul.f32 %v1083, %v1073
        %v1085 = vmul.f32 %v1083, %v1075
        %v1086 = vmul.f32 %v1083, %v1077
        %v1087 = vmul.f32 %v1083, %v1079
        %1088 = vst [vmem:[#allocation3 + $0x60] sm:$0xff] %v1084
        %1089 = vst [vmem:[#allocation3 + $0x68] sm:$0xff] %v1085
        %1090 = vst [vmem:[#allocation3 + $0x70] sm:$0xff] %v1086
        %1091 = vst [vmem:[#allocation3 + $0x78] sm:$0xff] %v1087
        %1092 = vst [vmem:[#allocation3 + $0x80] sm:$0xff] %v1004
        %1093 = vst [vmem:[#allocation3 + $0x88] sm:$0xff] %v1005
        %1094 = vst [vmem:[#allocation3 + $0x90] sm:$0xff] %v1006
        %1095 = vst [vmem:[#allocation3 + $0x98] sm:$0xff] %v1007
        %v1096 = vld [vmem:[#allocation10 + $0x5] sm:$0x1]
        %1097 = vrot.lane.b32.xlu0 %v1004, 127
        %v1098 = vpop.permute.xlu0 %1097
        %1099 = vrot.lane.b32.xlu0 %v1005, 127
        %v1100 = vpop.permute.xlu0 %1099
        %1101 = vrot.lane.b32.xlu0 %v1006, 127
        %v1102 = vpop.permute.xlu0 %1101
        %1103 = vrot.lane.b32.xlu0 %v1007, 127
        %v1104 = vpop.permute.xlu0 %1103
        %v1105 = vlaneseq
        %v1106 = vshrl.u32 %v1105, 7
        %v1107 = vsub.s32 0, %v1106
        %v1108 = vrot.slane %v1096, %v1107
        %v1109 = vmul.f32 %v1108, %v1098
        %v1110 = vmul.f32 %v1108, %v1100
        %v1111 = vmul.f32 %v1108, %v1102
        %v1112 = vmul.f32 %v1108, %v1104
        %1113 = vst [vmem:[#allocation3 + $0xa0] sm:$0xff] %v1109
        %1114 = vst [vmem:[#allocation3 + $0xa8] sm:$0xff] %v1110
        %1115 = vst [vmem:[#allocation3 + $0xb0] sm:$0xff] %v1111
        %1116 = vst [vmem:[#allocation3 + $0xb8] sm:$0xff] %v1112
        %v1117 = vld [vmem:[#allocation10 + $0x6] sm:$0x1]
        %1118 = vrot.lane.b32.xlu0 %v1004, 113
        %v1119 = vpop.permute.xlu0 %1118
        %1120 = vrot.lane.b32.xlu0 %v1005, 113
        %v1121 = vpop.permute.xlu0 %1120
        %1122 = vrot.lane.b32.xlu0 %v1006, 113
        %v1123 = vpop.permute.xlu0 %1122
        %1124 = vrot.lane.b32.xlu0 %v1007, 113
        %v1125 = vpop.permute.xlu0 %1124
        %v1126 = vlaneseq
        %v1127 = vshrl.u32 %v1126, 7
        %v1128 = vsub.s32 0, %v1127
        %v1129 = vrot.slane %v1117, %v1128
        %v1130 = vmul.f32 %v1129, %v1119
        %v1131 = vmul.f32 %v1129, %v1121
        %v1132 = vmul.f32 %v1129, %v1123
        %v1133 = vmul.f32 %v1129, %v1125
        %1134 = vst [vmem:[#allocation3 + $0xc0] sm:$0xff] %v1130
        %1135 = vst [vmem:[#allocation3 + $0xc8] sm:$0xff] %v1131
        %1136 = vst [vmem:[#allocation3 + $0xd0] sm:$0xff] %v1132
        %1137 = vst [vmem:[#allocation3 + $0xd8] sm:$0xff] %v1133
        %v1138 = vld [vmem:[#allocation10 + $0x7] sm:$0x1]
        %1139 = vrot.lane.b32.xlu0 %v1004, 112
        %v1140 = vpop.permute.xlu0 %1139
        %1141 = vrot.lane.b32.xlu0 %v1005, 112
        %v1142 = vpop.permute.xlu0 %1141
        %1143 = vrot.lane.b32.xlu0 %v1006, 112
        %v1144 = vpop.permute.xlu0 %1143
        %1145 = vrot.lane.b32.xlu0 %v1007, 112
        %v1146 = vpop.permute.xlu0 %1145
        %v1147 = vlaneseq
        %v1148 = vshrl.u32 %v1147, 7
        %v1149 = vsub.s32 0, %v1148
        %v1150 = vrot.slane %v1138, %v1149
        %v1151 = vmul.f32 %v1150, %v1140
        %v1152 = vmul.f32 %v1150, %v1142
        %v1153 = vmul.f32 %v1150, %v1144
        %v1154 = vmul.f32 %v1150, %v1146
        %1155 = vst [vmem:[#allocation3 + $0xe0] sm:$0xff] %v1151
        %1156 = vst [vmem:[#allocation3 + $0xe8] sm:$0xff] %v1152
        %1157 = vst [vmem:[#allocation3 + $0xf0] sm:$0xff] %v1153
        %1158 = vst [vmem:[#allocation3 + $0xf8] sm:$0xff] %v1154
        %v1159 = vld [vmem:[#allocation10 + $0x8] sm:$0x1]
        %1160 = vrot.lane.b32.xlu0 %v1004, 111
        %v1161 = vpop.permute.xlu0 %1160
        %1162 = vrot.lane.b32.xlu0 %v1005, 111
        %v1163 = vpop.permute.xlu0 %1162
        %1164 = vrot.lane.b32.xlu0 %v1006, 111
        %v1165 = vpop.permute.xlu0 %1164
        %1166 = vrot.lane.b32.xlu0 %v1007, 111
        %v1167 = vpop.permute.xlu0 %1166
        %v1168 = vlaneseq
        %v1169 = vshrl.u32 %v1168, 7
        %v1170 = vsub.s32 0, %v1169
        %v1171 = vrot.slane %v1159, %v1170
        %v1172 = vmul.f32 %v1171, %v1161
        %v1173 = vmul.f32 %v1171, %v1163
        %v1174 = vmul.f32 %v1171, %v1165
        %v1175 = vmul.f32 %v1171, %v1167
        %1176 = vst [vmem:[#allocation3 + $0x100] sm:$0xff] %v1172
        %1177 = vst [vmem:[#allocation3 + $0x108] sm:$0xff] %v1173
        %1178 = vst [vmem:[#allocation3 + $0x110] sm:$0xff] %v1174
        %1179 = vst [vmem:[#allocation3 + $0x118] sm:$0xff] %v1175
        %v1180 = vld [vmem:[%s7] sm:$0x3f]
        %v1181 = vld [vmem:[#allocation3] sm:$0xff]
        %v1182 = vld [vmem:[#allocation3 + $0x8] sm:$0xff]
        %v1183 = vld [vmem:[#allocation3 + $0x10] sm:$0xff]
        %v1184 = vld [vmem:[#allocation3 + $0x18] sm:$0xff]
        %v1185 = vld [vmem:[#allocation3 + $0x20] sm:$0xff]
        %v1186 = vld [vmem:[#allocation3 + $0x28] sm:$0xff]
        %v1187 = vld [vmem:[#allocation3 + $0x30] sm:$0xff]
        %v1188 = vld [vmem:[#allocation3 + $0x38] sm:$0xff]
        %v1189 = vld [vmem:[#allocation3 + $0x40] sm:$0xff]
        %v1190 = vld [vmem:[#allocation3 + $0x48] sm:$0xff]
        %v1191 = vld [vmem:[#allocation3 + $0x50] sm:$0xff]
        %v1192 = vld [vmem:[#allocation3 + $0x58] sm:$0xff]
        %v1193 = vld [vmem:[#allocation3 + $0x60] sm:$0xff]
        %v1194 = vld [vmem:[#allocation3 + $0x68] sm:$0xff]
        %v1195 = vld [vmem:[#allocation3 + $0x70] sm:$0xff]
        %v1196 = vld [vmem:[#allocation3 + $0x78] sm:$0xff]
        %v1197 = vld [vmem:[#allocation3 + $0x80] sm:$0xff]
        %v1198 = vld [vmem:[#allocation3 + $0x88] sm:$0xff]
        %v1199 = vld [vmem:[#allocation3 + $0x90] sm:$0xff]
        %v1200 = vld [vmem:[#allocation3 + $0x98] sm:$0xff]
        %v1201 = vld [vmem:[#allocation3 + $0xa0] sm:$0xff]
        %v1202 = vld [vmem:[#allocation3 + $0xa8] sm:$0xff]
        %v1203 = vld [vmem:[#allocation3 + $0xb0] sm:$0xff]
        %v1204 = vld [vmem:[#allocation3 + $0xb8] sm:$0xff]
        %v1205 = vld [vmem:[#allocation3 + $0xc0] sm:$0xff]
        %v1206 = vld [vmem:[#allocation3 + $0xc8] sm:$0xff]
        %v1207 = vld [vmem:[#allocation3 + $0xd0] sm:$0xff]
        %v1208 = vld [vmem:[#allocation3 + $0xd8] sm:$0xff]
        %v1209 = vld [vmem:[#allocation3 + $0xe0] sm:$0xff]
        %v1210 = vld [vmem:[#allocation3 + $0xe8] sm:$0xff]
        %v1211 = vld [vmem:[#allocation3 + $0xf0] sm:$0xff]
        %v1212 = vld [vmem:[#allocation3 + $0xf8] sm:$0xff]
        %v1213 = vld [vmem:[#allocation3 + $0x100] sm:$0xff]
        %v1214 = vld [vmem:[#allocation3 + $0x108] sm:$0xff]
        %v1215 = vld [vmem:[#allocation3 + $0x110] sm:$0xff]
        %v1216 = vld [vmem:[#allocation3 + $0x118] sm:$0xff]
        %v1217 = vld [vmem:[#allocation16] sm:$0x3]
        %1219 = vset.pattern.permute.xlu0 0
        %1220 = vperm.xlu0 %1219, %v1217
        %v1221 = vpop.permute.xlu0 %1220
        %v1224 = vcombine.high %v1180, %v1180
        %v1226 = vunpack.c.l.s4 1983009808
        %v1227 = vunpack.c.0.s8 %v1226
        %v1228 = vlaneseq
        %v1229 = vshrl.u32 %v1228, 7
        %v1230 = vsub.s32 %v1227, %v1229
        %v1231 = vrot.slane %v1180, %v1230
        %v1233 = vunpack.c.l.s4 1983009808
        %v1234 = vunpack.c.0.s8 %v1233
        %v1235 = vlaneseq
        %v1236 = vshrl.u32 %v1235, 7
        %v1237 = vsub.s32 %v1234, %v1236
        %v1238 = vrot.slane %v1224, %v1237
        %v1239 = vcombine.high %v1231, %v1231
        %vm1242 = vcmask 261120
        %v1243 = vsel %vm1242, %v1238, 0
        %1245 = vmatprep.subr.mxu0 0.0
        %1246 = vmatpush1.msra.mxu0 %v1196
        %1247 = vmatprep.subr.mxu0 0.0
        %1248 = vmatpush1.msra.mxu0 %v1195
        %1249 = vmatprep.subr.mxu0 0.0
        %1250 = vmatpush1.msra.mxu0 %v1194
        %1251 = vmatprep.subr.mxu0 0.0
        %1252 = vmatpush1.msra.mxu0 %v1193
        %1253 = vmatprep.subr.mxu0 0.0
        %1254 = vmatpush1.msra.mxu0 %v1192
        %1255 = vmatprep.subr.mxu0 0.0
        %1256 = vmatpush1.msra.mxu0 %v1191
        %1257 = vmatprep.subr.mxu0 0.0
        %1258 = vmatpush1.msra.mxu0 %v1190
        %1259 = vmatprep.subr.mxu0 0.0
        %1260 = vmatpush1.msra.mxu0 %v1189
        %1261 = vmatprep.subr.mxu0 0.0
        %1262 = vmatpush1.msra.mxu0 %v1188
        %1263 = vmatprep.subr.mxu0 0.0
        %1264 = vmatpush1.msra.mxu0 %v1187
        %1265 = vmatprep.subr.mxu0 0.0
        %1266 = vmatpush1.msra.mxu0 %v1186
        %1267 = vmatprep.subr.mxu0 0.0
        %1268 = vmatpush1.msra.mxu0 %v1185
        %1269 = vmatprep.subr.mxu0 0.0
        %1270 = vmatpush1.msra.mxu0 %v1184
        %1271 = vmatprep.subr.mxu0 0.0
        %1272 = vmatpush1.msra.mxu0 %v1183
        %1273 = vmatprep.subr.mxu0 0.0
        %1274 = vmatpush1.msra.mxu0 %v1182
        %1275 = vmatprep.subr.mxu0 0.0
        %1276 = vmatpush1.msra.mxu0 %v1181
        %1277 = vmatprep.subr.mxu0 0.0
        %1278 = vmatpush2.msra.mxu0 %v1212
        %1279 = vmatprep.subr.mxu0 0.0
        %1280 = vmatpush2.msra.mxu0 %v1211
        %1281 = vmatprep.subr.mxu0 0.0
        %1282 = vmatpush2.msra.mxu0 %v1210
        %1283 = vmatprep.subr.mxu0 0.0
        %1284 = vmatpush2.msra.mxu0 %v1209
        %1285 = vmatprep.subr.mxu0 0.0
        %1286 = vmatpush2.msra.mxu0 %v1208
        %1287 = vmatprep.subr.mxu0 0.0
        %1288 = vmatpush2.msra.mxu0 %v1207
        %1289 = vmatprep.subr.mxu0 0.0
        %1290 = vmatpush2.msra.mxu0 %v1206
        %1291 = vmatprep.subr.mxu0 0.0
        %1292 = vmatpush2.msra.mxu0 %v1205
        %1293 = vmatprep.subr.mxu0 0.0
        %1294 = vmatpush2.msra.mxu0 %v1204
        %1295 = vmatprep.subr.mxu0 0.0
        %1296 = vmatpush2.msra.mxu0 %v1203
        %1297 = vmatprep.subr.mxu0 0.0
        %1298 = vmatpush2.msra.mxu0 %v1202
        %1299 = vmatprep.subr.mxu0 0.0
        %1300 = vmatpush2.msra.mxu0 %v1201
        %1301 = vmatprep.subr.mxu0 0.0
        %1302 = vmatpush2.msra.mxu0 %v1200
        %1303 = vmatprep.subr.mxu0 0.0
        %1304 = vmatpush2.msra.mxu0 %v1199
        %1305 = vmatprep.subr.mxu0 0.0
        %1306 = vmatpush2.msra.mxu0 %v1198
        %1307 = vmatprep.subr.mxu0 0.0
        %1308 = vmatpush2.msra.mxu0 %v1197
        %1309 = vmatprep.mubr.f32.mxu0 %v1239
        %1310 = vmatmul.mubr.f32.gmra.mxu0 %v1231
        %v1311 = vpop.f32.mrf.mxu0
        %v1312 = vadd.f32 %v1221, %v1311
        %v1313 = vpop.f32.mrf.mxu0
        %1314 = vdwg.mxu0
        %1315 = vmatprep.subr.mxu0 0.0
        %1316 = vmatpush1.msra.mxu0 0.0
        %1317 = vmatprep.subr.mxu0 0.0
        %1318 = vmatpush1.msra.mxu0 0.0
        %1319 = vmatprep.subr.mxu0 0.0
        %1320 = vmatpush1.msra.mxu0 0.0
        %1321 = vmatprep.subr.mxu0 0.0
        %1322 = vmatpush1.msra.mxu0 0.0
        %1323 = vmatprep.subr.mxu0 0.0
        %1324 = vmatpush1.msra.mxu0 0.0
        %1325 = vmatprep.subr.mxu0 0.0
        %1326 = vmatpush1.msra.mxu0 0.0
        %1327 = vmatprep.subr.mxu0 0.0
        %1328 = vmatpush1.msra.mxu0 0.0
        %1329 = vmatprep.subr.mxu0 0.0
        %1330 = vmatpush1.msra.mxu0 0.0
        %1331 = vmatprep.subr.mxu0 0.0
        %1332 = vmatpush1.msra.mxu0 0.0
        %1333 = vmatprep.subr.mxu0 0.0
        %1334 = vmatpush1.msra.mxu0 0.0
        %1335 = vmatprep.subr.mxu0 0.0
        %1336 = vmatpush1.msra.mxu0 0.0
        %1337 = vmatprep.subr.mxu0 0.0
        %1338 = vmatpush1.msra.mxu0 0.0
        %1339 = vmatprep.subr.mxu0 0.0
        %1340 = vmatpush1.msra.mxu0 %v1216
        %1341 = vmatprep.subr.mxu0 0.0
        %1342 = vmatpush1.msra.mxu0 %v1215
        %1343 = vmatprep.subr.mxu0 0.0
        %1344 = vmatpush1.msra.mxu0 %v1214
        %1345 = vmatprep.subr.mxu0 0.0
        %1346 = vmatpush1.msra.mxu0 %v1213
        %1347 = vmatprep.subr.mxu0 0.0
        %1348 = vmatpush2.msra.mxu0 0.0
        %1349 = vmatprep.subr.mxu0 0.0
        %1350 = vmatpush2.msra.mxu0 0.0
        %1351 = vmatprep.subr.mxu0 0.0
        %1352 = vmatpush2.msra.mxu0 0.0
        %1353 = vmatprep.subr.mxu0 0.0
        %1354 = vmatpush2.msra.mxu0 0.0
        %1355 = vmatprep.subr.mxu0 0.0
        %1356 = vmatpush2.msra.mxu0 0.0
        %1357 = vmatprep.subr.mxu0 0.0
        %1358 = vmatpush2.msra.mxu0 0.0
        %1359 = vmatprep.subr.mxu0 0.0
        %1360 = vmatpush2.msra.mxu0 0.0
        %1361 = vmatprep.subr.mxu0 0.0
        %1362 = vmatpush2.msra.mxu0 0.0
        %1363 = vmatprep.subr.mxu0 0.0
        %1364 = vmatpush2.msra.mxu0 0.0
        %1365 = vmatprep.subr.mxu0 0.0
        %1366 = vmatpush2.msra.mxu0 0.0
        %1367 = vmatprep.subr.mxu0 0.0
        %1368 = vmatpush2.msra.mxu0 0.0
        %1369 = vmatprep.subr.mxu0 0.0
        %1370 = vmatpush2.msra.mxu0 0.0
        %1371 = vmatprep.subr.mxu0 0.0
        %1372 = vmatpush2.msra.mxu0 0.0
        %1373 = vmatprep.subr.mxu0 0.0
        %1374 = vmatpush2.msra.mxu0 0.0
        %1375 = vmatprep.subr.mxu0 0.0
        %1376 = vmatpush2.msra.mxu0 0.0
        %1377 = vmatprep.subr.mxu0 0.0
        %1378 = vmatpush2.msra.mxu0 0.0
        %1379 = vmatprep.mubr.f32.mxu0 0.0
        %1380 = vmatmul.mubr.f32.gmra.mxu0 %v1243
        %v1381 = vpop.f32.mrf.mxu0
        %v1382 = vadd.f32 %v1312, %v1381
        %v1383 = vpop.f32.mrf.mxu0
        %1384 = vdwg.mxu0
        %1385 = vmatprep.subr.mxu0 %v643
        %1386 = vmatpush1.msra.mxu0 %v642
        %1387 = vmatprep.subr.mxu0 %v641
        %1388 = vmatpush1.msra.mxu0 %v640
        %1389 = vmatprep.subr.mxu0 %v639
        %1390 = vmatpush1.msra.mxu0 %v638
        %1391 = vmatprep.subr.mxu0 %v637
        %1392 = vmatpush1.msra.mxu0 %v636
        %1393 = vmatprep.subr.mxu0 %v635
        %1394 = vmatpush1.msra.mxu0 %v634
        %1395 = vmatprep.subr.mxu0 %v633
        %1396 = vmatpush1.msra.mxu0 %v632
        %1397 = vmatprep.subr.mxu0 %v631
        %1398 = vmatpush1.msra.mxu0 %v630
        %1399 = vmatprep.subr.mxu0 %v629
        %1400 = vmatpush1.msra.mxu0 %v628
        %1401 = vmatprep.subr.mxu0 %v627
        %1402 = vmatpush1.msra.mxu0 %v626
        %1403 = vmatprep.subr.mxu0 %v625
        %1404 = vmatpush1.msra.mxu0 %v624
        %1405 = vmatprep.subr.mxu0 %v623
        %1406 = vmatpush1.msra.mxu0 %v622
        %1407 = vmatprep.subr.mxu0 %v621
        %1408 = vmatpush1.msra.mxu0 %v620
        %1409 = vmatprep.subr.mxu0 %v619
        %1410 = vmatpush1.msra.mxu0 %v618
        %1411 = vmatprep.subr.mxu0 %v617
        %1412 = vmatpush1.msra.mxu0 %v616
        %1413 = vmatprep.subr.mxu0 %v615
        %1414 = vmatpush1.msra.mxu0 %v614
        %1415 = vmatprep.subr.mxu0 %v613
        %1416 = vmatpush1.msra.mxu0 %v612
        %1417 = vmatprep.subr.mxu0 0.0
        %1418 = vmatpush2.msra.mxu0 0.0
        %1419 = vmatprep.subr.mxu0 0.0
        %1420 = vmatpush2.msra.mxu0 0.0
        %1421 = vmatprep.subr.mxu0 0.0
        %1422 = vmatpush2.msra.mxu0 0.0
        %1423 = vmatprep.subr.mxu0 0.0
        %1424 = vmatpush2.msra.mxu0 0.0
        %1425 = vmatprep.subr.mxu0 0.0
        %1426 = vmatpush2.msra.mxu0 0.0
        %1427 = vmatprep.subr.mxu0 0.0
        %1428 = vmatpush2.msra.mxu0 0.0
        %1429 = vmatprep.subr.mxu0 0.0
        %1430 = vmatpush2.msra.mxu0 0.0
        %1431 = vmatprep.subr.mxu0 0.0
        %1432 = vmatpush2.msra.mxu0 0.0
        %1433 = vmatprep.subr.mxu0 0.0
        %1434 = vmatpush2.msra.mxu0 0.0
        %1435 = vmatprep.subr.mxu0 0.0
        %1436 = vmatpush2.msra.mxu0 0.0
        %1437 = vmatprep.subr.mxu0 0.0
        %1438 = vmatpush2.msra.mxu0 0.0
        %1439 = vmatprep.subr.mxu0 0.0
        %1440 = vmatpush2.msra.mxu0 0.0
        %1441 = vmatprep.subr.mxu0 0.0
        %1442 = vmatpush2.msra.mxu0 0.0
        %1443 = vmatprep.subr.mxu0 0.0
        %1444 = vmatpush2.msra.mxu0 0.0
        %1445 = vmatprep.subr.mxu0 0.0
        %1446 = vmatpush2.msra.mxu0 0.0
        %1447 = vmatprep.subr.mxu0 0.0
        %1448 = vmatpush2.msra.mxu0 0.0
        %1449 = vmatprep.mubr.f32.mxu0 0.0
        %1450 = vmatmul.mubr.f32.gmra.mxu0 %v1382
        %v1451 = vpop.f32.mrf.mxu0
        %v1452 = vadd.f32 0.0, %v1451
        %v1453 = vpop.f32.mrf.mxu0
        %v1454 = vadd.f32 0.0, %v1453
        %1455 = vdwg.mxu0
        %v1456 = vld [vmem:[#allocation11] ss:$8 sm:$0x3]
        %v1457 = vlaneseq
        %v1458 = vand.u32 %v1457, 127
        %vm1459 = vcmp.lt.s32.totalorder %v1458, 17
        %v1461 = vlaneseq
        %v1462 = vshrl.u32 %v1461, 7
        %v1463 = vsub.s32 0, %v1462
        %v1464 = vrot.slane %v1456, %v1463
        %v1465 = vlaneseq
        %v1466 = vshrl.u32 %v1465, 7
        %v1467 = vsub.s32 1, %v1466
        %v1468 = vrot.slane %v1456, %v1467
        %v1471 = vmul.f32 %v1464, %v757
        %v1472 = vmul.f32 %v1468, %v757
        %1473 = vst [vmem:[#allocation4] sm:$0x3] %v1471
        %1474 = vst [vmem:[#allocation4 + $0x8] sm:$0x3] %v1472
        %s1475 = scalar_lea.vmem [#allocation11], 1
        %v1476 = vld [vmem:[%s1475] ss:$8 sm:$0x3]
        %vm1477 = vcmp.lt.s32.totalorder %v1458, 16
        %v1479 = vlaneseq
        %v1480 = vshrl.u32 %v1479, 7
        %v1481 = vsub.s32 0, %v1480
        %v1482 = vrot.slane %v1476, %v1481
        %v1483 = vlaneseq
        %v1484 = vshrl.u32 %v1483, 7
        %v1485 = vsub.s32 1, %v1484
        %v1486 = vrot.slane %v1476, %v1485
        %v1489 = vmul.f32 %v1482, %v766
        %v1490 = vmul.f32 %v1486, %v766
        %v1493 = vrot.slane %v1489, 6
        %v1494 = vrot.slane %v1490, 6
        %1497 = vst [vmem:[#allocation4] sm:$0xc] %v1493
        %1498 = vst [vmem:[#allocation4 + $0x8] sm:$0xc] %v1494
        %s1499 = scalar_lea.vmem [#allocation11], 2
        %v1500 = vld [vmem:[%s1499] ss:$8 sm:$0x3]
        %vm1501 = vcmp.lt.s32.totalorder %v1458, 15
        %v1503 = vlaneseq
        %v1504 = vshrl.u32 %v1503, 7
        %v1505 = vsub.s32 0, %v1504
        %v1506 = vrot.slane %v1500, %v1505
        %v1507 = vlaneseq
        %v1508 = vshrl.u32 %v1507, 7
        %v1509 = vsub.s32 1, %v1508
        %v1510 = vrot.slane %v1500, %v1509
        %v1513 = vmul.f32 %v1506, %v775
        %v1514 = vmul.f32 %v1510, %v775
        %v1517 = vrot.slane %v1513, 4
        %v1518 = vrot.slane %v1514, 4
        %1521 = vst [vmem:[#allocation4] sm:$0x30] %v1517
        %1522 = vst [vmem:[#allocation4 + $0x8] sm:$0x30] %v1518
        %s1523 = scalar_lea.vmem [#allocation11], 3
        %v1524 = vld [vmem:[%s1523] ss:$8 sm:$0x3]
        %vm1525 = vcmp.lt.s32.totalorder %v1458, 1
        %v1527 = vlaneseq
        %v1528 = vshrl.u32 %v1527, 7
        %v1529 = vsub.s32 0, %v1528
        %v1530 = vrot.slane %v1524, %v1529
        %v1531 = vlaneseq
        %v1532 = vshrl.u32 %v1531, 7
        %v1533 = vsub.s32 1, %v1532
        %v1534 = vrot.slane %v1524, %v1533
        %v1537 = vmul.f32 %v1530, %v784
        %v1538 = vmul.f32 %v1534, %v784
        %v1541 = vrot.slane %v1537, 2
        %v1542 = vrot.slane %v1538, 2
        %1545 = vst [vmem:[#allocation4] sm:$0xc0] %v1541
        %1546 = vst [vmem:[#allocation4 + $0x8] sm:$0xc0] %v1542
        %1547 = vst [vmem:[#allocation4 + $0x10] sm:$0x3] 0.0
        %1548 = vst [vmem:[#allocation4 + $0x18] sm:$0x3] 0.0
        %s1549 = scalar_lea.vmem [#allocation11], 5
        %v1550 = vld [vmem:[%s1549] ss:$8 sm:$0x3]
        %vm1551 = vcmp.lt.s32.totalorder %v1458, 127
        %v1553 = vlaneseq
        %v1554 = vshrl.u32 %v1553, 7
        %v1555 = vsub.s32 0, %v1554
        %v1556 = vrot.slane %v1550, %v1555
        %v1557 = vlaneseq
        %v1558 = vshrl.u32 %v1557, 7
        %v1559 = vsub.s32 1, %v1558
        %v1560 = vrot.slane %v1550, %v1559
        %v1563 = vmul.f32 %v1556, %v794
        %v1564 = vmul.f32 %v1560, %v794
        %v1567 = vrot.slane %v1563, 6
        %v1568 = vrot.slane %v1564, 6
        %1571 = vst [vmem:[#allocation4 + $0x10] sm:$0xc] %v1567
        %1572 = vst [vmem:[#allocation4 + $0x18] sm:$0xc] %v1568
        %s1573 = scalar_lea.vmem [#allocation11], 6
        %v1574 = vld [vmem:[%s1573] ss:$8 sm:$0x3]
        %vm1575 = vcmp.lt.s32.totalorder %v1458, 113
        %v1577 = vlaneseq
        %v1578 = vshrl.u32 %v1577, 7
        %v1579 = vsub.s32 0, %v1578
        %v1580 = vrot.slane %v1574, %v1579
        %v1581 = vlaneseq
        %v1582 = vshrl.u32 %v1581, 7
        %v1583 = vsub.s32 1, %v1582
        %v1584 = vrot.slane %v1574, %v1583
        %v1587 = vmul.f32 %v1580, %v803
        %v1588 = vmul.f32 %v1584, %v803
        %v1591 = vrot.slane %v1587, 4
        %v1592 = vrot.slane %v1588, 4
        %1595 = vst [vmem:[#allocation4 + $0x10] sm:$0x30] %v1591
        %1596 = vst [vmem:[#allocation4 + $0x18] sm:$0x30] %v1592
        %s1597 = scalar_lea.vmem [#allocation11], 7
        %v1598 = vld [vmem:[%s1597] ss:$8 sm:$0x3]
        %vm1599 = vcmp.lt.s32.totalorder %v1458, 112
        %v1601 = vlaneseq
        %v1602 = vshrl.u32 %v1601, 7
        %v1603 = vsub.s32 0, %v1602
        %v1604 = vrot.slane %v1598, %v1603
        %v1605 = vlaneseq
        %v1606 = vshrl.u32 %v1605, 7
        %v1607 = vsub.s32 1, %v1606
        %v1608 = vrot.slane %v1598, %v1607
        %v1611 = vmul.f32 %v1604, %v812
        %v1612 = vmul.f32 %v1608, %v812
        %v1615 = vrot.slane %v1611, 2
        %v1616 = vrot.slane %v1612, 2
        %1619 = vst [vmem:[#allocation4 + $0x10] sm:$0xc0] %v1615
        %1620 = vst [vmem:[#allocation4 + $0x18] sm:$0xc0] %v1616
        %s1621 = scalar_lea.vmem [#allocation11], 16
        %v1622 = vld [vmem:[%s1621] ss:$8 sm:$0x3]
        %vm1623 = vcmp.lt.s32.totalorder %v1458, 111
        %v1625 = vlaneseq
        %v1626 = vshrl.u32 %v1625, 7
        %v1627 = vsub.s32 0, %v1626
        %v1628 = vrot.slane %v1622, %v1627
        %v1629 = vlaneseq
        %v1630 = vshrl.u32 %v1629, 7
        %v1631 = vsub.s32 1, %v1630
        %v1632 = vrot.slane %v1622, %v1631
        %v1635 = vmul.f32 %v1628, %v821
        %v1636 = vmul.f32 %v1632, %v821
        %1637 = vst [vmem:[#allocation4 + $0x20] sm:$0x3] %v1635
        %1638 = vst [vmem:[#allocation4 + $0x28] sm:$0x3] %v1636
        %v1639 = vld [vmem:[#allocation11] ss:$8 sm:$0x3]
        %1640 = vrot.lane.b32.xlu0 %v1452, 17
        %v1641 = vpop.permute.xlu0 %1640
        %1642 = vrot.lane.b32.xlu0 %v1454, 17
        %v1643 = vpop.permute.xlu0 %1642
        %v1644 = vsel %vm1459, %v1641, %v1643
        %v1645 = vsel %vm1459, %v1643, %v1641
        %v1648 = vcombine.low %v1645, %v1644
        %v1650 = vunpack.c.l.s4 1966171168
        %v1651 = vunpack.c.0.s8 %v1650
        %v1652 = vlaneseq
        %v1653 = vshrl.u32 %v1652, 7
        %v1654 = vsub.s32 %v1651, %v1653
        %v1655 = vrot.slane %v1648, %v1654
        %v1657 = vunpack.c.l.s4 1966171168
        %v1658 = vunpack.c.0.s8 %v1657
        %v1659 = vlaneseq
        %v1660 = vshrl.u32 %v1659, 7
        %v1661 = vsub.s32 %v1658, %v1660
        %v1662 = vrot.slane %v1655, %v1661
        %v1664 = vmul.f32 %v1639, %v1662
        %v1665 = vlaneseq
        %vm1666 = vcmp.ge.s32.totalorder %v1665, 0
        %vm1667 = vcmp.lt.s32.totalorder %v1665, 256
        %vm1668 = vmand %vm1666, %vm1667
        %s1669 = scalar_lea.vmem [#allocation4], 34
        %1670 = vst.msk [vmem:[%s1669] ss:$8 sm:$0x3] %vm1668, %v1664
        %1671 = vst.msk [vmem:[%s1669] ss:$8 sm:$0x0] %vm1668, %v1664
        %v1672 = vld [vmem:[%s1475] ss:$8 sm:$0x3]
        %1673 = vrot.lane.b32.xlu0 %v1452, 16
        %v1674 = vpop.permute.xlu0 %1673
        %1675 = vrot.lane.b32.xlu0 %v1454, 16
        %v1676 = vpop.permute.xlu0 %1675
        %v1677 = vsel %vm1477, %v1674, %v1676
        %v1678 = vsel %vm1477, %v1676, %v1674
        %v1681 = vcombine.low %v1678, %v1677
        %v1683 = vunpack.c.l.s4 1966171168
        %v1684 = vunpack.c.0.s8 %v1683
        %v1685 = vlaneseq
        %v1686 = vshrl.u32 %v1685, 7
        %v1687 = vsub.s32 %v1684, %v1686
        %v1688 = vrot.slane %v1681, %v1687
        %v1690 = vunpack.c.l.s4 1966171168
        %v1691 = vunpack.c.0.s8 %v1690
        %v1692 = vlaneseq
        %v1693 = vshrl.u32 %v1692, 7
        %v1694 = vsub.s32 %v1691, %v1693
        %v1695 = vrot.slane %v1688, %v1694
        %v1697 = vmul.f32 %v1672, %v1695
        %s1698 = scalar_lea.vmem [#allocation4], 35
        %1699 = vst.msk [vmem:[%s1698] ss:$8 sm:$0x3] %vm1668, %v1697
        %1700 = vst.msk [vmem:[%s1698] ss:$8 sm:$0x0] %vm1668, %v1697
        %v1701 = vld [vmem:[%s1499] ss:$8 sm:$0x3]
        %1702 = vrot.lane.b32.xlu0 %v1452, 15
        %v1703 = vpop.permute.xlu0 %1702
        %1704 = vrot.lane.b32.xlu0 %v1454, 15
        %v1705 = vpop.permute.xlu0 %1704
        %v1706 = vsel %vm1501, %v1703, %v1705
        %v1707 = vsel %vm1501, %v1705, %v1703
        %v1710 = vcombine.low %v1707, %v1706
        %v1712 = vunpack.c.l.s4 1966171168
        %v1713 = vunpack.c.0.s8 %v1712
        %v1714 = vlaneseq
        %v1715 = vshrl.u32 %v1714, 7
        %v1716 = vsub.s32 %v1713, %v1715
        %v1717 = vrot.slane %v1710, %v1716
        %v1719 = vunpack.c.l.s4 1966171168
        %v1720 = vunpack.c.0.s8 %v1719
        %v1721 = vlaneseq
        %v1722 = vshrl.u32 %v1721, 7
        %v1723 = vsub.s32 %v1720, %v1722
        %v1724 = vrot.slane %v1717, %v1723
        %v1726 = vmul.f32 %v1701, %v1724
        %s1727 = scalar_lea.vmem [#allocation4], 36
        %1728 = vst.msk [vmem:[%s1727] ss:$8 sm:$0x3] %vm1668, %v1726
        %1729 = vst.msk [vmem:[%s1727] ss:$8 sm:$0x0] %vm1668, %v1726
        %v1730 = vld [vmem:[%s1523] ss:$8 sm:$0x3]
        %1731 = vrot.lane.b32.xlu0 %v1452, 1
        %v1732 = vpop.permute.xlu0 %1731
        %1733 = vrot.lane.b32.xlu0 %v1454, 1
        %v1734 = vpop.permute.xlu0 %1733
        %v1735 = vsel %vm1525, %v1732, %v1734
        %v1736 = vsel %vm1525, %v1734, %v1732
        %v1739 = vcombine.low %v1736, %v1735
        %v1741 = vunpack.c.l.s4 1966171168
        %v1742 = vunpack.c.0.s8 %v1741
        %v1743 = vlaneseq
        %v1744 = vshrl.u32 %v1743, 7
        %v1745 = vsub.s32 %v1742, %v1744
        %v1746 = vrot.slane %v1739, %v1745
        %v1748 = vunpack.c.l.s4 1966171168
        %v1749 = vunpack.c.0.s8 %v1748
        %v1750 = vlaneseq
        %v1751 = vshrl.u32 %v1750, 7
        %v1752 = vsub.s32 %v1749, %v1751
        %v1753 = vrot.slane %v1746, %v1752
        %v1755 = vmul.f32 %v1730, %v1753
        %s1756 = scalar_lea.vmem [#allocation4], 37
        %1757 = vst.msk [vmem:[%s1756] ss:$8 sm:$0x3] %vm1668, %v1755
        %1758 = vst.msk [vmem:[%s1756] ss:$8 sm:$0x0] %vm1668, %v1755
        %v1761 = vcombine.low %v1452, %v1454
        %v1763 = vunpack.c.l.s4 1966171168
        %v1764 = vunpack.c.0.s8 %v1763
        %v1765 = vlaneseq
        %v1766 = vshrl.u32 %v1765, 7
        %v1767 = vsub.s32 %v1764, %v1766
        %v1768 = vrot.slane %v1761, %v1767
        %v1770 = vunpack.c.l.s4 1966171168
        %v1771 = vunpack.c.0.s8 %v1770
        %v1772 = vlaneseq
        %v1773 = vshrl.u32 %v1772, 7
        %v1774 = vsub.s32 %v1771, %v1773
        %v1775 = vrot.slane %v1768, %v1774
        %s1777 = scalar_lea.vmem [#allocation4], 38
        %1778 = vst.msk [vmem:[%s1777] ss:$8 sm:$0x3] %vm1668, %v1775
        %1779 = vst.msk [vmem:[%s1777] ss:$8 sm:$0x0] %vm1668, %v1775
        %v1780 = vld [vmem:[%s1549] ss:$8 sm:$0x3]
        %1781 = vrot.lane.b32.xlu0 %v1452, 127
        %v1782 = vpop.permute.xlu0 %1781
        %1783 = vrot.lane.b32.xlu0 %v1454, 127
        %v1784 = vpop.permute.xlu0 %1783
        %v1785 = vsel %vm1551, %v1782, %v1784
        %v1786 = vsel %vm1551, %v1784, %v1782
        %v1789 = vcombine.low %v1785, %v1786
        %v1791 = vunpack.c.l.s4 1966171168
        %v1792 = vunpack.c.0.s8 %v1791
        %v1793 = vlaneseq
        %v1794 = vshrl.u32 %v1793, 7
        %v1795 = vsub.s32 %v1792, %v1794
        %v1796 = vrot.slane %v1789, %v1795
        %v1798 = vunpack.c.l.s4 1966171168
        %v1799 = vunpack.c.0.s8 %v1798
        %v1800 = vlaneseq
        %v1801 = vshrl.u32 %v1800, 7
        %v1802 = vsub.s32 %v1799, %v1801
        %v1803 = vrot.slane %v1796, %v1802
        %v1805 = vmul.f32 %v1780, %v1803
        %s1806 = scalar_lea.vmem [#allocation4], 39
        %1807 = vst.msk [vmem:[%s1806] ss:$8 sm:$0x3] %vm1668, %v1805
        %1808 = vst.msk [vmem:[%s1806] ss:$8 sm:$0x0] %vm1668, %v1805
        %v1809 = vld [vmem:[%s1573] ss:$8 sm:$0x3]
        %1810 = vrot.lane.b32.xlu0 %v1452, 113
        %v1811 = vpop.permute.xlu0 %1810
        %1812 = vrot.lane.b32.xlu0 %v1454, 113
        %v1813 = vpop.permute.xlu0 %1812
        %v1814 = vsel %vm1575, %v1811, %v1813
        %v1815 = vsel %vm1575, %v1813, %v1811
        %v1818 = vcombine.low %v1814, %v1815
        %v1820 = vunpack.c.l.s4 1966171168
        %v1821 = vunpack.c.0.s8 %v1820
        %v1822 = vlaneseq
        %v1823 = vshrl.u32 %v1822, 7
        %v1824 = vsub.s32 %v1821, %v1823
        %v1825 = vrot.slane %v1818, %v1824
        %v1827 = vunpack.c.l.s4 1966171168
        %v1828 = vunpack.c.0.s8 %v1827
        %v1829 = vlaneseq
        %v1830 = vshrl.u32 %v1829, 7
        %v1831 = vsub.s32 %v1828, %v1830
        %v1832 = vrot.slane %v1825, %v1831
        %v1834 = vmul.f32 %v1809, %v1832
        %s1835 = scalar_lea.vmem [#allocation4], 48
        %1836 = vst.msk [vmem:[%s1835] ss:$8 sm:$0x3] %vm1668, %v1834
        %1837 = vst.msk [vmem:[%s1835] ss:$8 sm:$0x0] %vm1668, %v1834
        %v1838 = vld [vmem:[%s1597] ss:$8 sm:$0x3]
        %1839 = vrot.lane.b32.xlu0 %v1452, 112
        %v1840 = vpop.permute.xlu0 %1839
        %1841 = vrot.lane.b32.xlu0 %v1454, 112
        %v1842 = vpop.permute.xlu0 %1841
        %v1843 = vsel %vm1599, %v1840, %v1842
        %v1844 = vsel %vm1599, %v1842, %v1840
        %v1847 = vcombine.low %v1843, %v1844
        %v1849 = vunpack.c.l.s4 1966171168
        %v1850 = vunpack.c.0.s8 %v1849
        %v1851 = vlaneseq
        %v1852 = vshrl.u32 %v1851, 7
        %v1853 = vsub.s32 %v1850, %v1852
        %v1854 = vrot.slane %v1847, %v1853
        %v1856 = vunpack.c.l.s4 1966171168
        %v1857 = vunpack.c.0.s8 %v1856
        %v1858 = vlaneseq
        %v1859 = vshrl.u32 %v1858, 7
        %v1860 = vsub.s32 %v1857, %v1859
        %v1861 = vrot.slane %v1854, %v1860
        %v1863 = vmul.f32 %v1838, %v1861
        %s1864 = scalar_lea.vmem [#allocation4], 49
        %1865 = vst.msk [vmem:[%s1864] ss:$8 sm:$0x3] %vm1668, %v1863
        %1866 = vst.msk [vmem:[%s1864] ss:$8 sm:$0x0] %vm1668, %v1863
        %v1867 = vld [vmem:[%s1621] ss:$8 sm:$0x3]
        %1868 = vrot.lane.b32.xlu0 %v1452, 111
        %v1869 = vpop.permute.xlu0 %1868
        %1870 = vrot.lane.b32.xlu0 %v1454, 111
        %v1871 = vpop.permute.xlu0 %1870
        %v1872 = vsel %vm1623, %v1869, %v1871
        %v1873 = vsel %vm1623, %v1871, %v1869
        %v1876 = vcombine.low %v1872, %v1873
        %v1878 = vunpack.c.l.s4 1966171168
        %v1879 = vunpack.c.0.s8 %v1878
        %v1880 = vlaneseq
        %v1881 = vshrl.u32 %v1880, 7
        %v1882 = vsub.s32 %v1879, %v1881
        %v1883 = vrot.slane %v1876, %v1882
        %v1885 = vunpack.c.l.s4 1966171168
        %v1886 = vunpack.c.0.s8 %v1885
        %v1887 = vlaneseq
        %v1888 = vshrl.u32 %v1887, 7
        %v1889 = vsub.s32 %v1886, %v1888
        %v1890 = vrot.slane %v1883, %v1889
        %v1892 = vmul.f32 %v1867, %v1890
        %s1893 = scalar_lea.vmem [#allocation4], 50
        %1894 = vst.msk [vmem:[%s1893] ss:$8 sm:$0x3] %vm1668, %v1892
        %1895 = vst.msk [vmem:[%s1893] ss:$8 sm:$0x0] %vm1668, %v1892
        %v1896 = vld [vmem:[#allocation17] sm:$0xff]
        %v1897 = vld [vmem:[#allocation17 + $0x8] sm:$0xff]
        %v1898 = vld [vmem:[#allocation17 + $0x10] sm:$0xff]
        %v1899 = vld [vmem:[#allocation17 + $0x18] sm:$0xff]
        %v1900 = vld [vmem:[#allocation4] sm:$0xff]
        %v1901 = vld [vmem:[#allocation4 + $0x8] sm:$0xff]
        %v1902 = vld [vmem:[#allocation4 + $0x10] sm:$0xff]
        %v1903 = vld [vmem:[#allocation4 + $0x18] sm:$0xff]
        %v1904 = vld [vmem:[#allocation4 + $0x20] sm:$0xff]
        %v1905 = vld [vmem:[#allocation4 + $0x28] sm:$0xff]
        %v1906 = vld [vmem:[#allocation4 + $0x30] sm:$0x7]
        %v1907 = vld [vmem:[#allocation4 + $0x38] sm:$0x7]
        %v1908 = vld [vmem:[#allocation19] sm:$0xff]
        %v1909 = vld [vmem:[#allocation19 + $0x8] sm:$0xff]
        %v1910 = vld [vmem:[#allocation19 + $0x10] sm:$0xff]
        %v1911 = vld [vmem:[#allocation19 + $0x18] sm:$0xff]
        %1913 = vset.pattern.permute.xlu0 0
        %1914 = vperm.xlu0 %1913, %v1908
        %v1915 = vpop.permute.xlu0 %1914
        %1918 = vset.pattern.permute.xlu0 0
        %1919 = vperm.xlu0 %1918, %v1909
        %v1920 = vpop.permute.xlu0 %1919
        %1923 = vset.pattern.permute.xlu0 0
        %1924 = vperm.xlu0 %1923, %v1910
        %v1925 = vpop.permute.xlu0 %1924
        %1928 = vset.pattern.permute.xlu0 0
        %1929 = vperm.xlu0 %1928, %v1911
        %v1930 = vpop.permute.xlu0 %1929
        %vm1932 = vcmask 220160
        %v1934 = vsel %vm1932, %v1896, 0
        %v1937 = vsel %vm1932, %v1897, 0
        %v1940 = vsel %vm1932, %v1898, 0
        %v1943 = vsel %vm1932, %v1899, 0
        %vm1945 = vcmask 1042432
        %v1947 = vsel %vm1945, %v1906, 0
        %v1950 = vsel %vm1945, %v1907, 0
        %1952 = vmatprep.subr.mxu0 0.0
        %1953 = vmatpush1.msra.mxu0 0.0
        %1954 = vmatprep.subr.mxu0 0.0
        %1955 = vmatpush1.msra.mxu0 0.0
        %1956 = vmatprep.subr.mxu0 0.0
        %1957 = vmatpush1.msra.mxu0 0.0
        %1958 = vmatprep.subr.mxu0 0.0
        %1959 = vmatpush1.msra.mxu0 0.0
        %1960 = vmatprep.subr.mxu0 0.0
        %1961 = vmatpush1.msra.mxu0 0.0
        %1962 = vmatprep.subr.mxu0 0.0
        %1963 = vmatpush1.msra.mxu0 0.0
        %1964 = vmatprep.subr.mxu0 0.0
        %1965 = vmatpush1.msra.mxu0 0.0
        %1966 = vmatprep.subr.mxu0 0.0
        %1967 = vmatpush1.msra.mxu0 0.0
        %1968 = vmatprep.subr.mxu0 0.0
        %1969 = vmatpush1.msra.mxu0 0.0
        %1970 = vmatprep.subr.mxu0 0.0
        %1971 = vmatpush1.msra.mxu0 0.0
        %1972 = vmatprep.subr.mxu0 0.0
        %1973 = vmatpush1.msra.mxu0 0.0
        %1974 = vmatprep.subr.mxu0 0.0
        %1975 = vmatpush1.msra.mxu0 0.0
        %1976 = vmatprep.subr.mxu0 %v1950
        %1977 = vmatpush1.msra.mxu0 %v1947
        %1978 = vmatprep.subr.mxu0 %v1905
        %1979 = vmatpush1.msra.mxu0 %v1904
        %1980 = vmatprep.subr.mxu0 %v1903
        %1981 = vmatpush1.msra.mxu0 %v1902
        %1982 = vmatprep.subr.mxu0 %v1901
        %1983 = vmatpush1.msra.mxu0 %v1900
        %1984 = vmatprep.subr.mxu0 0.0
        %1985 = vmatpush2.msra.mxu0 0.0
        %1986 = vmatprep.subr.mxu0 0.0
        %1987 = vmatpush2.msra.mxu0 0.0
        %1988 = vmatprep.subr.mxu0 0.0
        %1989 = vmatpush2.msra.mxu0 0.0
        %1990 = vmatprep.subr.mxu0 0.0
        %1991 = vmatpush2.msra.mxu0 0.0
        %1992 = vmatprep.subr.mxu0 0.0
        %1993 = vmatpush2.msra.mxu0 0.0
        %1994 = vmatprep.subr.mxu0 0.0
        %1995 = vmatpush2.msra.mxu0 0.0
        %1996 = vmatprep.subr.mxu0 0.0
        %1997 = vmatpush2.msra.mxu0 0.0
        %1998 = vmatprep.subr.mxu0 0.0
        %1999 = vmatpush2.msra.mxu0 0.0
        %2000 = vmatprep.subr.mxu0 0.0
        %2001 = vmatpush2.msra.mxu0 0.0
        %2002 = vmatprep.subr.mxu0 0.0
        %2003 = vmatpush2.msra.mxu0 0.0
        %2004 = vmatprep.subr.mxu0 0.0
        %2005 = vmatpush2.msra.mxu0 0.0
        %2006 = vmatprep.subr.mxu0 0.0
        %2007 = vmatpush2.msra.mxu0 0.0
        %2008 = vmatprep.subr.mxu0 0.0
        %2009 = vmatpush2.msra.mxu0 0.0
        %2010 = vmatprep.subr.mxu0 0.0
        %2011 = vmatpush2.msra.mxu0 0.0
        %2012 = vmatprep.subr.mxu0 0.0
        %2013 = vmatpush2.msra.mxu0 0.0
        %2014 = vmatprep.subr.mxu0 0.0
        %2015 = vmatpush2.msra.mxu0 0.0
        %2016 = vmatprep.mubr.f32.mxu0 0.0
        %2017 = vmatmul.mubr.f32.gmra.mxu0 %v1934
        %v2018 = vpop.f32.mrf.mxu0
        %v2019 = vadd.f32 %v1915, %v2018
        %v2020 = vpop.f32.mrf.mxu0
        %v2021 = vadd.f32 %v1915, %v2020
        %2022 = vmatprep.mubr.f32.mxu0 0.0
        %2023 = vmatmul.mubr.f32.gmra.mxu0 %v1937
        %v2024 = vpop.f32.mrf.mxu0
        %v2025 = vadd.f32 %v1920, %v2024
        %v2026 = vpop.f32.mrf.mxu0
        %v2027 = vadd.f32 %v1920, %v2026
        %2028 = vmatprep.mubr.f32.mxu0 0.0
        %2029 = vmatmul.mubr.f32.gmra.mxu0 %v1940
        %v2030 = vpop.f32.mrf.mxu0
        %v2031 = vadd.f32 %v1925, %v2030
        %v2032 = vpop.f32.mrf.mxu0
        %v2033 = vadd.f32 %v1925, %v2032
        %2034 = vmatprep.mubr.f32.mxu0 0.0
        %2035 = vmatmul.mubr.f32.gmra.mxu0 %v1943
        %v2036 = vpop.f32.mrf.mxu0
        %v2037 = vadd.f32 %v1930, %v2036
        %v2038 = vpop.f32.mrf.mxu0
        %v2039 = vadd.f32 %v1930, %v2038
        %2040 = vdwg.mxu0
        %v2041 = vmax.f32 %v2019, 0.0
        %v2042 = vmax.f32 %v2021, 0.0
        %v2043 = vmax.f32 %v2025, 0.0
        %v2044 = vmax.f32 %v2027, 0.0
        %v2045 = vmax.f32 %v2031, 0.0
        %v2046 = vmax.f32 %v2033, 0.0
        %v2047 = vmax.f32 %v2037, 0.0
        %v2048 = vmax.f32 %v2039, 0.0
        %v2049 = vld [vmem:[#allocation11] ss:$8 sm:$0x3]
        %2050 = vrot.lane.b32.xlu0 %v2041, 17
        %v2051 = vpop.permute.xlu0 %2050
        %2052 = vrot.lane.b32.xlu0 %v2043, 17
        %v2053 = vpop.permute.xlu0 %2052
        %2054 = vrot.lane.b32.xlu0 %v2045, 17
        %v2055 = vpop.permute.xlu0 %2054
        %2056 = vrot.lane.b32.xlu0 %v2047, 17
        %v2057 = vpop.permute.xlu0 %2056
        %2058 = vrot.lane.b32.xlu0 %v2042, 17
        %v2059 = vpop.permute.xlu0 %2058
        %2060 = vrot.lane.b32.xlu0 %v2044, 17
        %v2061 = vpop.permute.xlu0 %2060
        %2062 = vrot.lane.b32.xlu0 %v2046, 17
        %v2063 = vpop.permute.xlu0 %2062
        %2064 = vrot.lane.b32.xlu0 %v2048, 17
        %v2065 = vpop.permute.xlu0 %2064
        %v2066 = vsel %vm1459, %v2051, %v2059
        %v2067 = vsel %vm1459, %v2053, %v2061
        %v2068 = vsel %vm1459, %v2055, %v2063
        %v2069 = vsel %vm1459, %v2057, %v2065
        %v2070 = vsel %vm1459, %v2059, %v2051
        %v2071 = vsel %vm1459, %v2061, %v2053
        %v2072 = vsel %vm1459, %v2063, %v2055
        %v2073 = vsel %vm1459, %v2065, %v2057
        %v2075 = vlaneseq
        %v2076 = vshrl.u32 %v2075, 7
        %v2077 = vsub.s32 0, %v2076
        %v2078 = vrot.slane %v2049, %v2077
        %v2079 = vlaneseq
        %v2080 = vshrl.u32 %v2079, 7
        %v2081 = vsub.s32 1, %v2080
        %v2082 = vrot.slane %v2049, %v2081
        %v2085 = vmul.f32 %v2078, %v2070
        %v2086 = vmul.f32 %v2082, %v2066
        %v2087 = vmul.f32 %v2078, %v2071
        %v2088 = vmul.f32 %v2082, %v2067
        %v2089 = vmul.f32 %v2078, %v2072
        %v2090 = vmul.f32 %v2082, %v2068
        %v2091 = vmul.f32 %v2078, %v2073
        %v2092 = vmul.f32 %v2082, %v2069
        %2093 = vst [vmem:[#allocation5] sm:$0xff] %v2085
        %2094 = vst [vmem:[#allocation5 + $0x8] sm:$0xff] %v2086
        %2095 = vst [vmem:[#allocation5 + $0x10] sm:$0xff] %v2087
        %2096 = vst [vmem:[#allocation5 + $0x18] sm:$0xff] %v2088
        %2097 = vst [vmem:[#allocation5 + $0x20] sm:$0xff] %v2089
        %2098 = vst [vmem:[#allocation5 + $0x28] sm:$0xff] %v2090
        %2099 = vst [vmem:[#allocation5 + $0x30] sm:$0xff] %v2091
        %2100 = vst [vmem:[#allocation5 + $0x38] sm:$0xff] %v2092
        %v2101 = vld [vmem:[%s1475] ss:$8 sm:$0x3]
        %2102 = vrot.lane.b32.xlu0 %v2041, 16
        %v2103 = vpop.permute.xlu0 %2102
        %2104 = vrot.lane.b32.xlu0 %v2043, 16
        %v2105 = vpop.permute.xlu0 %2104
        %2106 = vrot.lane.b32.xlu0 %v2045, 16
        %v2107 = vpop.permute.xlu0 %2106
        %2108 = vrot.lane.b32.xlu0 %v2047, 16
        %v2109 = vpop.permute.xlu0 %2108
        %2110 = vrot.lane.b32.xlu0 %v2042, 16
        %v2111 = vpop.permute.xlu0 %2110
        %2112 = vrot.lane.b32.xlu0 %v2044, 16
        %v2113 = vpop.permute.xlu0 %2112
        %2114 = vrot.lane.b32.xlu0 %v2046, 16
        %v2115 = vpop.permute.xlu0 %2114
        %2116 = vrot.lane.b32.xlu0 %v2048, 16
        %v2117 = vpop.permute.xlu0 %2116
        %v2118 = vsel %vm1477, %v2103, %v2111
        %v2119 = vsel %vm1477, %v2105, %v2113
        %v2120 = vsel %vm1477, %v2107, %v2115
        %v2121 = vsel %vm1477, %v2109, %v2117
        %v2122 = vsel %vm1477, %v2111, %v2103
        %v2123 = vsel %vm1477, %v2113, %v2105
        %v2124 = vsel %vm1477, %v2115, %v2107
        %v2125 = vsel %vm1477, %v2117, %v2109
        %v2127 = vlaneseq
        %v2128 = vshrl.u32 %v2127, 7
        %v2129 = vsub.s32 0, %v2128
        %v2130 = vrot.slane %v2101, %v2129
        %v2131 = vlaneseq
        %v2132 = vshrl.u32 %v2131, 7
        %v2133 = vsub.s32 1, %v2132
        %v2134 = vrot.slane %v2101, %v2133
        %v2137 = vmul.f32 %v2130, %v2122
        %v2138 = vmul.f32 %v2134, %v2118
        %v2139 = vmul.f32 %v2130, %v2123
        %v2140 = vmul.f32 %v2134, %v2119
        %v2141 = vmul.f32 %v2130, %v2124
        %v2142 = vmul.f32 %v2134, %v2120
        %v2143 = vmul.f32 %v2130, %v2125
        %v2144 = vmul.f32 %v2134, %v2121
        %2145 = vst [vmem:[#allocation5 + $0x40] sm:$0xff] %v2137
        %2146 = vst [vmem:[#allocation5 + $0x48] sm:$0xff] %v2138
        %2147 = vst [vmem:[#allocation5 + $0x50] sm:$0xff] %v2139
        %2148 = vst [vmem:[#allocation5 + $0x58] sm:$0xff] %v2140
        %2149 = vst [vmem:[#allocation5 + $0x60] sm:$0xff] %v2141
        %2150 = vst [vmem:[#allocation5 + $0x68] sm:$0xff] %v2142
        %2151 = vst [vmem:[#allocation5 + $0x70] sm:$0xff] %v2143
        %2152 = vst [vmem:[#allocation5 + $0x78] sm:$0xff] %v2144
        %v2153 = vld [vmem:[%s1499] ss:$8 sm:$0x3]
        %2154 = vrot.lane.b32.xlu0 %v2041, 15
        %v2155 = vpop.permute.xlu0 %2154
        %2156 = vrot.lane.b32.xlu0 %v2043, 15
        %v2157 = vpop.permute.xlu0 %2156
        %2158 = vrot.lane.b32.xlu0 %v2045, 15
        %v2159 = vpop.permute.xlu0 %2158
        %2160 = vrot.lane.b32.xlu0 %v2047, 15
        %v2161 = vpop.permute.xlu0 %2160
        %2162 = vrot.lane.b32.xlu0 %v2042, 15
        %v2163 = vpop.permute.xlu0 %2162
        %2164 = vrot.lane.b32.xlu0 %v2044, 15
        %v2165 = vpop.permute.xlu0 %2164
        %2166 = vrot.lane.b32.xlu0 %v2046, 15
        %v2167 = vpop.permute.xlu0 %2166
        %2168 = vrot.lane.b32.xlu0 %v2048, 15
        %v2169 = vpop.permute.xlu0 %2168
        %v2170 = vsel %vm1501, %v2155, %v2163
        %v2171 = vsel %vm1501, %v2157, %v2165
        %v2172 = vsel %vm1501, %v2159, %v2167
        %v2173 = vsel %vm1501, %v2161, %v2169
        %v2174 = vsel %vm1501, %v2163, %v2155
        %v2175 = vsel %vm1501, %v2165, %v2157
        %v2176 = vsel %vm1501, %v2167, %v2159
        %v2177 = vsel %vm1501, %v2169, %v2161
        %v2179 = vlaneseq
        %v2180 = vshrl.u32 %v2179, 7
        %v2181 = vsub.s32 0, %v2180
        %v2182 = vrot.slane %v2153, %v2181
        %v2183 = vlaneseq
        %v2184 = vshrl.u32 %v2183, 7
        %v2185 = vsub.s32 1, %v2184
        %v2186 = vrot.slane %v2153, %v2185
        %v2189 = vmul.f32 %v2182, %v2174
        %v2190 = vmul.f32 %v2186, %v2170
        %v2191 = vmul.f32 %v2182, %v2175
        %v2192 = vmul.f32 %v2186, %v2171
        %v2193 = vmul.f32 %v2182, %v2176
        %v2194 = vmul.f32 %v2186, %v2172
        %v2195 = vmul.f32 %v2182, %v2177
        %v2196 = vmul.f32 %v2186, %v2173
        %2197 = vst [vmem:[#allocation5 + $0x80] sm:$0xff] %v2189
        %2198 = vst [vmem:[#allocation5 + $0x88] sm:$0xff] %v2190
        %2199 = vst [vmem:[#allocation5 + $0x90] sm:$0xff] %v2191
        %2200 = vst [vmem:[#allocation5 + $0x98] sm:$0xff] %v2192
        %2201 = vst [vmem:[#allocation5 + $0xa0] sm:$0xff] %v2193
        %2202 = vst [vmem:[#allocation5 + $0xa8] sm:$0xff] %v2194
        %2203 = vst [vmem:[#allocation5 + $0xb0] sm:$0xff] %v2195
        %2204 = vst [vmem:[#allocation5 + $0xb8] sm:$0xff] %v2196
        %v2205 = vld [vmem:[%s1523] ss:$8 sm:$0x3]
        %2206 = vrot.lane.b32.xlu0 %v2041, 1
        %v2207 = vpop.permute.xlu0 %2206
        %2208 = vrot.lane.b32.xlu0 %v2043, 1
        %v2209 = vpop.permute.xlu0 %2208
        %2210 = vrot.lane.b32.xlu0 %v2045, 1
        %v2211 = vpop.permute.xlu0 %2210
        %2212 = vrot.lane.b32.xlu0 %v2047, 1
        %v2213 = vpop.permute.xlu0 %2212
        %2214 = vrot.lane.b32.xlu0 %v2042, 1
        %v2215 = vpop.permute.xlu0 %2214
        %2216 = vrot.lane.b32.xlu0 %v2044, 1
        %v2217 = vpop.permute.xlu0 %2216
        %2218 = vrot.lane.b32.xlu0 %v2046, 1
        %v2219 = vpop.permute.xlu0 %2218
        %2220 = vrot.lane.b32.xlu0 %v2048, 1
        %v2221 = vpop.permute.xlu0 %2220
        %v2222 = vsel %vm1525, %v2207, %v2215
        %v2223 = vsel %vm1525, %v2209, %v2217
        %v2224 = vsel %vm1525, %v2211, %v2219
        %v2225 = vsel %vm1525, %v2213, %v2221
        %v2226 = vsel %vm1525, %v2215, %v2207
        %v2227 = vsel %vm1525, %v2217, %v2209
        %v2228 = vsel %vm1525, %v2219, %v2211
        %v2229 = vsel %vm1525, %v2221, %v2213
        %v2231 = vlaneseq
        %v2232 = vshrl.u32 %v2231, 7
        %v2233 = vsub.s32 0, %v2232
        %v2234 = vrot.slane %v2205, %v2233
        %v2235 = vlaneseq
        %v2236 = vshrl.u32 %v2235, 7
        %v2237 = vsub.s32 1, %v2236
        %v2238 = vrot.slane %v2205, %v2237
        %v2241 = vmul.f32 %v2234, %v2226
        %v2242 = vmul.f32 %v2238, %v2222
        %v2243 = vmul.f32 %v2234, %v2227
        %v2244 = vmul.f32 %v2238, %v2223
        %v2245 = vmul.f32 %v2234, %v2228
        %v2246 = vmul.f32 %v2238, %v2224
        %v2247 = vmul.f32 %v2234, %v2229
        %v2248 = vmul.f32 %v2238, %v2225
        %2249 = vst [vmem:[#allocation5 + $0xc0] sm:$0xff] %v2241
        %2250 = vst [vmem:[#allocation5 + $0xc8] sm:$0xff] %v2242
        %2251 = vst [vmem:[#allocation5 + $0xd0] sm:$0xff] %v2243
        %2252 = vst [vmem:[#allocation5 + $0xd8] sm:$0xff] %v2244
        %2253 = vst [vmem:[#allocation5 + $0xe0] sm:$0xff] %v2245
        %2254 = vst [vmem:[#allocation5 + $0xe8] sm:$0xff] %v2246
        %2255 = vst [vmem:[#allocation5 + $0xf0] sm:$0xff] %v2247
        %2256 = vst [vmem:[#allocation5 + $0xf8] sm:$0xff] %v2248
        %2257 = vst [vmem:[#allocation5 + $0x100] sm:$0xff] %v2041
        %2258 = vst [vmem:[#allocation5 + $0x108] sm:$0xff] %v2042
        %2259 = vst [vmem:[#allocation5 + $0x110] sm:$0xff] %v2043
        %2260 = vst [vmem:[#allocation5 + $0x118] sm:$0xff] %v2044
        %2261 = vst [vmem:[#allocation5 + $0x120] sm:$0xff] %v2045
        %2262 = vst [vmem:[#allocation5 + $0x128] sm:$0xff] %v2046
        %2263 = vst [vmem:[#allocation5 + $0x130] sm:$0xff] %v2047
        %2264 = vst [vmem:[#allocation5 + $0x138] sm:$0xff] %v2048
        %v2265 = vld [vmem:[%s1549] ss:$8 sm:$0x3]
        %2266 = vrot.lane.b32.xlu0 %v2041, 127
        %v2267 = vpop.permute.xlu0 %2266
        %2268 = vrot.lane.b32.xlu0 %v2043, 127
        %v2269 = vpop.permute.xlu0 %2268
        %2270 = vrot.lane.b32.xlu0 %v2045, 127
        %v2271 = vpop.permute.xlu0 %2270
        %2272 = vrot.lane.b32.xlu0 %v2047, 127
        %v2273 = vpop.permute.xlu0 %2272
        %2274 = vrot.lane.b32.xlu0 %v2042, 127
        %v2275 = vpop.permute.xlu0 %2274
        %2276 = vrot.lane.b32.xlu0 %v2044, 127
        %v2277 = vpop.permute.xlu0 %2276
        %2278 = vrot.lane.b32.xlu0 %v2046, 127
        %v2279 = vpop.permute.xlu0 %2278
        %2280 = vrot.lane.b32.xlu0 %v2048, 127
        %v2281 = vpop.permute.xlu0 %2280
        %v2282 = vsel %vm1551, %v2267, %v2275
        %v2283 = vsel %vm1551, %v2269, %v2277
        %v2284 = vsel %vm1551, %v2271, %v2279
        %v2285 = vsel %vm1551, %v2273, %v2281
        %v2286 = vsel %vm1551, %v2275, %v2267
        %v2287 = vsel %vm1551, %v2277, %v2269
        %v2288 = vsel %vm1551, %v2279, %v2271
        %v2289 = vsel %vm1551, %v2281, %v2273
        %v2291 = vlaneseq
        %v2292 = vshrl.u32 %v2291, 7
        %v2293 = vsub.s32 0, %v2292
        %v2294 = vrot.slane %v2265, %v2293
        %v2295 = vlaneseq
        %v2296 = vshrl.u32 %v2295, 7
        %v2297 = vsub.s32 1, %v2296
        %v2298 = vrot.slane %v2265, %v2297
        %v2301 = vmul.f32 %v2294, %v2282
        %v2302 = vmul.f32 %v2298, %v2286
        %v2303 = vmul.f32 %v2294, %v2283
        %v2304 = vmul.f32 %v2298, %v2287
        %v2305 = vmul.f32 %v2294, %v2284
        %v2306 = vmul.f32 %v2298, %v2288
        %v2307 = vmul.f32 %v2294, %v2285
        %v2308 = vmul.f32 %v2298, %v2289
        %2309 = vst [vmem:[#allocation5 + $0x140] sm:$0xff] %v2301
        %2310 = vst [vmem:[#allocation5 + $0x148] sm:$0xff] %v2302
        %2311 = vst [vmem:[#allocation5 + $0x150] sm:$0xff] %v2303
        %2312 = vst [vmem:[#allocation5 + $0x158] sm:$0xff] %v2304
        %2313 = vst [vmem:[#allocation5 + $0x160] sm:$0xff] %v2305
        %2314 = vst [vmem:[#allocation5 + $0x168] sm:$0xff] %v2306
        %2315 = vst [vmem:[#allocation5 + $0x170] sm:$0xff] %v2307
        %2316 = vst [vmem:[#allocation5 + $0x178] sm:$0xff] %v2308
        %v2317 = vld [vmem:[%s1573] ss:$8 sm:$0x3]
        %2318 = vrot.lane.b32.xlu0 %v2041, 113
        %v2319 = vpop.permute.xlu0 %2318
        %2320 = vrot.lane.b32.xlu0 %v2043, 113
        %v2321 = vpop.permute.xlu0 %2320
        %2322 = vrot.lane.b32.xlu0 %v2045, 113
        %v2323 = vpop.permute.xlu0 %2322
        %2324 = vrot.lane.b32.xlu0 %v2047, 113
        %v2325 = vpop.permute.xlu0 %2324
        %2326 = vrot.lane.b32.xlu0 %v2042, 113
        %v2327 = vpop.permute.xlu0 %2326
        %2328 = vrot.lane.b32.xlu0 %v2044, 113
        %v2329 = vpop.permute.xlu0 %2328
        %2330 = vrot.lane.b32.xlu0 %v2046, 113
        %v2331 = vpop.permute.xlu0 %2330
        %2332 = vrot.lane.b32.xlu0 %v2048, 113
        %v2333 = vpop.permute.xlu0 %2332
        %v2334 = vsel %vm1575, %v2319, %v2327
        %v2335 = vsel %vm1575, %v2321, %v2329
        %v2336 = vsel %vm1575, %v2323, %v2331
        %v2337 = vsel %vm1575, %v2325, %v2333
        %v2338 = vsel %vm1575, %v2327, %v2319
        %v2339 = vsel %vm1575, %v2329, %v2321
        %v2340 = vsel %vm1575, %v2331, %v2323
        %v2341 = vsel %vm1575, %v2333, %v2325
        %v2343 = vlaneseq
        %v2344 = vshrl.u32 %v2343, 7
        %v2345 = vsub.s32 0, %v2344
        %v2346 = vrot.slane %v2317, %v2345
        %v2347 = vlaneseq
        %v2348 = vshrl.u32 %v2347, 7
        %v2349 = vsub.s32 1, %v2348
        %v2350 = vrot.slane %v2317, %v2349
        %v2353 = vmul.f32 %v2346, %v2334
        %v2354 = vmul.f32 %v2350, %v2338
        %v2355 = vmul.f32 %v2346, %v2335
        %v2356 = vmul.f32 %v2350, %v2339
        %v2357 = vmul.f32 %v2346, %v2336
        %v2358 = vmul.f32 %v2350, %v2340
        %v2359 = vmul.f32 %v2346, %v2337
        %v2360 = vmul.f32 %v2350, %v2341
        %2361 = vst [vmem:[#allocation5 + $0x180] sm:$0xff] %v2353
        %2362 = vst [vmem:[#allocation5 + $0x188] sm:$0xff] %v2354
        %2363 = vst [vmem:[#allocation5 + $0x190] sm:$0xff] %v2355
        %2364 = vst [vmem:[#allocation5 + $0x198] sm:$0xff] %v2356
        %2365 = vst [vmem:[#allocation5 + $0x1a0] sm:$0xff] %v2357
        %2366 = vst [vmem:[#allocation5 + $0x1a8] sm:$0xff] %v2358
        %2367 = vst [vmem:[#allocation5 + $0x1b0] sm:$0xff] %v2359
        %2368 = vst [vmem:[#allocation5 + $0x1b8] sm:$0xff] %v2360
        %v2369 = vld [vmem:[%s1597] ss:$8 sm:$0x3]
        %2370 = vrot.lane.b32.xlu0 %v2041, 112
        %v2371 = vpop.permute.xlu0 %2370
        %2372 = vrot.lane.b32.xlu0 %v2043, 112
        %v2373 = vpop.permute.xlu0 %2372
        %2374 = vrot.lane.b32.xlu0 %v2045, 112
        %v2375 = vpop.permute.xlu0 %2374
        %2376 = vrot.lane.b32.xlu0 %v2047, 112
        %v2377 = vpop.permute.xlu0 %2376
        %2378 = vrot.lane.b32.xlu0 %v2042, 112
        %v2379 = vpop.permute.xlu0 %2378
        %2380 = vrot.lane.b32.xlu0 %v2044, 112
        %v2381 = vpop.permute.xlu0 %2380
        %2382 = vrot.lane.b32.xlu0 %v2046, 112
        %v2383 = vpop.permute.xlu0 %2382
        %2384 = vrot.lane.b32.xlu0 %v2048, 112
        %v2385 = vpop.permute.xlu0 %2384
        %v2386 = vsel %vm1599, %v2371, %v2379
        %v2387 = vsel %vm1599, %v2373, %v2381
        %v2388 = vsel %vm1599, %v2375, %v2383
        %v2389 = vsel %vm1599, %v2377, %v2385
        %v2390 = vsel %vm1599, %v2379, %v2371
        %v2391 = vsel %vm1599, %v2381, %v2373
        %v2392 = vsel %vm1599, %v2383, %v2375
        %v2393 = vsel %vm1599, %v2385, %v2377
        %v2395 = vlaneseq
        %v2396 = vshrl.u32 %v2395, 7
        %v2397 = vsub.s32 0, %v2396
        %v2398 = vrot.slane %v2369, %v2397
        %v2399 = vlaneseq
        %v2400 = vshrl.u32 %v2399, 7
        %v2401 = vsub.s32 1, %v2400
        %v2402 = vrot.slane %v2369, %v2401
        %v2405 = vmul.f32 %v2398, %v2386
        %v2406 = vmul.f32 %v2402, %v2390
        %v2407 = vmul.f32 %v2398, %v2387
        %v2408 = vmul.f32 %v2402, %v2391
        %v2409 = vmul.f32 %v2398, %v2388
        %v2410 = vmul.f32 %v2402, %v2392
        %v2411 = vmul.f32 %v2398, %v2389
        %v2412 = vmul.f32 %v2402, %v2393
        %2413 = vst [vmem:[#allocation5 + $0x1c0] sm:$0xff] %v2405
        %2414 = vst [vmem:[#allocation5 + $0x1c8] sm:$0xff] %v2406
        %2415 = vst [vmem:[#allocation5 + $0x1d0] sm:$0xff] %v2407
        %2416 = vst [vmem:[#allocation5 + $0x1d8] sm:$0xff] %v2408
        %2417 = vst [vmem:[#allocation5 + $0x1e0] sm:$0xff] %v2409
        %2418 = vst [vmem:[#allocation5 + $0x1e8] sm:$0xff] %v2410
        %2419 = vst [vmem:[#allocation5 + $0x1f0] sm:$0xff] %v2411
        %2420 = vst [vmem:[#allocation5 + $0x1f8] sm:$0xff] %v2412
        %v2421 = vld [vmem:[%s1621] ss:$8 sm:$0x3]
        %2422 = vrot.lane.b32.xlu0 %v2041, 111
        %v2423 = vpop.permute.xlu0 %2422
        %2424 = vrot.lane.b32.xlu0 %v2043, 111
        %v2425 = vpop.permute.xlu0 %2424
        %2426 = vrot.lane.b32.xlu0 %v2045, 111
        %v2427 = vpop.permute.xlu0 %2426
        %2428 = vrot.lane.b32.xlu0 %v2047, 111
        %v2429 = vpop.permute.xlu0 %2428
        %2430 = vrot.lane.b32.xlu0 %v2042, 111
        %v2431 = vpop.permute.xlu0 %2430
        %2432 = vrot.lane.b32.xlu0 %v2044, 111
        %v2433 = vpop.permute.xlu0 %2432
        %2434 = vrot.lane.b32.xlu0 %v2046, 111
        %v2435 = vpop.permute.xlu0 %2434
        %2436 = vrot.lane.b32.xlu0 %v2048, 111
        %v2437 = vpop.permute.xlu0 %2436
        %v2438 = vsel %vm1623, %v2423, %v2431
        %v2439 = vsel %vm1623, %v2425, %v2433
        %v2440 = vsel %vm1623, %v2427, %v2435
        %v2441 = vsel %vm1623, %v2429, %v2437
        %v2442 = vsel %vm1623, %v2431, %v2423
        %v2443 = vsel %vm1623, %v2433, %v2425
        %v2444 = vsel %vm1623, %v2435, %v2427
        %v2445 = vsel %vm1623, %v2437, %v2429
        %v2447 = vlaneseq
        %v2448 = vshrl.u32 %v2447, 7
        %v2449 = vsub.s32 0, %v2448
        %v2450 = vrot.slane %v2421, %v2449
        %v2451 = vlaneseq
        %v2452 = vshrl.u32 %v2451, 7
        %v2453 = vsub.s32 1, %v2452
        %v2454 = vrot.slane %v2421, %v2453
        %v2457 = vmul.f32 %v2450, %v2438
        %v2458 = vmul.f32 %v2454, %v2442
        %v2459 = vmul.f32 %v2450, %v2439
        %v2460 = vmul.f32 %v2454, %v2443
        %v2461 = vmul.f32 %v2450, %v2440
        %v2462 = vmul.f32 %v2454, %v2444
        %v2463 = vmul.f32 %v2450, %v2441
        %v2464 = vmul.f32 %v2454, %v2445
        %2465 = vst [vmem:[#allocation5 + $0x200] sm:$0xff] %v2457
        %2466 = vst [vmem:[#allocation5 + $0x208] sm:$0xff] %v2458
        %2467 = vst [vmem:[#allocation5 + $0x210] sm:$0xff] %v2459
        %2468 = vst [vmem:[#allocation5 + $0x218] sm:$0xff] %v2460
        %2469 = vst [vmem:[#allocation5 + $0x220] sm:$0xff] %v2461
        %2470 = vst [vmem:[#allocation5 + $0x228] sm:$0xff] %v2462
        %2471 = vst [vmem:[#allocation5 + $0x230] sm:$0xff] %v2463
        %2472 = vst [vmem:[#allocation5 + $0x238] sm:$0xff] %v2464
        %v2473 = vld [vmem:[%s11] sm:$0x3f]
        %v2474 = vld [vmem:[#allocation5] sm:$0xff]
        %v2475 = vld [vmem:[#allocation5 + $0x8] sm:$0xff]
        %v2476 = vld [vmem:[#allocation5 + $0x10] sm:$0xff]
        %v2477 = vld [vmem:[#allocation5 + $0x18] sm:$0xff]
        %v2478 = vld [vmem:[#allocation5 + $0x20] sm:$0xff]
        %v2479 = vld [vmem:[#allocation5 + $0x28] sm:$0xff]
        %v2480 = vld [vmem:[#allocation5 + $0x30] sm:$0xff]
        %v2481 = vld [vmem:[#allocation5 + $0x38] sm:$0xff]
        %v2482 = vld [vmem:[#allocation5 + $0x40] sm:$0xff]
        %v2483 = vld [vmem:[#allocation5 + $0x48] sm:$0xff]
        %v2484 = vld [vmem:[#allocation5 + $0x50] sm:$0xff]
        %v2485 = vld [vmem:[#allocation5 + $0x58] sm:$0xff]
        %v2486 = vld [vmem:[#allocation5 + $0x60] sm:$0xff]
        %v2487 = vld [vmem:[#allocation5 + $0x68] sm:$0xff]
        %v2488 = vld [vmem:[#allocation5 + $0x70] sm:$0xff]
        %v2489 = vld [vmem:[#allocation5 + $0x78] sm:$0xff]
        %v2490 = vld [vmem:[#allocation5 + $0x80] sm:$0xff]
        %v2491 = vld [vmem:[#allocation5 + $0x88] sm:$0xff]
        %v2492 = vld [vmem:[#allocation5 + $0x90] sm:$0xff]
        %v2493 = vld [vmem:[#allocation5 + $0x98] sm:$0xff]
        %v2494 = vld [vmem:[#allocation5 + $0xa0] sm:$0xff]
        %v2495 = vld [vmem:[#allocation5 + $0xa8] sm:$0xff]
        %v2496 = vld [vmem:[#allocation5 + $0xb0] sm:$0xff]
        %v2497 = vld [vmem:[#allocation5 + $0xb8] sm:$0xff]
        %v2498 = vld [vmem:[#allocation5 + $0xc0] sm:$0xff]
        %v2499 = vld [vmem:[#allocation5 + $0xc8] sm:$0xff]
        %v2500 = vld [vmem:[#allocation5 + $0xd0] sm:$0xff]
        %v2501 = vld [vmem:[#allocation5 + $0xd8] sm:$0xff]
        %v2502 = vld [vmem:[#allocation5 + $0xe0] sm:$0xff]
        %v2503 = vld [vmem:[#allocation5 + $0xe8] sm:$0xff]
        %v2504 = vld [vmem:[#allocation5 + $0xf0] sm:$0xff]
        %v2505 = vld [vmem:[#allocation5 + $0xf8] sm:$0xff]
        %v2506 = vld [vmem:[#allocation5 + $0x100] sm:$0xff]
        %v2507 = vld [vmem:[#allocation5 + $0x108] sm:$0xff]
        %v2508 = vld [vmem:[#allocation5 + $0x110] sm:$0xff]
        %v2509 = vld [vmem:[#allocation5 + $0x118] sm:$0xff]
        %v2510 = vld [vmem:[#allocation5 + $0x120] sm:$0xff]
        %v2511 = vld [vmem:[#allocation5 + $0x128] sm:$0xff]
        %v2512 = vld [vmem:[#allocation5 + $0x130] sm:$0xff]
        %v2513 = vld [vmem:[#allocation5 + $0x138] sm:$0xff]
        %v2514 = vld [vmem:[#allocation5 + $0x140] sm:$0xff]
        %v2515 = vld [vmem:[#allocation5 + $0x148] sm:$0xff]
        %v2516 = vld [vmem:[#allocation5 + $0x150] sm:$0xff]
        %v2517 = vld [vmem:[#allocation5 + $0x158] sm:$0xff]
        %v2518 = vld [vmem:[#allocation5 + $0x160] sm:$0xff]
        %v2519 = vld [vmem:[#allocation5 + $0x168] sm:$0xff]
        %v2520 = vld [vmem:[#allocation5 + $0x170] sm:$0xff]
        %v2521 = vld [vmem:[#allocation5 + $0x178] sm:$0xff]
        %v2522 = vld [vmem:[#allocation5 + $0x180] sm:$0xff]
        %v2523 = vld [vmem:[#allocation5 + $0x188] sm:$0xff]
        %v2524 = vld [vmem:[#allocation5 + $0x190] sm:$0xff]
        %v2525 = vld [vmem:[#allocation5 + $0x198] sm:$0xff]
        %v2526 = vld [vmem:[#allocation5 + $0x1a0] sm:$0xff]
        %v2527 = vld [vmem:[#allocation5 + $0x1a8] sm:$0xff]
        %v2528 = vld [vmem:[#allocation5 + $0x1b0] sm:$0xff]
        %v2529 = vld [vmem:[#allocation5 + $0x1b8] sm:$0xff]
        %v2530 = vld [vmem:[#allocation5 + $0x1c0] sm:$0xff]
        %v2531 = vld [vmem:[#allocation5 + $0x1c8] sm:$0xff]
        %v2532 = vld [vmem:[#allocation5 + $0x1d0] sm:$0xff]
        %v2533 = vld [vmem:[#allocation5 + $0x1d8] sm:$0xff]
        %v2534 = vld [vmem:[#allocation5 + $0x1e0] sm:$0xff]
        %v2535 = vld [vmem:[#allocation5 + $0x1e8] sm:$0xff]
        %v2536 = vld [vmem:[#allocation5 + $0x1f0] sm:$0xff]
        %v2537 = vld [vmem:[#allocation5 + $0x1f8] sm:$0xff]
        %v2538 = vld [vmem:[#allocation5 + $0x200] sm:$0xff]
        %v2539 = vld [vmem:[#allocation5 + $0x208] sm:$0xff]
        %v2540 = vld [vmem:[#allocation5 + $0x210] sm:$0xff]
        %v2541 = vld [vmem:[#allocation5 + $0x218] sm:$0xff]
        %v2542 = vld [vmem:[#allocation5 + $0x220] sm:$0xff]
        %v2543 = vld [vmem:[#allocation5 + $0x228] sm:$0xff]
        %v2544 = vld [vmem:[#allocation5 + $0x230] sm:$0xff]
        %v2545 = vld [vmem:[#allocation5 + $0x238] sm:$0xff]
        %v2546 = vld [vmem:[#allocation20] sm:$0x3]
        %2548 = vset.pattern.permute.xlu0 0
        %2549 = vperm.xlu0 %2548, %v2546
        %v2550 = vpop.permute.xlu0 %2549
        %v2553 = vcombine.high %v2473, %v2473
        %v2555 = vunpack.c.l.s4 1983009808
        %v2556 = vunpack.c.0.s8 %v2555
        %v2557 = vlaneseq
        %v2558 = vshrl.u32 %v2557, 7
        %v2559 = vsub.s32 %v2556, %v2558
        %v2560 = vrot.slane %v2473, %v2559
        %v2562 = vunpack.c.l.s4 1983009808
        %v2563 = vunpack.c.0.s8 %v2562
        %v2564 = vlaneseq
        %v2565 = vshrl.u32 %v2564, 7
        %v2566 = vsub.s32 %v2563, %v2565
        %v2567 = vrot.slane %v2553, %v2566
        %v2568 = vcombine.high %v2560, %v2560
        %v2571 = vsel %vm1242, %v2567, 0
        %2573 = vmatprep.subr.mxu0 %v2505
        %2574 = vmatpush1.msra.mxu0 %v2504
        %2575 = vmatprep.subr.mxu0 %v2503
        %2576 = vmatpush1.msra.mxu0 %v2502
        %2577 = vmatprep.subr.mxu0 %v2501
        %2578 = vmatpush1.msra.mxu0 %v2500
        %2579 = vmatprep.subr.mxu0 %v2499
        %2580 = vmatpush1.msra.mxu0 %v2498
        %2581 = vmatprep.subr.mxu0 %v2497
        %2582 = vmatpush1.msra.mxu0 %v2496
        %2583 = vmatprep.subr.mxu0 %v2495
        %2584 = vmatpush1.msra.mxu0 %v2494
        %2585 = vmatprep.subr.mxu0 %v2493
        %2586 = vmatpush1.msra.mxu0 %v2492
        %2587 = vmatprep.subr.mxu0 %v2491
        %2588 = vmatpush1.msra.mxu0 %v2490
        %2589 = vmatprep.subr.mxu0 %v2489
        %2590 = vmatpush1.msra.mxu0 %v2488
        %2591 = vmatprep.subr.mxu0 %v2487
        %2592 = vmatpush1.msra.mxu0 %v2486
        %2593 = vmatprep.subr.mxu0 %v2485
        %2594 = vmatpush1.msra.mxu0 %v2484
        %2595 = vmatprep.subr.mxu0 %v2483
        %2596 = vmatpush1.msra.mxu0 %v2482
        %2597 = vmatprep.subr.mxu0 %v2481
        %2598 = vmatpush1.msra.mxu0 %v2480
        %2599 = vmatprep.subr.mxu0 %v2479
        %2600 = vmatpush1.msra.mxu0 %v2478
        %2601 = vmatprep.subr.mxu0 %v2477
        %2602 = vmatpush1.msra.mxu0 %v2476
        %2603 = vmatprep.subr.mxu0 %v2475
        %2604 = vmatpush1.msra.mxu0 %v2474
        %2605 = vmatprep.subr.mxu0 %v2537
        %2606 = vmatpush2.msra.mxu0 %v2536
        %2607 = vmatprep.subr.mxu0 %v2535
        %2608 = vmatpush2.msra.mxu0 %v2534
        %2609 = vmatprep.subr.mxu0 %v2533
        %2610 = vmatpush2.msra.mxu0 %v2532
        %2611 = vmatprep.subr.mxu0 %v2531
        %2612 = vmatpush2.msra.mxu0 %v2530
        %2613 = vmatprep.subr.mxu0 %v2529
        %2614 = vmatpush2.msra.mxu0 %v2528
        %2615 = vmatprep.subr.mxu0 %v2527
        %2616 = vmatpush2.msra.mxu0 %v2526
        %2617 = vmatprep.subr.mxu0 %v2525
        %2618 = vmatpush2.msra.mxu0 %v2524
        %2619 = vmatprep.subr.mxu0 %v2523
        %2620 = vmatpush2.msra.mxu0 %v2522
        %2621 = vmatprep.subr.mxu0 %v2521
        %2622 = vmatpush2.msra.mxu0 %v2520
        %2623 = vmatprep.subr.mxu0 %v2519
        %2624 = vmatpush2.msra.mxu0 %v2518
        %2625 = vmatprep.subr.mxu0 %v2517
        %2626 = vmatpush2.msra.mxu0 %v2516
        %2627 = vmatprep.subr.mxu0 %v2515
        %2628 = vmatpush2.msra.mxu0 %v2514
        %2629 = vmatprep.subr.mxu0 %v2513
        %2630 = vmatpush2.msra.mxu0 %v2512
        %2631 = vmatprep.subr.mxu0 %v2511
        %2632 = vmatpush2.msra.mxu0 %v2510
        %2633 = vmatprep.subr.mxu0 %v2509
        %2634 = vmatpush2.msra.mxu0 %v2508
        %2635 = vmatprep.subr.mxu0 %v2507
        %2636 = vmatpush2.msra.mxu0 %v2506
        %2637 = vmatprep.mubr.f32.mxu0 %v2568
        %2638 = vmatmul.mubr.f32.gmra.mxu0 %v2560
        %v2639 = vpop.f32.mrf.mxu0
        %v2640 = vadd.f32 %v2550, %v2639
        %v2641 = vpop.f32.mrf.mxu0
        %v2642 = vadd.f32 %v2550, %v2641
        %2643 = vdwg.mxu0
        %2644 = vmatprep.subr.mxu0 0.0
        %2645 = vmatpush1.msra.mxu0 0.0
        %2646 = vmatprep.subr.mxu0 0.0
        %2647 = vmatpush1.msra.mxu0 0.0
        %2648 = vmatprep.subr.mxu0 0.0
        %2649 = vmatpush1.msra.mxu0 0.0
        %2650 = vmatprep.subr.mxu0 0.0
        %2651 = vmatpush1.msra.mxu0 0.0
        %2652 = vmatprep.subr.mxu0 0.0
        %2653 = vmatpush1.msra.mxu0 0.0
        %2654 = vmatprep.subr.mxu0 0.0
        %2655 = vmatpush1.msra.mxu0 0.0
        %2656 = vmatprep.subr.mxu0 0.0
        %2657 = vmatpush1.msra.mxu0 0.0
        %2658 = vmatprep.subr.mxu0 0.0
        %2659 = vmatpush1.msra.mxu0 0.0
        %2660 = vmatprep.subr.mxu0 0.0
        %2661 = vmatpush1.msra.mxu0 0.0
        %2662 = vmatprep.subr.mxu0 0.0
        %2663 = vmatpush1.msra.mxu0 0.0
        %2664 = vmatprep.subr.mxu0 0.0
        %2665 = vmatpush1.msra.mxu0 0.0
        %2666 = vmatprep.subr.mxu0 0.0
        %2667 = vmatpush1.msra.mxu0 0.0
        %2668 = vmatprep.subr.mxu0 %v2545
        %2669 = vmatpush1.msra.mxu0 %v2544
        %2670 = vmatprep.subr.mxu0 %v2543
        %2671 = vmatpush1.msra.mxu0 %v2542
        %2672 = vmatprep.subr.mxu0 %v2541
        %2673 = vmatpush1.msra.mxu0 %v2540
        %2674 = vmatprep.subr.mxu0 %v2539
        %2675 = vmatpush1.msra.mxu0 %v2538
        %2676 = vmatprep.subr.mxu0 0.0
        %2677 = vmatpush2.msra.mxu0 0.0
        %2678 = vmatprep.subr.mxu0 0.0
        %2679 = vmatpush2.msra.mxu0 0.0
        %2680 = vmatprep.subr.mxu0 0.0
        %2681 = vmatpush2.msra.mxu0 0.0
        %2682 = vmatprep.subr.mxu0 0.0
        %2683 = vmatpush2.msra.mxu0 0.0
        %2684 = vmatprep.subr.mxu0 0.0
        %2685 = vmatpush2.msra.mxu0 0.0
        %2686 = vmatprep.subr.mxu0 0.0
        %2687 = vmatpush2.msra.mxu0 0.0
        %2688 = vmatprep.subr.mxu0 0.0
        %2689 = vmatpush2.msra.mxu0 0.0
        %2690 = vmatprep.subr.mxu0 0.0
        %2691 = vmatpush2.msra.mxu0 0.0
        %2692 = vmatprep.subr.mxu0 0.0
        %2693 = vmatpush2.msra.mxu0 0.0
        %2694 = vmatprep.subr.mxu0 0.0
        %2695 = vmatpush2.msra.mxu0 0.0
        %2696 = vmatprep.subr.mxu0 0.0
        %2697 = vmatpush2.msra.mxu0 0.0
        %2698 = vmatprep.subr.mxu0 0.0
        %2699 = vmatpush2.msra.mxu0 0.0
        %2700 = vmatprep.subr.mxu0 0.0
        %2701 = vmatpush2.msra.mxu0 0.0
        %2702 = vmatprep.subr.mxu0 0.0
        %2703 = vmatpush2.msra.mxu0 0.0
        %2704 = vmatprep.subr.mxu0 0.0
        %2705 = vmatpush2.msra.mxu0 0.0
        %2706 = vmatprep.subr.mxu0 0.0
        %2707 = vmatpush2.msra.mxu0 0.0
        %2708 = vmatprep.mubr.f32.mxu0 0.0
        %2709 = vmatmul.mubr.f32.gmra.mxu0 %v2571
        %v2710 = vpop.f32.mrf.mxu0
        %v2711 = vadd.f32 %v2640, %v2710
        %v2712 = vpop.f32.mrf.mxu0
        %v2713 = vadd.f32 %v2642, %v2712
        %2714 = vdwg.mxu0
        %v2717 = vrot.slane %v2711, 1
        %v2718 = vrot.slane %v2713, 1
        %2721 = vmatprep.subr.mxu0 0.0
        %2722 = vmatpush1.msra.mxu0 %v595
        %2723 = vmatprep.subr.mxu0 0.0
        %2724 = vmatpush1.msra.mxu0 %v594
        %2725 = vmatprep.subr.mxu0 0.0
        %2726 = vmatpush1.msra.mxu0 %v593
        %2727 = vmatprep.subr.mxu0 0.0
        %2728 = vmatpush1.msra.mxu0 %v592
        %2729 = vmatprep.subr.mxu0 0.0
        %2730 = vmatpush1.msra.mxu0 %v591
        %2731 = vmatprep.subr.mxu0 0.0
        %2732 = vmatpush1.msra.mxu0 %v590
        %2733 = vmatprep.subr.mxu0 0.0
        %2734 = vmatpush1.msra.mxu0 %v589
        %2735 = vmatprep.subr.mxu0 0.0
        %2736 = vmatpush1.msra.mxu0 %v588
        %2737 = vmatprep.subr.mxu0 0.0
        %2738 = vmatpush1.msra.mxu0 %v587
        %2739 = vmatprep.subr.mxu0 0.0
        %2740 = vmatpush1.msra.mxu0 %v586
        %2741 = vmatprep.subr.mxu0 0.0
        %2742 = vmatpush1.msra.mxu0 %v585
        %2743 = vmatprep.subr.mxu0 0.0
        %2744 = vmatpush1.msra.mxu0 %v584
        %2745 = vmatprep.subr.mxu0 0.0
        %2746 = vmatpush1.msra.mxu0 %v583
        %2747 = vmatprep.subr.mxu0 0.0
        %2748 = vmatpush1.msra.mxu0 %v582
        %2749 = vmatprep.subr.mxu0 0.0
        %2750 = vmatpush1.msra.mxu0 %v581
        %2751 = vmatprep.subr.mxu0 0.0
        %2752 = vmatpush1.msra.mxu0 %v580
        %2753 = vmatprep.subr.mxu0 0.0
        %2754 = vmatpush2.msra.mxu0 %v611
        %2755 = vmatprep.subr.mxu0 0.0
        %2756 = vmatpush2.msra.mxu0 %v610
        %2757 = vmatprep.subr.mxu0 0.0
        %2758 = vmatpush2.msra.mxu0 %v609
        %2759 = vmatprep.subr.mxu0 0.0
        %2760 = vmatpush2.msra.mxu0 %v608
        %2761 = vmatprep.subr.mxu0 0.0
        %2762 = vmatpush2.msra.mxu0 %v607
        %2763 = vmatprep.subr.mxu0 0.0
        %2764 = vmatpush2.msra.mxu0 %v606
        %2765 = vmatprep.subr.mxu0 0.0
        %2766 = vmatpush2.msra.mxu0 %v605
        %2767 = vmatprep.subr.mxu0 0.0
        %2768 = vmatpush2.msra.mxu0 %v604
        %2769 = vmatprep.subr.mxu0 0.0
        %2770 = vmatpush2.msra.mxu0 %v603
        %2771 = vmatprep.subr.mxu0 0.0
        %2772 = vmatpush2.msra.mxu0 %v602
        %2773 = vmatprep.subr.mxu0 0.0
        %2774 = vmatpush2.msra.mxu0 %v601
        %2775 = vmatprep.subr.mxu0 0.0
        %2776 = vmatpush2.msra.mxu0 %v600
        %2777 = vmatprep.subr.mxu0 0.0
        %2778 = vmatpush2.msra.mxu0 %v599
        %2779 = vmatprep.subr.mxu0 0.0
        %2780 = vmatpush2.msra.mxu0 %v598
        %2781 = vmatprep.subr.mxu0 0.0
        %2782 = vmatpush2.msra.mxu0 %v597
        %2783 = vmatprep.subr.mxu0 0.0
        %2784 = vmatpush2.msra.mxu0 %v596
        %2785 = vmatprep.mubr.f32.mxu0 %v2718
        %2786 = vmatmul.mubr.f32.gmra.mxu0 %v2717
        %v2787 = vpop.f32.mrf.mxu0
        %v2788 = vadd.f32 0.0, %v2787
        %v2789 = vpop.f32.mrf.mxu0
        %2790 = vdwg.mxu0
        %v2791 = vld [vmem:[#allocation10] sm:$0x1]
        %2792 = vrot.lane.b32.xlu0 %v1382, 17
        %v2793 = vpop.permute.xlu0 %2792
        %v2794 = vlaneseq
        %v2795 = vshrl.u32 %v2794, 7
        %v2796 = vsub.s32 0, %v2795
        %v2797 = vrot.slane %v2791, %v2796
        %v2798 = vmul.f32 %v2797, %v2793
        %2799 = vst [vmem:[#allocation2] sm:$0x3] %v2798
        %v2800 = vld [vmem:[#allocation10 + $0x1] sm:$0x1]
        %2801 = vrot.lane.b32.xlu0 %v1382, 16
        %v2802 = vpop.permute.xlu0 %2801
        %v2803 = vlaneseq
        %v2804 = vshrl.u32 %v2803, 7
        %v2805 = vsub.s32 0, %v2804
        %v2806 = vrot.slane %v2800, %v2805
        %v2807 = vmul.f32 %v2806, %v2802
        %2808 = vst [vmem:[#allocation2 + $0x2] sm:$0x3] %v2807
        %v2809 = vld [vmem:[#allocation10 + $0x2] sm:$0x1]
        %2810 = vrot.lane.b32.xlu0 %v1382, 15
        %v2811 = vpop.permute.xlu0 %2810
        %v2812 = vlaneseq
        %v2813 = vshrl.u32 %v2812, 7
        %v2814 = vsub.s32 0, %v2813
        %v2815 = vrot.slane %v2809, %v2814
        %v2816 = vmul.f32 %v2815, %v2811
        %2817 = vst [vmem:[#allocation2 + $0x4] sm:$0x3] %v2816
        %v2818 = vld [vmem:[#allocation10 + $0x3] sm:$0x1]
        %2819 = vrot.lane.b32.xlu0 %v1382, 1
        %v2820 = vpop.permute.xlu0 %2819
        %v2821 = vlaneseq
        %v2822 = vshrl.u32 %v2821, 7
        %v2823 = vsub.s32 0, %v2822
        %v2824 = vrot.slane %v2818, %v2823
        %v2825 = vmul.f32 %v2824, %v2820
        %2826 = vst [vmem:[#allocation2 + $0x6] sm:$0x3] %v2825
        %2827 = vst [vmem:[#allocation2 + $0x8] sm:$0x3] %v1382
        %v2828 = vld [vmem:[#allocation10 + $0x5] sm:$0x1]
        %2829 = vrot.lane.b32.xlu0 %v1382, 127
        %v2830 = vpop.permute.xlu0 %2829
        %v2831 = vlaneseq
        %v2832 = vshrl.u32 %v2831, 7
        %v2833 = vsub.s32 0, %v2832
        %v2834 = vrot.slane %v2828, %v2833
        %v2835 = vmul.f32 %v2834, %v2830
        %2836 = vst [vmem:[#allocation2 + $0xa] sm:$0x3] %v2835
        %v2837 = vld [vmem:[#allocation10 + $0x6] sm:$0x1]
        %2838 = vrot.lane.b32.xlu0 %v1382, 113
        %v2839 = vpop.permute.xlu0 %2838
        %v2840 = vlaneseq
        %v2841 = vshrl.u32 %v2840, 7
        %v2842 = vsub.s32 0, %v2841
        %v2843 = vrot.slane %v2837, %v2842
        %v2844 = vmul.f32 %v2843, %v2839
        %2845 = vst [vmem:[#allocation2 + $0xc] sm:$0x3] %v2844
        %v2846 = vld [vmem:[#allocation10 + $0x7] sm:$0x1]
        %2847 = vrot.lane.b32.xlu0 %v1382, 112
        %v2848 = vpop.permute.xlu0 %2847
        %v2849 = vlaneseq
        %v2850 = vshrl.u32 %v2849, 7
        %v2851 = vsub.s32 0, %v2850
        %v2852 = vrot.slane %v2846, %v2851
        %v2853 = vmul.f32 %v2852, %v2848
        %2854 = vst [vmem:[#allocation2 + $0xe] sm:$0x3] %v2853
        %v2855 = vld [vmem:[#allocation10 + $0x8] sm:$0x1]
        %2856 = vrot.lane.b32.xlu0 %v1382, 111
        %v2857 = vpop.permute.xlu0 %2856
        %v2858 = vlaneseq
        %v2859 = vshrl.u32 %v2858, 7
        %v2860 = vsub.s32 0, %v2859
        %v2861 = vrot.slane %v2855, %v2860
        %v2862 = vmul.f32 %v2861, %v2857
        %2863 = vst [vmem:[#allocation2 + $0x10] sm:$0x3] %v2862
        %v2864 = vld [vmem:[#allocation10] sm:$0x1]
        %2865 = vrot.lane.b32.xlu0 %v2788, 17
        %v2866 = vpop.permute.xlu0 %2865
        %v2867 = vmul.f32 %v2864, %v2866
        %2868 = vst [vmem:[#allocation2 + $0x12] sm:$0x1] %v2867
        %v2869 = vld [vmem:[#allocation10 + $0x1] sm:$0x1]
        %2870 = vrot.lane.b32.xlu0 %v2788, 16
        %v2871 = vpop.permute.xlu0 %2870
        %v2872 = vmul.f32 %v2869, %v2871
        %2873 = vst [vmem:[#allocation2 + $0x13] sm:$0x1] %v2872
        %v2874 = vld [vmem:[#allocation10 + $0x2] sm:$0x1]
        %2875 = vrot.lane.b32.xlu0 %v2788, 15
        %v2876 = vpop.permute.xlu0 %2875
        %v2877 = vmul.f32 %v2874, %v2876
        %2878 = vst [vmem:[#allocation2 + $0x14] sm:$0x1] %v2877
        %v2879 = vld [vmem:[#allocation10 + $0x3] sm:$0x1]
        %2880 = vrot.lane.b32.xlu0 %v2788, 1
        %v2881 = vpop.permute.xlu0 %2880
        %v2882 = vmul.f32 %v2879, %v2881
        %2883 = vst [vmem:[#allocation2 + $0x15] sm:$0x1] %v2882
        %2884 = vst [vmem:[#allocation2 + $0x16] sm:$0x1] %v2788
        %v2885 = vld [vmem:[#allocation10 + $0x5] sm:$0x1]
        %2886 = vrot.lane.b32.xlu0 %v2788, 127
        %v2887 = vpop.permute.xlu0 %2886
        %v2888 = vmul.f32 %v2885, %v2887
        %2889 = vst [vmem:[#allocation2 + $0x17] sm:$0x1] %v2888
        %v2890 = vld [vmem:[#allocation10 + $0x6] sm:$0x1]
        %2891 = vrot.lane.b32.xlu0 %v2788, 113
        %v2892 = vpop.permute.xlu0 %2891
        %v2893 = vmul.f32 %v2890, %v2892
        %2894 = vst [vmem:[#allocation2 + $0x18] sm:$0x1] %v2893
        %v2895 = vld [vmem:[#allocation10 + $0x7] sm:$0x1]
        %2896 = vrot.lane.b32.xlu0 %v2788, 112
        %v2897 = vpop.permute.xlu0 %2896
        %v2898 = vmul.f32 %v2895, %v2897
        %2899 = vst [vmem:[#allocation2 + $0x19] sm:$0x1] %v2898
        %v2900 = vld [vmem:[#allocation10 + $0x8] sm:$0x1]
        %2901 = vrot.lane.b32.xlu0 %v2788, 111
        %v2902 = vpop.permute.xlu0 %2901
        %v2903 = vmul.f32 %v2900, %v2902
        %2904 = vst [vmem:[#allocation2 + $0x1a] sm:$0x1] %v2903
        %s2905 = scalar_lea.vmem [#allocation13], 32
        %v2906 = vld [vmem:[%s2905] sm:$0xff]
        %v2907 = vld [vmem:[%s2905 + $0x8] sm:$0xff]
        %v2908 = vld [vmem:[%s2905 + $0x10] sm:$0xff]
        %v2909 = vld [vmem:[%s2905 + $0x18] sm:$0xff]
        %v2910 = vld [vmem:[#allocation2] sm:$0xff]
        %v2911 = vld [vmem:[#allocation2 + $0x8] sm:$0xff]
        %v2912 = vld [vmem:[#allocation2 + $0x10] sm:$0xff]
        %v2913 = vld [vmem:[#allocation2 + $0x18] sm:$0xff]
        %v2914 = vld [vmem:[#allocation2 + $0x20] sm:$0xf]
        %s2915 = scalar_lea.vmem [#allocation14], 32
        %v2916 = vld [vmem:[%s2915] sm:$0xff]
        %v2917 = vld [vmem:[%s2915 + $0x8] sm:$0xff]
        %v2918 = vld [vmem:[%s2915 + $0x10] sm:$0xff]
        %v2919 = vld [vmem:[%s2915 + $0x18] sm:$0xff]
        %2921 = vset.pattern.permute.xlu0 0
        %2922 = vperm.xlu0 %2921, %v2916
        %v2923 = vpop.permute.xlu0 %2922
        %2926 = vset.pattern.permute.xlu0 0
        %2927 = vperm.xlu0 %2926, %v2917
        %v2928 = vpop.permute.xlu0 %2927
        %2931 = vset.pattern.permute.xlu0 0
        %2932 = vperm.xlu0 %2931, %v2918
        %v2933 = vpop.permute.xlu0 %2932
        %2936 = vset.pattern.permute.xlu0 0
        %2937 = vperm.xlu0 %2936, %v2919
        %v2938 = vpop.permute.xlu0 %2937
        %v2941 = vsel %vm902, %v2906, 0
        %v2944 = vsel %vm902, %v2907, 0
        %v2947 = vsel %vm902, %v2908, 0
        %v2950 = vsel %vm902, %v2909, 0
        %v2953 = vsel %vm915, %v2914, 0
        %2955 = vmatprep.subr.mxu0 0.0
        %2956 = vmatpush1.msra.mxu0 0.0
        %2957 = vmatprep.subr.mxu0 0.0
        %2958 = vmatpush1.msra.mxu0 0.0
        %2959 = vmatprep.subr.mxu0 0.0
        %2960 = vmatpush1.msra.mxu0 0.0
        %2961 = vmatprep.subr.mxu0 0.0
        %2962 = vmatpush1.msra.mxu0 0.0
        %2963 = vmatprep.subr.mxu0 0.0
        %2964 = vmatpush1.msra.mxu0 0.0
        %2965 = vmatprep.subr.mxu0 0.0
        %2966 = vmatpush1.msra.mxu0 0.0
        %2967 = vmatprep.subr.mxu0 0.0
        %2968 = vmatpush1.msra.mxu0 0.0
        %2969 = vmatprep.subr.mxu0 0.0
        %2970 = vmatpush1.msra.mxu0 0.0
        %2971 = vmatprep.subr.mxu0 0.0
        %2972 = vmatpush1.msra.mxu0 0.0
        %2973 = vmatprep.subr.mxu0 0.0
        %2974 = vmatpush1.msra.mxu0 0.0
        %2975 = vmatprep.subr.mxu0 0.0
        %2976 = vmatpush1.msra.mxu0 0.0
        %2977 = vmatprep.subr.mxu0 0.0
        %2978 = vmatpush1.msra.mxu0 %v2953
        %2979 = vmatprep.subr.mxu0 0.0
        %2980 = vmatpush1.msra.mxu0 %v2913
        %2981 = vmatprep.subr.mxu0 0.0
        %2982 = vmatpush1.msra.mxu0 %v2912
        %2983 = vmatprep.subr.mxu0 0.0
        %2984 = vmatpush1.msra.mxu0 %v2911
        %2985 = vmatprep.subr.mxu0 0.0
        %2986 = vmatpush1.msra.mxu0 %v2910
        %2987 = vmatprep.subr.mxu0 0.0
        %2988 = vmatpush2.msra.mxu0 0.0
        %2989 = vmatprep.subr.mxu0 0.0
        %2990 = vmatpush2.msra.mxu0 0.0
        %2991 = vmatprep.subr.mxu0 0.0
        %2992 = vmatpush2.msra.mxu0 0.0
        %2993 = vmatprep.subr.mxu0 0.0
        %2994 = vmatpush2.msra.mxu0 0.0
        %2995 = vmatprep.subr.mxu0 0.0
        %2996 = vmatpush2.msra.mxu0 0.0
        %2997 = vmatprep.subr.mxu0 0.0
        %2998 = vmatpush2.msra.mxu0 0.0
        %2999 = vmatprep.subr.mxu0 0.0
        %3000 = vmatpush2.msra.mxu0 0.0
        %3001 = vmatprep.subr.mxu0 0.0
        %3002 = vmatpush2.msra.mxu0 0.0
        %3003 = vmatprep.subr.mxu0 0.0
        %3004 = vmatpush2.msra.mxu0 0.0
        %3005 = vmatprep.subr.mxu0 0.0
        %3006 = vmatpush2.msra.mxu0 0.0
        %3007 = vmatprep.subr.mxu0 0.0
        %3008 = vmatpush2.msra.mxu0 0.0
        %3009 = vmatprep.subr.mxu0 0.0
        %3010 = vmatpush2.msra.mxu0 0.0
        %3011 = vmatprep.subr.mxu0 0.0
        %3012 = vmatpush2.msra.mxu0 0.0
        %3013 = vmatprep.subr.mxu0 0.0
        %3014 = vmatpush2.msra.mxu0 0.0
        %3015 = vmatprep.subr.mxu0 0.0
        %3016 = vmatpush2.msra.mxu0 0.0
        %3017 = vmatprep.subr.mxu0 0.0
        %3018 = vmatpush2.msra.mxu0 0.0
        %3019 = vmatprep.mubr.f32.mxu0 0.0
        %3020 = vmatmul.mubr.f32.gmra.mxu0 %v2941
        %v3021 = vpop.f32.mrf.mxu0
        %v3022 = vadd.f32 %v2923, %v3021
        %v3023 = vpop.f32.mrf.mxu0
        %3024 = vmatprep.mubr.f32.mxu0 0.0
        %3025 = vmatmul.mubr.f32.gmra.mxu0 %v2944
        %v3026 = vpop.f32.mrf.mxu0
        %v3027 = vadd.f32 %v2928, %v3026
        %v3028 = vpop.f32.mrf.mxu0
        %3029 = vmatprep.mubr.f32.mxu0 0.0
        %3030 = vmatmul.mubr.f32.gmra.mxu0 %v2947
        %v3031 = vpop.f32.mrf.mxu0
        %v3032 = vadd.f32 %v2933, %v3031
        %v3033 = vpop.f32.mrf.mxu0
        %3034 = vmatprep.mubr.f32.mxu0 0.0
        %3035 = vmatmul.mubr.f32.gmra.mxu0 %v2950
        %v3036 = vpop.f32.mrf.mxu0
        %v3037 = vadd.f32 %v2938, %v3036
        %v3038 = vpop.f32.mrf.mxu0
        %3039 = vdwg.mxu0
        %v3040 = vmax.f32 %v3022, 0.0
        %v3041 = vmax.f32 %v3027, 0.0
        %v3042 = vmax.f32 %v3032, 0.0
        %v3043 = vmax.f32 %v3037, 0.0
        %v3044 = vld [vmem:[#allocation10] sm:$0x1]
        %3045 = vrot.lane.b32.xlu0 %v3040, 17
        %v3046 = vpop.permute.xlu0 %3045
        %3047 = vrot.lane.b32.xlu0 %v3041, 17
        %v3048 = vpop.permute.xlu0 %3047
        %3049 = vrot.lane.b32.xlu0 %v3042, 17
        %v3050 = vpop.permute.xlu0 %3049
        %3051 = vrot.lane.b32.xlu0 %v3043, 17
        %v3052 = vpop.permute.xlu0 %3051
        %v3053 = vlaneseq
        %v3054 = vshrl.u32 %v3053, 7
        %v3055 = vsub.s32 0, %v3054
        %v3056 = vrot.slane %v3044, %v3055
        %v3057 = vmul.f32 %v3056, %v3046
        %v3058 = vmul.f32 %v3056, %v3048
        %v3059 = vmul.f32 %v3056, %v3050
        %v3060 = vmul.f32 %v3056, %v3052
        %3061 = vst [vmem:[#allocation3] sm:$0xff] %v3057
        %3062 = vst [vmem:[#allocation3 + $0x8] sm:$0xff] %v3058
        %3063 = vst [vmem:[#allocation3 + $0x10] sm:$0xff] %v3059
        %3064 = vst [vmem:[#allocation3 + $0x18] sm:$0xff] %v3060
        %v3065 = vld [vmem:[#allocation10 + $0x1] sm:$0x1]
        %3066 = vrot.lane.b32.xlu0 %v3040, 16
        %v3067 = vpop.permute.xlu0 %3066
        %3068 = vrot.lane.b32.xlu0 %v3041, 16
        %v3069 = vpop.permute.xlu0 %3068
        %3070 = vrot.lane.b32.xlu0 %v3042, 16
        %v3071 = vpop.permute.xlu0 %3070
        %3072 = vrot.lane.b32.xlu0 %v3043, 16
        %v3073 = vpop.permute.xlu0 %3072
        %v3074 = vlaneseq
        %v3075 = vshrl.u32 %v3074, 7
        %v3076 = vsub.s32 0, %v3075
        %v3077 = vrot.slane %v3065, %v3076
        %v3078 = vmul.f32 %v3077, %v3067
        %v3079 = vmul.f32 %v3077, %v3069
        %v3080 = vmul.f32 %v3077, %v3071
        %v3081 = vmul.f32 %v3077, %v3073
        %3082 = vst [vmem:[#allocation3 + $0x20] sm:$0xff] %v3078
        %3083 = vst [vmem:[#allocation3 + $0x28] sm:$0xff] %v3079
        %3084 = vst [vmem:[#allocation3 + $0x30] sm:$0xff] %v3080
        %3085 = vst [vmem:[#allocation3 + $0x38] sm:$0xff] %v3081
        %v3086 = vld [vmem:[#allocation10 + $0x2] sm:$0x1]
        %3087 = vrot.lane.b32.xlu0 %v3040, 15
        %v3088 = vpop.permute.xlu0 %3087
        %3089 = vrot.lane.b32.xlu0 %v3041, 15
        %v3090 = vpop.permute.xlu0 %3089
        %3091 = vrot.lane.b32.xlu0 %v3042, 15
        %v3092 = vpop.permute.xlu0 %3091
        %3093 = vrot.lane.b32.xlu0 %v3043, 15
        %v3094 = vpop.permute.xlu0 %3093
        %v3095 = vlaneseq
        %v3096 = vshrl.u32 %v3095, 7
        %v3097 = vsub.s32 0, %v3096
        %v3098 = vrot.slane %v3086, %v3097
        %v3099 = vmul.f32 %v3098, %v3088
        %v3100 = vmul.f32 %v3098, %v3090
        %v3101 = vmul.f32 %v3098, %v3092
        %v3102 = vmul.f32 %v3098, %v3094
        %3103 = vst [vmem:[#allocation3 + $0x40] sm:$0xff] %v3099
        %3104 = vst [vmem:[#allocation3 + $0x48] sm:$0xff] %v3100
        %3105 = vst [vmem:[#allocation3 + $0x50] sm:$0xff] %v3101
        %3106 = vst [vmem:[#allocation3 + $0x58] sm:$0xff] %v3102
        %v3107 = vld [vmem:[#allocation10 + $0x3] sm:$0x1]
        %3108 = vrot.lane.b32.xlu0 %v3040, 1
        %v3109 = vpop.permute.xlu0 %3108
        %3110 = vrot.lane.b32.xlu0 %v3041, 1
        %v3111 = vpop.permute.xlu0 %3110
        %3112 = vrot.lane.b32.xlu0 %v3042, 1
        %v3113 = vpop.permute.xlu0 %3112
        %3114 = vrot.lane.b32.xlu0 %v3043, 1
        %v3115 = vpop.permute.xlu0 %3114
        %v3116 = vlaneseq
        %v3117 = vshrl.u32 %v3116, 7
        %v3118 = vsub.s32 0, %v3117
        %v3119 = vrot.slane %v3107, %v3118
        %v3120 = vmul.f32 %v3119, %v3109
        %v3121 = vmul.f32 %v3119, %v3111
        %v3122 = vmul.f32 %v3119, %v3113
        %v3123 = vmul.f32 %v3119, %v3115
        %3124 = vst [vmem:[#allocation3 + $0x60] sm:$0xff] %v3120
        %3125 = vst [vmem:[#allocation3 + $0x68] sm:$0xff] %v3121
        %3126 = vst [vmem:[#allocation3 + $0x70] sm:$0xff] %v3122
        %3127 = vst [vmem:[#allocation3 + $0x78] sm:$0xff] %v3123
        %3128 = vst [vmem:[#allocation3 + $0x80] sm:$0xff] %v3040
        %3129 = vst [vmem:[#allocation3 + $0x88] sm:$0xff] %v3041
        %3130 = vst [vmem:[#allocation3 + $0x90] sm:$0xff] %v3042
        %3131 = vst [vmem:[#allocation3 + $0x98] sm:$0xff] %v3043
        %v3132 = vld [vmem:[#allocation10 + $0x5] sm:$0x1]
        %3133 = vrot.lane.b32.xlu0 %v3040, 127
        %v3134 = vpop.permute.xlu0 %3133
        %3135 = vrot.lane.b32.xlu0 %v3041, 127
        %v3136 = vpop.permute.xlu0 %3135
        %3137 = vrot.lane.b32.xlu0 %v3042, 127
        %v3138 = vpop.permute.xlu0 %3137
        %3139 = vrot.lane.b32.xlu0 %v3043, 127
        %v3140 = vpop.permute.xlu0 %3139
        %v3141 = vlaneseq
        %v3142 = vshrl.u32 %v3141, 7
        %v3143 = vsub.s32 0, %v3142
        %v3144 = vrot.slane %v3132, %v3143
        %v3145 = vmul.f32 %v3144, %v3134
        %v3146 = vmul.f32 %v3144, %v3136
        %v3147 = vmul.f32 %v3144, %v3138
        %v3148 = vmul.f32 %v3144, %v3140
        %3149 = vst [vmem:[#allocation3 + $0xa0] sm:$0xff] %v3145
        %3150 = vst [vmem:[#allocation3 + $0xa8] sm:$0xff] %v3146
        %3151 = vst [vmem:[#allocation3 + $0xb0] sm:$0xff] %v3147
        %3152 = vst [vmem:[#allocation3 + $0xb8] sm:$0xff] %v3148
        %v3153 = vld [vmem:[#allocation10 + $0x6] sm:$0x1]
        %3154 = vrot.lane.b32.xlu0 %v3040, 113
        %v3155 = vpop.permute.xlu0 %3154
        %3156 = vrot.lane.b32.xlu0 %v3041, 113
        %v3157 = vpop.permute.xlu0 %3156
        %3158 = vrot.lane.b32.xlu0 %v3042, 113
        %v3159 = vpop.permute.xlu0 %3158
        %3160 = vrot.lane.b32.xlu0 %v3043, 113
        %v3161 = vpop.permute.xlu0 %3160
        %v3162 = vlaneseq
        %v3163 = vshrl.u32 %v3162, 7
        %v3164 = vsub.s32 0, %v3163
        %v3165 = vrot.slane %v3153, %v3164
        %v3166 = vmul.f32 %v3165, %v3155
        %v3167 = vmul.f32 %v3165, %v3157
        %v3168 = vmul.f32 %v3165, %v3159
        %v3169 = vmul.f32 %v3165, %v3161
        %3170 = vst [vmem:[#allocation3 + $0xc0] sm:$0xff] %v3166
        %3171 = vst [vmem:[#allocation3 + $0xc8] sm:$0xff] %v3167
        %3172 = vst [vmem:[#allocation3 + $0xd0] sm:$0xff] %v3168
        %3173 = vst [vmem:[#allocation3 + $0xd8] sm:$0xff] %v3169
        %v3174 = vld [vmem:[#allocation10 + $0x7] sm:$0x1]
        %3175 = vrot.lane.b32.xlu0 %v3040, 112
        %v3176 = vpop.permute.xlu0 %3175
        %3177 = vrot.lane.b32.xlu0 %v3041, 112
        %v3178 = vpop.permute.xlu0 %3177
        %3179 = vrot.lane.b32.xlu0 %v3042, 112
        %v3180 = vpop.permute.xlu0 %3179
        %3181 = vrot.lane.b32.xlu0 %v3043, 112
        %v3182 = vpop.permute.xlu0 %3181
        %v3183 = vlaneseq
        %v3184 = vshrl.u32 %v3183, 7
        %v3185 = vsub.s32 0, %v3184
        %v3186 = vrot.slane %v3174, %v3185
        %v3187 = vmul.f32 %v3186, %v3176
        %v3188 = vmul.f32 %v3186, %v3178
        %v3189 = vmul.f32 %v3186, %v3180
        %v3190 = vmul.f32 %v3186, %v3182
        %3191 = vst [vmem:[#allocation3 + $0xe0] sm:$0xff] %v3187
        %3192 = vst [vmem:[#allocation3 + $0xe8] sm:$0xff] %v3188
        %3193 = vst [vmem:[#allocation3 + $0xf0] sm:$0xff] %v3189
        %3194 = vst [vmem:[#allocation3 + $0xf8] sm:$0xff] %v3190
        %v3195 = vld [vmem:[#allocation10 + $0x8] sm:$0x1]
        %3196 = vrot.lane.b32.xlu0 %v3040, 111
        %v3197 = vpop.permute.xlu0 %3196
        %3198 = vrot.lane.b32.xlu0 %v3041, 111
        %v3199 = vpop.permute.xlu0 %3198
        %3200 = vrot.lane.b32.xlu0 %v3042, 111
        %v3201 = vpop.permute.xlu0 %3200
        %3202 = vrot.lane.b32.xlu0 %v3043, 111
        %v3203 = vpop.permute.xlu0 %3202
        %v3204 = vlaneseq
        %v3205 = vshrl.u32 %v3204, 7
        %v3206 = vsub.s32 0, %v3205
        %v3207 = vrot.slane %v3195, %v3206
        %v3208 = vmul.f32 %v3207, %v3197
        %v3209 = vmul.f32 %v3207, %v3199
        %v3210 = vmul.f32 %v3207, %v3201
        %v3211 = vmul.f32 %v3207, %v3203
        %3212 = vst [vmem:[#allocation3 + $0x100] sm:$0xff] %v3208
        %3213 = vst [vmem:[#allocation3 + $0x108] sm:$0xff] %v3209
        %3214 = vst [vmem:[#allocation3 + $0x110] sm:$0xff] %v3210
        %3215 = vst [vmem:[#allocation3 + $0x118] sm:$0xff] %v3211
        %s3216 = scalar_lea.vmem %s7, 6
        %v3217 = vld [vmem:[%s3216] sm:$0x3f]
        %v3218 = vld [vmem:[#allocation3] sm:$0xff]
        %v3219 = vld [vmem:[#allocation3 + $0x8] sm:$0xff]
        %v3220 = vld [vmem:[#allocation3 + $0x10] sm:$0xff]
        %v3221 = vld [vmem:[#allocation3 + $0x18] sm:$0xff]
        %v3222 = vld [vmem:[#allocation3 + $0x20] sm:$0xff]
        %v3223 = vld [vmem:[#allocation3 + $0x28] sm:$0xff]
        %v3224 = vld [vmem:[#allocation3 + $0x30] sm:$0xff]
        %v3225 = vld [vmem:[#allocation3 + $0x38] sm:$0xff]
        %v3226 = vld [vmem:[#allocation3 + $0x40] sm:$0xff]
        %v3227 = vld [vmem:[#allocation3 + $0x48] sm:$0xff]
        %v3228 = vld [vmem:[#allocation3 + $0x50] sm:$0xff]
        %v3229 = vld [vmem:[#allocation3 + $0x58] sm:$0xff]
        %v3230 = vld [vmem:[#allocation3 + $0x60] sm:$0xff]
        %v3231 = vld [vmem:[#allocation3 + $0x68] sm:$0xff]
        %v3232 = vld [vmem:[#allocation3 + $0x70] sm:$0xff]
        %v3233 = vld [vmem:[#allocation3 + $0x78] sm:$0xff]
        %v3234 = vld [vmem:[#allocation3 + $0x80] sm:$0xff]
        %v3235 = vld [vmem:[#allocation3 + $0x88] sm:$0xff]
        %v3236 = vld [vmem:[#allocation3 + $0x90] sm:$0xff]
        %v3237 = vld [vmem:[#allocation3 + $0x98] sm:$0xff]
        %v3238 = vld [vmem:[#allocation3 + $0xa0] sm:$0xff]
        %v3239 = vld [vmem:[#allocation3 + $0xa8] sm:$0xff]
        %v3240 = vld [vmem:[#allocation3 + $0xb0] sm:$0xff]
        %v3241 = vld [vmem:[#allocation3 + $0xb8] sm:$0xff]
        %v3242 = vld [vmem:[#allocation3 + $0xc0] sm:$0xff]
        %v3243 = vld [vmem:[#allocation3 + $0xc8] sm:$0xff]
        %v3244 = vld [vmem:[#allocation3 + $0xd0] sm:$0xff]
        %v3245 = vld [vmem:[#allocation3 + $0xd8] sm:$0xff]
        %v3246 = vld [vmem:[#allocation3 + $0xe0] sm:$0xff]
        %v3247 = vld [vmem:[#allocation3 + $0xe8] sm:$0xff]
        %v3248 = vld [vmem:[#allocation3 + $0xf0] sm:$0xff]
        %v3249 = vld [vmem:[#allocation3 + $0xf8] sm:$0xff]
        %v3250 = vld [vmem:[#allocation3 + $0x100] sm:$0xff]
        %v3251 = vld [vmem:[#allocation3 + $0x108] sm:$0xff]
        %v3252 = vld [vmem:[#allocation3 + $0x110] sm:$0xff]
        %v3253 = vld [vmem:[#allocation3 + $0x118] sm:$0xff]
        %v3255 = vcombine.high %v3217, %v3217
        %v3257 = vunpack.c.l.s4 1983009808
        %v3258 = vunpack.c.0.s8 %v3257
        %v3259 = vlaneseq
        %v3260 = vshrl.u32 %v3259, 7
        %v3261 = vsub.s32 %v3258, %v3260
        %v3262 = vrot.slane %v3217, %v3261
        %v3264 = vunpack.c.l.s4 1983009808
        %v3265 = vunpack.c.0.s8 %v3264
        %v3266 = vlaneseq
        %v3267 = vshrl.u32 %v3266, 7
        %v3268 = vsub.s32 %v3265, %v3267
        %v3269 = vrot.slane %v3255, %v3268
        %v3270 = vcombine.high %v3262, %v3262
        %v3273 = vsel %vm1242, %v3269, 0
        %3275 = vmatprep.subr.mxu0 0.0
        %3276 = vmatpush1.msra.mxu0 %v3233
        %3277 = vmatprep.subr.mxu0 0.0
        %3278 = vmatpush1.msra.mxu0 %v3232
        %3279 = vmatprep.subr.mxu0 0.0
        %3280 = vmatpush1.msra.mxu0 %v3231
        %3281 = vmatprep.subr.mxu0 0.0
        %3282 = vmatpush1.msra.mxu0 %v3230
        %3283 = vmatprep.subr.mxu0 0.0
        %3284 = vmatpush1.msra.mxu0 %v3229
        %3285 = vmatprep.subr.mxu0 0.0
        %3286 = vmatpush1.msra.mxu0 %v3228
        %3287 = vmatprep.subr.mxu0 0.0
        %3288 = vmatpush1.msra.mxu0 %v3227
        %3289 = vmatprep.subr.mxu0 0.0
        %3290 = vmatpush1.msra.mxu0 %v3226
        %3291 = vmatprep.subr.mxu0 0.0
        %3292 = vmatpush1.msra.mxu0 %v3225
        %3293 = vmatprep.subr.mxu0 0.0
        %3294 = vmatpush1.msra.mxu0 %v3224
        %3295 = vmatprep.subr.mxu0 0.0
        %3296 = vmatpush1.msra.mxu0 %v3223
        %3297 = vmatprep.subr.mxu0 0.0
        %3298 = vmatpush1.msra.mxu0 %v3222
        %3299 = vmatprep.subr.mxu0 0.0
        %3300 = vmatpush1.msra.mxu0 %v3221
        %3301 = vmatprep.subr.mxu0 0.0
        %3302 = vmatpush1.msra.mxu0 %v3220
        %3303 = vmatprep.subr.mxu0 0.0
        %3304 = vmatpush1.msra.mxu0 %v3219
        %3305 = vmatprep.subr.mxu0 0.0
        %3306 = vmatpush1.msra.mxu0 %v3218
        %3307 = vmatprep.subr.mxu0 0.0
        %3308 = vmatpush2.msra.mxu0 %v3249
        %3309 = vmatprep.subr.mxu0 0.0
        %3310 = vmatpush2.msra.mxu0 %v3248
        %3311 = vmatprep.subr.mxu0 0.0
        %3312 = vmatpush2.msra.mxu0 %v3247
        %3313 = vmatprep.subr.mxu0 0.0
        %3314 = vmatpush2.msra.mxu0 %v3246
        %3315 = vmatprep.subr.mxu0 0.0
        %3316 = vmatpush2.msra.mxu0 %v3245
        %3317 = vmatprep.subr.mxu0 0.0
        %3318 = vmatpush2.msra.mxu0 %v3244
        %3319 = vmatprep.subr.mxu0 0.0
        %3320 = vmatpush2.msra.mxu0 %v3243
        %3321 = vmatprep.subr.mxu0 0.0
        %3322 = vmatpush2.msra.mxu0 %v3242
        %3323 = vmatprep.subr.mxu0 0.0
        %3324 = vmatpush2.msra.mxu0 %v3241
        %3325 = vmatprep.subr.mxu0 0.0
        %3326 = vmatpush2.msra.mxu0 %v3240
        %3327 = vmatprep.subr.mxu0 0.0
        %3328 = vmatpush2.msra.mxu0 %v3239
        %3329 = vmatprep.subr.mxu0 0.0
        %3330 = vmatpush2.msra.mxu0 %v3238
        %3331 = vmatprep.subr.mxu0 0.0
        %3332 = vmatpush2.msra.mxu0 %v3237
        %3333 = vmatprep.subr.mxu0 0.0
        %3334 = vmatpush2.msra.mxu0 %v3236
        %3335 = vmatprep.subr.mxu0 0.0
        %3336 = vmatpush2.msra.mxu0 %v3235
        %3337 = vmatprep.subr.mxu0 0.0
        %3338 = vmatpush2.msra.mxu0 %v3234
        %3339 = vmatprep.mubr.f32.mxu0 %v3270
        %3340 = vmatmul.mubr.f32.gmra.mxu0 %v3262
        %v3341 = vpop.f32.mrf.mxu0
        %v3342 = vadd.f32 0.0, %v3341
        %v3343 = vpop.f32.mrf.mxu0
        %3344 = vdwg.mxu0
        %3345 = vmatprep.subr.mxu0 0.0
        %3346 = vmatpush1.msra.mxu0 0.0
        %3347 = vmatprep.subr.mxu0 0.0
        %3348 = vmatpush1.msra.mxu0 0.0
        %3349 = vmatprep.subr.mxu0 0.0
        %3350 = vmatpush1.msra.mxu0 0.0
        %3351 = vmatprep.subr.mxu0 0.0
        %3352 = vmatpush1.msra.mxu0 0.0
        %3353 = vmatprep.subr.mxu0 0.0
        %3354 = vmatpush1.msra.mxu0 0.0
        %3355 = vmatprep.subr.mxu0 0.0
        %3356 = vmatpush1.msra.mxu0 0.0
        %3357 = vmatprep.subr.mxu0 0.0
        %3358 = vmatpush1.msra.mxu0 0.0
        %3359 = vmatprep.subr.mxu0 0.0
        %3360 = vmatpush1.msra.mxu0 0.0
        %3361 = vmatprep.subr.mxu0 0.0
        %3362 = vmatpush1.msra.mxu0 0.0
        %3363 = vmatprep.subr.mxu0 0.0
        %3364 = vmatpush1.msra.mxu0 0.0
        %3365 = vmatprep.subr.mxu0 0.0
        %3366 = vmatpush1.msra.mxu0 0.0
        %3367 = vmatprep.subr.mxu0 0.0
        %3368 = vmatpush1.msra.mxu0 0.0
        %3369 = vmatprep.subr.mxu0 0.0
        %3370 = vmatpush1.msra.mxu0 %v3253
        %3371 = vmatprep.subr.mxu0 0.0
        %3372 = vmatpush1.msra.mxu0 %v3252
        %3373 = vmatprep.subr.mxu0 0.0
        %3374 = vmatpush1.msra.mxu0 %v3251
        %3375 = vmatprep.subr.mxu0 0.0
        %3376 = vmatpush1.msra.mxu0 %v3250
        %3377 = vmatprep.subr.mxu0 0.0
        %3378 = vmatpush2.msra.mxu0 0.0
        %3379 = vmatprep.subr.mxu0 0.0
        %3380 = vmatpush2.msra.mxu0 0.0
        %3381 = vmatprep.subr.mxu0 0.0
        %3382 = vmatpush2.msra.mxu0 0.0
        %3383 = vmatprep.subr.mxu0 0.0
        %3384 = vmatpush2.msra.mxu0 0.0
        %3385 = vmatprep.subr.mxu0 0.0
        %3386 = vmatpush2.msra.mxu0 0.0
        %3387 = vmatprep.subr.mxu0 0.0
        %3388 = vmatpush2.msra.mxu0 0.0
        %3389 = vmatprep.subr.mxu0 0.0
        %3390 = vmatpush2.msra.mxu0 0.0
        %3391 = vmatprep.subr.mxu0 0.0
        %3392 = vmatpush2.msra.mxu0 0.0
        %3393 = vmatprep.subr.mxu0 0.0
        %3394 = vmatpush2.msra.mxu0 0.0
        %3395 = vmatprep.subr.mxu0 0.0
        %3396 = vmatpush2.msra.mxu0 0.0
        %3397 = vmatprep.subr.mxu0 0.0
        %3398 = vmatpush2.msra.mxu0 0.0
        %3399 = vmatprep.subr.mxu0 0.0
        %3400 = vmatpush2.msra.mxu0 0.0
        %3401 = vmatprep.subr.mxu0 0.0
        %3402 = vmatpush2.msra.mxu0 0.0
        %3403 = vmatprep.subr.mxu0 0.0
        %3404 = vmatpush2.msra.mxu0 0.0
        %3405 = vmatprep.subr.mxu0 0.0
        %3406 = vmatpush2.msra.mxu0 0.0
        %3407 = vmatprep.subr.mxu0 0.0
        %3408 = vmatpush2.msra.mxu0 0.0
        %3409 = vmatprep.mubr.f32.mxu0 0.0
        %3410 = vmatmul.mubr.f32.gmra.mxu0 %v3273
        %v3411 = vpop.f32.mrf.mxu0
        %v3412 = vadd.f32 %v3342, %v3411
        %v3413 = vpop.f32.mrf.mxu0
        %3414 = vdwg.mxu0
        %v3415 = vadd.f32 %v1382, %v3412
        %s3416 = scalar_lea.vmem [#allocation16], 2
        %v3417 = vld [vmem:[%s3416] sm:$0x3]
        %3419 = vset.pattern.permute.xlu0 0
        %3420 = vperm.xlu0 %3419, %v3417
        %v3421 = vpop.permute.xlu0 %3420
        %v3423 = vadd.f32 %v3415, %v3421
        %3424 = vmatprep.subr.mxu0 %v643
        %3425 = vmatpush1.msra.mxu0 %v642
        %3426 = vmatprep.subr.mxu0 %v641
        %3427 = vmatpush1.msra.mxu0 %v640
        %3428 = vmatprep.subr.mxu0 %v639
        %3429 = vmatpush1.msra.mxu0 %v638
        %3430 = vmatprep.subr.mxu0 %v637
        %3431 = vmatpush1.msra.mxu0 %v636
        %3432 = vmatprep.subr.mxu0 %v635
        %3433 = vmatpush1.msra.mxu0 %v634
        %3434 = vmatprep.subr.mxu0 %v633
        %3435 = vmatpush1.msra.mxu0 %v632
        %3436 = vmatprep.subr.mxu0 %v631
        %3437 = vmatpush1.msra.mxu0 %v630
        %3438 = vmatprep.subr.mxu0 %v629
        %3439 = vmatpush1.msra.mxu0 %v628
        %3440 = vmatprep.subr.mxu0 %v627
        %3441 = vmatpush1.msra.mxu0 %v626
        %3442 = vmatprep.subr.mxu0 %v625
        %3443 = vmatpush1.msra.mxu0 %v624
        %3444 = vmatprep.subr.mxu0 %v623
        %3445 = vmatpush1.msra.mxu0 %v622
        %3446 = vmatprep.subr.mxu0 %v621
        %3447 = vmatpush1.msra.mxu0 %v620
        %3448 = vmatprep.subr.mxu0 %v619
        %3449 = vmatpush1.msra.mxu0 %v618
        %3450 = vmatprep.subr.mxu0 %v617
        %3451 = vmatpush1.msra.mxu0 %v616
        %3452 = vmatprep.subr.mxu0 %v615
        %3453 = vmatpush1.msra.mxu0 %v614
        %3454 = vmatprep.subr.mxu0 %v613
        %3455 = vmatpush1.msra.mxu0 %v612
        %3456 = vmatprep.subr.mxu0 0.0
        %3457 = vmatpush2.msra.mxu0 0.0
        %3458 = vmatprep.subr.mxu0 0.0
        %3459 = vmatpush2.msra.mxu0 0.0
        %3460 = vmatprep.subr.mxu0 0.0
        %3461 = vmatpush2.msra.mxu0 0.0
        %3462 = vmatprep.subr.mxu0 0.0
        %3463 = vmatpush2.msra.mxu0 0.0
        %3464 = vmatprep.subr.mxu0 0.0
        %3465 = vmatpush2.msra.mxu0 0.0
        %3466 = vmatprep.subr.mxu0 0.0
        %3467 = vmatpush2.msra.mxu0 0.0
        %3468 = vmatprep.subr.mxu0 0.0
        %3469 = vmatpush2.msra.mxu0 0.0
        %3470 = vmatprep.subr.mxu0 0.0
        %3471 = vmatpush2.msra.mxu0 0.0
        %3472 = vmatprep.subr.mxu0 0.0
        %3473 = vmatpush2.msra.mxu0 0.0
        %3474 = vmatprep.subr.mxu0 0.0
        %3475 = vmatpush2.msra.mxu0 0.0
        %3476 = vmatprep.subr.mxu0 0.0
        %3477 = vmatpush2.msra.mxu0 0.0
        %3478 = vmatprep.subr.mxu0 0.0
        %3479 = vmatpush2.msra.mxu0 0.0
        %3480 = vmatprep.subr.mxu0 0.0
        %3481 = vmatpush2.msra.mxu0 0.0
        %3482 = vmatprep.subr.mxu0 0.0
        %3483 = vmatpush2.msra.mxu0 0.0
        %3484 = vmatprep.subr.mxu0 0.0
        %3485 = vmatpush2.msra.mxu0 0.0
        %3486 = vmatprep.subr.mxu0 0.0
        %3487 = vmatpush2.msra.mxu0 0.0
        %3488 = vmatprep.mubr.f32.mxu0 0.0
        %3489 = vmatmul.mubr.f32.gmra.mxu0 %v3423
        %v3490 = vpop.f32.mrf.mxu0
        %v3491 = vadd.f32 0.0, %v3490
        %v3492 = vpop.f32.mrf.mxu0
        %v3493 = vadd.f32 0.0, %v3492
        %3494 = vdwg.mxu0
        %v3495 = vld [vmem:[#allocation11] ss:$8 sm:$0x3]
        %3496 = vrot.lane.b32.xlu0 %v2711, 17
        %v3497 = vpop.permute.xlu0 %3496
        %3498 = vrot.lane.b32.xlu0 %v2713, 17
        %v3499 = vpop.permute.xlu0 %3498
        %v3500 = vsel %vm1459, %v3497, %v3499
        %v3501 = vsel %vm1459, %v3499, %v3497
        %v3503 = vlaneseq
        %v3504 = vshrl.u32 %v3503, 7
        %v3505 = vsub.s32 0, %v3504
        %v3506 = vrot.slane %v3495, %v3505
        %v3507 = vlaneseq
        %v3508 = vshrl.u32 %v3507, 7
        %v3509 = vsub.s32 1, %v3508
        %v3510 = vrot.slane %v3495, %v3509
        %v3513 = vmul.f32 %v3506, %v3501
        %v3514 = vmul.f32 %v3510, %v3500
        %3515 = vst [vmem:[#allocation4] sm:$0x3] %v3513
        %3516 = vst [vmem:[#allocation4 + $0x8] sm:$0x3] %v3514
        %v3517 = vld [vmem:[%s1475] ss:$8 sm:$0x3]
        %3518 = vrot.lane.b32.xlu0 %v2711, 16
        %v3519 = vpop.permute.xlu0 %3518
        %3520 = vrot.lane.b32.xlu0 %v2713, 16
        %v3521 = vpop.permute.xlu0 %3520
        %v3522 = vsel %vm1477, %v3519, %v3521
        %v3523 = vsel %vm1477, %v3521, %v3519
        %v3525 = vlaneseq
        %v3526 = vshrl.u32 %v3525, 7
        %v3527 = vsub.s32 0, %v3526
        %v3528 = vrot.slane %v3517, %v3527
        %v3529 = vlaneseq
        %v3530 = vshrl.u32 %v3529, 7
        %v3531 = vsub.s32 1, %v3530
        %v3532 = vrot.slane %v3517, %v3531
        %v3535 = vmul.f32 %v3528, %v3523
        %v3536 = vmul.f32 %v3532, %v3522
        %v3539 = vrot.slane %v3535, 6
        %v3540 = vrot.slane %v3536, 6
        %3543 = vst [vmem:[#allocation4] sm:$0xc] %v3539
        %3544 = vst [vmem:[#allocation4 + $0x8] sm:$0xc] %v3540
        %v3545 = vld [vmem:[%s1499] ss:$8 sm:$0x3]
        %3546 = vrot.lane.b32.xlu0 %v2711, 15
        %v3547 = vpop.permute.xlu0 %3546
        %3548 = vrot.lane.b32.xlu0 %v2713, 15
        %v3549 = vpop.permute.xlu0 %3548
        %v3550 = vsel %vm1501, %v3547, %v3549
        %v3551 = vsel %vm1501, %v3549, %v3547
        %v3553 = vlaneseq
        %v3554 = vshrl.u32 %v3553, 7
        %v3555 = vsub.s32 0, %v3554
        %v3556 = vrot.slane %v3545, %v3555
        %v3557 = vlaneseq
        %v3558 = vshrl.u32 %v3557, 7
        %v3559 = vsub.s32 1, %v3558
        %v3560 = vrot.slane %v3545, %v3559
        %v3563 = vmul.f32 %v3556, %v3551
        %v3564 = vmul.f32 %v3560, %v3550
        %v3567 = vrot.slane %v3563, 4
        %v3568 = vrot.slane %v3564, 4
        %3571 = vst [vmem:[#allocation4] sm:$0x30] %v3567
        %3572 = vst [vmem:[#allocation4 + $0x8] sm:$0x30] %v3568
        %v3573 = vld [vmem:[%s1523] ss:$8 sm:$0x3]
        %3574 = vrot.lane.b32.xlu0 %v2711, 1
        %v3575 = vpop.permute.xlu0 %3574
        %3576 = vrot.lane.b32.xlu0 %v2713, 1
        %v3577 = vpop.permute.xlu0 %3576
        %v3578 = vsel %vm1525, %v3575, %v3577
        %v3579 = vsel %vm1525, %v3577, %v3575
        %v3581 = vlaneseq
        %v3582 = vshrl.u32 %v3581, 7
        %v3583 = vsub.s32 0, %v3582
        %v3584 = vrot.slane %v3573, %v3583
        %v3585 = vlaneseq
        %v3586 = vshrl.u32 %v3585, 7
        %v3587 = vsub.s32 1, %v3586
        %v3588 = vrot.slane %v3573, %v3587
        %v3591 = vmul.f32 %v3584, %v3579
        %v3592 = vmul.f32 %v3588, %v3578
        %v3595 = vrot.slane %v3591, 2
        %v3596 = vrot.slane %v3592, 2
        %3599 = vst [vmem:[#allocation4] sm:$0xc0] %v3595
        %3600 = vst [vmem:[#allocation4 + $0x8] sm:$0xc0] %v3596
        %3601 = vst [vmem:[#allocation4 + $0x10] sm:$0x3] %v2711
        %3602 = vst [vmem:[#allocation4 + $0x18] sm:$0x3] %v2713
        %v3603 = vld [vmem:[%s1549] ss:$8 sm:$0x3]
        %3604 = vrot.lane.b32.xlu0 %v2711, 127
        %v3605 = vpop.permute.xlu0 %3604
        %3606 = vrot.lane.b32.xlu0 %v2713, 127
        %v3607 = vpop.permute.xlu0 %3606
        %v3608 = vsel %vm1551, %v3605, %v3607
        %v3609 = vsel %vm1551, %v3607, %v3605
        %v3611 = vlaneseq
        %v3612 = vshrl.u32 %v3611, 7
        %v3613 = vsub.s32 0, %v3612
        %v3614 = vrot.slane %v3603, %v3613
        %v3615 = vlaneseq
        %v3616 = vshrl.u32 %v3615, 7
        %v3617 = vsub.s32 1, %v3616
        %v3618 = vrot.slane %v3603, %v3617
        %v3621 = vmul.f32 %v3614, %v3608
        %v3622 = vmul.f32 %v3618, %v3609
        %v3625 = vrot.slane %v3621, 6
        %v3626 = vrot.slane %v3622, 6
        %3629 = vst [vmem:[#allocation4 + $0x10] sm:$0xc] %v3625
        %3630 = vst [vmem:[#allocation4 + $0x18] sm:$0xc] %v3626
        %v3631 = vld [vmem:[%s1573] ss:$8 sm:$0x3]
        %3632 = vrot.lane.b32.xlu0 %v2711, 113
        %v3633 = vpop.permute.xlu0 %3632
        %3634 = vrot.lane.b32.xlu0 %v2713, 113
        %v3635 = vpop.permute.xlu0 %3634
        %v3636 = vsel %vm1575, %v3633, %v3635
        %v3637 = vsel %vm1575, %v3635, %v3633
        %v3639 = vlaneseq
        %v3640 = vshrl.u32 %v3639, 7
        %v3641 = vsub.s32 0, %v3640
        %v3642 = vrot.slane %v3631, %v3641
        %v3643 = vlaneseq
        %v3644 = vshrl.u32 %v3643, 7
        %v3645 = vsub.s32 1, %v3644
        %v3646 = vrot.slane %v3631, %v3645
        %v3649 = vmul.f32 %v3642, %v3636
        %v3650 = vmul.f32 %v3646, %v3637
        %v3653 = vrot.slane %v3649, 4
        %v3654 = vrot.slane %v3650, 4
        %3657 = vst [vmem:[#allocation4 + $0x10] sm:$0x30] %v3653
        %3658 = vst [vmem:[#allocation4 + $0x18] sm:$0x30] %v3654
        %v3659 = vld [vmem:[%s1597] ss:$8 sm:$0x3]
        %3660 = vrot.lane.b32.xlu0 %v2711, 112
        %v3661 = vpop.permute.xlu0 %3660
        %3662 = vrot.lane.b32.xlu0 %v2713, 112
        %v3663 = vpop.permute.xlu0 %3662
        %v3664 = vsel %vm1599, %v3661, %v3663
        %v3665 = vsel %vm1599, %v3663, %v3661
        %v3667 = vlaneseq
        %v3668 = vshrl.u32 %v3667, 7
        %v3669 = vsub.s32 0, %v3668
        %v3670 = vrot.slane %v3659, %v3669
        %v3671 = vlaneseq
        %v3672 = vshrl.u32 %v3671, 7
        %v3673 = vsub.s32 1, %v3672
        %v3674 = vrot.slane %v3659, %v3673
        %v3677 = vmul.f32 %v3670, %v3664
        %v3678 = vmul.f32 %v3674, %v3665
        %v3681 = vrot.slane %v3677, 2
        %v3682 = vrot.slane %v3678, 2
        %3685 = vst [vmem:[#allocation4 + $0x10] sm:$0xc0] %v3681
        %3686 = vst [vmem:[#allocation4 + $0x18] sm:$0xc0] %v3682
        %v3687 = vld [vmem:[%s1621] ss:$8 sm:$0x3]
        %3688 = vrot.lane.b32.xlu0 %v2711, 111
        %v3689 = vpop.permute.xlu0 %3688
        %3690 = vrot.lane.b32.xlu0 %v2713, 111
        %v3691 = vpop.permute.xlu0 %3690
        %v3692 = vsel %vm1623, %v3689, %v3691
        %v3693 = vsel %vm1623, %v3691, %v3689
        %v3695 = vlaneseq
        %v3696 = vshrl.u32 %v3695, 7
        %v3697 = vsub.s32 0, %v3696
        %v3698 = vrot.slane %v3687, %v3697
        %v3699 = vlaneseq
        %v3700 = vshrl.u32 %v3699, 7
        %v3701 = vsub.s32 1, %v3700
        %v3702 = vrot.slane %v3687, %v3701
        %v3705 = vmul.f32 %v3698, %v3692
        %v3706 = vmul.f32 %v3702, %v3693
        %3707 = vst [vmem:[#allocation4 + $0x20] sm:$0x3] %v3705
        %3708 = vst [vmem:[#allocation4 + $0x28] sm:$0x3] %v3706
        %v3709 = vld [vmem:[#allocation11] ss:$8 sm:$0x3]
        %3710 = vrot.lane.b32.xlu0 %v3491, 17
        %v3711 = vpop.permute.xlu0 %3710
        %3712 = vrot.lane.b32.xlu0 %v3493, 17
        %v3713 = vpop.permute.xlu0 %3712
        %v3714 = vsel %vm1459, %v3711, %v3713
        %v3715 = vsel %vm1459, %v3713, %v3711
        %v3718 = vcombine.low %v3715, %v3714
        %v3720 = vunpack.c.l.s4 1966171168
        %v3721 = vunpack.c.0.s8 %v3720
        %v3722 = vlaneseq
        %v3723 = vshrl.u32 %v3722, 7
        %v3724 = vsub.s32 %v3721, %v3723
        %v3725 = vrot.slane %v3718, %v3724
        %v3727 = vunpack.c.l.s4 1966171168
        %v3728 = vunpack.c.0.s8 %v3727
        %v3729 = vlaneseq
        %v3730 = vshrl.u32 %v3729, 7
        %v3731 = vsub.s32 %v3728, %v3730
        %v3732 = vrot.slane %v3725, %v3731
        %v3734 = vmul.f32 %v3709, %v3732
        %3735 = vst.msk [vmem:[%s1669] ss:$8 sm:$0x3] %vm1668, %v3734
        %3736 = vst.msk [vmem:[%s1669] ss:$8 sm:$0x0] %vm1668, %v3734
        %v3737 = vld [vmem:[%s1475] ss:$8 sm:$0x3]
        %3738 = vrot.lane.b32.xlu0 %v3491, 16
        %v3739 = vpop.permute.xlu0 %3738
        %3740 = vrot.lane.b32.xlu0 %v3493, 16
        %v3741 = vpop.permute.xlu0 %3740
        %v3742 = vsel %vm1477, %v3739, %v3741
        %v3743 = vsel %vm1477, %v3741, %v3739
        %v3746 = vcombine.low %v3743, %v3742
        %v3748 = vunpack.c.l.s4 1966171168
        %v3749 = vunpack.c.0.s8 %v3748
        %v3750 = vlaneseq
        %v3751 = vshrl.u32 %v3750, 7
        %v3752 = vsub.s32 %v3749, %v3751
        %v3753 = vrot.slane %v3746, %v3752
        %v3755 = vunpack.c.l.s4 1966171168
        %v3756 = vunpack.c.0.s8 %v3755
        %v3757 = vlaneseq
        %v3758 = vshrl.u32 %v3757, 7
        %v3759 = vsub.s32 %v3756, %v3758
        %v3760 = vrot.slane %v3753, %v3759
        %v3762 = vmul.f32 %v3737, %v3760
        %3763 = vst.msk [vmem:[%s1698] ss:$8 sm:$0x3] %vm1668, %v3762
        %3764 = vst.msk [vmem:[%s1698] ss:$8 sm:$0x0] %vm1668, %v3762
        %v3765 = vld [vmem:[%s1499] ss:$8 sm:$0x3]
        %3766 = vrot.lane.b32.xlu0 %v3491, 15
        %v3767 = vpop.permute.xlu0 %3766
        %3768 = vrot.lane.b32.xlu0 %v3493, 15
        %v3769 = vpop.permute.xlu0 %3768
        %v3770 = vsel %vm1501, %v3767, %v3769
        %v3771 = vsel %vm1501, %v3769, %v3767
        %v3774 = vcombine.low %v3771, %v3770
        %v3776 = vunpack.c.l.s4 1966171168
        %v3777 = vunpack.c.0.s8 %v3776
        %v3778 = vlaneseq
        %v3779 = vshrl.u32 %v3778, 7
        %v3780 = vsub.s32 %v3777, %v3779
        %v3781 = vrot.slane %v3774, %v3780
        %v3783 = vunpack.c.l.s4 1966171168
        %v3784 = vunpack.c.0.s8 %v3783
        %v3785 = vlaneseq
        %v3786 = vshrl.u32 %v3785, 7
        %v3787 = vsub.s32 %v3784, %v3786
        %v3788 = vrot.slane %v3781, %v3787
        %v3790 = vmul.f32 %v3765, %v3788
        %3791 = vst.msk [vmem:[%s1727] ss:$8 sm:$0x3] %vm1668, %v3790
        %3792 = vst.msk [vmem:[%s1727] ss:$8 sm:$0x0] %vm1668, %v3790
        %v3793 = vld [vmem:[%s1523] ss:$8 sm:$0x3]
        %3794 = vrot.lane.b32.xlu0 %v3491, 1
        %v3795 = vpop.permute.xlu0 %3794
        %3796 = vrot.lane.b32.xlu0 %v3493, 1
        %v3797 = vpop.permute.xlu0 %3796
        %v3798 = vsel %vm1525, %v3795, %v3797
        %v3799 = vsel %vm1525, %v3797, %v3795
        %v3802 = vcombine.low %v3799, %v3798
        %v3804 = vunpack.c.l.s4 1966171168
        %v3805 = vunpack.c.0.s8 %v3804
        %v3806 = vlaneseq
        %v3807 = vshrl.u32 %v3806, 7
        %v3808 = vsub.s32 %v3805, %v3807
        %v3809 = vrot.slane %v3802, %v3808
        %v3811 = vunpack.c.l.s4 1966171168
        %v3812 = vunpack.c.0.s8 %v3811
        %v3813 = vlaneseq
        %v3814 = vshrl.u32 %v3813, 7
        %v3815 = vsub.s32 %v3812, %v3814
        %v3816 = vrot.slane %v3809, %v3815
        %v3818 = vmul.f32 %v3793, %v3816
        %3819 = vst.msk [vmem:[%s1756] ss:$8 sm:$0x3] %vm1668, %v3818
        %3820 = vst.msk [vmem:[%s1756] ss:$8 sm:$0x0] %vm1668, %v3818
        %v3823 = vcombine.low %v3491, %v3493
        %v3825 = vunpack.c.l.s4 1966171168
        %v3826 = vunpack.c.0.s8 %v3825
        %v3827 = vlaneseq
        %v3828 = vshrl.u32 %v3827, 7
        %v3829 = vsub.s32 %v3826, %v3828
        %v3830 = vrot.slane %v3823, %v3829
        %v3832 = vunpack.c.l.s4 1966171168
        %v3833 = vunpack.c.0.s8 %v3832
        %v3834 = vlaneseq
        %v3835 = vshrl.u32 %v3834, 7
        %v3836 = vsub.s32 %v3833, %v3835
        %v3837 = vrot.slane %v3830, %v3836
        %3839 = vst.msk [vmem:[%s1777] ss:$8 sm:$0x3] %vm1668, %v3837
        %3840 = vst.msk [vmem:[%s1777] ss:$8 sm:$0x0] %vm1668, %v3837
        %v3841 = vld [vmem:[%s1549] ss:$8 sm:$0x3]
        %3842 = vrot.lane.b32.xlu0 %v3491, 127
        %v3843 = vpop.permute.xlu0 %3842
        %3844 = vrot.lane.b32.xlu0 %v3493, 127
        %v3845 = vpop.permute.xlu0 %3844
        %v3846 = vsel %vm1551, %v3843, %v3845
        %v3847 = vsel %vm1551, %v3845, %v3843
        %v3850 = vcombine.low %v3846, %v3847
        %v3852 = vunpack.c.l.s4 1966171168
        %v3853 = vunpack.c.0.s8 %v3852
        %v3854 = vlaneseq
        %v3855 = vshrl.u32 %v3854, 7
        %v3856 = vsub.s32 %v3853, %v3855
        %v3857 = vrot.slane %v3850, %v3856
        %v3859 = vunpack.c.l.s4 1966171168
        %v3860 = vunpack.c.0.s8 %v3859
        %v3861 = vlaneseq
        %v3862 = vshrl.u32 %v3861, 7
        %v3863 = vsub.s32 %v3860, %v3862
        %v3864 = vrot.slane %v3857, %v3863
        %v3866 = vmul.f32 %v3841, %v3864
        %3867 = vst.msk [vmem:[%s1806] ss:$8 sm:$0x3] %vm1668, %v3866
        %3868 = vst.msk [vmem:[%s1806] ss:$8 sm:$0x0] %vm1668, %v3866
        %v3869 = vld [vmem:[%s1573] ss:$8 sm:$0x3]
        %3870 = vrot.lane.b32.xlu0 %v3491, 113
        %v3871 = vpop.permute.xlu0 %3870
        %3872 = vrot.lane.b32.xlu0 %v3493, 113
        %v3873 = vpop.permute.xlu0 %3872
        %v3874 = vsel %vm1575, %v3871, %v3873
        %v3875 = vsel %vm1575, %v3873, %v3871
        %v3878 = vcombine.low %v3874, %v3875
        %v3880 = vunpack.c.l.s4 1966171168
        %v3881 = vunpack.c.0.s8 %v3880
        %v3882 = vlaneseq
        %v3883 = vshrl.u32 %v3882, 7
        %v3884 = vsub.s32 %v3881, %v3883
        %v3885 = vrot.slane %v3878, %v3884
        %v3887 = vunpack.c.l.s4 1966171168
        %v3888 = vunpack.c.0.s8 %v3887
        %v3889 = vlaneseq
        %v3890 = vshrl.u32 %v3889, 7
        %v3891 = vsub.s32 %v3888, %v3890
        %v3892 = vrot.slane %v3885, %v3891
        %v3894 = vmul.f32 %v3869, %v3892
        %3895 = vst.msk [vmem:[%s1835] ss:$8 sm:$0x3] %vm1668, %v3894
        %3896 = vst.msk [vmem:[%s1835] ss:$8 sm:$0x0] %vm1668, %v3894
        %v3897 = vld [vmem:[%s1597] ss:$8 sm:$0x3]
        %3898 = vrot.lane.b32.xlu0 %v3491, 112
        %v3899 = vpop.permute.xlu0 %3898
        %3900 = vrot.lane.b32.xlu0 %v3493, 112
        %v3901 = vpop.permute.xlu0 %3900
        %v3902 = vsel %vm1599, %v3899, %v3901
        %v3903 = vsel %vm1599, %v3901, %v3899
        %v3906 = vcombine.low %v3902, %v3903
        %v3908 = vunpack.c.l.s4 1966171168
        %v3909 = vunpack.c.0.s8 %v3908
        %v3910 = vlaneseq
        %v3911 = vshrl.u32 %v3910, 7
        %v3912 = vsub.s32 %v3909, %v3911
        %v3913 = vrot.slane %v3906, %v3912
        %v3915 = vunpack.c.l.s4 1966171168
        %v3916 = vunpack.c.0.s8 %v3915
        %v3917 = vlaneseq
        %v3918 = vshrl.u32 %v3917, 7
        %v3919 = vsub.s32 %v3916, %v3918
        %v3920 = vrot.slane %v3913, %v3919
        %v3922 = vmul.f32 %v3897, %v3920
        %3923 = vst.msk [vmem:[%s1864] ss:$8 sm:$0x3] %vm1668, %v3922
        %3924 = vst.msk [vmem:[%s1864] ss:$8 sm:$0x0] %vm1668, %v3922
        %v3925 = vld [vmem:[%s1621] ss:$8 sm:$0x3]
        %3926 = vrot.lane.b32.xlu0 %v3491, 111
        %v3927 = vpop.permute.xlu0 %3926
        %3928 = vrot.lane.b32.xlu0 %v3493, 111
        %v3929 = vpop.permute.xlu0 %3928
        %v3930 = vsel %vm1623, %v3927, %v3929
        %v3931 = vsel %vm1623, %v3929, %v3927
        %v3934 = vcombine.low %v3930, %v3931
        %v3936 = vunpack.c.l.s4 1966171168
        %v3937 = vunpack.c.0.s8 %v3936
        %v3938 = vlaneseq
        %v3939 = vshrl.u32 %v3938, 7
        %v3940 = vsub.s32 %v3937, %v3939
        %v3941 = vrot.slane %v3934, %v3940
        %v3943 = vunpack.c.l.s4 1966171168
        %v3944 = vunpack.c.0.s8 %v3943
        %v3945 = vlaneseq
        %v3946 = vshrl.u32 %v3945, 7
        %v3947 = vsub.s32 %v3944, %v3946
        %v3948 = vrot.slane %v3941, %v3947
        %v3950 = vmul.f32 %v3925, %v3948
        %3951 = vst.msk [vmem:[%s1893] ss:$8 sm:$0x3] %vm1668, %v3950
        %3952 = vst.msk [vmem:[%s1893] ss:$8 sm:$0x0] %vm1668, %v3950
        %s3953 = scalar_lea.vmem [#allocation17], 32
        %v3954 = vld [vmem:[%s3953] sm:$0xff]
        %v3955 = vld [vmem:[%s3953 + $0x8] sm:$0xff]
        %v3956 = vld [vmem:[%s3953 + $0x10] sm:$0xff]
        %v3957 = vld [vmem:[%s3953 + $0x18] sm:$0xff]
        %v3958 = vld [vmem:[#allocation4] sm:$0xff]
        %v3959 = vld [vmem:[#allocation4 + $0x8] sm:$0xff]
        %v3960 = vld [vmem:[#allocation4 + $0x10] sm:$0xff]
        %v3961 = vld [vmem:[#allocation4 + $0x18] sm:$0xff]
        %v3962 = vld [vmem:[#allocation4 + $0x20] sm:$0xff]
        %v3963 = vld [vmem:[#allocation4 + $0x28] sm:$0xff]
        %v3964 = vld [vmem:[#allocation4 + $0x30] sm:$0x7]
        %v3965 = vld [vmem:[#allocation4 + $0x38] sm:$0x7]
        %s3966 = scalar_lea.vmem [#allocation19], 32
        %v3967 = vld [vmem:[%s3966] sm:$0xff]
        %v3968 = vld [vmem:[%s3966 + $0x8] sm:$0xff]
        %v3969 = vld [vmem:[%s3966 + $0x10] sm:$0xff]
        %v3970 = vld [vmem:[%s3966 + $0x18] sm:$0xff]
        %3972 = vset.pattern.permute.xlu0 0
        %3973 = vperm.xlu0 %3972, %v3967
        %v3974 = vpop.permute.xlu0 %3973
        %3977 = vset.pattern.permute.xlu0 0
        %3978 = vperm.xlu0 %3977, %v3968
        %v3979 = vpop.permute.xlu0 %3978
        %3982 = vset.pattern.permute.xlu0 0
        %3983 = vperm.xlu0 %3982, %v3969
        %v3984 = vpop.permute.xlu0 %3983
        %3987 = vset.pattern.permute.xlu0 0
        %3988 = vperm.xlu0 %3987, %v3970
        %v3989 = vpop.permute.xlu0 %3988
        %v3992 = vsel %vm1932, %v3954, 0
        %v3995 = vsel %vm1932, %v3955, 0
        %v3998 = vsel %vm1932, %v3956, 0
        %v4001 = vsel %vm1932, %v3957, 0
        %v4004 = vsel %vm1945, %v3964, 0
        %v4007 = vsel %vm1945, %v3965, 0
        %4009 = vmatprep.subr.mxu0 0.0
        %4010 = vmatpush1.msra.mxu0 0.0
        %4011 = vmatprep.subr.mxu0 0.0
        %4012 = vmatpush1.msra.mxu0 0.0
        %4013 = vmatprep.subr.mxu0 0.0
        %4014 = vmatpush1.msra.mxu0 0.0
        %4015 = vmatprep.subr.mxu0 0.0
        %4016 = vmatpush1.msra.mxu0 0.0
        %4017 = vmatprep.subr.mxu0 0.0
        %4018 = vmatpush1.msra.mxu0 0.0
        %4019 = vmatprep.subr.mxu0 0.0
        %4020 = vmatpush1.msra.mxu0 0.0
        %4021 = vmatprep.subr.mxu0 0.0
        %4022 = vmatpush1.msra.mxu0 0.0
        %4023 = vmatprep.subr.mxu0 0.0
        %4024 = vmatpush1.msra.mxu0 0.0
        %4025 = vmatprep.subr.mxu0 0.0
        %4026 = vmatpush1.msra.mxu0 0.0
        %4027 = vmatprep.subr.mxu0 0.0
        %4028 = vmatpush1.msra.mxu0 0.0
        %4029 = vmatprep.subr.mxu0 0.0
        %4030 = vmatpush1.msra.mxu0 0.0
        %4031 = vmatprep.subr.mxu0 0.0
        %4032 = vmatpush1.msra.mxu0 0.0
        %4033 = vmatprep.subr.mxu0 %v4007
        %4034 = vmatpush1.msra.mxu0 %v4004
        %4035 = vmatprep.subr.mxu0 %v3963
        %4036 = vmatpush1.msra.mxu0 %v3962
        %4037 = vmatprep.subr.mxu0 %v3961
        %4038 = vmatpush1.msra.mxu0 %v3960
        %4039 = vmatprep.subr.mxu0 %v3959
        %4040 = vmatpush1.msra.mxu0 %v3958
        %4041 = vmatprep.subr.mxu0 0.0
        %4042 = vmatpush2.msra.mxu0 0.0
        %4043 = vmatprep.subr.mxu0 0.0
        %4044 = vmatpush2.msra.mxu0 0.0
        %4045 = vmatprep.subr.mxu0 0.0
        %4046 = vmatpush2.msra.mxu0 0.0
        %4047 = vmatprep.subr.mxu0 0.0
        %4048 = vmatpush2.msra.mxu0 0.0
        %4049 = vmatprep.subr.mxu0 0.0
        %4050 = vmatpush2.msra.mxu0 0.0
        %4051 = vmatprep.subr.mxu0 0.0
        %4052 = vmatpush2.msra.mxu0 0.0
        %4053 = vmatprep.subr.mxu0 0.0
        %4054 = vmatpush2.msra.mxu0 0.0
        %4055 = vmatprep.subr.mxu0 0.0
        %4056 = vmatpush2.msra.mxu0 0.0
        %4057 = vmatprep.subr.mxu0 0.0
        %4058 = vmatpush2.msra.mxu0 0.0
        %4059 = vmatprep.subr.mxu0 0.0
        %4060 = vmatpush2.msra.mxu0 0.0
        %4061 = vmatprep.subr.mxu0 0.0
        %4062 = vmatpush2.msra.mxu0 0.0
        %4063 = vmatprep.subr.mxu0 0.0
        %4064 = vmatpush2.msra.mxu0 0.0
        %4065 = vmatprep.subr.mxu0 0.0
        %4066 = vmatpush2.msra.mxu0 0.0
        %4067 = vmatprep.subr.mxu0 0.0
        %4068 = vmatpush2.msra.mxu0 0.0
        %4069 = vmatprep.subr.mxu0 0.0
        %4070 = vmatpush2.msra.mxu0 0.0
        %4071 = vmatprep.subr.mxu0 0.0
        %4072 = vmatpush2.msra.mxu0 0.0
        %4073 = vmatprep.mubr.f32.mxu0 0.0
        %4074 = vmatmul.mubr.f32.gmra.mxu0 %v3992
        %v4075 = vpop.f32.mrf.mxu0
        %v4076 = vadd.f32 %v3974, %v4075
        %v4077 = vpop.f32.mrf.mxu0
        %v4078 = vadd.f32 %v3974, %v4077
        %4079 = vmatprep.mubr.f32.mxu0 0.0
        %4080 = vmatmul.mubr.f32.gmra.mxu0 %v3995
        %v4081 = vpop.f32.mrf.mxu0
        %v4082 = vadd.f32 %v3979, %v4081
        %v4083 = vpop.f32.mrf.mxu0
        %v4084 = vadd.f32 %v3979, %v4083
        %4085 = vmatprep.mubr.f32.mxu0 0.0
        %4086 = vmatmul.mubr.f32.gmra.mxu0 %v3998
        %v4087 = vpop.f32.mrf.mxu0
        %v4088 = vadd.f32 %v3984, %v4087
        %v4089 = vpop.f32.mrf.mxu0
        %v4090 = vadd.f32 %v3984, %v4089
        %4091 = vmatprep.mubr.f32.mxu0 0.0
        %4092 = vmatmul.mubr.f32.gmra.mxu0 %v4001
        %v4093 = vpop.f32.mrf.mxu0
        %v4094 = vadd.f32 %v3989, %v4093
        %v4095 = vpop.f32.mrf.mxu0
        %v4096 = vadd.f32 %v3989, %v4095
        %4097 = vdwg.mxu0
        %v4098 = vmax.f32 %v4076, 0.0
        %v4099 = vmax.f32 %v4078, 0.0
        %v4100 = vmax.f32 %v4082, 0.0
        %v4101 = vmax.f32 %v4084, 0.0
        %v4102 = vmax.f32 %v4088, 0.0
        %v4103 = vmax.f32 %v4090, 0.0
        %v4104 = vmax.f32 %v4094, 0.0
        %v4105 = vmax.f32 %v4096, 0.0
        %v4106 = vld [vmem:[#allocation11] ss:$8 sm:$0x3]
        %4107 = vrot.lane.b32.xlu0 %v4098, 17
        %v4108 = vpop.permute.xlu0 %4107
        %4109 = vrot.lane.b32.xlu0 %v4100, 17
        %v4110 = vpop.permute.xlu0 %4109
        %4111 = vrot.lane.b32.xlu0 %v4102, 17
        %v4112 = vpop.permute.xlu0 %4111
        %4113 = vrot.lane.b32.xlu0 %v4104, 17
        %v4114 = vpop.permute.xlu0 %4113
        %4115 = vrot.lane.b32.xlu0 %v4099, 17
        %v4116 = vpop.permute.xlu0 %4115
        %4117 = vrot.lane.b32.xlu0 %v4101, 17
        %v4118 = vpop.permute.xlu0 %4117
        %4119 = vrot.lane.b32.xlu0 %v4103, 17
        %v4120 = vpop.permute.xlu0 %4119
        %4121 = vrot.lane.b32.xlu0 %v4105, 17
        %v4122 = vpop.permute.xlu0 %4121
        %v4123 = vsel %vm1459, %v4108, %v4116
        %v4124 = vsel %vm1459, %v4110, %v4118
        %v4125 = vsel %vm1459, %v4112, %v4120
        %v4126 = vsel %vm1459, %v4114, %v4122
        %v4127 = vsel %vm1459, %v4116, %v4108
        %v4128 = vsel %vm1459, %v4118, %v4110
        %v4129 = vsel %vm1459, %v4120, %v4112
        %v4130 = vsel %vm1459, %v4122, %v4114
        %v4132 = vlaneseq
        %v4133 = vshrl.u32 %v4132, 7
        %v4134 = vsub.s32 0, %v4133
        %v4135 = vrot.slane %v4106, %v4134
        %v4136 = vlaneseq
        %v4137 = vshrl.u32 %v4136, 7
        %v4138 = vsub.s32 1, %v4137
        %v4139 = vrot.slane %v4106, %v4138
        %v4142 = vmul.f32 %v4135, %v4127
        %v4143 = vmul.f32 %v4139, %v4123
        %v4144 = vmul.f32 %v4135, %v4128
        %v4145 = vmul.f32 %v4139, %v4124
        %v4146 = vmul.f32 %v4135, %v4129
        %v4147 = vmul.f32 %v4139, %v4125
        %v4148 = vmul.f32 %v4135, %v4130
        %v4149 = vmul.f32 %v4139, %v4126
        %4150 = vst [vmem:[#allocation5] sm:$0xff] %v4142
        %4151 = vst [vmem:[#allocation5 + $0x8] sm:$0xff] %v4143
        %4152 = vst [vmem:[#allocation5 + $0x10] sm:$0xff] %v4144
        %4153 = vst [vmem:[#allocation5 + $0x18] sm:$0xff] %v4145
        %4154 = vst [vmem:[#allocation5 + $0x20] sm:$0xff] %v4146
        %4155 = vst [vmem:[#allocation5 + $0x28] sm:$0xff] %v4147
        %4156 = vst [vmem:[#allocation5 + $0x30] sm:$0xff] %v4148
        %4157 = vst [vmem:[#allocation5 + $0x38] sm:$0xff] %v4149
        %v4158 = vld [vmem:[%s1475] ss:$8 sm:$0x3]
        %4159 = vrot.lane.b32.xlu0 %v4098, 16
        %v4160 = vpop.permute.xlu0 %4159
        %4161 = vrot.lane.b32.xlu0 %v4100, 16
        %v4162 = vpop.permute.xlu0 %4161
        %4163 = vrot.lane.b32.xlu0 %v4102, 16
        %v4164 = vpop.permute.xlu0 %4163
        %4165 = vrot.lane.b32.xlu0 %v4104, 16
        %v4166 = vpop.permute.xlu0 %4165
        %4167 = vrot.lane.b32.xlu0 %v4099, 16
        %v4168 = vpop.permute.xlu0 %4167
        %4169 = vrot.lane.b32.xlu0 %v4101, 16
        %v4170 = vpop.permute.xlu0 %4169
        %4171 = vrot.lane.b32.xlu0 %v4103, 16
        %v4172 = vpop.permute.xlu0 %4171
        %4173 = vrot.lane.b32.xlu0 %v4105, 16
        %v4174 = vpop.permute.xlu0 %4173
        %v4175 = vsel %vm1477, %v4160, %v4168
        %v4176 = vsel %vm1477, %v4162, %v4170
        %v4177 = vsel %vm1477, %v4164, %v4172
        %v4178 = vsel %vm1477, %v4166, %v4174
        %v4179 = vsel %vm1477, %v4168, %v4160
        %v4180 = vsel %vm1477, %v4170, %v4162
        %v4181 = vsel %vm1477, %v4172, %v4164
        %v4182 = vsel %vm1477, %v4174, %v4166
        %v4184 = vlaneseq
        %v4185 = vshrl.u32 %v4184, 7
        %v4186 = vsub.s32 0, %v4185
        %v4187 = vrot.slane %v4158, %v4186
        %v4188 = vlaneseq
        %v4189 = vshrl.u32 %v4188, 7
        %v4190 = vsub.s32 1, %v4189
        %v4191 = vrot.slane %v4158, %v4190
        %v4194 = vmul.f32 %v4187, %v4179
        %v4195 = vmul.f32 %v4191, %v4175
        %v4196 = vmul.f32 %v4187, %v4180
        %v4197 = vmul.f32 %v4191, %v4176
        %v4198 = vmul.f32 %v4187, %v4181
        %v4199 = vmul.f32 %v4191, %v4177
        %v4200 = vmul.f32 %v4187, %v4182
        %v4201 = vmul.f32 %v4191, %v4178
        %4202 = vst [vmem:[#allocation5 + $0x40] sm:$0xff] %v4194
        %4203 = vst [vmem:[#allocation5 + $0x48] sm:$0xff] %v4195
        %4204 = vst [vmem:[#allocation5 + $0x50] sm:$0xff] %v4196
        %4205 = vst [vmem:[#allocation5 + $0x58] sm:$0xff] %v4197
        %4206 = vst [vmem:[#allocation5 + $0x60] sm:$0xff] %v4198
        %4207 = vst [vmem:[#allocation5 + $0x68] sm:$0xff] %v4199
        %4208 = vst [vmem:[#allocation5 + $0x70] sm:$0xff] %v4200
        %4209 = vst [vmem:[#allocation5 + $0x78] sm:$0xff] %v4201
        %v4210 = vld [vmem:[%s1499] ss:$8 sm:$0x3]
        %4211 = vrot.lane.b32.xlu0 %v4098, 15
        %v4212 = vpop.permute.xlu0 %4211
        %4213 = vrot.lane.b32.xlu0 %v4100, 15
        %v4214 = vpop.permute.xlu0 %4213
        %4215 = vrot.lane.b32.xlu0 %v4102, 15
        %v4216 = vpop.permute.xlu0 %4215
        %4217 = vrot.lane.b32.xlu0 %v4104, 15
        %v4218 = vpop.permute.xlu0 %4217
        %4219 = vrot.lane.b32.xlu0 %v4099, 15
        %v4220 = vpop.permute.xlu0 %4219
        %4221 = vrot.lane.b32.xlu0 %v4101, 15
        %v4222 = vpop.permute.xlu0 %4221
        %4223 = vrot.lane.b32.xlu0 %v4103, 15
        %v4224 = vpop.permute.xlu0 %4223
        %4225 = vrot.lane.b32.xlu0 %v4105, 15
        %v4226 = vpop.permute.xlu0 %4225
        %v4227 = vsel %vm1501, %v4212, %v4220
        %v4228 = vsel %vm1501, %v4214, %v4222
        %v4229 = vsel %vm1501, %v4216, %v4224
        %v4230 = vsel %vm1501, %v4218, %v4226
        %v4231 = vsel %vm1501, %v4220, %v4212
        %v4232 = vsel %vm1501, %v4222, %v4214
        %v4233 = vsel %vm1501, %v4224, %v4216
        %v4234 = vsel %vm1501, %v4226, %v4218
        %v4236 = vlaneseq
        %v4237 = vshrl.u32 %v4236, 7
        %v4238 = vsub.s32 0, %v4237
        %v4239 = vrot.slane %v4210, %v4238
        %v4240 = vlaneseq
        %v4241 = vshrl.u32 %v4240, 7
        %v4242 = vsub.s32 1, %v4241
        %v4243 = vrot.slane %v4210, %v4242
        %v4246 = vmul.f32 %v4239, %v4231
        %v4247 = vmul.f32 %v4243, %v4227
        %v4248 = vmul.f32 %v4239, %v4232
        %v4249 = vmul.f32 %v4243, %v4228
        %v4250 = vmul.f32 %v4239, %v4233
        %v4251 = vmul.f32 %v4243, %v4229
        %v4252 = vmul.f32 %v4239, %v4234
        %v4253 = vmul.f32 %v4243, %v4230
        %4254 = vst [vmem:[#allocation5 + $0x80] sm:$0xff] %v4246
        %4255 = vst [vmem:[#allocation5 + $0x88] sm:$0xff] %v4247
        %4256 = vst [vmem:[#allocation5 + $0x90] sm:$0xff] %v4248
        %4257 = vst [vmem:[#allocation5 + $0x98] sm:$0xff] %v4249
        %4258 = vst [vmem:[#allocation5 + $0xa0] sm:$0xff] %v4250
        %4259 = vst [vmem:[#allocation5 + $0xa8] sm:$0xff] %v4251
        %4260 = vst [vmem:[#allocation5 + $0xb0] sm:$0xff] %v4252
        %4261 = vst [vmem:[#allocation5 + $0xb8] sm:$0xff] %v4253
        %v4262 = vld [vmem:[%s1523] ss:$8 sm:$0x3]
        %4263 = vrot.lane.b32.xlu0 %v4098, 1
        %v4264 = vpop.permute.xlu0 %4263
        %4265 = vrot.lane.b32.xlu0 %v4100, 1
        %v4266 = vpop.permute.xlu0 %4265
        %4267 = vrot.lane.b32.xlu0 %v4102, 1
        %v4268 = vpop.permute.xlu0 %4267
        %4269 = vrot.lane.b32.xlu0 %v4104, 1
        %v4270 = vpop.permute.xlu0 %4269
        %4271 = vrot.lane.b32.xlu0 %v4099, 1
        %v4272 = vpop.permute.xlu0 %4271
        %4273 = vrot.lane.b32.xlu0 %v4101, 1
        %v4274 = vpop.permute.xlu0 %4273
        %4275 = vrot.lane.b32.xlu0 %v4103, 1
        %v4276 = vpop.permute.xlu0 %4275
        %4277 = vrot.lane.b32.xlu0 %v4105, 1
        %v4278 = vpop.permute.xlu0 %4277
        %v4279 = vsel %vm1525, %v4264, %v4272
        %v4280 = vsel %vm1525, %v4266, %v4274
        %v4281 = vsel %vm1525, %v4268, %v4276
        %v4282 = vsel %vm1525, %v4270, %v4278
        %v4283 = vsel %vm1525, %v4272, %v4264
        %v4284 = vsel %vm1525, %v4274, %v4266
        %v4285 = vsel %vm1525, %v4276, %v4268
        %v4286 = vsel %vm1525, %v4278, %v4270
        %v4288 = vlaneseq
        %v4289 = vshrl.u32 %v4288, 7
        %v4290 = vsub.s32 0, %v4289
        %v4291 = vrot.slane %v4262, %v4290
        %v4292 = vlaneseq
        %v4293 = vshrl.u32 %v4292, 7
        %v4294 = vsub.s32 1, %v4293
        %v4295 = vrot.slane %v4262, %v4294
        %v4298 = vmul.f32 %v4291, %v4283
        %v4299 = vmul.f32 %v4295, %v4279
        %v4300 = vmul.f32 %v4291, %v4284
        %v4301 = vmul.f32 %v4295, %v4280
        %v4302 = vmul.f32 %v4291, %v4285
        %v4303 = vmul.f32 %v4295, %v4281
        %v4304 = vmul.f32 %v4291, %v4286
        %v4305 = vmul.f32 %v4295, %v4282
        %4306 = vst [vmem:[#allocation5 + $0xc0] sm:$0xff] %v4298
        %4307 = vst [vmem:[#allocation5 + $0xc8] sm:$0xff] %v4299
        %4308 = vst [vmem:[#allocation5 + $0xd0] sm:$0xff] %v4300
        %4309 = vst [vmem:[#allocation5 + $0xd8] sm:$0xff] %v4301
        %4310 = vst [vmem:[#allocation5 + $0xe0] sm:$0xff] %v4302
        %4311 = vst [vmem:[#allocation5 + $0xe8] sm:$0xff] %v4303
        %4312 = vst [vmem:[#allocation5 + $0xf0] sm:$0xff] %v4304
        %4313 = vst [vmem:[#allocation5 + $0xf8] sm:$0xff] %v4305
        %4314 = vst [vmem:[#allocation5 + $0x100] sm:$0xff] %v4098
        %4315 = vst [vmem:[#allocation5 + $0x108] sm:$0xff] %v4099
        %4316 = vst [vmem:[#allocation5 + $0x110] sm:$0xff] %v4100
        %4317 = vst [vmem:[#allocation5 + $0x118] sm:$0xff] %v4101
        %4318 = vst [vmem:[#allocation5 + $0x120] sm:$0xff] %v4102
        %4319 = vst [vmem:[#allocation5 + $0x128] sm:$0xff] %v4103
        %4320 = vst [vmem:[#allocation5 + $0x130] sm:$0xff] %v4104
        %4321 = vst [vmem:[#allocation5 + $0x138] sm:$0xff] %v4105
        %v4322 = vld [vmem:[%s1549] ss:$8 sm:$0x3]
        %4323 = vrot.lane.b32.xlu0 %v4098, 127
        %v4324 = vpop.permute.xlu0 %4323
        %4325 = vrot.lane.b32.xlu0 %v4100, 127
        %v4326 = vpop.permute.xlu0 %4325
        %4327 = vrot.lane.b32.xlu0 %v4102, 127
        %v4328 = vpop.permute.xlu0 %4327
        %4329 = vrot.lane.b32.xlu0 %v4104, 127
        %v4330 = vpop.permute.xlu0 %4329
        %4331 = vrot.lane.b32.xlu0 %v4099, 127
        %v4332 = vpop.permute.xlu0 %4331
        %4333 = vrot.lane.b32.xlu0 %v4101, 127
        %v4334 = vpop.permute.xlu0 %4333
        %4335 = vrot.lane.b32.xlu0 %v4103, 127
        %v4336 = vpop.permute.xlu0 %4335
        %4337 = vrot.lane.b32.xlu0 %v4105, 127
        %v4338 = vpop.permute.xlu0 %4337
        %v4339 = vsel %vm1551, %v4324, %v4332
        %v4340 = vsel %vm1551, %v4326, %v4334
        %v4341 = vsel %vm1551, %v4328, %v4336
        %v4342 = vsel %vm1551, %v4330, %v4338
        %v4343 = vsel %vm1551, %v4332, %v4324
        %v4344 = vsel %vm1551, %v4334, %v4326
        %v4345 = vsel %vm1551, %v4336, %v4328
        %v4346 = vsel %vm1551, %v4338, %v4330
        %v4348 = vlaneseq
        %v4349 = vshrl.u32 %v4348, 7
        %v4350 = vsub.s32 0, %v4349
        %v4351 = vrot.slane %v4322, %v4350
        %v4352 = vlaneseq
        %v4353 = vshrl.u32 %v4352, 7
        %v4354 = vsub.s32 1, %v4353
        %v4355 = vrot.slane %v4322, %v4354
        %v4358 = vmul.f32 %v4351, %v4339
        %v4359 = vmul.f32 %v4355, %v4343
        %v4360 = vmul.f32 %v4351, %v4340
        %v4361 = vmul.f32 %v4355, %v4344
        %v4362 = vmul.f32 %v4351, %v4341
        %v4363 = vmul.f32 %v4355, %v4345
        %v4364 = vmul.f32 %v4351, %v4342
        %v4365 = vmul.f32 %v4355, %v4346
        %4366 = vst [vmem:[#allocation5 + $0x140] sm:$0xff] %v4358
        %4367 = vst [vmem:[#allocation5 + $0x148] sm:$0xff] %v4359
        %4368 = vst [vmem:[#allocation5 + $0x150] sm:$0xff] %v4360
        %4369 = vst [vmem:[#allocation5 + $0x158] sm:$0xff] %v4361
        %4370 = vst [vmem:[#allocation5 + $0x160] sm:$0xff] %v4362
        %4371 = vst [vmem:[#allocation5 + $0x168] sm:$0xff] %v4363
        %4372 = vst [vmem:[#allocation5 + $0x170] sm:$0xff] %v4364
        %4373 = vst [vmem:[#allocation5 + $0x178] sm:$0xff] %v4365
        %v4374 = vld [vmem:[%s1573] ss:$8 sm:$0x3]
        %4375 = vrot.lane.b32.xlu0 %v4098, 113
        %v4376 = vpop.permute.xlu0 %4375
        %4377 = vrot.lane.b32.xlu0 %v4100, 113
        %v4378 = vpop.permute.xlu0 %4377
        %4379 = vrot.lane.b32.xlu0 %v4102, 113
        %v4380 = vpop.permute.xlu0 %4379
        %4381 = vrot.lane.b32.xlu0 %v4104, 113
        %v4382 = vpop.permute.xlu0 %4381
        %4383 = vrot.lane.b32.xlu0 %v4099, 113
        %v4384 = vpop.permute.xlu0 %4383
        %4385 = vrot.lane.b32.xlu0 %v4101, 113
        %v4386 = vpop.permute.xlu0 %4385
        %4387 = vrot.lane.b32.xlu0 %v4103, 113
        %v4388 = vpop.permute.xlu0 %4387
        %4389 = vrot.lane.b32.xlu0 %v4105, 113
        %v4390 = vpop.permute.xlu0 %4389
        %v4391 = vsel %vm1575, %v4376, %v4384
        %v4392 = vsel %vm1575, %v4378, %v4386
        %v4393 = vsel %vm1575, %v4380, %v4388
        %v4394 = vsel %vm1575, %v4382, %v4390
        %v4395 = vsel %vm1575, %v4384, %v4376
        %v4396 = vsel %vm1575, %v4386, %v4378
        %v4397 = vsel %vm1575, %v4388, %v4380
        %v4398 = vsel %vm1575, %v4390, %v4382
        %v4400 = vlaneseq
        %v4401 = vshrl.u32 %v4400, 7
        %v4402 = vsub.s32 0, %v4401
        %v4403 = vrot.slane %v4374, %v4402
        %v4404 = vlaneseq
        %v4405 = vshrl.u32 %v4404, 7
        %v4406 = vsub.s32 1, %v4405
        %v4407 = vrot.slane %v4374, %v4406
        %v4410 = vmul.f32 %v4403, %v4391
        %v4411 = vmul.f32 %v4407, %v4395
        %v4412 = vmul.f32 %v4403, %v4392
        %v4413 = vmul.f32 %v4407, %v4396
        %v4414 = vmul.f32 %v4403, %v4393
        %v4415 = vmul.f32 %v4407, %v4397
        %v4416 = vmul.f32 %v4403, %v4394
        %v4417 = vmul.f32 %v4407, %v4398
        %4418 = vst [vmem:[#allocation5 + $0x180] sm:$0xff] %v4410
        %4419 = vst [vmem:[#allocation5 + $0x188] sm:$0xff] %v4411
        %4420 = vst [vmem:[#allocation5 + $0x190] sm:$0xff] %v4412
        %4421 = vst [vmem:[#allocation5 + $0x198] sm:$0xff] %v4413
        %4422 = vst [vmem:[#allocation5 + $0x1a0] sm:$0xff] %v4414
        %4423 = vst [vmem:[#allocation5 + $0x1a8] sm:$0xff] %v4415
        %4424 = vst [vmem:[#allocation5 + $0x1b0] sm:$0xff] %v4416
        %4425 = vst [vmem:[#allocation5 + $0x1b8] sm:$0xff] %v4417
        %v4426 = vld [vmem:[%s1597] ss:$8 sm:$0x3]
        %4427 = vrot.lane.b32.xlu0 %v4098, 112
        %v4428 = vpop.permute.xlu0 %4427
        %4429 = vrot.lane.b32.xlu0 %v4100, 112
        %v4430 = vpop.permute.xlu0 %4429
        %4431 = vrot.lane.b32.xlu0 %v4102, 112
        %v4432 = vpop.permute.xlu0 %4431
        %4433 = vrot.lane.b32.xlu0 %v4104, 112
        %v4434 = vpop.permute.xlu0 %4433
        %4435 = vrot.lane.b32.xlu0 %v4099, 112
        %v4436 = vpop.permute.xlu0 %4435
        %4437 = vrot.lane.b32.xlu0 %v4101, 112
        %v4438 = vpop.permute.xlu0 %4437
        %4439 = vrot.lane.b32.xlu0 %v4103, 112
        %v4440 = vpop.permute.xlu0 %4439
        %4441 = vrot.lane.b32.xlu0 %v4105, 112
        %v4442 = vpop.permute.xlu0 %4441
        %v4443 = vsel %vm1599, %v4428, %v4436
        %v4444 = vsel %vm1599, %v4430, %v4438
        %v4445 = vsel %vm1599, %v4432, %v4440
        %v4446 = vsel %vm1599, %v4434, %v4442
        %v4447 = vsel %vm1599, %v4436, %v4428
        %v4448 = vsel %vm1599, %v4438, %v4430
        %v4449 = vsel %vm1599, %v4440, %v4432
        %v4450 = vsel %vm1599, %v4442, %v4434
        %v4452 = vlaneseq
        %v4453 = vshrl.u32 %v4452, 7
        %v4454 = vsub.s32 0, %v4453
        %v4455 = vrot.slane %v4426, %v4454
        %v4456 = vlaneseq
        %v4457 = vshrl.u32 %v4456, 7
        %v4458 = vsub.s32 1, %v4457
        %v4459 = vrot.slane %v4426, %v4458
        %v4462 = vmul.f32 %v4455, %v4443
        %v4463 = vmul.f32 %v4459, %v4447
        %v4464 = vmul.f32 %v4455, %v4444
        %v4465 = vmul.f32 %v4459, %v4448
        %v4466 = vmul.f32 %v4455, %v4445
        %v4467 = vmul.f32 %v4459, %v4449
        %v4468 = vmul.f32 %v4455, %v4446
        %v4469 = vmul.f32 %v4459, %v4450
        %4470 = vst [vmem:[#allocation5 + $0x1c0] sm:$0xff] %v4462
        %4471 = vst [vmem:[#allocation5 + $0x1c8] sm:$0xff] %v4463
        %4472 = vst [vmem:[#allocation5 + $0x1d0] sm:$0xff] %v4464
        %4473 = vst [vmem:[#allocation5 + $0x1d8] sm:$0xff] %v4465
        %4474 = vst [vmem:[#allocation5 + $0x1e0] sm:$0xff] %v4466
        %4475 = vst [vmem:[#allocation5 + $0x1e8] sm:$0xff] %v4467
        %4476 = vst [vmem:[#allocation5 + $0x1f0] sm:$0xff] %v4468
        %4477 = vst [vmem:[#allocation5 + $0x1f8] sm:$0xff] %v4469
        %v4478 = vld [vmem:[%s1621] ss:$8 sm:$0x3]
        %4479 = vrot.lane.b32.xlu0 %v4098, 111
        %v4480 = vpop.permute.xlu0 %4479
        %4481 = vrot.lane.b32.xlu0 %v4100, 111
        %v4482 = vpop.permute.xlu0 %4481
        %4483 = vrot.lane.b32.xlu0 %v4102, 111
        %v4484 = vpop.permute.xlu0 %4483
        %4485 = vrot.lane.b32.xlu0 %v4104, 111
        %v4486 = vpop.permute.xlu0 %4485
        %4487 = vrot.lane.b32.xlu0 %v4099, 111
        %v4488 = vpop.permute.xlu0 %4487
        %4489 = vrot.lane.b32.xlu0 %v4101, 111
        %v4490 = vpop.permute.xlu0 %4489
        %4491 = vrot.lane.b32.xlu0 %v4103, 111
        %v4492 = vpop.permute.xlu0 %4491
        %4493 = vrot.lane.b32.xlu0 %v4105, 111
        %v4494 = vpop.permute.xlu0 %4493
        %v4495 = vsel %vm1623, %v4480, %v4488
        %v4496 = vsel %vm1623, %v4482, %v4490
        %v4497 = vsel %vm1623, %v4484, %v4492
        %v4498 = vsel %vm1623, %v4486, %v4494
        %v4499 = vsel %vm1623, %v4488, %v4480
        %v4500 = vsel %vm1623, %v4490, %v4482
        %v4501 = vsel %vm1623, %v4492, %v4484
        %v4502 = vsel %vm1623, %v4494, %v4486
        %v4504 = vlaneseq
        %v4505 = vshrl.u32 %v4504, 7
        %v4506 = vsub.s32 0, %v4505
        %v4507 = vrot.slane %v4478, %v4506
        %v4508 = vlaneseq
        %v4509 = vshrl.u32 %v4508, 7
        %v4510 = vsub.s32 1, %v4509
        %v4511 = vrot.slane %v4478, %v4510
        %v4514 = vmul.f32 %v4507, %v4495
        %v4515 = vmul.f32 %v4511, %v4499
        %v4516 = vmul.f32 %v4507, %v4496
        %v4517 = vmul.f32 %v4511, %v4500
        %v4518 = vmul.f32 %v4507, %v4497
        %v4519 = vmul.f32 %v4511, %v4501
        %v4520 = vmul.f32 %v4507, %v4498
        %v4521 = vmul.f32 %v4511, %v4502
        %4522 = vst [vmem:[#allocation5 + $0x200] sm:$0xff] %v4514
        %4523 = vst [vmem:[#allocation5 + $0x208] sm:$0xff] %v4515
        %4524 = vst [vmem:[#allocation5 + $0x210] sm:$0xff] %v4516
        %4525 = vst [vmem:[#allocation5 + $0x218] sm:$0xff] %v4517
        %4526 = vst [vmem:[#allocation5 + $0x220] sm:$0xff] %v4518
        %4527 = vst [vmem:[#allocation5 + $0x228] sm:$0xff] %v4519
        %4528 = vst [vmem:[#allocation5 + $0x230] sm:$0xff] %v4520
        %4529 = vst [vmem:[#allocation5 + $0x238] sm:$0xff] %v4521
        %s4530 = scalar_lea.vmem %s11, 6
        %v4531 = vld [vmem:[%s4530] sm:$0x3f]
        %v4532 = vld [vmem:[#allocation5] sm:$0xff]
        %v4533 = vld [vmem:[#allocation5 + $0x8] sm:$0xff]
        %v4534 = vld [vmem:[#allocation5 + $0x10] sm:$0xff]
        %v4535 = vld [vmem:[#allocation5 + $0x18] sm:$0xff]
        %v4536 = vld [vmem:[#allocation5 + $0x20] sm:$0xff]
        %v4537 = vld [vmem:[#allocation5 + $0x28] sm:$0xff]
        %v4538 = vld [vmem:[#allocation5 + $0x30] sm:$0xff]
        %v4539 = vld [vmem:[#allocation5 + $0x38] sm:$0xff]
        %v4540 = vld [vmem:[#allocation5 + $0x40] sm:$0xff]
        %v4541 = vld [vmem:[#allocation5 + $0x48] sm:$0xff]
        %v4542 = vld [vmem:[#allocation5 + $0x50] sm:$0xff]
        %v4543 = vld [vmem:[#allocation5 + $0x58] sm:$0xff]
        %v4544 = vld [vmem:[#allocation5 + $0x60] sm:$0xff]
        %v4545 = vld [vmem:[#allocation5 + $0x68] sm:$0xff]
        %v4546 = vld [vmem:[#allocation5 + $0x70] sm:$0xff]
        %v4547 = vld [vmem:[#allocation5 + $0x78] sm:$0xff]
        %v4548 = vld [vmem:[#allocation5 + $0x80] sm:$0xff]
        %v4549 = vld [vmem:[#allocation5 + $0x88] sm:$0xff]
        %v4550 = vld [vmem:[#allocation5 + $0x90] sm:$0xff]
        %v4551 = vld [vmem:[#allocation5 + $0x98] sm:$0xff]
        %v4552 = vld [vmem:[#allocation5 + $0xa0] sm:$0xff]
        %v4553 = vld [vmem:[#allocation5 + $0xa8] sm:$0xff]
        %v4554 = vld [vmem:[#allocation5 + $0xb0] sm:$0xff]
        %v4555 = vld [vmem:[#allocation5 + $0xb8] sm:$0xff]
        %v4556 = vld [vmem:[#allocation5 + $0xc0] sm:$0xff]
        %v4557 = vld [vmem:[#allocation5 + $0xc8] sm:$0xff]
        %v4558 = vld [vmem:[#allocation5 + $0xd0] sm:$0xff]
        %v4559 = vld [vmem:[#allocation5 + $0xd8] sm:$0xff]
        %v4560 = vld [vmem:[#allocation5 + $0xe0] sm:$0xff]
        %v4561 = vld [vmem:[#allocation5 + $0xe8] sm:$0xff]
        %v4562 = vld [vmem:[#allocation5 + $0xf0] sm:$0xff]
        %v4563 = vld [vmem:[#allocation5 + $0xf8] sm:$0xff]
        %v4564 = vld [vmem:[#allocation5 + $0x100] sm:$0xff]
        %v4565 = vld [vmem:[#allocation5 + $0x108] sm:$0xff]
        %v4566 = vld [vmem:[#allocation5 + $0x110] sm:$0xff]
        %v4567 = vld [vmem:[#allocation5 + $0x118] sm:$0xff]
        %v4568 = vld [vmem:[#allocation5 + $0x120] sm:$0xff]
        %v4569 = vld [vmem:[#allocation5 + $0x128] sm:$0xff]
        %v4570 = vld [vmem:[#allocation5 + $0x130] sm:$0xff]
        %v4571 = vld [vmem:[#allocation5 + $0x138] sm:$0xff]
        %v4572 = vld [vmem:[#allocation5 + $0x140] sm:$0xff]
        %v4573 = vld [vmem:[#allocation5 + $0x148] sm:$0xff]
        %v4574 = vld [vmem:[#allocation5 + $0x150] sm:$0xff]
        %v4575 = vld [vmem:[#allocation5 + $0x158] sm:$0xff]
        %v4576 = vld [vmem:[#allocation5 + $0x160] sm:$0xff]
        %v4577 = vld [vmem:[#allocation5 + $0x168] sm:$0xff]
        %v4578 = vld [vmem:[#allocation5 + $0x170] sm:$0xff]
        %v4579 = vld [vmem:[#allocation5 + $0x178] sm:$0xff]
        %v4580 = vld [vmem:[#allocation5 + $0x180] sm:$0xff]
        %v4581 = vld [vmem:[#allocation5 + $0x188] sm:$0xff]
        %v4582 = vld [vmem:[#allocation5 + $0x190] sm:$0xff]
        %v4583 = vld [vmem:[#allocation5 + $0x198] sm:$0xff]
        %v4584 = vld [vmem:[#allocation5 + $0x1a0] sm:$0xff]
        %v4585 = vld [vmem:[#allocation5 + $0x1a8] sm:$0xff]
        %v4586 = vld [vmem:[#allocation5 + $0x1b0] sm:$0xff]
        %v4587 = vld [vmem:[#allocation5 + $0x1b8] sm:$0xff]
        %v4588 = vld [vmem:[#allocation5 + $0x1c0] sm:$0xff]
        %v4589 = vld [vmem:[#allocation5 + $0x1c8] sm:$0xff]
        %v4590 = vld [vmem:[#allocation5 + $0x1d0] sm:$0xff]
        %v4591 = vld [vmem:[#allocation5 + $0x1d8] sm:$0xff]
        %v4592 = vld [vmem:[#allocation5 + $0x1e0] sm:$0xff]
        %v4593 = vld [vmem:[#allocation5 + $0x1e8] sm:$0xff]
        %v4594 = vld [vmem:[#allocation5 + $0x1f0] sm:$0xff]
        %v4595 = vld [vmem:[#allocation5 + $0x1f8] sm:$0xff]
        %v4596 = vld [vmem:[#allocation5 + $0x200] sm:$0xff]
        %v4597 = vld [vmem:[#allocation5 + $0x208] sm:$0xff]
        %v4598 = vld [vmem:[#allocation5 + $0x210] sm:$0xff]
        %v4599 = vld [vmem:[#allocation5 + $0x218] sm:$0xff]
        %v4600 = vld [vmem:[#allocation5 + $0x220] sm:$0xff]
        %v4601 = vld [vmem:[#allocation5 + $0x228] sm:$0xff]
        %v4602 = vld [vmem:[#allocation5 + $0x230] sm:$0xff]
        %v4603 = vld [vmem:[#allocation5 + $0x238] sm:$0xff]
        %v4605 = vcombine.high %v4531, %v4531
        %v4607 = vunpack.c.l.s4 1983009808
        %v4608 = vunpack.c.0.s8 %v4607
        %v4609 = vlaneseq
        %v4610 = vshrl.u32 %v4609, 7
        %v4611 = vsub.s32 %v4608, %v4610
        %v4612 = vrot.slane %v4531, %v4611
        %v4614 = vunpack.c.l.s4 1983009808
        %v4615 = vunpack.c.0.s8 %v4614
        %v4616 = vlaneseq
        %v4617 = vshrl.u32 %v4616, 7
        %v4618 = vsub.s32 %v4615, %v4617
        %v4619 = vrot.slane %v4605, %v4618
        %v4620 = vcombine.high %v4612, %v4612
        %v4623 = vsel %vm1242, %v4619, 0
        %4625 = vmatprep.subr.mxu0 %v4563
        %4626 = vmatpush1.msra.mxu0 %v4562
        %4627 = vmatprep.subr.mxu0 %v4561
        %4628 = vmatpush1.msra.mxu0 %v4560
        %4629 = vmatprep.subr.mxu0 %v4559
        %4630 = vmatpush1.msra.mxu0 %v4558
        %4631 = vmatprep.subr.mxu0 %v4557
        %4632 = vmatpush1.msra.mxu0 %v4556
        %4633 = vmatprep.subr.mxu0 %v4555
        %4634 = vmatpush1.msra.mxu0 %v4554
        %4635 = vmatprep.subr.mxu0 %v4553
        %4636 = vmatpush1.msra.mxu0 %v4552
        %4637 = vmatprep.subr.mxu0 %v4551
        %4638 = vmatpush1.msra.mxu0 %v4550
        %4639 = vmatprep.subr.mxu0 %v4549
        %4640 = vmatpush1.msra.mxu0 %v4548
        %4641 = vmatprep.subr.mxu0 %v4547
        %4642 = vmatpush1.msra.mxu0 %v4546
        %4643 = vmatprep.subr.mxu0 %v4545
        %4644 = vmatpush1.msra.mxu0 %v4544
        %4645 = vmatprep.subr.mxu0 %v4543
        %4646 = vmatpush1.msra.mxu0 %v4542
        %4647 = vmatprep.subr.mxu0 %v4541
        %4648 = vmatpush1.msra.mxu0 %v4540
        %4649 = vmatprep.subr.mxu0 %v4539
        %4650 = vmatpush1.msra.mxu0 %v4538
        %4651 = vmatprep.subr.mxu0 %v4537
        %4652 = vmatpush1.msra.mxu0 %v4536
        %4653 = vmatprep.subr.mxu0 %v4535
        %4654 = vmatpush1.msra.mxu0 %v4534
        %4655 = vmatprep.subr.mxu0 %v4533
        %4656 = vmatpush1.msra.mxu0 %v4532
        %4657 = vmatprep.subr.mxu0 %v4595
        %4658 = vmatpush2.msra.mxu0 %v4594
        %4659 = vmatprep.subr.mxu0 %v4593
        %4660 = vmatpush2.msra.mxu0 %v4592
        %4661 = vmatprep.subr.mxu0 %v4591
        %4662 = vmatpush2.msra.mxu0 %v4590
        %4663 = vmatprep.subr.mxu0 %v4589
        %4664 = vmatpush2.msra.mxu0 %v4588
        %4665 = vmatprep.subr.mxu0 %v4587
        %4666 = vmatpush2.msra.mxu0 %v4586
        %4667 = vmatprep.subr.mxu0 %v4585
        %4668 = vmatpush2.msra.mxu0 %v4584
        %4669 = vmatprep.subr.mxu0 %v4583
        %4670 = vmatpush2.msra.mxu0 %v4582
        %4671 = vmatprep.subr.mxu0 %v4581
        %4672 = vmatpush2.msra.mxu0 %v4580
        %4673 = vmatprep.subr.mxu0 %v4579
        %4674 = vmatpush2.msra.mxu0 %v4578
        %4675 = vmatprep.subr.mxu0 %v4577
        %4676 = vmatpush2.msra.mxu0 %v4576
        %4677 = vmatprep.subr.mxu0 %v4575
        %4678 = vmatpush2.msra.mxu0 %v4574
        %4679 = vmatprep.subr.mxu0 %v4573
        %4680 = vmatpush2.msra.mxu0 %v4572
        %4681 = vmatprep.subr.mxu0 %v4571
        %4682 = vmatpush2.msra.mxu0 %v4570
        %4683 = vmatprep.subr.mxu0 %v4569
        %4684 = vmatpush2.msra.mxu0 %v4568
        %4685 = vmatprep.subr.mxu0 %v4567
        %4686 = vmatpush2.msra.mxu0 %v4566
        %4687 = vmatprep.subr.mxu0 %v4565
        %4688 = vmatpush2.msra.mxu0 %v4564
        %4689 = vmatprep.mubr.f32.mxu0 %v4620
        %4690 = vmatmul.mubr.f32.gmra.mxu0 %v4612
        %v4691 = vpop.f32.mrf.mxu0
        %v4692 = vadd.f32 0.0, %v4691
        %v4693 = vpop.f32.mrf.mxu0
        %v4694 = vadd.f32 0.0, %v4693
        %4695 = vdwg.mxu0
        %4696 = vmatprep.subr.mxu0 0.0
        %4697 = vmatpush1.msra.mxu0 0.0
        %4698 = vmatprep.subr.mxu0 0.0
        %4699 = vmatpush1.msra.mxu0 0.0
        %4700 = vmatprep.subr.mxu0 0.0
        %4701 = vmatpush1.msra.mxu0 0.0
        %4702 = vmatprep.subr.mxu0 0.0
        %4703 = vmatpush1.msra.mxu0 0.0
        %4704 = vmatprep.subr.mxu0 0.0
        %4705 = vmatpush1.msra.mxu0 0.0
        %4706 = vmatprep.subr.mxu0 0.0
        %4707 = vmatpush1.msra.mxu0 0.0
        %4708 = vmatprep.subr.mxu0 0.0
        %4709 = vmatpush1.msra.mxu0 0.0
        %4710 = vmatprep.subr.mxu0 0.0
        %4711 = vmatpush1.msra.mxu0 0.0
        %4712 = vmatprep.subr.mxu0 0.0
        %4713 = vmatpush1.msra.mxu0 0.0
        %4714 = vmatprep.subr.mxu0 0.0
        %4715 = vmatpush1.msra.mxu0 0.0
        %4716 = vmatprep.subr.mxu0 0.0
        %4717 = vmatpush1.msra.mxu0 0.0
        %4718 = vmatprep.subr.mxu0 0.0
        %4719 = vmatpush1.msra.mxu0 0.0
        %4720 = vmatprep.subr.mxu0 %v4603
        %4721 = vmatpush1.msra.mxu0 %v4602
        %4722 = vmatprep.subr.mxu0 %v4601
        %4723 = vmatpush1.msra.mxu0 %v4600
        %4724 = vmatprep.subr.mxu0 %v4599
        %4725 = vmatpush1.msra.mxu0 %v4598
        %4726 = vmatprep.subr.mxu0 %v4597
        %4727 = vmatpush1.msra.mxu0 %v4596
        %4728 = vmatprep.subr.mxu0 0.0
        %4729 = vmatpush2.msra.mxu0 0.0
        %4730 = vmatprep.subr.mxu0 0.0
        %4731 = vmatpush2.msra.mxu0 0.0
        %4732 = vmatprep.subr.mxu0 0.0
        %4733 = vmatpush2.msra.mxu0 0.0
        %4734 = vmatprep.subr.mxu0 0.0
        %4735 = vmatpush2.msra.mxu0 0.0
        %4736 = vmatprep.subr.mxu0 0.0
        %4737 = vmatpush2.msra.mxu0 0.0
        %4738 = vmatprep.subr.mxu0 0.0
        %4739 = vmatpush2.msra.mxu0 0.0
        %4740 = vmatprep.subr.mxu0 0.0
        %4741 = vmatpush2.msra.mxu0 0.0
        %4742 = vmatprep.subr.mxu0 0.0
        %4743 = vmatpush2.msra.mxu0 0.0
        %4744 = vmatprep.subr.mxu0 0.0
        %4745 = vmatpush2.msra.mxu0 0.0
        %4746 = vmatprep.subr.mxu0 0.0
        %4747 = vmatpush2.msra.mxu0 0.0
        %4748 = vmatprep.subr.mxu0 0.0
        %4749 = vmatpush2.msra.mxu0 0.0
        %4750 = vmatprep.subr.mxu0 0.0
        %4751 = vmatpush2.msra.mxu0 0.0
        %4752 = vmatprep.subr.mxu0 0.0
        %4753 = vmatpush2.msra.mxu0 0.0
        %4754 = vmatprep.subr.mxu0 0.0
        %4755 = vmatpush2.msra.mxu0 0.0
        %4756 = vmatprep.subr.mxu0 0.0
        %4757 = vmatpush2.msra.mxu0 0.0
        %4758 = vmatprep.subr.mxu0 0.0
        %4759 = vmatpush2.msra.mxu0 0.0
        %4760 = vmatprep.mubr.f32.mxu0 0.0
        %4761 = vmatmul.mubr.f32.gmra.mxu0 %v4623
        %v4762 = vpop.f32.mrf.mxu0
        %v4763 = vadd.f32 %v4692, %v4762
        %v4764 = vpop.f32.mrf.mxu0
        %v4765 = vadd.f32 %v4694, %v4764
        %4766 = vdwg.mxu0
        %v4767 = vadd.f32 %v2711, %v4763
        %v4768 = vadd.f32 %v2713, %v4765
        %s4769 = scalar_lea.vmem [#allocation20], 2
        %v4770 = vld [vmem:[%s4769] sm:$0x3]
        %4772 = vset.pattern.permute.xlu0 0
        %4773 = vperm.xlu0 %4772, %v4770
        %v4774 = vpop.permute.xlu0 %4773
        %v4776 = vadd.f32 %v4767, %v4774
        %v4777 = vadd.f32 %v4768, %v4774
        %v4780 = vrot.slane %v4776, 1
        %v4781 = vrot.slane %v4777, 1
        %4784 = vmatprep.subr.mxu0 0.0
        %4785 = vmatpush1.msra.mxu0 %v595
        %4786 = vmatprep.subr.mxu0 0.0
        %4787 = vmatpush1.msra.mxu0 %v594
        %4788 = vmatprep.subr.mxu0 0.0
        %4789 = vmatpush1.msra.mxu0 %v593
        %4790 = vmatprep.subr.mxu0 0.0
        %4791 = vmatpush1.msra.mxu0 %v592
        %4792 = vmatprep.subr.mxu0 0.0
        %4793 = vmatpush1.msra.mxu0 %v591
        %4794 = vmatprep.subr.mxu0 0.0
        %4795 = vmatpush1.msra.mxu0 %v590
        %4796 = vmatprep.subr.mxu0 0.0
        %4797 = vmatpush1.msra.mxu0 %v589
        %4798 = vmatprep.subr.mxu0 0.0
        %4799 = vmatpush1.msra.mxu0 %v588
        %4800 = vmatprep.subr.mxu0 0.0
        %4801 = vmatpush1.msra.mxu0 %v587
        %4802 = vmatprep.subr.mxu0 0.0
        %4803 = vmatpush1.msra.mxu0 %v586
        %4804 = vmatprep.subr.mxu0 0.0
        %4805 = vmatpush1.msra.mxu0 %v585
        %4806 = vmatprep.subr.mxu0 0.0
        %4807 = vmatpush1.msra.mxu0 %v584
        %4808 = vmatprep.subr.mxu0 0.0
        %4809 = vmatpush1.msra.mxu0 %v583
        %4810 = vmatprep.subr.mxu0 0.0
        %4811 = vmatpush1.msra.mxu0 %v582
        %4812 = vmatprep.subr.mxu0 0.0
        %4813 = vmatpush1.msra.mxu0 %v581
        %4814 = vmatprep.subr.mxu0 0.0
        %4815 = vmatpush1.msra.mxu0 %v580
        %4816 = vmatprep.subr.mxu0 0.0
        %4817 = vmatpush2.msra.mxu0 %v611
        %4818 = vmatprep.subr.mxu0 0.0
        %4819 = vmatpush2.msra.mxu0 %v610
        %4820 = vmatprep.subr.mxu0 0.0
        %4821 = vmatpush2.msra.mxu0 %v609
        %4822 = vmatprep.subr.mxu0 0.0
        %4823 = vmatpush2.msra.mxu0 %v608
        %4824 = vmatprep.subr.mxu0 0.0
        %4825 = vmatpush2.msra.mxu0 %v607
        %4826 = vmatprep.subr.mxu0 0.0
        %4827 = vmatpush2.msra.mxu0 %v606
        %4828 = vmatprep.subr.mxu0 0.0
        %4829 = vmatpush2.msra.mxu0 %v605
        %4830 = vmatprep.subr.mxu0 0.0
        %4831 = vmatpush2.msra.mxu0 %v604
        %4832 = vmatprep.subr.mxu0 0.0
        %4833 = vmatpush2.msra.mxu0 %v603
        %4834 = vmatprep.subr.mxu0 0.0
        %4835 = vmatpush2.msra.mxu0 %v602
        %4836 = vmatprep.subr.mxu0 0.0
        %4837 = vmatpush2.msra.mxu0 %v601
        %4838 = vmatprep.subr.mxu0 0.0
        %4839 = vmatpush2.msra.mxu0 %v600
        %4840 = vmatprep.subr.mxu0 0.0
        %4841 = vmatpush2.msra.mxu0 %v599
        %4842 = vmatprep.subr.mxu0 0.0
        %4843 = vmatpush2.msra.mxu0 %v598
        %4844 = vmatprep.subr.mxu0 0.0
        %4845 = vmatpush2.msra.mxu0 %v597
        %4846 = vmatprep.subr.mxu0 0.0
        %4847 = vmatpush2.msra.mxu0 %v596
        %4848 = vmatprep.mubr.f32.mxu0 %v4781
        %4849 = vmatmul.mubr.f32.gmra.mxu0 %v4780
        %v4850 = vpop.f32.mrf.mxu0
        %v4851 = vadd.f32 0.0, %v4850
        %v4852 = vpop.f32.mrf.mxu0
        %4853 = vdwg.mxu0
        %v4854 = vld [vmem:[#allocation10] sm:$0x1]
        %4855 = vrot.lane.b32.xlu0 %v3423, 17
        %v4856 = vpop.permute.xlu0 %4855
        %v4857 = vlaneseq
        %v4858 = vshrl.u32 %v4857, 7
        %v4859 = vsub.s32 0, %v4858
        %v4860 = vrot.slane %v4854, %v4859
        %v4861 = vmul.f32 %v4860, %v4856
        %4862 = vst [vmem:[#allocation2] sm:$0x3] %v4861
        %v4863 = vld [vmem:[#allocation10 + $0x1] sm:$0x1]
        %4864 = vrot.lane.b32.xlu0 %v3423, 16
        %v4865 = vpop.permute.xlu0 %4864
        %v4866 = vlaneseq
        %v4867 = vshrl.u32 %v4866, 7
        %v4868 = vsub.s32 0, %v4867
        %v4869 = vrot.slane %v4863, %v4868
        %v4870 = vmul.f32 %v4869, %v4865
        %4871 = vst [vmem:[#allocation2 + $0x2] sm:$0x3] %v4870
        %v4872 = vld [vmem:[#allocation10 + $0x2] sm:$0x1]
        %4873 = vrot.lane.b32.xlu0 %v3423, 15
        %v4874 = vpop.permute.xlu0 %4873
        %v4875 = vlaneseq
        %v4876 = vshrl.u32 %v4875, 7
        %v4877 = vsub.s32 0, %v4876
        %v4878 = vrot.slane %v4872, %v4877
        %v4879 = vmul.f32 %v4878, %v4874
        %4880 = vst [vmem:[#allocation2 + $0x4] sm:$0x3] %v4879
        %v4881 = vld [vmem:[#allocation10 + $0x3] sm:$0x1]
        %4882 = vrot.lane.b32.xlu0 %v3423, 1
        %v4883 = vpop.permute.xlu0 %4882
        %v4884 = vlaneseq
        %v4885 = vshrl.u32 %v4884, 7
        %v4886 = vsub.s32 0, %v4885
        %v4887 = vrot.slane %v4881, %v4886
        %v4888 = vmul.f32 %v4887, %v4883
        %4889 = vst [vmem:[#allocation2 + $0x6] sm:$0x3] %v4888
        %4890 = vst [vmem:[#allocation2 + $0x8] sm:$0x3] %v3423
        %v4891 = vld [vmem:[#allocation10 + $0x5] sm:$0x1]
        %4892 = vrot.lane.b32.xlu0 %v3423, 127
        %v4893 = vpop.permute.xlu0 %4892
        %v4894 = vlaneseq
        %v4895 = vshrl.u32 %v4894, 7
        %v4896 = vsub.s32 0, %v4895
        %v4897 = vrot.slane %v4891, %v4896
        %v4898 = vmul.f32 %v4897, %v4893
        %4899 = vst [vmem:[#allocation2 + $0xa] sm:$0x3] %v4898
        %v4900 = vld [vmem:[#allocation10 + $0x6] sm:$0x1]
        %4901 = vrot.lane.b32.xlu0 %v3423, 113
        %v4902 = vpop.permute.xlu0 %4901
        %v4903 = vlaneseq
        %v4904 = vshrl.u32 %v4903, 7
        %v4905 = vsub.s32 0, %v4904
        %v4906 = vrot.slane %v4900, %v4905
        %v4907 = vmul.f32 %v4906, %v4902
        %4908 = vst [vmem:[#allocation2 + $0xc] sm:$0x3] %v4907
        %v4909 = vld [vmem:[#allocation10 + $0x7] sm:$0x1]
        %4910 = vrot.lane.b32.xlu0 %v3423, 112
        %v4911 = vpop.permute.xlu0 %4910
        %v4912 = vlaneseq
        %v4913 = vshrl.u32 %v4912, 7
        %v4914 = vsub.s32 0, %v4913
        %v4915 = vrot.slane %v4909, %v4914
        %v4916 = vmul.f32 %v4915, %v4911
        %4917 = vst [vmem:[#allocation2 + $0xe] sm:$0x3] %v4916
        %v4918 = vld [vmem:[#allocation10 + $0x8] sm:$0x1]
        %4919 = vrot.lane.b32.xlu0 %v3423, 111
        %v4920 = vpop.permute.xlu0 %4919
        %v4921 = vlaneseq
        %v4922 = vshrl.u32 %v4921, 7
        %v4923 = vsub.s32 0, %v4922
        %v4924 = vrot.slane %v4918, %v4923
        %v4925 = vmul.f32 %v4924, %v4920
        %4926 = vst [vmem:[#allocation2 + $0x10] sm:$0x3] %v4925
        %v4927 = vld [vmem:[#allocation10] sm:$0x1]
        %4928 = vrot.lane.b32.xlu0 %v4851, 17
        %v4929 = vpop.permute.xlu0 %4928
        %v4930 = vmul.f32 %v4927, %v4929
        %4931 = vst [vmem:[#allocation2 + $0x12] sm:$0x1] %v4930
        %v4932 = vld [vmem:[#allocation10 + $0x1] sm:$0x1]
        %4933 = vrot.lane.b32.xlu0 %v4851, 16
        %v4934 = vpop.permute.xlu0 %4933
        %v4935 = vmul.f32 %v4932, %v4934
        %4936 = vst [vmem:[#allocation2 + $0x13] sm:$0x1] %v4935
        %v4937 = vld [vmem:[#allocation10 + $0x2] sm:$0x1]
        %4938 = vrot.lane.b32.xlu0 %v4851, 15
        %v4939 = vpop.permute.xlu0 %4938
        %v4940 = vmul.f32 %v4937, %v4939
        %4941 = vst [vmem:[#allocation2 + $0x14] sm:$0x1] %v4940
        %v4942 = vld [vmem:[#allocation10 + $0x3] sm:$0x1]
        %4943 = vrot.lane.b32.xlu0 %v4851, 1
        %v4944 = vpop.permute.xlu0 %4943
        %v4945 = vmul.f32 %v4942, %v4944
        %4946 = vst [vmem:[#allocation2 + $0x15] sm:$0x1] %v4945
        %4947 = vst [vmem:[#allocation2 + $0x16] sm:$0x1] %v4851
        %v4948 = vld [vmem:[#allocation10 + $0x5] sm:$0x1]
        %4949 = vrot.lane.b32.xlu0 %v4851, 127
        %v4950 = vpop.permute.xlu0 %4949
        %v4951 = vmul.f32 %v4948, %v4950
        %4952 = vst [vmem:[#allocation2 + $0x17] sm:$0x1] %v4951
        %v4953 = vld [vmem:[#allocation10 + $0x6] sm:$0x1]
        %4954 = vrot.lane.b32.xlu0 %v4851, 113
        %v4955 = vpop.permute.xlu0 %4954
        %v4956 = vmul.f32 %v4953, %v4955
        %4957 = vst [vmem:[#allocation2 + $0x18] sm:$0x1] %v4956
        %v4958 = vld [vmem:[#allocation10 + $0x7] sm:$0x1]
        %4959 = vrot.lane.b32.xlu0 %v4851, 112
        %v4960 = vpop.permute.xlu0 %4959
        %v4961 = vmul.f32 %v4958, %v4960
        %4962 = vst [vmem:[#allocation2 + $0x19] sm:$0x1] %v4961
        %v4963 = vld [vmem:[#allocation10 + $0x8] sm:$0x1]
        %4964 = vrot.lane.b32.xlu0 %v4851, 111
        %v4965 = vpop.permute.xlu0 %4964
        %v4966 = vmul.f32 %v4963, %v4965
        %4967 = vst [vmem:[#allocation2 + $0x1a] sm:$0x1] %v4966
        %s4968 = scalar_lea.vmem [#allocation13], 64
        %v4969 = vld [vmem:[%s4968] sm:$0xff]
        %v4970 = vld [vmem:[%s4968 + $0x8] sm:$0xff]
        %v4971 = vld [vmem:[%s4968 + $0x10] sm:$0xff]
        %v4972 = vld [vmem:[%s4968 + $0x18] sm:$0xff]
        %v4973 = vld [vmem:[#allocation2] sm:$0xff]
        %v4974 = vld [vmem:[#allocation2 + $0x8] sm:$0xff]
        %v4975 = vld [vmem:[#allocation2 + $0x10] sm:$0xff]
        %v4976 = vld [vmem:[#allocation2 + $0x18] sm:$0xff]
        %v4977 = vld [vmem:[#allocation2 + $0x20] sm:$0xf]
        %s4978 = scalar_lea.vmem [#allocation14], 64
        %v4979 = vld [vmem:[%s4978] sm:$0xff]
        %v4980 = vld [vmem:[%s4978 + $0x8] sm:$0xff]
        %v4981 = vld [vmem:[%s4978 + $0x10] sm:$0xff]
        %v4982 = vld [vmem:[%s4978 + $0x18] sm:$0xff]
        %4984 = vset.pattern.permute.xlu0 0
        %4985 = vperm.xlu0 %4984, %v4979
        %v4986 = vpop.permute.xlu0 %4985
        %4989 = vset.pattern.permute.xlu0 0
        %4990 = vperm.xlu0 %4989, %v4980
        %v4991 = vpop.permute.xlu0 %4990
        %4994 = vset.pattern.permute.xlu0 0
        %4995 = vperm.xlu0 %4994, %v4981
        %v4996 = vpop.permute.xlu0 %4995
        %4999 = vset.pattern.permute.xlu0 0
        %5000 = vperm.xlu0 %4999, %v4982
        %v5001 = vpop.permute.xlu0 %5000
        %v5004 = vsel %vm902, %v4969, 0
        %v5007 = vsel %vm902, %v4970, 0
        %v5010 = vsel %vm902, %v4971, 0
        %v5013 = vsel %vm902, %v4972, 0
        %v5016 = vsel %vm915, %v4977, 0
        %5018 = vmatprep.subr.mxu0 0.0
        %5019 = vmatpush1.msra.mxu0 0.0
        %5020 = vmatprep.subr.mxu0 0.0
        %5021 = vmatpush1.msra.mxu0 0.0
        %5022 = vmatprep.subr.mxu0 0.0
        %5023 = vmatpush1.msra.mxu0 0.0
        %5024 = vmatprep.subr.mxu0 0.0
        %5025 = vmatpush1.msra.mxu0 0.0
        %5026 = vmatprep.subr.mxu0 0.0
        %5027 = vmatpush1.msra.mxu0 0.0
        %5028 = vmatprep.subr.mxu0 0.0
        %5029 = vmatpush1.msra.mxu0 0.0
        %5030 = vmatprep.subr.mxu0 0.0
        %5031 = vmatpush1.msra.mxu0 0.0
        %5032 = vmatprep.subr.mxu0 0.0
        %5033 = vmatpush1.msra.mxu0 0.0
        %5034 = vmatprep.subr.mxu0 0.0
        %5035 = vmatpush1.msra.mxu0 0.0
        %5036 = vmatprep.subr.mxu0 0.0
        %5037 = vmatpush1.msra.mxu0 0.0
        %5038 = vmatprep.subr.mxu0 0.0
        %5039 = vmatpush1.msra.mxu0 0.0
        %5040 = vmatprep.subr.mxu0 0.0
        %5041 = vmatpush1.msra.mxu0 %v5016
        %5042 = vmatprep.subr.mxu0 0.0
        %5043 = vmatpush1.msra.mxu0 %v4976
        %5044 = vmatprep.subr.mxu0 0.0
        %5045 = vmatpush1.msra.mxu0 %v4975
        %5046 = vmatprep.subr.mxu0 0.0
        %5047 = vmatpush1.msra.mxu0 %v4974
        %5048 = vmatprep.subr.mxu0 0.0
        %5049 = vmatpush1.msra.mxu0 %v4973
        %5050 = vmatprep.subr.mxu0 0.0
        %5051 = vmatpush2.msra.mxu0 0.0
        %5052 = vmatprep.subr.mxu0 0.0
        %5053 = vmatpush2.msra.mxu0 0.0
        %5054 = vmatprep.subr.mxu0 0.0
        %5055 = vmatpush2.msra.mxu0 0.0
        %5056 = vmatprep.subr.mxu0 0.0
        %5057 = vmatpush2.msra.mxu0 0.0
        %5058 = vmatprep.subr.mxu0 0.0
        %5059 = vmatpush2.msra.mxu0 0.0
        %5060 = vmatprep.subr.mxu0 0.0
        %5061 = vmatpush2.msra.mxu0 0.0
        %5062 = vmatprep.subr.mxu0 0.0
        %5063 = vmatpush2.msra.mxu0 0.0
        %5064 = vmatprep.subr.mxu0 0.0
        %5065 = vmatpush2.msra.mxu0 0.0
        %5066 = vmatprep.subr.mxu0 0.0
        %5067 = vmatpush2.msra.mxu0 0.0
        %5068 = vmatprep.subr.mxu0 0.0
        %5069 = vmatpush2.msra.mxu0 0.0
        %5070 = vmatprep.subr.mxu0 0.0
        %5071 = vmatpush2.msra.mxu0 0.0
        %5072 = vmatprep.subr.mxu0 0.0
        %5073 = vmatpush2.msra.mxu0 0.0
        %5074 = vmatprep.subr.mxu0 0.0
        %5075 = vmatpush2.msra.mxu0 0.0
        %5076 = vmatprep.subr.mxu0 0.0
        %5077 = vmatpush2.msra.mxu0 0.0
        %5078 = vmatprep.subr.mxu0 0.0
        %5079 = vmatpush2.msra.mxu0 0.0
        %5080 = vmatprep.subr.mxu0 0.0
        %5081 = vmatpush2.msra.mxu0 0.0
        %5082 = vmatprep.mubr.f32.mxu0 0.0
        %5083 = vmatmul.mubr.f32.gmra.mxu0 %v5004
        %v5084 = vpop.f32.mrf.mxu0
        %v5085 = vadd.f32 %v4986, %v5084
        %v5086 = vpop.f32.mrf.mxu0
        %5087 = vmatprep.mubr.f32.mxu0 0.0
        %5088 = vmatmul.mubr.f32.gmra.mxu0 %v5007
        %v5089 = vpop.f32.mrf.mxu0
        %v5090 = vadd.f32 %v4991, %v5089
        %v5091 = vpop.f32.mrf.mxu0
        %5092 = vmatprep.mubr.f32.mxu0 0.0
        %5093 = vmatmul.mubr.f32.gmra.mxu0 %v5010
        %v5094 = vpop.f32.mrf.mxu0
        %v5095 = vadd.f32 %v4996, %v5094
        %v5096 = vpop.f32.mrf.mxu0
        %5097 = vmatprep.mubr.f32.mxu0 0.0
        %5098 = vmatmul.mubr.f32.gmra.mxu0 %v5013
        %v5099 = vpop.f32.mrf.mxu0
        %v5100 = vadd.f32 %v5001, %v5099
        %v5101 = vpop.f32.mrf.mxu0
        %5102 = vdwg.mxu0
        %v5103 = vmax.f32 %v5085, 0.0
        %v5104 = vmax.f32 %v5090, 0.0
        %v5105 = vmax.f32 %v5095, 0.0
        %v5106 = vmax.f32 %v5100, 0.0
        %v5107 = vld [vmem:[#allocation10] sm:$0x1]
        %5108 = vrot.lane.b32.xlu0 %v5103, 17
        %v5109 = vpop.permute.xlu0 %5108
        %5110 = vrot.lane.b32.xlu0 %v5104, 17
        %v5111 = vpop.permute.xlu0 %5110
        %5112 = vrot.lane.b32.xlu0 %v5105, 17
        %v5113 = vpop.permute.xlu0 %5112
        %5114 = vrot.lane.b32.xlu0 %v5106, 17
        %v5115 = vpop.permute.xlu0 %5114
        %v5116 = vlaneseq
        %v5117 = vshrl.u32 %v5116, 7
        %v5118 = vsub.s32 0, %v5117
        %v5119 = vrot.slane %v5107, %v5118
        %v5120 = vmul.f32 %v5119, %v5109
        %v5121 = vmul.f32 %v5119, %v5111
        %v5122 = vmul.f32 %v5119, %v5113
        %v5123 = vmul.f32 %v5119, %v5115
        %5124 = vst [vmem:[#allocation3] sm:$0xff] %v5120
        %5125 = vst [vmem:[#allocation3 + $0x8] sm:$0xff] %v5121
        %5126 = vst [vmem:[#allocation3 + $0x10] sm:$0xff] %v5122
        %5127 = vst [vmem:[#allocation3 + $0x18] sm:$0xff] %v5123
        %v5128 = vld [vmem:[#allocation10 + $0x1] sm:$0x1]
        %5129 = vrot.lane.b32.xlu0 %v5103, 16
        %v5130 = vpop.permute.xlu0 %5129
        %5131 = vrot.lane.b32.xlu0 %v5104, 16
        %v5132 = vpop.permute.xlu0 %5131
        %5133 = vrot.lane.b32.xlu0 %v5105, 16
        %v5134 = vpop.permute.xlu0 %5133
        %5135 = vrot.lane.b32.xlu0 %v5106, 16
        %v5136 = vpop.permute.xlu0 %5135
        %v5137 = vlaneseq
        %v5138 = vshrl.u32 %v5137, 7
        %v5139 = vsub.s32 0, %v5138
        %v5140 = vrot.slane %v5128, %v5139
        %v5141 = vmul.f32 %v5140, %v5130
        %v5142 = vmul.f32 %v5140, %v5132
        %v5143 = vmul.f32 %v5140, %v5134
        %v5144 = vmul.f32 %v5140, %v5136
        %5145 = vst [vmem:[#allocation3 + $0x20] sm:$0xff] %v5141
        %5146 = vst [vmem:[#allocation3 + $0x28] sm:$0xff] %v5142
        %5147 = vst [vmem:[#allocation3 + $0x30] sm:$0xff] %v5143
        %5148 = vst [vmem:[#allocation3 + $0x38] sm:$0xff] %v5144
        %v5149 = vld [vmem:[#allocation10 + $0x2] sm:$0x1]
        %5150 = vrot.lane.b32.xlu0 %v5103, 15
        %v5151 = vpop.permute.xlu0 %5150
        %5152 = vrot.lane.b32.xlu0 %v5104, 15
        %v5153 = vpop.permute.xlu0 %5152
        %5154 = vrot.lane.b32.xlu0 %v5105, 15
        %v5155 = vpop.permute.xlu0 %5154
        %5156 = vrot.lane.b32.xlu0 %v5106, 15
        %v5157 = vpop.permute.xlu0 %5156
        %v5158 = vlaneseq
        %v5159 = vshrl.u32 %v5158, 7
        %v5160 = vsub.s32 0, %v5159
        %v5161 = vrot.slane %v5149, %v5160
        %v5162 = vmul.f32 %v5161, %v5151
        %v5163 = vmul.f32 %v5161, %v5153
        %v5164 = vmul.f32 %v5161, %v5155
        %v5165 = vmul.f32 %v5161, %v5157
        %5166 = vst [vmem:[#allocation3 + $0x40] sm:$0xff] %v5162
        %5167 = vst [vmem:[#allocation3 + $0x48] sm:$0xff] %v5163
        %5168 = vst [vmem:[#allocation3 + $0x50] sm:$0xff] %v5164
        %5169 = vst [vmem:[#allocation3 + $0x58] sm:$0xff] %v5165
        %v5170 = vld [vmem:[#allocation10 + $0x3] sm:$0x1]
        %5171 = vrot.lane.b32.xlu0 %v5103, 1
        %v5172 = vpop.permute.xlu0 %5171
        %5173 = vrot.lane.b32.xlu0 %v5104, 1
        %v5174 = vpop.permute.xlu0 %5173
        %5175 = vrot.lane.b32.xlu0 %v5105, 1
        %v5176 = vpop.permute.xlu0 %5175
        %5177 = vrot.lane.b32.xlu0 %v5106, 1
        %v5178 = vpop.permute.xlu0 %5177
        %v5179 = vlaneseq
        %v5180 = vshrl.u32 %v5179, 7
        %v5181 = vsub.s32 0, %v5180
        %v5182 = vrot.slane %v5170, %v5181
        %v5183 = vmul.f32 %v5182, %v5172
        %v5184 = vmul.f32 %v5182, %v5174
        %v5185 = vmul.f32 %v5182, %v5176
        %v5186 = vmul.f32 %v5182, %v5178
        %5187 = vst [vmem:[#allocation3 + $0x60] sm:$0xff] %v5183
        %5188 = vst [vmem:[#allocation3 + $0x68] sm:$0xff] %v5184
        %5189 = vst [vmem:[#allocation3 + $0x70] sm:$0xff] %v5185
        %5190 = vst [vmem:[#allocation3 + $0x78] sm:$0xff] %v5186
        %5191 = vst [vmem:[#allocation3 + $0x80] sm:$0xff] %v5103
        %5192 = vst [vmem:[#allocation3 + $0x88] sm:$0xff] %v5104
        %5193 = vst [vmem:[#allocation3 + $0x90] sm:$0xff] %v5105
        %5194 = vst [vmem:[#allocation3 + $0x98] sm:$0xff] %v5106
        %v5195 = vld [vmem:[#allocation10 + $0x5] sm:$0x1]
        %5196 = vrot.lane.b32.xlu0 %v5103, 127
        %v5197 = vpop.permute.xlu0 %5196
        %5198 = vrot.lane.b32.xlu0 %v5104, 127
        %v5199 = vpop.permute.xlu0 %5198
        %5200 = vrot.lane.b32.xlu0 %v5105, 127
        %v5201 = vpop.permute.xlu0 %5200
        %5202 = vrot.lane.b32.xlu0 %v5106, 127
        %v5203 = vpop.permute.xlu0 %5202
        %v5204 = vlaneseq
        %v5205 = vshrl.u32 %v5204, 7
        %v5206 = vsub.s32 0, %v5205
        %v5207 = vrot.slane %v5195, %v5206
        %v5208 = vmul.f32 %v5207, %v5197
        %v5209 = vmul.f32 %v5207, %v5199
        %v5210 = vmul.f32 %v5207, %v5201
        %v5211 = vmul.f32 %v5207, %v5203
        %5212 = vst [vmem:[#allocation3 + $0xa0] sm:$0xff] %v5208
        %5213 = vst [vmem:[#allocation3 + $0xa8] sm:$0xff] %v5209
        %5214 = vst [vmem:[#allocation3 + $0xb0] sm:$0xff] %v5210
        %5215 = vst [vmem:[#allocation3 + $0xb8] sm:$0xff] %v5211
        %v5216 = vld [vmem:[#allocation10 + $0x6] sm:$0x1]
        %5217 = vrot.lane.b32.xlu0 %v5103, 113
        %v5218 = vpop.permute.xlu0 %5217
        %5219 = vrot.lane.b32.xlu0 %v5104, 113
        %v5220 = vpop.permute.xlu0 %5219
        %5221 = vrot.lane.b32.xlu0 %v5105, 113
        %v5222 = vpop.permute.xlu0 %5221
        %5223 = vrot.lane.b32.xlu0 %v5106, 113
        %v5224 = vpop.permute.xlu0 %5223
        %v5225 = vlaneseq
        %v5226 = vshrl.u32 %v5225, 7
        %v5227 = vsub.s32 0, %v5226
        %v5228 = vrot.slane %v5216, %v5227
        %v5229 = vmul.f32 %v5228, %v5218
        %v5230 = vmul.f32 %v5228, %v5220
        %v5231 = vmul.f32 %v5228, %v5222
        %v5232 = vmul.f32 %v5228, %v5224
        %5233 = vst [vmem:[#allocation3 + $0xc0] sm:$0xff] %v5229
        %5234 = vst [vmem:[#allocation3 + $0xc8] sm:$0xff] %v5230
        %5235 = vst [vmem:[#allocation3 + $0xd0] sm:$0xff] %v5231
        %5236 = vst [vmem:[#allocation3 + $0xd8] sm:$0xff] %v5232
        %v5237 = vld [vmem:[#allocation10 + $0x7] sm:$0x1]
        %5238 = vrot.lane.b32.xlu0 %v5103, 112
        %v5239 = vpop.permute.xlu0 %5238
        %5240 = vrot.lane.b32.xlu0 %v5104, 112
        %v5241 = vpop.permute.xlu0 %5240
        %5242 = vrot.lane.b32.xlu0 %v5105, 112
        %v5243 = vpop.permute.xlu0 %5242
        %5244 = vrot.lane.b32.xlu0 %v5106, 112
        %v5245 = vpop.permute.xlu0 %5244
        %v5246 = vlaneseq
        %v5247 = vshrl.u32 %v5246, 7
        %v5248 = vsub.s32 0, %v5247
        %v5249 = vrot.slane %v5237, %v5248
        %v5250 = vmul.f32 %v5249, %v5239
        %v5251 = vmul.f32 %v5249, %v5241
        %v5252 = vmul.f32 %v5249, %v5243
        %v5253 = vmul.f32 %v5249, %v5245
        %5254 = vst [vmem:[#allocation3 + $0xe0] sm:$0xff] %v5250
        %5255 = vst [vmem:[#allocation3 + $0xe8] sm:$0xff] %v5251
        %5256 = vst [vmem:[#allocation3 + $0xf0] sm:$0xff] %v5252
        %5257 = vst [vmem:[#allocation3 + $0xf8] sm:$0xff] %v5253
        %v5258 = vld [vmem:[#allocation10 + $0x8] sm:$0x1]
        %5259 = vrot.lane.b32.xlu0 %v5103, 111
        %v5260 = vpop.permute.xlu0 %5259
        %5261 = vrot.lane.b32.xlu0 %v5104, 111
        %v5262 = vpop.permute.xlu0 %5261
        %5263 = vrot.lane.b32.xlu0 %v5105, 111
        %v5264 = vpop.permute.xlu0 %5263
        %5265 = vrot.lane.b32.xlu0 %v5106, 111
        %v5266 = vpop.permute.xlu0 %5265
        %v5267 = vlaneseq
        %v5268 = vshrl.u32 %v5267, 7
        %v5269 = vsub.s32 0, %v5268
        %v5270 = vrot.slane %v5258, %v5269
        %v5271 = vmul.f32 %v5270, %v5260
        %v5272 = vmul.f32 %v5270, %v5262
        %v5273 = vmul.f32 %v5270, %v5264
        %v5274 = vmul.f32 %v5270, %v5266
        %5275 = vst [vmem:[#allocation3 + $0x100] sm:$0xff] %v5271
        %5276 = vst [vmem:[#allocation3 + $0x108] sm:$0xff] %v5272
        %5277 = vst [vmem:[#allocation3 + $0x110] sm:$0xff] %v5273
        %5278 = vst [vmem:[#allocation3 + $0x118] sm:$0xff] %v5274
        %s5279 = scalar_lea.vmem %s7, 12
        %v5280 = vld [vmem:[%s5279] sm:$0x3f]
        %v5281 = vld [vmem:[#allocation3] sm:$0xff]
        %v5282 = vld [vmem:[#allocation3 + $0x8] sm:$0xff]
        %v5283 = vld [vmem:[#allocation3 + $0x10] sm:$0xff]
        %v5284 = vld [vmem:[#allocation3 + $0x18] sm:$0xff]
        %v5285 = vld [vmem:[#allocation3 + $0x20] sm:$0xff]
        %v5286 = vld [vmem:[#allocation3 + $0x28] sm:$0xff]
        %v5287 = vld [vmem:[#allocation3 + $0x30] sm:$0xff]
        %v5288 = vld [vmem:[#allocation3 + $0x38] sm:$0xff]
        %v5289 = vld [vmem:[#allocation3 + $0x40] sm:$0xff]
        %v5290 = vld [vmem:[#allocation3 + $0x48] sm:$0xff]
        %v5291 = vld [vmem:[#allocation3 + $0x50] sm:$0xff]
        %v5292 = vld [vmem:[#allocation3 + $0x58] sm:$0xff]
        %v5293 = vld [vmem:[#allocation3 + $0x60] sm:$0xff]
        %v5294 = vld [vmem:[#allocation3 + $0x68] sm:$0xff]
        %v5295 = vld [vmem:[#allocation3 + $0x70] sm:$0xff]
        %v5296 = vld [vmem:[#allocation3 + $0x78] sm:$0xff]
        %v5297 = vld [vmem:[#allocation3 + $0x80] sm:$0xff]
        %v5298 = vld [vmem:[#allocation3 + $0x88] sm:$0xff]
        %v5299 = vld [vmem:[#allocation3 + $0x90] sm:$0xff]
        %v5300 = vld [vmem:[#allocation3 + $0x98] sm:$0xff]
        %v5301 = vld [vmem:[#allocation3 + $0xa0] sm:$0xff]
        %v5302 = vld [vmem:[#allocation3 + $0xa8] sm:$0xff]
        %v5303 = vld [vmem:[#allocation3 + $0xb0] sm:$0xff]
        %v5304 = vld [vmem:[#allocation3 + $0xb8] sm:$0xff]
        %v5305 = vld [vmem:[#allocation3 + $0xc0] sm:$0xff]
        %v5306 = vld [vmem:[#allocation3 + $0xc8] sm:$0xff]
        %v5307 = vld [vmem:[#allocation3 + $0xd0] sm:$0xff]
        %v5308 = vld [vmem:[#allocation3 + $0xd8] sm:$0xff]
        %v5309 = vld [vmem:[#allocation3 + $0xe0] sm:$0xff]
        %v5310 = vld [vmem:[#allocation3 + $0xe8] sm:$0xff]
        %v5311 = vld [vmem:[#allocation3 + $0xf0] sm:$0xff]
        %v5312 = vld [vmem:[#allocation3 + $0xf8] sm:$0xff]
        %v5313 = vld [vmem:[#allocation3 + $0x100] sm:$0xff]
        %v5314 = vld [vmem:[#allocation3 + $0x108] sm:$0xff]
        %v5315 = vld [vmem:[#allocation3 + $0x110] sm:$0xff]
        %v5316 = vld [vmem:[#allocation3 + $0x118] sm:$0xff]
        %v5318 = vcombine.high %v5280, %v5280
        %v5320 = vunpack.c.l.s4 1983009808
        %v5321 = vunpack.c.0.s8 %v5320
        %v5322 = vlaneseq
        %v5323 = vshrl.u32 %v5322, 7
        %v5324 = vsub.s32 %v5321, %v5323
        %v5325 = vrot.slane %v5280, %v5324
        %v5327 = vunpack.c.l.s4 1983009808
        %v5328 = vunpack.c.0.s8 %v5327
        %v5329 = vlaneseq
        %v5330 = vshrl.u32 %v5329, 7
        %v5331 = vsub.s32 %v5328, %v5330
        %v5332 = vrot.slane %v5318, %v5331
        %v5333 = vcombine.high %v5325, %v5325
        %v5336 = vsel %vm1242, %v5332, 0
        %5338 = vmatprep.subr.mxu0 0.0
        %5339 = vmatpush1.msra.mxu0 %v5296
        %5340 = vmatprep.subr.mxu0 0.0
        %5341 = vmatpush1.msra.mxu0 %v5295
        %5342 = vmatprep.subr.mxu0 0.0
        %5343 = vmatpush1.msra.mxu0 %v5294
        %5344 = vmatprep.subr.mxu0 0.0
        %5345 = vmatpush1.msra.mxu0 %v5293
        %5346 = vmatprep.subr.mxu0 0.0
        %5347 = vmatpush1.msra.mxu0 %v5292
        %5348 = vmatprep.subr.mxu0 0.0
        %5349 = vmatpush1.msra.mxu0 %v5291
        %5350 = vmatprep.subr.mxu0 0.0
        %5351 = vmatpush1.msra.mxu0 %v5290
        %5352 = vmatprep.subr.mxu0 0.0
        %5353 = vmatpush1.msra.mxu0 %v5289
        %5354 = vmatprep.subr.mxu0 0.0
        %5355 = vmatpush1.msra.mxu0 %v5288
        %5356 = vmatprep.subr.mxu0 0.0
        %5357 = vmatpush1.msra.mxu0 %v5287
        %5358 = vmatprep.subr.mxu0 0.0
        %5359 = vmatpush1.msra.mxu0 %v5286
        %5360 = vmatprep.subr.mxu0 0.0
        %5361 = vmatpush1.msra.mxu0 %v5285
        %5362 = vmatprep.subr.mxu0 0.0
        %5363 = vmatpush1.msra.mxu0 %v5284
        %5364 = vmatprep.subr.mxu0 0.0
        %5365 = vmatpush1.msra.mxu0 %v5283
        %5366 = vmatprep.subr.mxu0 0.0
        %5367 = vmatpush1.msra.mxu0 %v5282
        %5368 = vmatprep.subr.mxu0 0.0
        %5369 = vmatpush1.msra.mxu0 %v5281
        %5370 = vmatprep.subr.mxu0 0.0
        %5371 = vmatpush2.msra.mxu0 %v5312
        %5372 = vmatprep.subr.mxu0 0.0
        %5373 = vmatpush2.msra.mxu0 %v5311
        %5374 = vmatprep.subr.mxu0 0.0
        %5375 = vmatpush2.msra.mxu0 %v5310
        %5376 = vmatprep.subr.mxu0 0.0
        %5377 = vmatpush2.msra.mxu0 %v5309
        %5378 = vmatprep.subr.mxu0 0.0
        %5379 = vmatpush2.msra.mxu0 %v5308
        %5380 = vmatprep.subr.mxu0 0.0
        %5381 = vmatpush2.msra.mxu0 %v5307
        %5382 = vmatprep.subr.mxu0 0.0
        %5383 = vmatpush2.msra.mxu0 %v5306
        %5384 = vmatprep.subr.mxu0 0.0
        %5385 = vmatpush2.msra.mxu0 %v5305
        %5386 = vmatprep.subr.mxu0 0.0
        %5387 = vmatpush2.msra.mxu0 %v5304
        %5388 = vmatprep.subr.mxu0 0.0
        %5389 = vmatpush2.msra.mxu0 %v5303
        %5390 = vmatprep.subr.mxu0 0.0
        %5391 = vmatpush2.msra.mxu0 %v5302
        %5392 = vmatprep.subr.mxu0 0.0
        %5393 = vmatpush2.msra.mxu0 %v5301
        %5394 = vmatprep.subr.mxu0 0.0
        %5395 = vmatpush2.msra.mxu0 %v5300
        %5396 = vmatprep.subr.mxu0 0.0
        %5397 = vmatpush2.msra.mxu0 %v5299
        %5398 = vmatprep.subr.mxu0 0.0
        %5399 = vmatpush2.msra.mxu0 %v5298
        %5400 = vmatprep.subr.mxu0 0.0
        %5401 = vmatpush2.msra.mxu0 %v5297
        %5402 = vmatprep.mubr.f32.mxu0 %v5333
        %5403 = vmatmul.mubr.f32.gmra.mxu0 %v5325
        %v5404 = vpop.f32.mrf.mxu0
        %v5405 = vadd.f32 0.0, %v5404
        %v5406 = vpop.f32.mrf.mxu0
        %5407 = vdwg.mxu0
        %5408 = vmatprep.subr.mxu0 0.0
        %5409 = vmatpush1.msra.mxu0 0.0
        %5410 = vmatprep.subr.mxu0 0.0
        %5411 = vmatpush1.msra.mxu0 0.0
        %5412 = vmatprep.subr.mxu0 0.0
        %5413 = vmatpush1.msra.mxu0 0.0
        %5414 = vmatprep.subr.mxu0 0.0
        %5415 = vmatpush1.msra.mxu0 0.0
        %5416 = vmatprep.subr.mxu0 0.0
        %5417 = vmatpush1.msra.mxu0 0.0
        %5418 = vmatprep.subr.mxu0 0.0
        %5419 = vmatpush1.msra.mxu0 0.0
        %5420 = vmatprep.subr.mxu0 0.0
        %5421 = vmatpush1.msra.mxu0 0.0
        %5422 = vmatprep.subr.mxu0 0.0
        %5423 = vmatpush1.msra.mxu0 0.0
        %5424 = vmatprep.subr.mxu0 0.0
        %5425 = vmatpush1.msra.mxu0 0.0
        %5426 = vmatprep.subr.mxu0 0.0
        %5427 = vmatpush1.msra.mxu0 0.0
        %5428 = vmatprep.subr.mxu0 0.0
        %5429 = vmatpush1.msra.mxu0 0.0
        %5430 = vmatprep.subr.mxu0 0.0
        %5431 = vmatpush1.msra.mxu0 0.0
        %5432 = vmatprep.subr.mxu0 0.0
        %5433 = vmatpush1.msra.mxu0 %v5316
        %5434 = vmatprep.subr.mxu0 0.0
        %5435 = vmatpush1.msra.mxu0 %v5315
        %5436 = vmatprep.subr.mxu0 0.0
        %5437 = vmatpush1.msra.mxu0 %v5314
        %5438 = vmatprep.subr.mxu0 0.0
        %5439 = vmatpush1.msra.mxu0 %v5313
        %5440 = vmatprep.subr.mxu0 0.0
        %5441 = vmatpush2.msra.mxu0 0.0
        %5442 = vmatprep.subr.mxu0 0.0
        %5443 = vmatpush2.msra.mxu0 0.0
        %5444 = vmatprep.subr.mxu0 0.0
        %5445 = vmatpush2.msra.mxu0 0.0
        %5446 = vmatprep.subr.mxu0 0.0
        %5447 = vmatpush2.msra.mxu0 0.0
        %5448 = vmatprep.subr.mxu0 0.0
        %5449 = vmatpush2.msra.mxu0 0.0
        %5450 = vmatprep.subr.mxu0 0.0
        %5451 = vmatpush2.msra.mxu0 0.0
        %5452 = vmatprep.subr.mxu0 0.0
        %5453 = vmatpush2.msra.mxu0 0.0
        %5454 = vmatprep.subr.mxu0 0.0
        %5455 = vmatpush2.msra.mxu0 0.0
        %5456 = vmatprep.subr.mxu0 0.0
        %5457 = vmatpush2.msra.mxu0 0.0
        %5458 = vmatprep.subr.mxu0 0.0
        %5459 = vmatpush2.msra.mxu0 0.0
        %5460 = vmatprep.subr.mxu0 0.0
        %5461 = vmatpush2.msra.mxu0 0.0
        %5462 = vmatprep.subr.mxu0 0.0
        %5463 = vmatpush2.msra.mxu0 0.0
        %5464 = vmatprep.subr.mxu0 0.0
        %5465 = vmatpush2.msra.mxu0 0.0
        %5466 = vmatprep.subr.mxu0 0.0
        %5467 = vmatpush2.msra.mxu0 0.0
        %5468 = vmatprep.subr.mxu0 0.0
        %5469 = vmatpush2.msra.mxu0 0.0
        %5470 = vmatprep.subr.mxu0 0.0
        %5471 = vmatpush2.msra.mxu0 0.0
        %5472 = vmatprep.mubr.f32.mxu0 0.0
        %5473 = vmatmul.mubr.f32.gmra.mxu0 %v5336
        %v5474 = vpop.f32.mrf.mxu0
        %v5475 = vadd.f32 %v5405, %v5474
        %v5476 = vpop.f32.mrf.mxu0
        %5477 = vdwg.mxu0
        %v5478 = vadd.f32 %v3423, %v5475
        %s5479 = scalar_lea.vmem [#allocation16], 4
        %v5480 = vld [vmem:[%s5479] sm:$0x3]
        %5482 = vset.pattern.permute.xlu0 0
        %5483 = vperm.xlu0 %5482, %v5480
        %v5484 = vpop.permute.xlu0 %5483
        %v5486 = vadd.f32 %v5478, %v5484
        %5487 = vmatprep.subr.mxu0 %v643
        %5488 = vmatpush1.msra.mxu0 %v642
        %5489 = vmatprep.subr.mxu0 %v641
        %5490 = vmatpush1.msra.mxu0 %v640
        %5491 = vmatprep.subr.mxu0 %v639
        %5492 = vmatpush1.msra.mxu0 %v638
        %5493 = vmatprep.subr.mxu0 %v637
        %5494 = vmatpush1.msra.mxu0 %v636
        %5495 = vmatprep.subr.mxu0 %v635
        %5496 = vmatpush1.msra.mxu0 %v634
        %5497 = vmatprep.subr.mxu0 %v633
        %5498 = vmatpush1.msra.mxu0 %v632
        %5499 = vmatprep.subr.mxu0 %v631
        %5500 = vmatpush1.msra.mxu0 %v630
        %5501 = vmatprep.subr.mxu0 %v629
        %5502 = vmatpush1.msra.mxu0 %v628
        %5503 = vmatprep.subr.mxu0 %v627
        %5504 = vmatpush1.msra.mxu0 %v626
        %5505 = vmatprep.subr.mxu0 %v625
        %5506 = vmatpush1.msra.mxu0 %v624
        %5507 = vmatprep.subr.mxu0 %v623
        %5508 = vmatpush1.msra.mxu0 %v622
        %5509 = vmatprep.subr.mxu0 %v621
        %5510 = vmatpush1.msra.mxu0 %v620
        %5511 = vmatprep.subr.mxu0 %v619
        %5512 = vmatpush1.msra.mxu0 %v618
        %5513 = vmatprep.subr.mxu0 %v617
        %5514 = vmatpush1.msra.mxu0 %v616
        %5515 = vmatprep.subr.mxu0 %v615
        %5516 = vmatpush1.msra.mxu0 %v614
        %5517 = vmatprep.subr.mxu0 %v613
        %5518 = vmatpush1.msra.mxu0 %v612
        %5519 = vmatprep.subr.mxu0 0.0
        %5520 = vmatpush2.msra.mxu0 0.0
        %5521 = vmatprep.subr.mxu0 0.0
        %5522 = vmatpush2.msra.mxu0 0.0
        %5523 = vmatprep.subr.mxu0 0.0
        %5524 = vmatpush2.msra.mxu0 0.0
        %5525 = vmatprep.subr.mxu0 0.0
        %5526 = vmatpush2.msra.mxu0 0.0
        %5527 = vmatprep.subr.mxu0 0.0
        %5528 = vmatpush2.msra.mxu0 0.0
        %5529 = vmatprep.subr.mxu0 0.0
        %5530 = vmatpush2.msra.mxu0 0.0
        %5531 = vmatprep.subr.mxu0 0.0
        %5532 = vmatpush2.msra.mxu0 0.0
        %5533 = vmatprep.subr.mxu0 0.0
        %5534 = vmatpush2.msra.mxu0 0.0
        %5535 = vmatprep.subr.mxu0 0.0
        %5536 = vmatpush2.msra.mxu0 0.0
        %5537 = vmatprep.subr.mxu0 0.0
        %5538 = vmatpush2.msra.mxu0 0.0
        %5539 = vmatprep.subr.mxu0 0.0
        %5540 = vmatpush2.msra.mxu0 0.0
        %5541 = vmatprep.subr.mxu0 0.0
        %5542 = vmatpush2.msra.mxu0 0.0
        %5543 = vmatprep.subr.mxu0 0.0
        %5544 = vmatpush2.msra.mxu0 0.0
        %5545 = vmatprep.subr.mxu0 0.0
        %5546 = vmatpush2.msra.mxu0 0.0
        %5547 = vmatprep.subr.mxu0 0.0
        %5548 = vmatpush2.msra.mxu0 0.0
        %5549 = vmatprep.subr.mxu0 0.0
        %5550 = vmatpush2.msra.mxu0 0.0
        %5551 = vmatprep.mubr.f32.mxu0 0.0
        %5552 = vmatmul.mubr.f32.gmra.mxu0 %v5486
        %v5553 = vpop.f32.mrf.mxu0
        %v5554 = vadd.f32 0.0, %v5553
        %v5555 = vpop.f32.mrf.mxu0
        %v5556 = vadd.f32 0.0, %v5555
        %5557 = vdwg.mxu0
        %v5558 = vld [vmem:[#allocation11] ss:$8 sm:$0x3]
        %5559 = vrot.lane.b32.xlu0 %v4776, 17
        %v5560 = vpop.permute.xlu0 %5559
        %5561 = vrot.lane.b32.xlu0 %v4777, 17
        %v5562 = vpop.permute.xlu0 %5561
        %v5563 = vsel %vm1459, %v5560, %v5562
        %v5564 = vsel %vm1459, %v5562, %v5560
        %v5566 = vlaneseq
        %v5567 = vshrl.u32 %v5566, 7
        %v5568 = vsub.s32 0, %v5567
        %v5569 = vrot.slane %v5558, %v5568
        %v5570 = vlaneseq
        %v5571 = vshrl.u32 %v5570, 7
        %v5572 = vsub.s32 1, %v5571
        %v5573 = vrot.slane %v5558, %v5572
        %v5576 = vmul.f32 %v5569, %v5564
        %v5577 = vmul.f32 %v5573, %v5563
        %5578 = vst [vmem:[#allocation4] sm:$0x3] %v5576
        %5579 = vst [vmem:[#allocation4 + $0x8] sm:$0x3] %v5577
        %v5580 = vld [vmem:[%s1475] ss:$8 sm:$0x3]
        %5581 = vrot.lane.b32.xlu0 %v4776, 16
        %v5582 = vpop.permute.xlu0 %5581
        %5583 = vrot.lane.b32.xlu0 %v4777, 16
        %v5584 = vpop.permute.xlu0 %5583
        %v5585 = vsel %vm1477, %v5582, %v5584
        %v5586 = vsel %vm1477, %v5584, %v5582
        %v5588 = vlaneseq
        %v5589 = vshrl.u32 %v5588, 7
        %v5590 = vsub.s32 0, %v5589
        %v5591 = vrot.slane %v5580, %v5590
        %v5592 = vlaneseq
        %v5593 = vshrl.u32 %v5592, 7
        %v5594 = vsub.s32 1, %v5593
        %v5595 = vrot.slane %v5580, %v5594
        %v5598 = vmul.f32 %v5591, %v5586
        %v5599 = vmul.f32 %v5595, %v5585
        %v5602 = vrot.slane %v5598, 6
        %v5603 = vrot.slane %v5599, 6
        %5606 = vst [vmem:[#allocation4] sm:$0xc] %v5602
        %5607 = vst [vmem:[#allocation4 + $0x8] sm:$0xc] %v5603
        %v5608 = vld [vmem:[%s1499] ss:$8 sm:$0x3]
        %5609 = vrot.lane.b32.xlu0 %v4776, 15
        %v5610 = vpop.permute.xlu0 %5609
        %5611 = vrot.lane.b32.xlu0 %v4777, 15
        %v5612 = vpop.permute.xlu0 %5611
        %v5613 = vsel %vm1501, %v5610, %v5612
        %v5614 = vsel %vm1501, %v5612, %v5610
        %v5616 = vlaneseq
        %v5617 = vshrl.u32 %v5616, 7
        %v5618 = vsub.s32 0, %v5617
        %v5619 = vrot.slane %v5608, %v5618
        %v5620 = vlaneseq
        %v5621 = vshrl.u32 %v5620, 7
        %v5622 = vsub.s32 1, %v5621
        %v5623 = vrot.slane %v5608, %v5622
        %v5626 = vmul.f32 %v5619, %v5614
        %v5627 = vmul.f32 %v5623, %v5613
        %v5630 = vrot.slane %v5626, 4
        %v5631 = vrot.slane %v5627, 4
        %5634 = vst [vmem:[#allocation4] sm:$0x30] %v5630
        %5635 = vst [vmem:[#allocation4 + $0x8] sm:$0x30] %v5631
        %v5636 = vld [vmem:[%s1523] ss:$8 sm:$0x3]
        %5637 = vrot.lane.b32.xlu0 %v4776, 1
        %v5638 = vpop.permute.xlu0 %5637
        %5639 = vrot.lane.b32.xlu0 %v4777, 1
        %v5640 = vpop.permute.xlu0 %5639
        %v5641 = vsel %vm1525, %v5638, %v5640
        %v5642 = vsel %vm1525, %v5640, %v5638
        %v5644 = vlaneseq
        %v5645 = vshrl.u32 %v5644, 7
        %v5646 = vsub.s32 0, %v5645
        %v5647 = vrot.slane %v5636, %v5646
        %v5648 = vlaneseq
        %v5649 = vshrl.u32 %v5648, 7
        %v5650 = vsub.s32 1, %v5649
        %v5651 = vrot.slane %v5636, %v5650
        %v5654 = vmul.f32 %v5647, %v5642
        %v5655 = vmul.f32 %v5651, %v5641
        %v5658 = vrot.slane %v5654, 2
        %v5659 = vrot.slane %v5655, 2
        %5662 = vst [vmem:[#allocation4] sm:$0xc0] %v5658
        %5663 = vst [vmem:[#allocation4 + $0x8] sm:$0xc0] %v5659
        %5664 = vst [vmem:[#allocation4 + $0x10] sm:$0x3] %v4776
        %5665 = vst [vmem:[#allocation4 + $0x18] sm:$0x3] %v4777
        %v5666 = vld [vmem:[%s1549] ss:$8 sm:$0x3]
        %5667 = vrot.lane.b32.xlu0 %v4776, 127
        %v5668 = vpop.permute.xlu0 %5667
        %5669 = vrot.lane.b32.xlu0 %v4777, 127
        %v5670 = vpop.permute.xlu0 %5669
        %v5671 = vsel %vm1551, %v5668, %v5670
        %v5672 = vsel %vm1551, %v5670, %v5668
        %v5674 = vlaneseq
        %v5675 = vshrl.u32 %v5674, 7
        %v5676 = vsub.s32 0, %v5675
        %v5677 = vrot.slane %v5666, %v5676
        %v5678 = vlaneseq
        %v5679 = vshrl.u32 %v5678, 7
        %v5680 = vsub.s32 1, %v5679
        %v5681 = vrot.slane %v5666, %v5680
        %v5684 = vmul.f32 %v5677, %v5671
        %v5685 = vmul.f32 %v5681, %v5672
        %v5688 = vrot.slane %v5684, 6
        %v5689 = vrot.slane %v5685, 6
        %5692 = vst [vmem:[#allocation4 + $0x10] sm:$0xc] %v5688
        %5693 = vst [vmem:[#allocation4 + $0x18] sm:$0xc] %v5689
        %v5694 = vld [vmem:[%s1573] ss:$8 sm:$0x3]
        %5695 = vrot.lane.b32.xlu0 %v4776, 113
        %v5696 = vpop.permute.xlu0 %5695
        %5697 = vrot.lane.b32.xlu0 %v4777, 113
        %v5698 = vpop.permute.xlu0 %5697
        %v5699 = vsel %vm1575, %v5696, %v5698
        %v5700 = vsel %vm1575, %v5698, %v5696
        %v5702 = vlaneseq
        %v5703 = vshrl.u32 %v5702, 7
        %v5704 = vsub.s32 0, %v5703
        %v5705 = vrot.slane %v5694, %v5704
        %v5706 = vlaneseq
        %v5707 = vshrl.u32 %v5706, 7
        %v5708 = vsub.s32 1, %v5707
        %v5709 = vrot.slane %v5694, %v5708
        %v5712 = vmul.f32 %v5705, %v5699
        %v5713 = vmul.f32 %v5709, %v5700
        %v5716 = vrot.slane %v5712, 4
        %v5717 = vrot.slane %v5713, 4
        %5720 = vst [vmem:[#allocation4 + $0x10] sm:$0x30] %v5716
        %5721 = vst [vmem:[#allocation4 + $0x18] sm:$0x30] %v5717
        %v5722 = vld [vmem:[%s1597] ss:$8 sm:$0x3]
        %5723 = vrot.lane.b32.xlu0 %v4776, 112
        %v5724 = vpop.permute.xlu0 %5723
        %5725 = vrot.lane.b32.xlu0 %v4777, 112
        %v5726 = vpop.permute.xlu0 %5725
        %v5727 = vsel %vm1599, %v5724, %v5726
        %v5728 = vsel %vm1599, %v5726, %v5724
        %v5730 = vlaneseq
        %v5731 = vshrl.u32 %v5730, 7
        %v5732 = vsub.s32 0, %v5731
        %v5733 = vrot.slane %v5722, %v5732
        %v5734 = vlaneseq
        %v5735 = vshrl.u32 %v5734, 7
        %v5736 = vsub.s32 1, %v5735
        %v5737 = vrot.slane %v5722, %v5736
        %v5740 = vmul.f32 %v5733, %v5727
        %v5741 = vmul.f32 %v5737, %v5728
        %v5744 = vrot.slane %v5740, 2
        %v5745 = vrot.slane %v5741, 2
        %5748 = vst [vmem:[#allocation4 + $0x10] sm:$0xc0] %v5744
        %5749 = vst [vmem:[#allocation4 + $0x18] sm:$0xc0] %v5745
        %v5750 = vld [vmem:[%s1621] ss:$8 sm:$0x3]
        %5751 = vrot.lane.b32.xlu0 %v4776, 111
        %v5752 = vpop.permute.xlu0 %5751
        %5753 = vrot.lane.b32.xlu0 %v4777, 111
        %v5754 = vpop.permute.xlu0 %5753
        %v5755 = vsel %vm1623, %v5752, %v5754
        %v5756 = vsel %vm1623, %v5754, %v5752
        %v5758 = vlaneseq
        %v5759 = vshrl.u32 %v5758, 7
        %v5760 = vsub.s32 0, %v5759
        %v5761 = vrot.slane %v5750, %v5760
        %v5762 = vlaneseq
        %v5763 = vshrl.u32 %v5762, 7
        %v5764 = vsub.s32 1, %v5763
        %v5765 = vrot.slane %v5750, %v5764
        %v5768 = vmul.f32 %v5761, %v5755
        %v5769 = vmul.f32 %v5765, %v5756
        %5770 = vst [vmem:[#allocation4 + $0x20] sm:$0x3] %v5768
        %5771 = vst [vmem:[#allocation4 + $0x28] sm:$0x3] %v5769
        %v5772 = vld [vmem:[#allocation11] ss:$8 sm:$0x3]
        %5773 = vrot.lane.b32.xlu0 %v5554, 17
        %v5774 = vpop.permute.xlu0 %5773
        %5775 = vrot.lane.b32.xlu0 %v5556, 17
        %v5776 = vpop.permute.xlu0 %5775
        %v5777 = vsel %vm1459, %v5774, %v5776
        %v5778 = vsel %vm1459, %v5776, %v5774
        %v5781 = vcombine.low %v5778, %v5777
        %v5783 = vunpack.c.l.s4 1966171168
        %v5784 = vunpack.c.0.s8 %v5783
        %v5785 = vlaneseq
        %v5786 = vshrl.u32 %v5785, 7
        %v5787 = vsub.s32 %v5784, %v5786
        %v5788 = vrot.slane %v5781, %v5787
        %v5790 = vunpack.c.l.s4 1966171168
        %v5791 = vunpack.c.0.s8 %v5790
        %v5792 = vlaneseq
        %v5793 = vshrl.u32 %v5792, 7
        %v5794 = vsub.s32 %v5791, %v5793
        %v5795 = vrot.slane %v5788, %v5794
        %v5797 = vmul.f32 %v5772, %v5795
        %5798 = vst.msk [vmem:[%s1669] ss:$8 sm:$0x3] %vm1668, %v5797
        %5799 = vst.msk [vmem:[%s1669] ss:$8 sm:$0x0] %vm1668, %v5797
        %v5800 = vld [vmem:[%s1475] ss:$8 sm:$0x3]
        %5801 = vrot.lane.b32.xlu0 %v5554, 16
        %v5802 = vpop.permute.xlu0 %5801
        %5803 = vrot.lane.b32.xlu0 %v5556, 16
        %v5804 = vpop.permute.xlu0 %5803
        %v5805 = vsel %vm1477, %v5802, %v5804
        %v5806 = vsel %vm1477, %v5804, %v5802
        %v5809 = vcombine.low %v5806, %v5805
        %v5811 = vunpack.c.l.s4 1966171168
        %v5812 = vunpack.c.0.s8 %v5811
        %v5813 = vlaneseq
        %v5814 = vshrl.u32 %v5813, 7
        %v5815 = vsub.s32 %v5812, %v5814
        %v5816 = vrot.slane %v5809, %v5815
        %v5818 = vunpack.c.l.s4 1966171168
        %v5819 = vunpack.c.0.s8 %v5818
        %v5820 = vlaneseq
        %v5821 = vshrl.u32 %v5820, 7
        %v5822 = vsub.s32 %v5819, %v5821
        %v5823 = vrot.slane %v5816, %v5822
        %v5825 = vmul.f32 %v5800, %v5823
        %5826 = vst.msk [vmem:[%s1698] ss:$8 sm:$0x3] %vm1668, %v5825
        %5827 = vst.msk [vmem:[%s1698] ss:$8 sm:$0x0] %vm1668, %v5825
        %v5828 = vld [vmem:[%s1499] ss:$8 sm:$0x3]
        %5829 = vrot.lane.b32.xlu0 %v5554, 15
        %v5830 = vpop.permute.xlu0 %5829
        %5831 = vrot.lane.b32.xlu0 %v5556, 15
        %v5832 = vpop.permute.xlu0 %5831
        %v5833 = vsel %vm1501, %v5830, %v5832
        %v5834 = vsel %vm1501, %v5832, %v5830
        %v5837 = vcombine.low %v5834, %v5833
        %v5839 = vunpack.c.l.s4 1966171168
        %v5840 = vunpack.c.0.s8 %v5839
        %v5841 = vlaneseq
        %v5842 = vshrl.u32 %v5841, 7
        %v5843 = vsub.s32 %v5840, %v5842
        %v5844 = vrot.slane %v5837, %v5843
        %v5846 = vunpack.c.l.s4 1966171168
        %v5847 = vunpack.c.0.s8 %v5846
        %v5848 = vlaneseq
        %v5849 = vshrl.u32 %v5848, 7
        %v5850 = vsub.s32 %v5847, %v5849
        %v5851 = vrot.slane %v5844, %v5850
        %v5853 = vmul.f32 %v5828, %v5851
        %5854 = vst.msk [vmem:[%s1727] ss:$8 sm:$0x3] %vm1668, %v5853
        %5855 = vst.msk [vmem:[%s1727] ss:$8 sm:$0x0] %vm1668, %v5853
        %v5856 = vld [vmem:[%s1523] ss:$8 sm:$0x3]
        %5857 = vrot.lane.b32.xlu0 %v5554, 1
        %v5858 = vpop.permute.xlu0 %5857
        %5859 = vrot.lane.b32.xlu0 %v5556, 1
        %v5860 = vpop.permute.xlu0 %5859
        %v5861 = vsel %vm1525, %v5858, %v5860
        %v5862 = vsel %vm1525, %v5860, %v5858
        %v5865 = vcombine.low %v5862, %v5861
        %v5867 = vunpack.c.l.s4 1966171168
        %v5868 = vunpack.c.0.s8 %v5867
        %v5869 = vlaneseq
        %v5870 = vshrl.u32 %v5869, 7
        %v5871 = vsub.s32 %v5868, %v5870
        %v5872 = vrot.slane %v5865, %v5871
        %v5874 = vunpack.c.l.s4 1966171168
        %v5875 = vunpack.c.0.s8 %v5874
        %v5876 = vlaneseq
        %v5877 = vshrl.u32 %v5876, 7
        %v5878 = vsub.s32 %v5875, %v5877
        %v5879 = vrot.slane %v5872, %v5878
        %v5881 = vmul.f32 %v5856, %v5879
        %5882 = vst.msk [vmem:[%s1756] ss:$8 sm:$0x3] %vm1668, %v5881
        %5883 = vst.msk [vmem:[%s1756] ss:$8 sm:$0x0] %vm1668, %v5881
        %v5886 = vcombine.low %v5554, %v5556
        %v5888 = vunpack.c.l.s4 1966171168
        %v5889 = vunpack.c.0.s8 %v5888
        %v5890 = vlaneseq
        %v5891 = vshrl.u32 %v5890, 7
        %v5892 = vsub.s32 %v5889, %v5891
        %v5893 = vrot.slane %v5886, %v5892
        %v5895 = vunpack.c.l.s4 1966171168
        %v5896 = vunpack.c.0.s8 %v5895
        %v5897 = vlaneseq
        %v5898 = vshrl.u32 %v5897, 7
        %v5899 = vsub.s32 %v5896, %v5898
        %v5900 = vrot.slane %v5893, %v5899
        %5902 = vst.msk [vmem:[%s1777] ss:$8 sm:$0x3] %vm1668, %v5900
        %5903 = vst.msk [vmem:[%s1777] ss:$8 sm:$0x0] %vm1668, %v5900
        %v5904 = vld [vmem:[%s1549] ss:$8 sm:$0x3]
        %5905 = vrot.lane.b32.xlu0 %v5554, 127
        %v5906 = vpop.permute.xlu0 %5905
        %5907 = vrot.lane.b32.xlu0 %v5556, 127
        %v5908 = vpop.permute.xlu0 %5907
        %v5909 = vsel %vm1551, %v5906, %v5908
        %v5910 = vsel %vm1551, %v5908, %v5906
        %v5913 = vcombine.low %v5909, %v5910
        %v5915 = vunpack.c.l.s4 1966171168
        %v5916 = vunpack.c.0.s8 %v5915
        %v5917 = vlaneseq
        %v5918 = vshrl.u32 %v5917, 7
        %v5919 = vsub.s32 %v5916, %v5918
        %v5920 = vrot.slane %v5913, %v5919
        %v5922 = vunpack.c.l.s4 1966171168
        %v5923 = vunpack.c.0.s8 %v5922
        %v5924 = vlaneseq
        %v5925 = vshrl.u32 %v5924, 7
        %v5926 = vsub.s32 %v5923, %v5925
        %v5927 = vrot.slane %v5920, %v5926
        %v5929 = vmul.f32 %v5904, %v5927
        %5930 = vst.msk [vmem:[%s1806] ss:$8 sm:$0x3] %vm1668, %v5929
        %5931 = vst.msk [vmem:[%s1806] ss:$8 sm:$0x0] %vm1668, %v5929
        %v5932 = vld [vmem:[%s1573] ss:$8 sm:$0x3]
        %5933 = vrot.lane.b32.xlu0 %v5554, 113
        %v5934 = vpop.permute.xlu0 %5933
        %5935 = vrot.lane.b32.xlu0 %v5556, 113
        %v5936 = vpop.permute.xlu0 %5935
        %v5937 = vsel %vm1575, %v5934, %v5936
        %v5938 = vsel %vm1575, %v5936, %v5934
        %v5941 = vcombine.low %v5937, %v5938
        %v5943 = vunpack.c.l.s4 1966171168
        %v5944 = vunpack.c.0.s8 %v5943
        %v5945 = vlaneseq
        %v5946 = vshrl.u32 %v5945, 7
        %v5947 = vsub.s32 %v5944, %v5946
        %v5948 = vrot.slane %v5941, %v5947
        %v5950 = vunpack.c.l.s4 1966171168
        %v5951 = vunpack.c.0.s8 %v5950
        %v5952 = vlaneseq
        %v5953 = vshrl.u32 %v5952, 7
        %v5954 = vsub.s32 %v5951, %v5953
        %v5955 = vrot.slane %v5948, %v5954
        %v5957 = vmul.f32 %v5932, %v5955
        %5958 = vst.msk [vmem:[%s1835] ss:$8 sm:$0x3] %vm1668, %v5957
        %5959 = vst.msk [vmem:[%s1835] ss:$8 sm:$0x0] %vm1668, %v5957
        %v5960 = vld [vmem:[%s1597] ss:$8 sm:$0x3]
        %5961 = vrot.lane.b32.xlu0 %v5554, 112
        %v5962 = vpop.permute.xlu0 %5961
        %5963 = vrot.lane.b32.xlu0 %v5556, 112
        %v5964 = vpop.permute.xlu0 %5963
        %v5965 = vsel %vm1599, %v5962, %v5964
        %v5966 = vsel %vm1599, %v5964, %v5962
        %v5969 = vcombine.low %v5965, %v5966
        %v5971 = vunpack.c.l.s4 1966171168
        %v5972 = vunpack.c.0.s8 %v5971
        %v5973 = vlaneseq
        %v5974 = vshrl.u32 %v5973, 7
        %v5975 = vsub.s32 %v5972, %v5974
        %v5976 = vrot.slane %v5969, %v5975
        %v5978 = vunpack.c.l.s4 1966171168
        %v5979 = vunpack.c.0.s8 %v5978
        %v5980 = vlaneseq
        %v5981 = vshrl.u32 %v5980, 7
        %v5982 = vsub.s32 %v5979, %v5981
        %v5983 = vrot.slane %v5976, %v5982
        %v5985 = vmul.f32 %v5960, %v5983
        %5986 = vst.msk [vmem:[%s1864] ss:$8 sm:$0x3] %vm1668, %v5985
        %5987 = vst.msk [vmem:[%s1864] ss:$8 sm:$0x0] %vm1668, %v5985
        %v5988 = vld [vmem:[%s1621] ss:$8 sm:$0x3]
        %5989 = vrot.lane.b32.xlu0 %v5554, 111
        %v5990 = vpop.permute.xlu0 %5989
        %5991 = vrot.lane.b32.xlu0 %v5556, 111
        %v5992 = vpop.permute.xlu0 %5991
        %v5993 = vsel %vm1623, %v5990, %v5992
        %v5994 = vsel %vm1623, %v5992, %v5990
        %v5997 = vcombine.low %v5993, %v5994
        %v5999 = vunpack.c.l.s4 1966171168
        %v6000 = vunpack.c.0.s8 %v5999
        %v6001 = vlaneseq
        %v6002 = vshrl.u32 %v6001, 7
        %v6003 = vsub.s32 %v6000, %v6002
        %v6004 = vrot.slane %v5997, %v6003
        %v6006 = vunpack.c.l.s4 1966171168
        %v6007 = vunpack.c.0.s8 %v6006
        %v6008 = vlaneseq
        %v6009 = vshrl.u32 %v6008, 7
        %v6010 = vsub.s32 %v6007, %v6009
        %v6011 = vrot.slane %v6004, %v6010
        %v6013 = vmul.f32 %v5988, %v6011
        %6014 = vst.msk [vmem:[%s1893] ss:$8 sm:$0x3] %vm1668, %v6013
        %6015 = vst.msk [vmem:[%s1893] ss:$8 sm:$0x0] %vm1668, %v6013
        %s6016 = scalar_lea.vmem [#allocation17], 64
        %v6017 = vld [vmem:[%s6016] sm:$0xff]
        %v6018 = vld [vmem:[%s6016 + $0x8] sm:$0xff]
        %v6019 = vld [vmem:[%s6016 + $0x10] sm:$0xff]
        %v6020 = vld [vmem:[%s6016 + $0x18] sm:$0xff]
        %v6021 = vld [vmem:[#allocation4] sm:$0xff]
        %v6022 = vld [vmem:[#allocation4 + $0x8] sm:$0xff]
        %v6023 = vld [vmem:[#allocation4 + $0x10] sm:$0xff]
        %v6024 = vld [vmem:[#allocation4 + $0x18] sm:$0xff]
        %v6025 = vld [vmem:[#allocation4 + $0x20] sm:$0xff]
        %v6026 = vld [vmem:[#allocation4 + $0x28] sm:$0xff]
        %v6027 = vld [vmem:[#allocation4 + $0x30] sm:$0x7]
        %v6028 = vld [vmem:[#allocation4 + $0x38] sm:$0x7]
        %s6029 = scalar_lea.vmem [#allocation19], 64
        %v6030 = vld [vmem:[%s6029] sm:$0xff]
        %v6031 = vld [vmem:[%s6029 + $0x8] sm:$0xff]
        %v6032 = vld [vmem:[%s6029 + $0x10] sm:$0xff]
        %v6033 = vld [vmem:[%s6029 + $0x18] sm:$0xff]
        %6035 = vset.pattern.permute.xlu0 0
        %6036 = vperm.xlu0 %6035, %v6030
        %v6037 = vpop.permute.xlu0 %6036
        %6040 = vset.pattern.permute.xlu0 0
        %6041 = vperm.xlu0 %6040, %v6031
        %v6042 = vpop.permute.xlu0 %6041
        %6045 = vset.pattern.permute.xlu0 0
        %6046 = vperm.xlu0 %6045, %v6032
        %v6047 = vpop.permute.xlu0 %6046
        %6050 = vset.pattern.permute.xlu0 0
        %6051 = vperm.xlu0 %6050, %v6033
        %v6052 = vpop.permute.xlu0 %6051
        %v6055 = vsel %vm1932, %v6017, 0
        %v6058 = vsel %vm1932, %v6018, 0
        %v6061 = vsel %vm1932, %v6019, 0
        %v6064 = vsel %vm1932, %v6020, 0
        %v6067 = vsel %vm1945, %v6027, 0
        %v6070 = vsel %vm1945, %v6028, 0
        %6072 = vmatprep.subr.mxu0 0.0
        %6073 = vmatpush1.msra.mxu0 0.0
        %6074 = vmatprep.subr.mxu0 0.0
        %6075 = vmatpush1.msra.mxu0 0.0
        %6076 = vmatprep.subr.mxu0 0.0
        %6077 = vmatpush1.msra.mxu0 0.0
        %6078 = vmatprep.subr.mxu0 0.0
        %6079 = vmatpush1.msra.mxu0 0.0
        %6080 = vmatprep.subr.mxu0 0.0
        %6081 = vmatpush1.msra.mxu0 0.0
        %6082 = vmatprep.subr.mxu0 0.0
        %6083 = vmatpush1.msra.mxu0 0.0
        %6084 = vmatprep.subr.mxu0 0.0
        %6085 = vmatpush1.msra.mxu0 0.0
        %6086 = vmatprep.subr.mxu0 0.0
        %6087 = vmatpush1.msra.mxu0 0.0
        %6088 = vmatprep.subr.mxu0 0.0
        %6089 = vmatpush1.msra.mxu0 0.0
        %6090 = vmatprep.subr.mxu0 0.0
        %6091 = vmatpush1.msra.mxu0 0.0
        %6092 = vmatprep.subr.mxu0 0.0
        %6093 = vmatpush1.msra.mxu0 0.0
        %6094 = vmatprep.subr.mxu0 0.0
        %6095 = vmatpush1.msra.mxu0 0.0
        %6096 = vmatprep.subr.mxu0 %v6070
        %6097 = vmatpush1.msra.mxu0 %v6067
        %6098 = vmatprep.subr.mxu0 %v6026
        %6099 = vmatpush1.msra.mxu0 %v6025
        %6100 = vmatprep.subr.mxu0 %v6024
        %6101 = vmatpush1.msra.mxu0 %v6023
        %6102 = vmatprep.subr.mxu0 %v6022
        %6103 = vmatpush1.msra.mxu0 %v6021
        %6104 = vmatprep.subr.mxu0 0.0
        %6105 = vmatpush2.msra.mxu0 0.0
        %6106 = vmatprep.subr.mxu0 0.0
        %6107 = vmatpush2.msra.mxu0 0.0
        %6108 = vmatprep.subr.mxu0 0.0
        %6109 = vmatpush2.msra.mxu0 0.0
        %6110 = vmatprep.subr.mxu0 0.0
        %6111 = vmatpush2.msra.mxu0 0.0
        %6112 = vmatprep.subr.mxu0 0.0
        %6113 = vmatpush2.msra.mxu0 0.0
        %6114 = vmatprep.subr.mxu0 0.0
        %6115 = vmatpush2.msra.mxu0 0.0
        %6116 = vmatprep.subr.mxu0 0.0
        %6117 = vmatpush2.msra.mxu0 0.0
        %6118 = vmatprep.subr.mxu0 0.0
        %6119 = vmatpush2.msra.mxu0 0.0
        %6120 = vmatprep.subr.mxu0 0.0
        %6121 = vmatpush2.msra.mxu0 0.0
        %6122 = vmatprep.subr.mxu0 0.0
        %6123 = vmatpush2.msra.mxu0 0.0
        %6124 = vmatprep.subr.mxu0 0.0
        %6125 = vmatpush2.msra.mxu0 0.0
        %6126 = vmatprep.subr.mxu0 0.0
        %6127 = vmatpush2.msra.mxu0 0.0
        %6128 = vmatprep.subr.mxu0 0.0
        %6129 = vmatpush2.msra.mxu0 0.0
        %6130 = vmatprep.subr.mxu0 0.0
        %6131 = vmatpush2.msra.mxu0 0.0
        %6132 = vmatprep.subr.mxu0 0.0
        %6133 = vmatpush2.msra.mxu0 0.0
        %6134 = vmatprep.subr.mxu0 0.0
        %6135 = vmatpush2.msra.mxu0 0.0
        %6136 = vmatprep.mubr.f32.mxu0 0.0
        %6137 = vmatmul.mubr.f32.gmra.mxu0 %v6055
        %v6138 = vpop.f32.mrf.mxu0
        %v6139 = vadd.f32 %v6037, %v6138
        %v6140 = vpop.f32.mrf.mxu0
        %v6141 = vadd.f32 %v6037, %v6140
        %6142 = vmatprep.mubr.f32.mxu0 0.0
        %6143 = vmatmul.mubr.f32.gmra.mxu0 %v6058
        %v6144 = vpop.f32.mrf.mxu0
        %v6145 = vadd.f32 %v6042, %v6144
        %v6146 = vpop.f32.mrf.mxu0
        %v6147 = vadd.f32 %v6042, %v6146
        %6148 = vmatprep.mubr.f32.mxu0 0.0
        %6149 = vmatmul.mubr.f32.gmra.mxu0 %v6061
        %v6150 = vpop.f32.mrf.mxu0
        %v6151 = vadd.f32 %v6047, %v6150
        %v6152 = vpop.f32.mrf.mxu0
        %v6153 = vadd.f32 %v6047, %v6152
        %6154 = vmatprep.mubr.f32.mxu0 0.0
        %6155 = vmatmul.mubr.f32.gmra.mxu0 %v6064
        %v6156 = vpop.f32.mrf.mxu0
        %v6157 = vadd.f32 %v6052, %v6156
        %v6158 = vpop.f32.mrf.mxu0
        %v6159 = vadd.f32 %v6052, %v6158
        %6160 = vdwg.mxu0
        %v6161 = vmax.f32 %v6139, 0.0
        %v6162 = vmax.f32 %v6141, 0.0
        %v6163 = vmax.f32 %v6145, 0.0
        %v6164 = vmax.f32 %v6147, 0.0
        %v6165 = vmax.f32 %v6151, 0.0
        %v6166 = vmax.f32 %v6153, 0.0
        %v6167 = vmax.f32 %v6157, 0.0
        %v6168 = vmax.f32 %v6159, 0.0
        %v6169 = vld [vmem:[#allocation11] ss:$8 sm:$0x3]
        %6170 = vrot.lane.b32.xlu0 %v6161, 17
        %v6171 = vpop.permute.xlu0 %6170
        %6172 = vrot.lane.b32.xlu0 %v6163, 17
        %v6173 = vpop.permute.xlu0 %6172
        %6174 = vrot.lane.b32.xlu0 %v6165, 17
        %v6175 = vpop.permute.xlu0 %6174
        %6176 = vrot.lane.b32.xlu0 %v6167, 17
        %v6177 = vpop.permute.xlu0 %6176
        %6178 = vrot.lane.b32.xlu0 %v6162, 17
        %v6179 = vpop.permute.xlu0 %6178
        %6180 = vrot.lane.b32.xlu0 %v6164, 17
        %v6181 = vpop.permute.xlu0 %6180
        %6182 = vrot.lane.b32.xlu0 %v6166, 17
        %v6183 = vpop.permute.xlu0 %6182
        %6184 = vrot.lane.b32.xlu0 %v6168, 17
        %v6185 = vpop.permute.xlu0 %6184
        %v6186 = vsel %vm1459, %v6171, %v6179
        %v6187 = vsel %vm1459, %v6173, %v6181
        %v6188 = vsel %vm1459, %v6175, %v6183
        %v6189 = vsel %vm1459, %v6177, %v6185
        %v6190 = vsel %vm1459, %v6179, %v6171
        %v6191 = vsel %vm1459, %v6181, %v6173
        %v6192 = vsel %vm1459, %v6183, %v6175
        %v6193 = vsel %vm1459, %v6185, %v6177
        %v6195 = vlaneseq
        %v6196 = vshrl.u32 %v6195, 7
        %v6197 = vsub.s32 0, %v6196
        %v6198 = vrot.slane %v6169, %v6197
        %v6199 = vlaneseq
        %v6200 = vshrl.u32 %v6199, 7
        %v6201 = vsub.s32 1, %v6200
        %v6202 = vrot.slane %v6169, %v6201
        %v6205 = vmul.f32 %v6198, %v6190
        %v6206 = vmul.f32 %v6202, %v6186
        %v6207 = vmul.f32 %v6198, %v6191
        %v6208 = vmul.f32 %v6202, %v6187
        %v6209 = vmul.f32 %v6198, %v6192
        %v6210 = vmul.f32 %v6202, %v6188
        %v6211 = vmul.f32 %v6198, %v6193
        %v6212 = vmul.f32 %v6202, %v6189
        %6213 = vst [vmem:[#allocation5] sm:$0xff] %v6205
        %6214 = vst [vmem:[#allocation5 + $0x8] sm:$0xff] %v6206
        %6215 = vst [vmem:[#allocation5 + $0x10] sm:$0xff] %v6207
        %6216 = vst [vmem:[#allocation5 + $0x18] sm:$0xff] %v6208
        %6217 = vst [vmem:[#allocation5 + $0x20] sm:$0xff] %v6209
        %6218 = vst [vmem:[#allocation5 + $0x28] sm:$0xff] %v6210
        %6219 = vst [vmem:[#allocation5 + $0x30] sm:$0xff] %v6211
        %6220 = vst [vmem:[#allocation5 + $0x38] sm:$0xff] %v6212
        %v6221 = vld [vmem:[%s1475] ss:$8 sm:$0x3]
        %6222 = vrot.lane.b32.xlu0 %v6161, 16
        %v6223 = vpop.permute.xlu0 %6222
        %6224 = vrot.lane.b32.xlu0 %v6163, 16
        %v6225 = vpop.permute.xlu0 %6224
        %6226 = vrot.lane.b32.xlu0 %v6165, 16
        %v6227 = vpop.permute.xlu0 %6226
        %6228 = vrot.lane.b32.xlu0 %v6167, 16
        %v6229 = vpop.permute.xlu0 %6228
        %6230 = vrot.lane.b32.xlu0 %v6162, 16
        %v6231 = vpop.permute.xlu0 %6230
        %6232 = vrot.lane.b32.xlu0 %v6164, 16
        %v6233 = vpop.permute.xlu0 %6232
        %6234 = vrot.lane.b32.xlu0 %v6166, 16
        %v6235 = vpop.permute.xlu0 %6234
        %6236 = vrot.lane.b32.xlu0 %v6168, 16
        %v6237 = vpop.permute.xlu0 %6236
        %v6238 = vsel %vm1477, %v6223, %v6231
        %v6239 = vsel %vm1477, %v6225, %v6233
        %v6240 = vsel %vm1477, %v6227, %v6235
        %v6241 = vsel %vm1477, %v6229, %v6237
        %v6242 = vsel %vm1477, %v6231, %v6223
        %v6243 = vsel %vm1477, %v6233, %v6225
        %v6244 = vsel %vm1477, %v6235, %v6227
        %v6245 = vsel %vm1477, %v6237, %v6229
        %v6247 = vlaneseq
        %v6248 = vshrl.u32 %v6247, 7
        %v6249 = vsub.s32 0, %v6248
        %v6250 = vrot.slane %v6221, %v6249
        %v6251 = vlaneseq
        %v6252 = vshrl.u32 %v6251, 7
        %v6253 = vsub.s32 1, %v6252
        %v6254 = vrot.slane %v6221, %v6253
        %v6257 = vmul.f32 %v6250, %v6242
        %v6258 = vmul.f32 %v6254, %v6238
        %v6259 = vmul.f32 %v6250, %v6243
        %v6260 = vmul.f32 %v6254, %v6239
        %v6261 = vmul.f32 %v6250, %v6244
        %v6262 = vmul.f32 %v6254, %v6240
        %v6263 = vmul.f32 %v6250, %v6245
        %v6264 = vmul.f32 %v6254, %v6241
        %6265 = vst [vmem:[#allocation5 + $0x40] sm:$0xff] %v6257
        %6266 = vst [vmem:[#allocation5 + $0x48] sm:$0xff] %v6258
        %6267 = vst [vmem:[#allocation5 + $0x50] sm:$0xff] %v6259
        %6268 = vst [vmem:[#allocation5 + $0x58] sm:$0xff] %v6260
        %6269 = vst [vmem:[#allocation5 + $0x60] sm:$0xff] %v6261
        %6270 = vst [vmem:[#allocation5 + $0x68] sm:$0xff] %v6262
        %6271 = vst [vmem:[#allocation5 + $0x70] sm:$0xff] %v6263
        %6272 = vst [vmem:[#allocation5 + $0x78] sm:$0xff] %v6264
        %v6273 = vld [vmem:[%s1499] ss:$8 sm:$0x3]
        %6274 = vrot.lane.b32.xlu0 %v6161, 15
        %v6275 = vpop.permute.xlu0 %6274
        %6276 = vrot.lane.b32.xlu0 %v6163, 15
        %v6277 = vpop.permute.xlu0 %6276
        %6278 = vrot.lane.b32.xlu0 %v6165, 15
        %v6279 = vpop.permute.xlu0 %6278
        %6280 = vrot.lane.b32.xlu0 %v6167, 15
        %v6281 = vpop.permute.xlu0 %6280
        %6282 = vrot.lane.b32.xlu0 %v6162, 15
        %v6283 = vpop.permute.xlu0 %6282
        %6284 = vrot.lane.b32.xlu0 %v6164, 15
        %v6285 = vpop.permute.xlu0 %6284
        %6286 = vrot.lane.b32.xlu0 %v6166, 15
        %v6287 = vpop.permute.xlu0 %6286
        %6288 = vrot.lane.b32.xlu0 %v6168, 15
        %v6289 = vpop.permute.xlu0 %6288
        %v6290 = vsel %vm1501, %v6275, %v6283
        %v6291 = vsel %vm1501, %v6277, %v6285
        %v6292 = vsel %vm1501, %v6279, %v6287
        %v6293 = vsel %vm1501, %v6281, %v6289
        %v6294 = vsel %vm1501, %v6283, %v6275
        %v6295 = vsel %vm1501, %v6285, %v6277
        %v6296 = vsel %vm1501, %v6287, %v6279
        %v6297 = vsel %vm1501, %v6289, %v6281
        %v6299 = vlaneseq
        %v6300 = vshrl.u32 %v6299, 7
        %v6301 = vsub.s32 0, %v6300
        %v6302 = vrot.slane %v6273, %v6301
        %v6303 = vlaneseq
        %v6304 = vshrl.u32 %v6303, 7
        %v6305 = vsub.s32 1, %v6304
        %v6306 = vrot.slane %v6273, %v6305
        %v6309 = vmul.f32 %v6302, %v6294
        %v6310 = vmul.f32 %v6306, %v6290
        %v6311 = vmul.f32 %v6302, %v6295
        %v6312 = vmul.f32 %v6306, %v6291
        %v6313 = vmul.f32 %v6302, %v6296
        %v6314 = vmul.f32 %v6306, %v6292
        %v6315 = vmul.f32 %v6302, %v6297
        %v6316 = vmul.f32 %v6306, %v6293
        %6317 = vst [vmem:[#allocation5 + $0x80] sm:$0xff] %v6309
        %6318 = vst [vmem:[#allocation5 + $0x88] sm:$0xff] %v6310
        %6319 = vst [vmem:[#allocation5 + $0x90] sm:$0xff] %v6311
        %6320 = vst [vmem:[#allocation5 + $0x98] sm:$0xff] %v6312
        %6321 = vst [vmem:[#allocation5 + $0xa0] sm:$0xff] %v6313
        %6322 = vst [vmem:[#allocation5 + $0xa8] sm:$0xff] %v6314
        %6323 = vst [vmem:[#allocation5 + $0xb0] sm:$0xff] %v6315
        %6324 = vst [vmem:[#allocation5 + $0xb8] sm:$0xff] %v6316
        %v6325 = vld [vmem:[%s1523] ss:$8 sm:$0x3]
        %6326 = vrot.lane.b32.xlu0 %v6161, 1
        %v6327 = vpop.permute.xlu0 %6326
        %6328 = vrot.lane.b32.xlu0 %v6163, 1
        %v6329 = vpop.permute.xlu0 %6328
        %6330 = vrot.lane.b32.xlu0 %v6165, 1
        %v6331 = vpop.permute.xlu0 %6330
        %6332 = vrot.lane.b32.xlu0 %v6167, 1
        %v6333 = vpop.permute.xlu0 %6332
        %6334 = vrot.lane.b32.xlu0 %v6162, 1
        %v6335 = vpop.permute.xlu0 %6334
        %6336 = vrot.lane.b32.xlu0 %v6164, 1
        %v6337 = vpop.permute.xlu0 %6336
        %6338 = vrot.lane.b32.xlu0 %v6166, 1
        %v6339 = vpop.permute.xlu0 %6338
        %6340 = vrot.lane.b32.xlu0 %v6168, 1
        %v6341 = vpop.permute.xlu0 %6340
        %v6342 = vsel %vm1525, %v6327, %v6335
        %v6343 = vsel %vm1525, %v6329, %v6337
        %v6344 = vsel %vm1525, %v6331, %v6339
        %v6345 = vsel %vm1525, %v6333, %v6341
        %v6346 = vsel %vm1525, %v6335, %v6327
        %v6347 = vsel %vm1525, %v6337, %v6329
        %v6348 = vsel %vm1525, %v6339, %v6331
        %v6349 = vsel %vm1525, %v6341, %v6333
        %v6351 = vlaneseq
        %v6352 = vshrl.u32 %v6351, 7
        %v6353 = vsub.s32 0, %v6352
        %v6354 = vrot.slane %v6325, %v6353
        %v6355 = vlaneseq
        %v6356 = vshrl.u32 %v6355, 7
        %v6357 = vsub.s32 1, %v6356
        %v6358 = vrot.slane %v6325, %v6357
        %v6361 = vmul.f32 %v6354, %v6346
        %v6362 = vmul.f32 %v6358, %v6342
        %v6363 = vmul.f32 %v6354, %v6347
        %v6364 = vmul.f32 %v6358, %v6343
        %v6365 = vmul.f32 %v6354, %v6348
        %v6366 = vmul.f32 %v6358, %v6344
        %v6367 = vmul.f32 %v6354, %v6349
        %v6368 = vmul.f32 %v6358, %v6345
        %6369 = vst [vmem:[#allocation5 + $0xc0] sm:$0xff] %v6361
        %6370 = vst [vmem:[#allocation5 + $0xc8] sm:$0xff] %v6362
        %6371 = vst [vmem:[#allocation5 + $0xd0] sm:$0xff] %v6363
        %6372 = vst [vmem:[#allocation5 + $0xd8] sm:$0xff] %v6364
        %6373 = vst [vmem:[#allocation5 + $0xe0] sm:$0xff] %v6365
        %6374 = vst [vmem:[#allocation5 + $0xe8] sm:$0xff] %v6366
        %6375 = vst [vmem:[#allocation5 + $0xf0] sm:$0xff] %v6367
        %6376 = vst [vmem:[#allocation5 + $0xf8] sm:$0xff] %v6368
        %6377 = vst [vmem:[#allocation5 + $0x100] sm:$0xff] %v6161
        %6378 = vst [vmem:[#allocation5 + $0x108] sm:$0xff] %v6162
        %6379 = vst [vmem:[#allocation5 + $0x110] sm:$0xff] %v6163
        %6380 = vst [vmem:[#allocation5 + $0x118] sm:$0xff] %v6164
        %6381 = vst [vmem:[#allocation5 + $0x120] sm:$0xff] %v6165
        %6382 = vst [vmem:[#allocation5 + $0x128] sm:$0xff] %v6166
        %6383 = vst [vmem:[#allocation5 + $0x130] sm:$0xff] %v6167
        %6384 = vst [vmem:[#allocation5 + $0x138] sm:$0xff] %v6168
        %v6385 = vld [vmem:[%s1549] ss:$8 sm:$0x3]
        %6386 = vrot.lane.b32.xlu0 %v6161, 127
        %v6387 = vpop.permute.xlu0 %6386
        %6388 = vrot.lane.b32.xlu0 %v6163, 127
        %v6389 = vpop.permute.xlu0 %6388
        %6390 = vrot.lane.b32.xlu0 %v6165, 127
        %v6391 = vpop.permute.xlu0 %6390
        %6392 = vrot.lane.b32.xlu0 %v6167, 127
        %v6393 = vpop.permute.xlu0 %6392
        %6394 = vrot.lane.b32.xlu0 %v6162, 127
        %v6395 = vpop.permute.xlu0 %6394
        %6396 = vrot.lane.b32.xlu0 %v6164, 127
        %v6397 = vpop.permute.xlu0 %6396
        %6398 = vrot.lane.b32.xlu0 %v6166, 127
        %v6399 = vpop.permute.xlu0 %6398
        %6400 = vrot.lane.b32.xlu0 %v6168, 127
        %v6401 = vpop.permute.xlu0 %6400
        %v6402 = vsel %vm1551, %v6387, %v6395
        %v6403 = vsel %vm1551, %v6389, %v6397
        %v6404 = vsel %vm1551, %v6391, %v6399
        %v6405 = vsel %vm1551, %v6393, %v6401
        %v6406 = vsel %vm1551, %v6395, %v6387
        %v6407 = vsel %vm1551, %v6397, %v6389
        %v6408 = vsel %vm1551, %v6399, %v6391
        %v6409 = vsel %vm1551, %v6401, %v6393
        %v6411 = vlaneseq
        %v6412 = vshrl.u32 %v6411, 7
        %v6413 = vsub.s32 0, %v6412
        %v6414 = vrot.slane %v6385, %v6413
        %v6415 = vlaneseq
        %v6416 = vshrl.u32 %v6415, 7
        %v6417 = vsub.s32 1, %v6416
        %v6418 = vrot.slane %v6385, %v6417
        %v6421 = vmul.f32 %v6414, %v6402
        %v6422 = vmul.f32 %v6418, %v6406
        %v6423 = vmul.f32 %v6414, %v6403
        %v6424 = vmul.f32 %v6418, %v6407
        %v6425 = vmul.f32 %v6414, %v6404
        %v6426 = vmul.f32 %v6418, %v6408
        %v6427 = vmul.f32 %v6414, %v6405
        %v6428 = vmul.f32 %v6418, %v6409
        %6429 = vst [vmem:[#allocation5 + $0x140] sm:$0xff] %v6421
        %6430 = vst [vmem:[#allocation5 + $0x148] sm:$0xff] %v6422
        %6431 = vst [vmem:[#allocation5 + $0x150] sm:$0xff] %v6423
        %6432 = vst [vmem:[#allocation5 + $0x158] sm:$0xff] %v6424
        %6433 = vst [vmem:[#allocation5 + $0x160] sm:$0xff] %v6425
        %6434 = vst [vmem:[#allocation5 + $0x168] sm:$0xff] %v6426
        %6435 = vst [vmem:[#allocation5 + $0x170] sm:$0xff] %v6427
        %6436 = vst [vmem:[#allocation5 + $0x178] sm:$0xff] %v6428
        %v6437 = vld [vmem:[%s1573] ss:$8 sm:$0x3]
        %6438 = vrot.lane.b32.xlu0 %v6161, 113
        %v6439 = vpop.permute.xlu0 %6438
        %6440 = vrot.lane.b32.xlu0 %v6163, 113
        %v6441 = vpop.permute.xlu0 %6440
        %6442 = vrot.lane.b32.xlu0 %v6165, 113
        %v6443 = vpop.permute.xlu0 %6442
        %6444 = vrot.lane.b32.xlu0 %v6167, 113
        %v6445 = vpop.permute.xlu0 %6444
        %6446 = vrot.lane.b32.xlu0 %v6162, 113
        %v6447 = vpop.permute.xlu0 %6446
        %6448 = vrot.lane.b32.xlu0 %v6164, 113
        %v6449 = vpop.permute.xlu0 %6448
        %6450 = vrot.lane.b32.xlu0 %v6166, 113
        %v6451 = vpop.permute.xlu0 %6450
        %6452 = vrot.lane.b32.xlu0 %v6168, 113
        %v6453 = vpop.permute.xlu0 %6452
        %v6454 = vsel %vm1575, %v6439, %v6447
        %v6455 = vsel %vm1575, %v6441, %v6449
        %v6456 = vsel %vm1575, %v6443, %v6451
        %v6457 = vsel %vm1575, %v6445, %v6453
        %v6458 = vsel %vm1575, %v6447, %v6439
        %v6459 = vsel %vm1575, %v6449, %v6441
        %v6460 = vsel %vm1575, %v6451, %v6443
        %v6461 = vsel %vm1575, %v6453, %v6445
        %v6463 = vlaneseq
        %v6464 = vshrl.u32 %v6463, 7
        %v6465 = vsub.s32 0, %v6464
        %v6466 = vrot.slane %v6437, %v6465
        %v6467 = vlaneseq
        %v6468 = vshrl.u32 %v6467, 7
        %v6469 = vsub.s32 1, %v6468
        %v6470 = vrot.slane %v6437, %v6469
        %v6473 = vmul.f32 %v6466, %v6454
        %v6474 = vmul.f32 %v6470, %v6458
        %v6475 = vmul.f32 %v6466, %v6455
        %v6476 = vmul.f32 %v6470, %v6459
        %v6477 = vmul.f32 %v6466, %v6456
        %v6478 = vmul.f32 %v6470, %v6460
        %v6479 = vmul.f32 %v6466, %v6457
        %v6480 = vmul.f32 %v6470, %v6461
        %6481 = vst [vmem:[#allocation5 + $0x180] sm:$0xff] %v6473
        %6482 = vst [vmem:[#allocation5 + $0x188] sm:$0xff] %v6474
        %6483 = vst [vmem:[#allocation5 + $0x190] sm:$0xff] %v6475
        %6484 = vst [vmem:[#allocation5 + $0x198] sm:$0xff] %v6476
        %6485 = vst [vmem:[#allocation5 + $0x1a0] sm:$0xff] %v6477
        %6486 = vst [vmem:[#allocation5 + $0x1a8] sm:$0xff] %v6478
        %6487 = vst [vmem:[#allocation5 + $0x1b0] sm:$0xff] %v6479
        %6488 = vst [vmem:[#allocation5 + $0x1b8] sm:$0xff] %v6480
        %v6489 = vld [vmem:[%s1597] ss:$8 sm:$0x3]
        %6490 = vrot.lane.b32.xlu0 %v6161, 112
        %v6491 = vpop.permute.xlu0 %6490
        %6492 = vrot.lane.b32.xlu0 %v6163, 112
        %v6493 = vpop.permute.xlu0 %6492
        %6494 = vrot.lane.b32.xlu0 %v6165, 112
        %v6495 = vpop.permute.xlu0 %6494
        %6496 = vrot.lane.b32.xlu0 %v6167, 112
        %v6497 = vpop.permute.xlu0 %6496
        %6498 = vrot.lane.b32.xlu0 %v6162, 112
        %v6499 = vpop.permute.xlu0 %6498
        %6500 = vrot.lane.b32.xlu0 %v6164, 112
        %v6501 = vpop.permute.xlu0 %6500
        %6502 = vrot.lane.b32.xlu0 %v6166, 112
        %v6503 = vpop.permute.xlu0 %6502
        %6504 = vrot.lane.b32.xlu0 %v6168, 112
        %v6505 = vpop.permute.xlu0 %6504
        %v6506 = vsel %vm1599, %v6491, %v6499
        %v6507 = vsel %vm1599, %v6493, %v6501
        %v6508 = vsel %vm1599, %v6495, %v6503
        %v6509 = vsel %vm1599, %v6497, %v6505
        %v6510 = vsel %vm1599, %v6499, %v6491
        %v6511 = vsel %vm1599, %v6501, %v6493
        %v6512 = vsel %vm1599, %v6503, %v6495
        %v6513 = vsel %vm1599, %v6505, %v6497
        %v6515 = vlaneseq
        %v6516 = vshrl.u32 %v6515, 7
        %v6517 = vsub.s32 0, %v6516
        %v6518 = vrot.slane %v6489, %v6517
        %v6519 = vlaneseq
        %v6520 = vshrl.u32 %v6519, 7
        %v6521 = vsub.s32 1, %v6520
        %v6522 = vrot.slane %v6489, %v6521
        %v6525 = vmul.f32 %v6518, %v6506
        %v6526 = vmul.f32 %v6522, %v6510
        %v6527 = vmul.f32 %v6518, %v6507
        %v6528 = vmul.f32 %v6522, %v6511
        %v6529 = vmul.f32 %v6518, %v6508
        %v6530 = vmul.f32 %v6522, %v6512
        %v6531 = vmul.f32 %v6518, %v6509
        %v6532 = vmul.f32 %v6522, %v6513
        %6533 = vst [vmem:[#allocation5 + $0x1c0] sm:$0xff] %v6525
        %6534 = vst [vmem:[#allocation5 + $0x1c8] sm:$0xff] %v6526
        %6535 = vst [vmem:[#allocation5 + $0x1d0] sm:$0xff] %v6527
        %6536 = vst [vmem:[#allocation5 + $0x1d8] sm:$0xff] %v6528
        %6537 = vst [vmem:[#allocation5 + $0x1e0] sm:$0xff] %v6529
        %6538 = vst [vmem:[#allocation5 + $0x1e8] sm:$0xff] %v6530
        %6539 = vst [vmem:[#allocation5 + $0x1f0] sm:$0xff] %v6531
        %6540 = vst [vmem:[#allocation5 + $0x1f8] sm:$0xff] %v6532
        %v6541 = vld [vmem:[%s1621] ss:$8 sm:$0x3]
        %6542 = vrot.lane.b32.xlu0 %v6161, 111
        %v6543 = vpop.permute.xlu0 %6542
        %6544 = vrot.lane.b32.xlu0 %v6163, 111
        %v6545 = vpop.permute.xlu0 %6544
        %6546 = vrot.lane.b32.xlu0 %v6165, 111
        %v6547 = vpop.permute.xlu0 %6546
        %6548 = vrot.lane.b32.xlu0 %v6167, 111
        %v6549 = vpop.permute.xlu0 %6548
        %6550 = vrot.lane.b32.xlu0 %v6162, 111
        %v6551 = vpop.permute.xlu0 %6550
        %6552 = vrot.lane.b32.xlu0 %v6164, 111
        %v6553 = vpop.permute.xlu0 %6552
        %6554 = vrot.lane.b32.xlu0 %v6166, 111
        %v6555 = vpop.permute.xlu0 %6554
        %6556 = vrot.lane.b32.xlu0 %v6168, 111
        %v6557 = vpop.permute.xlu0 %6556
        %v6558 = vsel %vm1623, %v6543, %v6551
        %v6559 = vsel %vm1623, %v6545, %v6553
        %v6560 = vsel %vm1623, %v6547, %v6555
        %v6561 = vsel %vm1623, %v6549, %v6557
        %v6562 = vsel %vm1623, %v6551, %v6543
        %v6563 = vsel %vm1623, %v6553, %v6545
        %v6564 = vsel %vm1623, %v6555, %v6547
        %v6565 = vsel %vm1623, %v6557, %v6549
        %v6567 = vlaneseq
        %v6568 = vshrl.u32 %v6567, 7
        %v6569 = vsub.s32 0, %v6568
        %v6570 = vrot.slane %v6541, %v6569
        %v6571 = vlaneseq
        %v6572 = vshrl.u32 %v6571, 7
        %v6573 = vsub.s32 1, %v6572
        %v6574 = vrot.slane %v6541, %v6573
        %v6577 = vmul.f32 %v6570, %v6558
        %v6578 = vmul.f32 %v6574, %v6562
        %v6579 = vmul.f32 %v6570, %v6559
        %v6580 = vmul.f32 %v6574, %v6563
        %v6581 = vmul.f32 %v6570, %v6560
        %v6582 = vmul.f32 %v6574, %v6564
        %v6583 = vmul.f32 %v6570, %v6561
        %v6584 = vmul.f32 %v6574, %v6565
        %6585 = vst [vmem:[#allocation5 + $0x200] sm:$0xff] %v6577
        %6586 = vst [vmem:[#allocation5 + $0x208] sm:$0xff] %v6578
        %6587 = vst [vmem:[#allocation5 + $0x210] sm:$0xff] %v6579
        %6588 = vst [vmem:[#allocation5 + $0x218] sm:$0xff] %v6580
        %6589 = vst [vmem:[#allocation5 + $0x220] sm:$0xff] %v6581
        %6590 = vst [vmem:[#allocation5 + $0x228] sm:$0xff] %v6582
        %6591 = vst [vmem:[#allocation5 + $0x230] sm:$0xff] %v6583
        %6592 = vst [vmem:[#allocation5 + $0x238] sm:$0xff] %v6584
        %s6593 = scalar_lea.vmem %s11, 12
        %v6594 = vld [vmem:[%s6593] sm:$0x3f]
        %v6595 = vld [vmem:[#allocation5] sm:$0xff]
        %v6596 = vld [vmem:[#allocation5 + $0x8] sm:$0xff]
        %v6597 = vld [vmem:[#allocation5 + $0x10] sm:$0xff]
        %v6598 = vld [vmem:[#allocation5 + $0x18] sm:$0xff]
        %v6599 = vld [vmem:[#allocation5 + $0x20] sm:$0xff]
        %v6600 = vld [vmem:[#allocation5 + $0x28] sm:$0xff]
        %v6601 = vld [vmem:[#allocation5 + $0x30] sm:$0xff]
        %v6602 = vld [vmem:[#allocation5 + $0x38] sm:$0xff]
        %v6603 = vld [vmem:[#allocation5 + $0x40] sm:$0xff]
        %v6604 = vld [vmem:[#allocation5 + $0x48] sm:$0xff]
        %v6605 = vld [vmem:[#allocation5 + $0x50] sm:$0xff]
        %v6606 = vld [vmem:[#allocation5 + $0x58] sm:$0xff]
        %v6607 = vld [vmem:[#allocation5 + $0x60] sm:$0xff]
        %v6608 = vld [vmem:[#allocation5 + $0x68] sm:$0xff]
        %v6609 = vld [vmem:[#allocation5 + $0x70] sm:$0xff]
        %v6610 = vld [vmem:[#allocation5 + $0x78] sm:$0xff]
        %v6611 = vld [vmem:[#allocation5 + $0x80] sm:$0xff]
        %v6612 = vld [vmem:[#allocation5 + $0x88] sm:$0xff]
        %v6613 = vld [vmem:[#allocation5 + $0x90] sm:$0xff]
        %v6614 = vld [vmem:[#allocation5 + $0x98] sm:$0xff]
        %v6615 = vld [vmem:[#allocation5 + $0xa0] sm:$0xff]
        %v6616 = vld [vmem:[#allocation5 + $0xa8] sm:$0xff]
        %v6617 = vld [vmem:[#allocation5 + $0xb0] sm:$0xff]
        %v6618 = vld [vmem:[#allocation5 + $0xb8] sm:$0xff]
        %v6619 = vld [vmem:[#allocation5 + $0xc0] sm:$0xff]
        %v6620 = vld [vmem:[#allocation5 + $0xc8] sm:$0xff]
        %v6621 = vld [vmem:[#allocation5 + $0xd0] sm:$0xff]
        %v6622 = vld [vmem:[#allocation5 + $0xd8] sm:$0xff]
        %v6623 = vld [vmem:[#allocation5 + $0xe0] sm:$0xff]
        %v6624 = vld [vmem:[#allocation5 + $0xe8] sm:$0xff]
        %v6625 = vld [vmem:[#allocation5 + $0xf0] sm:$0xff]
        %v6626 = vld [vmem:[#allocation5 + $0xf8] sm:$0xff]
        %v6627 = vld [vmem:[#allocation5 + $0x100] sm:$0xff]
        %v6628 = vld [vmem:[#allocation5 + $0x108] sm:$0xff]
        %v6629 = vld [vmem:[#allocation5 + $0x110] sm:$0xff]
        %v6630 = vld [vmem:[#allocation5 + $0x118] sm:$0xff]
        %v6631 = vld [vmem:[#allocation5 + $0x120] sm:$0xff]
        %v6632 = vld [vmem:[#allocation5 + $0x128] sm:$0xff]
        %v6633 = vld [vmem:[#allocation5 + $0x130] sm:$0xff]
        %v6634 = vld [vmem:[#allocation5 + $0x138] sm:$0xff]
        %v6635 = vld [vmem:[#allocation5 + $0x140] sm:$0xff]
        %v6636 = vld [vmem:[#allocation5 + $0x148] sm:$0xff]
        %v6637 = vld [vmem:[#allocation5 + $0x150] sm:$0xff]
        %v6638 = vld [vmem:[#allocation5 + $0x158] sm:$0xff]
        %v6639 = vld [vmem:[#allocation5 + $0x160] sm:$0xff]
        %v6640 = vld [vmem:[#allocation5 + $0x168] sm:$0xff]
        %v6641 = vld [vmem:[#allocation5 + $0x170] sm:$0xff]
        %v6642 = vld [vmem:[#allocation5 + $0x178] sm:$0xff]
        %v6643 = vld [vmem:[#allocation5 + $0x180] sm:$0xff]
        %v6644 = vld [vmem:[#allocation5 + $0x188] sm:$0xff]
        %v6645 = vld [vmem:[#allocation5 + $0x190] sm:$0xff]
        %v6646 = vld [vmem:[#allocation5 + $0x198] sm:$0xff]
        %v6647 = vld [vmem:[#allocation5 + $0x1a0] sm:$0xff]
        %v6648 = vld [vmem:[#allocation5 + $0x1a8] sm:$0xff]
        %v6649 = vld [vmem:[#allocation5 + $0x1b0] sm:$0xff]
        %v6650 = vld [vmem:[#allocation5 + $0x1b8] sm:$0xff]
        %v6651 = vld [vmem:[#allocation5 + $0x1c0] sm:$0xff]
        %v6652 = vld [vmem:[#allocation5 + $0x1c8] sm:$0xff]
        %v6653 = vld [vmem:[#allocation5 + $0x1d0] sm:$0xff]
        %v6654 = vld [vmem:[#allocation5 + $0x1d8] sm:$0xff]
        %v6655 = vld [vmem:[#allocation5 + $0x1e0] sm:$0xff]
        %v6656 = vld [vmem:[#allocation5 + $0x1e8] sm:$0xff]
        %v6657 = vld [vmem:[#allocation5 + $0x1f0] sm:$0xff]
        %v6658 = vld [vmem:[#allocation5 + $0x1f8] sm:$0xff]
        %v6659 = vld [vmem:[#allocation5 + $0x200] sm:$0xff]
        %v6660 = vld [vmem:[#allocation5 + $0x208] sm:$0xff]
        %v6661 = vld [vmem:[#allocation5 + $0x210] sm:$0xff]
        %v6662 = vld [vmem:[#allocation5 + $0x218] sm:$0xff]
        %v6663 = vld [vmem:[#allocation5 + $0x220] sm:$0xff]
        %v6664 = vld [vmem:[#allocation5 + $0x228] sm:$0xff]
        %v6665 = vld [vmem:[#allocation5 + $0x230] sm:$0xff]
        %v6666 = vld [vmem:[#allocation5 + $0x238] sm:$0xff]
        %v6668 = vcombine.high %v6594, %v6594
        %v6670 = vunpack.c.l.s4 1983009808
        %v6671 = vunpack.c.0.s8 %v6670
        %v6672 = vlaneseq
        %v6673 = vshrl.u32 %v6672, 7
        %v6674 = vsub.s32 %v6671, %v6673
        %v6675 = vrot.slane %v6594, %v6674
        %v6677 = vunpack.c.l.s4 1983009808
        %v6678 = vunpack.c.0.s8 %v6677
        %v6679 = vlaneseq
        %v6680 = vshrl.u32 %v6679, 7
        %v6681 = vsub.s32 %v6678, %v6680
        %v6682 = vrot.slane %v6668, %v6681
        %v6683 = vcombine.high %v6675, %v6675
        %v6686 = vsel %vm1242, %v6682, 0
        %6688 = vmatprep.subr.mxu0 %v6626
        %6689 = vmatpush1.msra.mxu0 %v6625
        %6690 = vmatprep.subr.mxu0 %v6624
        %6691 = vmatpush1.msra.mxu0 %v6623
        %6692 = vmatprep.subr.mxu0 %v6622
        %6693 = vmatpush1.msra.mxu0 %v6621
        %6694 = vmatprep.subr.mxu0 %v6620
        %6695 = vmatpush1.msra.mxu0 %v6619
        %6696 = vmatprep.subr.mxu0 %v6618
        %6697 = vmatpush1.msra.mxu0 %v6617
        %6698 = vmatprep.subr.mxu0 %v6616
        %6699 = vmatpush1.msra.mxu0 %v6615
        %6700 = vmatprep.subr.mxu0 %v6614
        %6701 = vmatpush1.msra.mxu0 %v6613
        %6702 = vmatprep.subr.mxu0 %v6612
        %6703 = vmatpush1.msra.mxu0 %v6611
        %6704 = vmatprep.subr.mxu0 %v6610
        %6705 = vmatpush1.msra.mxu0 %v6609
        %6706 = vmatprep.subr.mxu0 %v6608
        %6707 = vmatpush1.msra.mxu0 %v6607
        %6708 = vmatprep.subr.mxu0 %v6606
        %6709 = vmatpush1.msra.mxu0 %v6605
        %6710 = vmatprep.subr.mxu0 %v6604
        %6711 = vmatpush1.msra.mxu0 %v6603
        %6712 = vmatprep.subr.mxu0 %v6602
        %6713 = vmatpush1.msra.mxu0 %v6601
        %6714 = vmatprep.subr.mxu0 %v6600
        %6715 = vmatpush1.msra.mxu0 %v6599
        %6716 = vmatprep.subr.mxu0 %v6598
        %6717 = vmatpush1.msra.mxu0 %v6597
        %6718 = vmatprep.subr.mxu0 %v6596
        %6719 = vmatpush1.msra.mxu0 %v6595
        %6720 = vmatprep.subr.mxu0 %v6658
        %6721 = vmatpush2.msra.mxu0 %v6657
        %6722 = vmatprep.subr.mxu0 %v6656
        %6723 = vmatpush2.msra.mxu0 %v6655
        %6724 = vmatprep.subr.mxu0 %v6654
        %6725 = vmatpush2.msra.mxu0 %v6653
        %6726 = vmatprep.subr.mxu0 %v6652
        %6727 = vmatpush2.msra.mxu0 %v6651
        %6728 = vmatprep.subr.mxu0 %v6650
        %6729 = vmatpush2.msra.mxu0 %v6649
        %6730 = vmatprep.subr.mxu0 %v6648
        %6731 = vmatpush2.msra.mxu0 %v6647
        %6732 = vmatprep.subr.mxu0 %v6646
        %6733 = vmatpush2.msra.mxu0 %v6645
        %6734 = vmatprep.subr.mxu0 %v6644
        %6735 = vmatpush2.msra.mxu0 %v6643
        %6736 = vmatprep.subr.mxu0 %v6642
        %6737 = vmatpush2.msra.mxu0 %v6641
        %6738 = vmatprep.subr.mxu0 %v6640
        %6739 = vmatpush2.msra.mxu0 %v6639
        %6740 = vmatprep.subr.mxu0 %v6638
        %6741 = vmatpush2.msra.mxu0 %v6637
        %6742 = vmatprep.subr.mxu0 %v6636
        %6743 = vmatpush2.msra.mxu0 %v6635
        %6744 = vmatprep.subr.mxu0 %v6634
        %6745 = vmatpush2.msra.mxu0 %v6633
        %6746 = vmatprep.subr.mxu0 %v6632
        %6747 = vmatpush2.msra.mxu0 %v6631
        %6748 = vmatprep.subr.mxu0 %v6630
        %6749 = vmatpush2.msra.mxu0 %v6629
        %6750 = vmatprep.subr.mxu0 %v6628
        %6751 = vmatpush2.msra.mxu0 %v6627
        %6752 = vmatprep.mubr.f32.mxu0 %v6683
        %6753 = vmatmul.mubr.f32.gmra.mxu0 %v6675
        %v6754 = vpop.f32.mrf.mxu0
        %v6755 = vadd.f32 0.0, %v6754
        %v6756 = vpop.f32.mrf.mxu0
        %v6757 = vadd.f32 0.0, %v6756
        %6758 = vdwg.mxu0
        %6759 = vmatprep.subr.mxu0 0.0
        %6760 = vmatpush1.msra.mxu0 0.0
        %6761 = vmatprep.subr.mxu0 0.0
        %6762 = vmatpush1.msra.mxu0 0.0
        %6763 = vmatprep.subr.mxu0 0.0
        %6764 = vmatpush1.msra.mxu0 0.0
        %6765 = vmatprep.subr.mxu0 0.0
        %6766 = vmatpush1.msra.mxu0 0.0
        %6767 = vmatprep.subr.mxu0 0.0
        %6768 = vmatpush1.msra.mxu0 0.0
        %6769 = vmatprep.subr.mxu0 0.0
        %6770 = vmatpush1.msra.mxu0 0.0
        %6771 = vmatprep.subr.mxu0 0.0
        %6772 = vmatpush1.msra.mxu0 0.0
        %6773 = vmatprep.subr.mxu0 0.0
        %6774 = vmatpush1.msra.mxu0 0.0
        %6775 = vmatprep.subr.mxu0 0.0
        %6776 = vmatpush1.msra.mxu0 0.0
        %6777 = vmatprep.subr.mxu0 0.0
        %6778 = vmatpush1.msra.mxu0 0.0
        %6779 = vmatprep.subr.mxu0 0.0
        %6780 = vmatpush1.msra.mxu0 0.0
        %6781 = vmatprep.subr.mxu0 0.0
        %6782 = vmatpush1.msra.mxu0 0.0
        %6783 = vmatprep.subr.mxu0 %v6666
        %6784 = vmatpush1.msra.mxu0 %v6665
        %6785 = vmatprep.subr.mxu0 %v6664
        %6786 = vmatpush1.msra.mxu0 %v6663
        %6787 = vmatprep.subr.mxu0 %v6662
        %6788 = vmatpush1.msra.mxu0 %v6661
        %6789 = vmatprep.subr.mxu0 %v6660
        %6790 = vmatpush1.msra.mxu0 %v6659
        %6791 = vmatprep.subr.mxu0 0.0
        %6792 = vmatpush2.msra.mxu0 0.0
        %6793 = vmatprep.subr.mxu0 0.0
        %6794 = vmatpush2.msra.mxu0 0.0
        %6795 = vmatprep.subr.mxu0 0.0
        %6796 = vmatpush2.msra.mxu0 0.0
        %6797 = vmatprep.subr.mxu0 0.0
        %6798 = vmatpush2.msra.mxu0 0.0
        %6799 = vmatprep.subr.mxu0 0.0
        %6800 = vmatpush2.msra.mxu0 0.0
        %6801 = vmatprep.subr.mxu0 0.0
        %6802 = vmatpush2.msra.mxu0 0.0
        %6803 = vmatprep.subr.mxu0 0.0
        %6804 = vmatpush2.msra.mxu0 0.0
        %6805 = vmatprep.subr.mxu0 0.0
        %6806 = vmatpush2.msra.mxu0 0.0
        %6807 = vmatprep.subr.mxu0 0.0
        %6808 = vmatpush2.msra.mxu0 0.0
        %6809 = vmatprep.subr.mxu0 0.0
        %6810 = vmatpush2.msra.mxu0 0.0
        %6811 = vmatprep.subr.mxu0 0.0
        %6812 = vmatpush2.msra.mxu0 0.0
        %6813 = vmatprep.subr.mxu0 0.0
        %6814 = vmatpush2.msra.mxu0 0.0
        %6815 = vmatprep.subr.mxu0 0.0
        %6816 = vmatpush2.msra.mxu0 0.0
        %6817 = vmatprep.subr.mxu0 0.0
        %6818 = vmatpush2.msra.mxu0 0.0
        %6819 = vmatprep.subr.mxu0 0.0
        %6820 = vmatpush2.msra.mxu0 0.0
        %6821 = vmatprep.subr.mxu0 0.0
        %6822 = vmatpush2.msra.mxu0 0.0
        %6823 = vmatprep.mubr.f32.mxu0 0.0
        %6824 = vmatmul.mubr.f32.gmra.mxu0 %v6686
        %v6825 = vpop.f32.mrf.mxu0
        %v6826 = vadd.f32 %v6755, %v6825
        %v6827 = vpop.f32.mrf.mxu0
        %v6828 = vadd.f32 %v6757, %v6827
        %6829 = vdwg.mxu0
        %v6830 = vadd.f32 %v4776, %v6826
        %v6831 = vadd.f32 %v4777, %v6828
        %s6832 = scalar_lea.vmem [#allocation20], 4
        %v6833 = vld [vmem:[%s6832] sm:$0x3]
        %6835 = vset.pattern.permute.xlu0 0
        %6836 = vperm.xlu0 %6835, %v6833
        %v6837 = vpop.permute.xlu0 %6836
        %v6839 = vadd.f32 %v6830, %v6837
        %v6840 = vadd.f32 %v6831, %v6837
        %v6843 = vcombine.low %v6839, %v6840
        %v6845 = vunpack.c.l.s4 1966171168
        %v6846 = vunpack.c.0.s8 %v6845
        %v6847 = vlaneseq
        %v6848 = vshrl.u32 %v6847, 7
        %v6849 = vsub.s32 %v6846, %v6848
        %v6850 = vrot.slane %v6843, %v6849
        %v6852 = vunpack.c.l.s4 1966171168
        %v6853 = vunpack.c.0.s8 %v6852
        %v6854 = vlaneseq
        %v6855 = vshrl.u32 %v6854, 7
        %v6856 = vsub.s32 %v6853, %v6855
        %v6857 = vrot.slane %v6850, %v6856
        %6859 = vst.msk [vmem:[%s578] sm:$0x3] %vm1668, %v6857
        %p6860 = scmp.lt.s32.totalorder %s30, 1
        %s6861 = scalar_select %p6860, %s30, 1
        %s6862 = smul.addr %s6861, 2
        %s6863 = scalar_lea.vmem %s13, %s6862
        // Predicated region
        $region113: #{lpd_forward.1} parent=71 // pred_check
          %p6864 = pneg %p326
        $region114: #{lpd_forward.1} parent=71 // pred_check_branch
          %6866 = sbr.rel (%p6864) target = $region116
        $region115: #{lpd_forward.1} parent=71 // pred_region
          _
        $region116: #{lpd_forward.1} parent=71 // pred_fallthru
          _
      $region72: #{lpd_forward.1} parent=5 // pred_fallthru
        _
      %p6867 = scmp.le.s32.totalorder 2, %s25
      // Predicated region
      $region117: #{lpd_forward.1} parent=5 // pred_check
        %p6868 = pneg %p6867
      $region118: #{lpd_forward.1} parent=5 // pred_check_branch
        %6870 = sbr.rel (%p6868) target = $region120
      $region119: #{lpd_forward.1} parent=5 // pred_region
        %s6871 = ssub.s32 %s25, 2
        // Predicated region
        $region121: #{lpd_forward.1} parent=119 // pred_check
          %p6872 = pneg %p332
        $region122: #{lpd_forward.1} parent=119 // pred_check_branch
          %6874 = sbr.rel (%p6872) target = $region124
        $region123: #{lpd_forward.1} parent=119 // pred_region
          %p6875 = scmp.lt.s32.totalorder %s31, 1
          %s6876 = scalar_select %p6875, %s31, 1
          %s6877 = smul.addr %s6876, 2
          %s6878 = scalar_lea.vmem %s13, %s6877
        $region124: #{lpd_forward.1} parent=119 // pred_fallthru
          _
      $region120: #{lpd_forward.1} parent=5 // pred_fallthru
        _
    $region6: #{lpd_forward.1} parent=1 // loop_footer
      %s29 = sadd.s32 1, %s25
    $region7: #{lpd_forward.1} parent=1 // loop_footer_branch
      %24 = sbr.rel target = $region3
    $region8: #{lpd_forward.1} parent=1 // loop_exit
      _
    %6879 = vsyncpa [#allocation7], 1
    %s6880 = scalar_lea.sflag [#allocation7], 1
    %6881 = vsyncpa %s6880, 1
    %6882 = vsyncpa [#allocation9], 1
    %6883 = vsyncpa [#allocation12], 1
    %6884 = vsyncpa [#allocation15], 1
    %6885 = vsyncpa [#allocation18], 1
    %6886 = vsyncpa [#allocation21], 1

</llo_original>
